<compile_context>
chip_gen: v5e
topology: v5e:2x2
jax: 0.10.0
libtpu: 0.0.40
codegen_flags: <defaults>
</compile_context>

<pallas_src>
import functools
import math

import numpy as np
import jax
import jax.numpy as jnp
from jax import lax
from jax.experimental import pallas as pl
from jax.experimental.pallas import tpu as pltpu

LANE = 128        # TPU lane width
CTILE = 16        # bf16 sublane tile; channel counts are padded to a multiple of this


def _cpad(c):
    return max(CTILE, ((c + CTILE - 1) // CTILE) * CTILE)


# ----------------------------------------------------------------------------
# Flat padded-grid geometry (host side, static)
# ----------------------------------------------------------------------------
def _level_dims(H, W):
    """P  = (H+2)*(W+2) flat pixel count (pixels live on the LANE axis),
       Wp = padded row width,
       E  = halo lanes on each side (multiple of 128, >= Wp+1) so every 3x3 tap shift
            is a static, in-bounds lane slice that reads zeros outside the grid."""
    Hp, Wp = H + 2, W + 2
    P = Hp * Wp
    E = ((Wp + 1 + LANE - 1) // LANE) * LANE
    return P, Wp, E


def _make_mask(H, W):
    """(1, P) 0/1 mask: 1 at interior pixels of the padded grid, 0 on the border."""
    Hp, Wp = H + 2, W + 2
    m = np.zeros((Hp, Wp), np.float32)
    m[1:H + 1, 1:W + 1] = 1.0
    return jnp.asarray(m.reshape(1, Hp * Wp))


def _make_pool_gather(H, W):
    """(P_fine, P_coarse) 0/1 matrix: coarse interior (i+1,j+1) <- fine anchor (2i+1,2j+1)."""
    Hp, Wp = H + 2, W + 2
    Ho, Wo = H // 2, W // 2
    Hop, Wop = Ho + 2, Wo + 2
    g = np.zeros((Hp * Wp, Hop * Wop), np.float32)
    for i in range(Ho):
        for j in range(Wo):
            g[(2 * i + 1) * Wp + (2 * j + 1), (i + 1) * Wop + (j + 1)] = 1.0
    return jnp.asarray(g, dtype=jnp.bfloat16)   # 0/1 is exact in bf16


def _make_dilate_scatter(Hc, Wc):
    """(P_coarse, P_fine) 0/1 matrix: coarse interior (i+1,j+1) -> fine (2i+1,2j+1)."""
    Hp, Wp = Hc + 2, Wc + 2
    Hf, Wf = 2 * Hc + 2, 2 * Wc + 2
    g = np.zeros((Hp * Wp, Hf * Wf), np.float32)
    for i in range(Hc):
        for j in range(Wc):
            g[(i + 1) * Wp + (j + 1), (2 * i + 1) * Wf + (2 * j + 1)] = 1.0
    return jnp.asarray(g, dtype=jnp.bfloat16)


def _const_index_map(nd):
    return lambda n: (0,) * nd


# ----------------------------------------------------------------------------
# The fused UNet kernel (one grid step == one image)
# ----------------------------------------------------------------------------
def _unet_kernel(x_ref,
                 w_enc1, s_enc1, w_enc2, s_enc2, w_enc3, s_enc3, w_bneck, s_bneck,
                 w_up3, s_up3, w_dec3, s_dec3,
                 w_up2, s_up2, w_dec2, s_dec2,
                 w_up1, s_up1, w_dec1, s_dec1,
                 w_out, s_out,
                 mk1, mk2, mk3, mk4,
                 gp1, gp2, gp3,
                 gd3, gd2, gd1,
                 out_ref,
                 b_enc1, b_p1, b_enc2, b_p2, b_enc3, b_p3, b_bneck,
                 b_dil3, b_up3, b_dec3, b_dil2, b_up2, b_dec2,
                 b_dil1, b_up1, b_dec1,
                 *, dims):
    (P1, W1, E1), (P2, W2, E2), (P3, W3, E3), (P4, W4, E4) = dims

    # Zero only the halo lanes.  Interiors are fully overwritten before being read
    # within this grid step, so full clears are unnecessary.  Done every step so the
    # batch grid axis can stay "parallel" (megacore-safe).
    for buf, e, p in ((b_enc1, E1, P1), (b_p1, E2, P2), (b_enc2, E2, P2),
                      (b_p2, E3, P3), (b_enc3, E3, P3), (b_p3, E4, P4),
                      (b_bneck, E4, P4),
                      (b_dil3, E3, P3), (b_up3, E3, P3), (b_dec3, E3, P3),
                      (b_dil2, E2, P2), (b_up2, E2, P2), (b_dec2, E2, P2),
                      (b_dil1, E1, P1), (b_up1, E1, P1), (b_dec1, E1, P1)):
        ch = buf.shape[0]
        buf[:, :e] = jnp.zeros((ch, e), buf.dtype)
        buf[:, e + p:] = jnp.zeros((ch, buf.shape[1] - e - p), buf.dtype)

    def conv3x3(sources, w_ref, s_ref, mk_ref, relu, P, Wp):
        """Folded 3x3 'same' conv: one (Cout, 9*sumCin) x (9*sumCin, P) MXU matmul.
        `sources` = [(src_ref, halo)] ; two sources fold the channel-concat skip."""
        pieces = []
        for src_ref, e_src in sources:
            for t in range(9):
                off = (t // 3 - 1) * Wp + (t % 3 - 1)
                pieces.append(src_ref[:, pl.ds(e_src + off, P)])
        xk = jnp.concatenate(pieces, axis=0)                        # (K, P) bf16
        y = jnp.dot(w_ref[...], xk, preferred_element_type=jnp.float32)
        ss = s_ref[...]
        y = y * ss[:, 0:1] + ss[:, 1:2]                             # BN(+bias) affine
        if relu:
            y = jnp.maximum(y, 0.0)
        return y * mk_ref[...]                                      # zero pad border

    def store(dst_ref, e, P, y):
        dst_ref[:, pl.ds(e, P)] = y.astype(dst_ref.dtype)

    def pool2x2(src_ref, e, P_in, Wp_in, g_ref, dst_ref, e_out, P_out):
        a = src_ref[:, pl.ds(e, P_in)]
        b = src_ref[:, pl.ds(e + 1, P_in)]
        c = src_ref[:, pl.ds(e + Wp_in, P_in)]
        d = src_ref[:, pl.ds(e + Wp_in + 1, P_in)]
        m = jnp.maximum(jnp.maximum(a, b), jnp.maximum(c, d))       # bf16, exact
        # TODO(synk): replace this 0/1 gather matmul with strided per-row copies at
        #             large image sizes (matrix is O(P_in*P_out) and won't fit v7x VMEM).
        y = jnp.dot(m, g_ref[...], preferred_element_type=jnp.float32)
        store(dst_ref, e_out, P_out, y)

    def dilate2x(src_ref, e, P_in, g_ref, dst_ref, e_out, P_out):
        x = src_ref[:, pl.ds(e, P_in)]
        y = jnp.dot(x, g_ref[...], preferred_element_type=jnp.float32)
        store(dst_ref, e_out, P_out, y)

    # ------------------------------- encoder --------------------------------
    store(b_enc1, E1, P1, conv3x3([(x_ref, E1)], w_enc1, s_enc1, mk1, True, P1, W1))
    pool2x2(b_enc1, E1, P1, W1, gp1, b_p1, E2, P2)
    store(b_enc2, E2, P2, conv3x3([(b_p1, E2)], w_enc2, s_enc2, mk2, True, P2, W2))
    pool2x2(b_enc2, E2, P2, W2, gp2, b_p2, E3, P3)
    store(b_enc3, E3, P3, conv3x3([(b_p2, E3)], w_enc3, s_enc3, mk3, True, P3, W3))
    pool2x2(b_enc3, E3, P3, W3, gp3, b_p3, E4, P4)
    store(b_bneck, E4, P4, conv3x3([(b_p3, E4)], w_bneck, s_bneck, mk4, True, P4, W4))

    # ------------------------------- decoder --------------------------------
    # upconvN: ConvTranspose2d(k3, s2, p1, outpad1) == stride-2 zero-dilate + 3x3 conv
    dilate2x(b_bneck, E4, P4, gd3, b_dil3, E3, P3)
    store(b_up3, E3, P3, conv3x3([(b_dil3, E3)], w_up3, s_up3, mk3, False, P3, W3))
    store(b_dec3, E3, P3, conv3x3([(b_up3, E3), (b_enc3, E3)],
                                  w_dec3, s_dec3, mk3, True, P3, W3))

    dilate2x(b_dec3, E3, P3, gd2, b_dil2, E2, P2)
    store(b_up2, E2, P2, conv3x3([(b_dil2, E2)], w_up2, s_up2, mk2, False, P2, W2))
    store(b_dec2, E2, P2, conv3x3([(b_up2, E2), (b_enc2, E2)],
                                  w_dec2, s_dec2, mk2, True, P2, W2))

    dilate2x(b_dec2, E2, P2, gd1, b_dil1, E1, P1)
    store(b_up1, E1, P1, conv3x3([(b_dil1, E1)], w_up1, s_up1, mk1, False, P1, W1))
    store(b_dec1, E1, P1, conv3x3([(b_up1, E1), (b_enc1, E1)],
                                  w_dec1, s_dec1, mk1, True, P1, W1))

    # --------------------- final 1x1 conv + BN (no activation) --------------
    xf = b_dec1[:, pl.ds(E1, P1)]
    y = jnp.dot(w_out[...], xf, preferred_element_type=jnp.float32)
    ss = s_out[...]
    y = y * ss[:, 0:1] + ss[:, 1:2]
    out_ref[...] = y * mk1[...]


# ----------------------------------------------------------------------------
# Parameter construction (shapes per AI85UNetSmall.__init__), deterministic
# ----------------------------------------------------------------------------
def _bn_fold(bias, cout, batchnorm):
    if batchnorm:
        var = jnp.ones((cout,), jnp.float32)
        scale = 1.0 / jnp.sqrt(var + 1e-5)
    else:
        scale = jnp.ones((cout,), jnp.float32)
    mean = jnp.zeros((cout,), jnp.float32)
    shift = (bias - mean) * scale                       # bias folded into the BN shift
    return jnp.stack([scale, shift], axis=0).astype(jnp.float32)   # (2, cout)


def _conv_entry(key, cin, cout, k, batchnorm=True):
    k1, k2 = jax.random.split(key)
    bound = 1.0 / math.sqrt(cin * k * k)
    w = jax.random.uniform(k1, (cout, cin, k, k), jnp.float32, -bound, bound)
    b = jax.random.uniform(k2, (cout,), jnp.float32, -bound, bound)
    return dict(w_oihw=w,
                w_hwio=jnp.transpose(w, (2, 3, 1, 0)).astype(jnp.bfloat16),
                ss=_bn_fold(b, cout, batchnorm))


def _convT_entry(key, cin, cout, k=3):
    k1, k2 = jax.random.split(key)
    bound = 1.0 / math.sqrt(cin * k * k)
    wt = jax.random.uniform(k1, (cin, cout, k, k), jnp.float32, -bound, bound)
    b = jax.random.uniform(k2, (cout,), jnp.float32, -bound, bound)
    # transposed conv == forward conv over the dilated input with flipped/swapped weights
    w_eq = jnp.transpose(jnp.flip(wt, axis=(2, 3)), (1, 0, 2, 3))   # (cout, cin, k, k)
    return dict(w_oihw=w_eq,
                w_hwio=jnp.transpose(w_eq, (2, 3, 1, 0)).astype(jnp.bfloat16),
                ss=_bn_fold(b, cout, batchnorm=False))


def build_params(key, num_classes=3, num_channels=3):
    ks = jax.random.split(key, 11)
    return {
        "enc1":    _conv_entry(ks[0], num_channels, 4, 3),
        "enc2":    _conv_entry(ks[1], 4, 8, 3),
        "enc3":    _conv_entry(ks[2], 8, 32, 3),
        "bneck":   _conv_entry(ks[3], 32, 64, 3),
        "upconv3": _convT_entry(ks[4], 64, 32),
        "dec3":    _conv_entry(ks[5], 64, 32, 3),
        "upconv2": _convT_entry(ks[6], 32, 8),
        "dec2":    _conv_entry(ks[7], 16, 8, 3),
        "upconv1": _convT_entry(ks[8], 8, 4),
        "dec1":    _conv_entry(ks[9], 8, 16, 3),
        "conv":    _conv_entry(ks[10], 16, num_classes, 1),
    }


# ----------------------------------------------------------------------------
# Host-side weight packing for the folded-tap matmuls
# ----------------------------------------------------------------------------
def _pack_conv_weight(w_oihw, splits, src_cpads, cout_pad):
    """(Cout, sum(splits), 3, 3) -> (cout_pad, 9*sum(src_cpads)) bf16, tap-major per
    source block, matching the kernel's stacked-operand layout.  Padded rows/cols are
    zero so padded channels contribute exact zeros."""
    cout = w_oihw.shape[0]
    w = jnp.transpose(w_oihw, (0, 2, 3, 1))            # (Cout, kh, kw, Cin_total)
    blocks, start = [], 0
    for cin, cpad in zip(splits, src_cpads):
        wb = w[..., start:start + cin]
        wb = jnp.pad(wb, ((0, cout_pad - cout), (0, 0), (0, 0), (0, cpad - cin)))
        blocks.append(wb.reshape(cout_pad, 9 * cpad))
        start += cin
    return jnp.concatenate(blocks, axis=1).astype(jnp.bfloat16)


def _pack_ss(ss, cout_pad):
    """(2, Cout) [scale; shift] -> (cout_pad, 2); padded rows yield exact zeros."""
    cout = ss.shape[1]
    return jnp.pad(jnp.transpose(ss), ((0, cout_pad - cout), (0, 0))).astype(jnp.float32)


# ----------------------------------------------------------------------------
# Forward pass: one fused pallas_call (grid over batch)
# ----------------------------------------------------------------------------
def unet_forward(x_nchw, params, H, W, num_channels, num_classes):
    assert H % 8 == 0 and W % 8 == 0, "3 pooling stages require H, W divisible by 8"
    N = x_nchw.shape[0]
    d1, d2 = _level_dims(H, W), _level_dims(H // 2, W // 2)
    d3, d4 = _level_dims(H // 4, W // 4), _level_dims(H // 8, W // 8)
    (P1, _, E1), (P2, _, E2), (P3, _, E3), (P4, _, E4) = d1, d2, d3, d4
    T1, T2, T3, T4 = P1 + 2 * E1, P2 + 2 * E2, P3 + 2 * E3, P4 + 2 * E4

    CIN = _cpad(num_channels)

    # ---- constant packing (folded taps, padded channels, concat fused along K) ----
    wk, sk = {}, {}

    def pack(name, splits, src_cpads, cout_pad):
        wk[name] = _pack_conv_weight(params[name]["w_oihw"], splits, src_cpads, cout_pad)
        sk[name] = _pack_ss(params[name]["ss"], cout_pad)

    pack("enc1", [num_channels], [CIN], 16)
    pack("enc2", [4], [16], 16)
    pack("enc3", [8], [16], 32)
    pack("bneck", [32], [32], 64)
    pack("upconv3", [64], [64], 32)
    pack("dec3", [32, 32], [32, 32], 32)
    pack("upconv2", [32], [32], 16)
    pack("dec2", [8, 8], [16, 16], 16)
    pack("upconv1", [8], [16], 16)
    pack("dec1", [4, 4], [16, 16], 16)
    w_out = params["conv"]["w_oihw"].reshape(num_classes, 16).astype(jnp.bfloat16)
    s_out = jnp.transpose(params["conv"]["ss"]).astype(jnp.float32)   # (nc, 2)

    masks = [_make_mask(H, W), _make_mask(H // 2, W // 2),
             _make_mask(H // 4, W // 4), _make_mask(H // 8, W // 8)]
    gpool = [_make_pool_gather(H, W), _make_pool_gather(H // 2, W // 2),
             _make_pool_gather(H // 4, W // 4)]
    gdil = [_make_dilate_scatter(H // 8, W // 8), _make_dilate_scatter(H // 4, W // 4),
            _make_dilate_scatter(H // 2, W // 2)]

    # ---- lane-dense input slab: (N, CIN, P1 + 2*E1) bf16 with zero halo/pad-channels ----
    x_nhwc = jnp.transpose(x_nchw, (0, 2, 3, 1))
    x_pad = jnp.pad(x_nhwc, ((0, 0), (1, 1), (1, 1), (0, 0)))
    x_cp = jnp.transpose(x_pad.reshape(N, P1, num_channels), (0, 2, 1))
    x_in = jnp.pad(x_cp, ((0, 0), (0, CIN - num_channels), (E1, E1))).astype(jnp.bfloat16)

    operands, specs = [], []

    def add(arr, spec=None):
        operands.append(arr)
        specs.append(spec if spec is not None
                     else pl.BlockSpec(arr.shape, _const_index_map(arr.ndim)))

    add(x_in, pl.BlockSpec((None, CIN, T1), lambda n: (n, 0, 0)))
    for name in ("enc1", "enc2", "enc3", "bneck", "upconv3", "dec3",
                 "upconv2", "dec2", "upconv1", "dec1"):
        add(wk[name]); add(sk[name])
    add(w_out); add(s_out)
    for m in masks:
        add(m)
    for g in gpool:
        add(g)
    for g in gdil:
        add(g)

    scratch = [
        pltpu.VMEM((16, T1), jnp.bfloat16),   # b_enc1
        pltpu.VMEM((16, T2), jnp.bfloat16),   # b_p1
        pltpu.VMEM((16, T2), jnp.bfloat16),   # b_enc2
        pltpu.VMEM((16, T3), jnp.bfloat16),   # b_p2
        pltpu.VMEM((32, T3), jnp.bfloat16),   # b_enc3
        pltpu.VMEM((32, T4), jnp.bfloat16),   # b_p3
        pltpu.VMEM((64, T4), jnp.bfloat16),   # b_bneck
        pltpu.VMEM((64, T3), jnp.bfloat16),   # b_dil3
        pltpu.VMEM((32, T3), jnp.bfloat16),   # b_up3
        pltpu.VMEM((32, T3), jnp.bfloat16),   # b_dec3
        pltpu.VMEM((32, T2), jnp.bfloat16),   # b_dil2
        pltpu.VMEM((16, T2), jnp.bfloat16),   # b_up2
        pltpu.VMEM((16, T2), jnp.bfloat16),   # b_dec2
        pltpu.VMEM((16, T1), jnp.bfloat16),   # b_dil1
        pltpu.VMEM((16, T1), jnp.bfloat16),   # b_up1
        pltpu.VMEM((16, T1), jnp.bfloat16),   # b_dec1
    ]

    out_flat = pl.pallas_call(
        functools.partial(_unet_kernel, dims=(d1, d2, d3, d4)),
        out_shape=jax.ShapeDtypeStruct((N, num_classes, P1), jnp.float32),
        grid=(N,),
        in_specs=specs,
        out_specs=pl.BlockSpec((None, num_classes, P1), lambda n: (n, 0, 0)),
        scratch_shapes=scratch,
        compiler_params=pltpu.CompilerParams(dimension_semantics=("parallel",)),
    )(*operands)

    # lane-dense (nc, P1) slab -> NCHW by cropping the pad border
    return out_flat.reshape(N, num_classes, H + 2, W + 2)[:, :, 1:H + 1, 1:W + 1]


# ----------------------------------------------------------------------------
# Pure-JAX reference (same math, end-to-end numerical check)
# ----------------------------------------------------------------------------
def unet_reference(x_nchw, params):
    DN = ('NHWC', 'HWIO', 'NHWC')

    def affine(y, ss):
        return y * ss[0].reshape(1, 1, 1, -1) + ss[1].reshape(1, 1, 1, -1)

    def conv(x, entry, relu, pad):
        y = lax.conv_general_dilated(
            x.astype(jnp.bfloat16), entry["w_hwio"], (1, 1),
            ((pad, pad), (pad, pad)), dimension_numbers=DN,
            preferred_element_type=jnp.float32)
        y = affine(y, entry["ss"])
        return jnp.maximum(y, 0.0) if relu else y

    def upconv(x, entry):
        y = lax.conv_general_dilated(
            x.astype(jnp.bfloat16), entry["w_hwio"], (1, 1),
            ((1, 2), (1, 2)), lhs_dilation=(2, 2), dimension_numbers=DN,
            preferred_element_type=jnp.float32)
        return affine(y, entry["ss"])

    def pool(x):
        n, h, w, c = x.shape
        return x.reshape(n, h // 2, 2, w // 2, 2, c).max(axis=(2, 4))

    x = jnp.transpose(x_nchw, (0, 2, 3, 1))
    enc1 = conv(x, params["enc1"], True, 1)
    enc2 = conv(pool(enc1), params["enc2"], True, 1)
    enc3 = conv(pool(enc2), params["enc3"], True, 1)
    bneck = conv(pool(enc3), params["bneck"], True, 1)
    dec3 = conv(jnp.concatenate([upconv(bneck, params["upconv3"]), enc3], axis=-1),
                params["dec3"], True, 1)
    dec2 = conv(jnp.concatenate([upconv(dec3, params["upconv2"]), enc2], axis=-1),
                params["dec2"], True, 1)
    dec1 = conv(jnp.concatenate([upconv(dec2, params["upconv1"]), enc1], axis=-1),
                params["dec1"], True, 1)
    out = conv(dec1, params["conv"], False, 0)
    return jnp.transpose(out, (0, 3, 1, 2))


# ----------------------------------------------------------------------------
if __name__ == "__main__":
    key = jax.random.PRNGKey(0)
    k_params, k_x = jax.random.split(key)

    num_classes, num_channels = 3, 3
    N, H, W = 2, 16, 16          # small spatial size divisible by 8 (3 pooling stages)

    params = build_params(k_params, num_classes, num_channels)
    x = jax.random.normal(k_x, (N, num_channels, H, W), jnp.float32)

    fwd = jax.jit(functools.partial(unet_forward, params=params, H=H, W=W,
                                    num_channels=num_channels,
                                    num_classes=num_classes))
    out = fwd(x)
    jax.block_until_ready(out)

    assert out.shape == (N, num_classes, H, W), out.shape
    assert out.dtype == jnp.float32
    assert bool(jnp.all(jnp.isfinite(out)))

    # End-to-end numerical check against a pure-JAX reference (same bf16 rounding points).
    ref = jax.jit(functools.partial(unet_reference, params=params))(x)
    max_diff = float(jnp.max(jnp.abs(out - ref)))
    assert max_diff < 5e-2, f"max |kernel - reference| too large: {max_diff}"

    print("KERNEL_OK")
</pallas_src>

<mosaic_0001>
module attributes {stable_mosaic.version = 11 : i64} {
  func.func @_unet_kernel(%arg0: i32, %arg1: memref<1x16x580xbf16, #tpu.memory_space<vmem>>, %arg2: memref<16x144xbf16, #tpu.memory_space<vmem>>, %arg3: memref<16x2xf32, #tpu.memory_space<vmem>>, %arg4: memref<16x144xbf16, #tpu.memory_space<vmem>>, %arg5: memref<16x2xf32, #tpu.memory_space<vmem>>, %arg6: memref<32x144xbf16, #tpu.memory_space<vmem>>, %arg7: memref<32x2xf32, #tpu.memory_space<vmem>>, %arg8: memref<64x288xbf16, #tpu.memory_space<vmem>>, %arg9: memref<64x2xf32, #tpu.memory_space<vmem>>, %arg10: memref<32x576xbf16, #tpu.memory_space<vmem>>, %arg11: memref<32x2xf32, #tpu.memory_space<vmem>>, %arg12: memref<32x576xbf16, #tpu.memory_space<vmem>>, %arg13: memref<32x2xf32, #tpu.memory_space<vmem>>, %arg14: memref<16x288xbf16, #tpu.memory_space<vmem>>, %arg15: memref<16x2xf32, #tpu.memory_space<vmem>>, %arg16: memref<16x288xbf16, #tpu.memory_space<vmem>>, %arg17: memref<16x2xf32, #tpu.memory_space<vmem>>, %arg18: memref<16x144xbf16, #tpu.memory_space<vmem>>, %arg19: memref<16x2xf32, #tpu.memory_space<vmem>>, %arg20: memref<16x288xbf16, #tpu.memory_space<vmem>>, %arg21: memref<16x2xf32, #tpu.memory_space<vmem>>, %arg22: memref<3x16xbf16, #tpu.memory_space<vmem>>, %arg23: memref<3x2xf32, #tpu.memory_space<vmem>>, %arg24: memref<1x324xf32, #tpu.memory_space<vmem>>, %arg25: memref<1x100xf32, #tpu.memory_space<vmem>>, %arg26: memref<1x36xf32, #tpu.memory_space<vmem>>, %arg27: memref<1x16xf32, #tpu.memory_space<vmem>>, %arg28: memref<324x100xbf16, #tpu.memory_space<vmem>>, %arg29: memref<100x36xbf16, #tpu.memory_space<vmem>>, %arg30: memref<36x16xbf16, #tpu.memory_space<vmem>>, %arg31: memref<16x36xbf16, #tpu.memory_space<vmem>>, %arg32: memref<36x100xbf16, #tpu.memory_space<vmem>>, %arg33: memref<100x324xbf16, #tpu.memory_space<vmem>>, %arg34: memref<1x3x324xf32, #tpu.memory_space<vmem>>, %arg35: memref<16x580xbf16, #tpu.memory_space<vmem>>, %arg36: memref<16x356xbf16, #tpu.memory_space<vmem>>, %arg37: memref<16x356xbf16, #tpu.memory_space<vmem>>, %arg38: memref<16x292xbf16, #tpu.memory_space<vmem>>, %arg39: memref<32x292xbf16, #tpu.memory_space<vmem>>, %arg40: memref<32x272xbf16, #tpu.memory_space<vmem>>, %arg41: memref<64x272xbf16, #tpu.memory_space<vmem>>, %arg42: memref<64x292xbf16, #tpu.memory_space<vmem>>, %arg43: memref<32x292xbf16, #tpu.memory_space<vmem>>, %arg44: memref<32x292xbf16, #tpu.memory_space<vmem>>, %arg45: memref<32x356xbf16, #tpu.memory_space<vmem>>, %arg46: memref<16x356xbf16, #tpu.memory_space<vmem>>, %arg47: memref<16x356xbf16, #tpu.memory_space<vmem>>, %arg48: memref<16x580xbf16, #tpu.memory_space<vmem>>, %arg49: memref<16x580xbf16, #tpu.memory_space<vmem>>, %arg50: memref<16x580xbf16, #tpu.memory_space<vmem>>) attributes {dimension_semantics = [#tpu.dimension_semantics<parallel>], iteration_bounds = array<i64: 2>, scalar_prefetch = 0 : i64, scratch_operands = 16 : i64, tpu.core_type = #tpu.core_type<tc>, window_params = [{transform_indices = @transform_0, window_bounds = array<i64: 1, 16, 580>}, {pipeline_mode = #tpu.pipeline_mode<synchronous>, transform_indices = @transform_1, window_bounds = array<i64: 16, 144>}, {pipeline_mode = #tpu.pipeline_mode<synchronous>, transform_indices = @transform_2, window_bounds = array<i64: 16, 2>}, {pipeline_mode = #tpu.pipeline_mode<synchronous>, transform_indices = @transform_3, window_bounds = array<i64: 16, 144>}, {pipeline_mode = #tpu.pipeline_mode<synchronous>, transform_indices = @transform_4, window_bounds = array<i64: 16, 2>}, {pipeline_mode = #tpu.pipeline_mode<synchronous>, transform_indices = @transform_5, window_bounds = array<i64: 32, 144>}, {pipeline_mode = #tpu.pipeline_mode<synchronous>, transform_indices = @transform_6, window_bounds = array<i64: 32, 2>}, {pipeline_mode = #tpu.pipeline_mode<synchronous>, transform_indices = @transform_7, window_bounds = array<i64: 64, 288>}, {pipeline_mode = #tpu.pipeline_mode<synchronous>, transform_indices = @transform_8, window_bounds = array<i64: 64, 2>}, {pipeline_mode = #tpu.pipeline_mode<synchronous>, transform_indices = @transform_9, window_bounds = array<i64: 32, 576>}, {pipeline_mode = #tpu.pipeline_mode<synchronous>, transform_indices = @transform_10, window_bounds = array<i64: 32, 2>}, {pipeline_mode = #tpu.pipeline_mode<synchronous>, transform_indices = @transform_11, window_bounds = array<i64: 32, 576>}, {pipeline_mode = #tpu.pipeline_mode<synchronous>, transform_indices = @transform_12, window_bounds = array<i64: 32, 2>}, {pipeline_mode = #tpu.pipeline_mode<synchronous>, transform_indices = @transform_13, window_bounds = array<i64: 16, 288>}, {pipeline_mode = #tpu.pipeline_mode<synchronous>, transform_indices = @transform_14, window_bounds = array<i64: 16, 2>}, {pipeline_mode = #tpu.pipeline_mode<synchronous>, transform_indices = @transform_15, window_bounds = array<i64: 16, 288>}, {pipeline_mode = #tpu.pipeline_mode<synchronous>, transform_indices = @transform_16, window_bounds = array<i64: 16, 2>}, {pipeline_mode = #tpu.pipeline_mode<synchronous>, transform_indices = @transform_17, window_bounds = array<i64: 16, 144>}, {pipeline_mode = #tpu.pipeline_mode<synchronous>, transform_indices = @transform_18, window_bounds = array<i64: 16, 2>}, {pipeline_mode = #tpu.pipeline_mode<synchronous>, transform_indices = @transform_19, window_bounds = array<i64: 16, 288>}, {pipeline_mode = #tpu.pipeline_mode<synchronous>, transform_indices = @transform_20, window_bounds = array<i64: 16, 2>}, {pipeline_mode = #tpu.pipeline_mode<synchronous>, transform_indices = @transform_21, window_bounds = array<i64: 3, 16>}, {pipeline_mode = #tpu.pipeline_mode<synchronous>, transform_indices = @transform_22, window_bounds = array<i64: 3, 2>}, {pipeline_mode = #tpu.pipeline_mode<synchronous>, transform_indices = @transform_23, window_bounds = array<i64: 1, 324>}, {pipeline_mode = #tpu.pipeline_mode<synchronous>, transform_indices = @transform_24, window_bounds = array<i64: 1, 100>}, {pipeline_mode = #tpu.pipeline_mode<synchronous>, transform_indices = @transform_25, window_bounds = array<i64: 1, 36>}, {pipeline_mode = #tpu.pipeline_mode<synchronous>, transform_indices = @transform_26, window_bounds = array<i64: 1, 16>}, {pipeline_mode = #tpu.pipeline_mode<synchronous>, transform_indices = @transform_27, window_bounds = array<i64: 324, 100>}, {pipeline_mode = #tpu.pipeline_mode<synchronous>, transform_indices = @transform_28, window_bounds = array<i64: 100, 36>}, {pipeline_mode = #tpu.pipeline_mode<synchronous>, transform_indices = @transform_29, window_bounds = array<i64: 36, 16>}, {pipeline_mode = #tpu.pipeline_mode<synchronous>, transform_indices = @transform_30, window_bounds = array<i64: 16, 36>}, {pipeline_mode = #tpu.pipeline_mode<synchronous>, transform_indices = @transform_31, window_bounds = array<i64: 36, 100>}, {pipeline_mode = #tpu.pipeline_mode<synchronous>, transform_indices = @transform_32, window_bounds = array<i64: 100, 324>}, {transform_indices = @transform_33, window_bounds = array<i64: 1, 3, 324>}]} {
    %cst = arith.constant 0.000000e+00 : bf16
    %0 = vector.broadcast %cst : bf16 to vector<16x128xbf16>
    %c0 = arith.constant 0 : index
    %c0_0 = arith.constant 0 : index
    %1 = vector.load %arg35[%c0, %c0_0] : memref<16x580xbf16, #tpu.memory_space<vmem>>, vector<16x128xbf16>
    tpu.vector_store %arg35[%c0, %c0_0], %0 {strides = array<i32>} : memref<16x580xbf16, #tpu.memory_space<vmem>>, vector<16x128xbf16>,
    %cst_1 = arith.constant 0.000000e+00 : bf16
    %2 = vector.broadcast %cst_1 : bf16 to vector<16x128xbf16>
    %c0_2 = arith.constant 0 : index
    %c452 = arith.constant 452 : index
    %3 = vector.load %arg35[%c0_2, %c452] : memref<16x580xbf16, #tpu.memory_space<vmem>>, vector<16x128xbf16>
    tpu.vector_store %arg35[%c0_2, %c452], %2 {strides = array<i32>} : memref<16x580xbf16, #tpu.memory_space<vmem>>, vector<16x128xbf16>,
    %cst_3 = arith.constant 0.000000e+00 : bf16
    %4 = vector.broadcast %cst_3 : bf16 to vector<16x128xbf16>
    %c0_4 = arith.constant 0 : index
    %c0_5 = arith.constant 0 : index
    %5 = vector.load %arg36[%c0_4, %c0_5] : memref<16x356xbf16, #tpu.memory_space<vmem>>, vector<16x128xbf16>
    tpu.vector_store %arg36[%c0_4, %c0_5], %4 {strides = array<i32>} : memref<16x356xbf16, #tpu.memory_space<vmem>>, vector<16x128xbf16>,
    %cst_6 = arith.constant 0.000000e+00 : bf16
    %6 = vector.broadcast %cst_6 : bf16 to vector<16x128xbf16>
    %c0_7 = arith.constant 0 : index
    %c228 = arith.constant 228 : index
    %7 = vector.load %arg36[%c0_7, %c228] : memref<16x356xbf16, #tpu.memory_space<vmem>>, vector<16x128xbf16>
    tpu.vector_store %arg36[%c0_7, %c228], %6 {strides = array<i32>} : memref<16x356xbf16, #tpu.memory_space<vmem>>, vector<16x128xbf16>,
    %cst_8 = arith.constant 0.000000e+00 : bf16
    %8 = vector.broadcast %cst_8 : bf16 to vector<16x128xbf16>
    %c0_9 = arith.constant 0 : index
    %c0_10 = arith.constant 0 : index
    %9 = vector.load %arg37[%c0_9, %c0_10] : memref<16x356xbf16, #tpu.memory_space<vmem>>, vector<16x128xbf16>
    tpu.vector_store %arg37[%c0_9, %c0_10], %8 {strides = array<i32>} : memref<16x356xbf16, #tpu.memory_space<vmem>>, vector<16x128xbf16>,
    %cst_11 = arith.constant 0.000000e+00 : bf16
    %10 = vector.broadcast %cst_11 : bf16 to vector<16x128xbf16>
    %c0_12 = arith.constant 0 : index
    %c228_13 = arith.constant 228 : index
    %11 = vector.load %arg37[%c0_12, %c228_13] : memref<16x356xbf16, #tpu.memory_space<vmem>>, vector<16x128xbf16>
    tpu.vector_store %arg37[%c0_12, %c228_13], %10 {strides = array<i32>} : memref<16x356xbf16, #tpu.memory_space<vmem>>, vector<16x128xbf16>,
    %cst_14 = arith.constant 0.000000e+00 : bf16
    %12 = vector.broadcast %cst_14 : bf16 to vector<16x128xbf16>
    %c0_15 = arith.constant 0 : index
    %c0_16 = arith.constant 0 : index
    %13 = vector.load %arg38[%c0_15, %c0_16] : memref<16x292xbf16, #tpu.memory_space<vmem>>, vector<16x128xbf16>
    tpu.vector_store %arg38[%c0_15, %c0_16], %12 {strides = array<i32>} : memref<16x292xbf16, #tpu.memory_space<vmem>>, vector<16x128xbf16>,
    %cst_17 = arith.constant 0.000000e+00 : bf16
    %14 = vector.broadcast %cst_17 : bf16 to vector<16x128xbf16>
    %c0_18 = arith.constant 0 : index
    %c164 = arith.constant 164 : index
    %15 = vector.load %arg38[%c0_18, %c164] : memref<16x292xbf16, #tpu.memory_space<vmem>>, vector<16x128xbf16>
    tpu.vector_store %arg38[%c0_18, %c164], %14 {strides = array<i32>} : memref<16x292xbf16, #tpu.memory_space<vmem>>, vector<16x128xbf16>,
    %cst_19 = arith.constant 0.000000e+00 : bf16
    %16 = vector.broadcast %cst_19 : bf16 to vector<32x128xbf16>
    %c0_20 = arith.constant 0 : index
    %c0_21 = arith.constant 0 : index
    %17 = vector.load %arg39[%c0_20, %c0_21] : memref<32x292xbf16, #tpu.memory_space<vmem>>, vector<32x128xbf16>
    tpu.vector_store %arg39[%c0_20, %c0_21], %16 {strides = array<i32>} : memref<32x292xbf16, #tpu.memory_space<vmem>>, vector<32x128xbf16>,
    %cst_22 = arith.constant 0.000000e+00 : bf16
    %18 = vector.broadcast %cst_22 : bf16 to vector<32x128xbf16>
    %c0_23 = arith.constant 0 : index
    %c164_24 = arith.constant 164 : index
    %19 = vector.load %arg39[%c0_23, %c164_24] : memref<32x292xbf16, #tpu.memory_space<vmem>>, vector<32x128xbf16>
    tpu.vector_store %arg39[%c0_23, %c164_24], %18 {strides = array<i32>} : memref<32x292xbf16, #tpu.memory_space<vmem>>, vector<32x128xbf16>,
    %cst_25 = arith.constant 0.000000e+00 : bf16
    %20 = vector.broadcast %cst_25 : bf16 to vector<32x128xbf16>
    %c0_26 = arith.constant 0 : index
    %c0_27 = arith.constant 0 : index
    %21 = vector.load %arg40[%c0_26, %c0_27] : memref<32x272xbf16, #tpu.memory_space<vmem>>, vector<32x128xbf16>
    tpu.vector_store %arg40[%c0_26, %c0_27], %20 {strides = array<i32>} : memref<32x272xbf16, #tpu.memory_space<vmem>>, vector<32x128xbf16>,
    %cst_28 = arith.constant 0.000000e+00 : bf16
    %22 = vector.broadcast %cst_28 : bf16 to vector<32x128xbf16>
    %c0_29 = arith.constant 0 : index
    %c144 = arith.constant 144 : index
    %23 = vector.load %arg40[%c0_29, %c144] : memref<32x272xbf16, #tpu.memory_space<vmem>>, vector<32x128xbf16>
    tpu.vector_store %arg40[%c0_29, %c144], %22 {strides = array<i32>} : memref<32x272xbf16, #tpu.memory_space<vmem>>, vector<32x128xbf16>,
    %cst_30 = arith.constant 0.000000e+00 : bf16
    %24 = vector.broadcast %cst_30 : bf16 to vector<64x128xbf16>
    %c0_31 = arith.constant 0 : index
    %c0_32 = arith.constant 0 : index
    %25 = vector.load %arg41[%c0_31, %c0_32] : memref<64x272xbf16, #tpu.memory_space<vmem>>, vector<64x128xbf16>
    tpu.vector_store %arg41[%c0_31, %c0_32], %24 {strides = array<i32>} : memref<64x272xbf16, #tpu.memory_space<vmem>>, vector<64x128xbf16>,
    %cst_33 = arith.constant 0.000000e+00 : bf16
    %26 = vector.broadcast %cst_33 : bf16 to vector<64x128xbf16>
    %c0_34 = arith.constant 0 : index
    %c144_35 = arith.constant 144 : index
    %27 = vector.load %arg41[%c0_34, %c144_35] : memref<64x272xbf16, #tpu.memory_space<vmem>>, vector<64x128xbf16>
    tpu.vector_store %arg41[%c0_34, %c144_35], %26 {strides = array<i32>} : memref<64x272xbf16, #tpu.memory_space<vmem>>, vector<64x128xbf16>,
    %cst_36 = arith.constant 0.000000e+00 : bf16
    %28 = vector.broadcast %cst_36 : bf16 to vector<64x128xbf16>
    %c0_37 = arith.constant 0 : index
    %c0_38 = arith.constant 0 : index
    %29 = vector.load %arg42[%c0_37, %c0_38] : memref<64x292xbf16, #tpu.memory_space<vmem>>, vector<64x128xbf16>
    tpu.vector_store %arg42[%c0_37, %c0_38], %28 {strides = array<i32>} : memref<64x292xbf16, #tpu.memory_space<vmem>>, vector<64x128xbf16>,
    %cst_39 = arith.constant 0.000000e+00 : bf16
    %30 = vector.broadcast %cst_39 : bf16 to vector<64x128xbf16>
    %c0_40 = arith.constant 0 : index
    %c164_41 = arith.constant 164 : index
    %31 = vector.load %arg42[%c0_40, %c164_41] : memref<64x292xbf16, #tpu.memory_space<vmem>>, vector<64x128xbf16>
    tpu.vector_store %arg42[%c0_40, %c164_41], %30 {strides = array<i32>} : memref<64x292xbf16, #tpu.memory_space<vmem>>, vector<64x128xbf16>,
    %cst_42 = arith.constant 0.000000e+00 : bf16
    %32 = vector.broadcast %cst_42 : bf16 to vector<32x128xbf16>
    %c0_43 = arith.constant 0 : index
    %c0_44 = arith.constant 0 : index
    %33 = vector.load %arg43[%c0_43, %c0_44] : memref<32x292xbf16, #tpu.memory_space<vmem>>, vector<32x128xbf16>
    tpu.vector_store %arg43[%c0_43, %c0_44], %32 {strides = array<i32>} : memref<32x292xbf16, #tpu.memory_space<vmem>>, vector<32x128xbf16>,
    %cst_45 = arith.constant 0.000000e+00 : bf16
    %34 = vector.broadcast %cst_45 : bf16 to vector<32x128xbf16>
    %c0_46 = arith.constant 0 : index
    %c164_47 = arith.constant 164 : index
    %35 = vector.load %arg43[%c0_46, %c164_47] : memref<32x292xbf16, #tpu.memory_space<vmem>>, vector<32x128xbf16>
    tpu.vector_store %arg43[%c0_46, %c164_47], %34 {strides = array<i32>} : memref<32x292xbf16, #tpu.memory_space<vmem>>, vector<32x128xbf16>,
    %cst_48 = arith.constant 0.000000e+00 : bf16
    %36 = vector.broadcast %cst_48 : bf16 to vector<32x128xbf16>
    %c0_49 = arith.constant 0 : index
    %c0_50 = arith.constant 0 : index
    %37 = vector.load %arg44[%c0_49, %c0_50] : memref<32x292xbf16, #tpu.memory_space<vmem>>, vector<32x128xbf16>
    tpu.vector_store %arg44[%c0_49, %c0_50], %36 {strides = array<i32>} : memref<32x292xbf16, #tpu.memory_space<vmem>>, vector<32x128xbf16>,
    %cst_51 = arith.constant 0.000000e+00 : bf16
    %38 = vector.broadcast %cst_51 : bf16 to vector<32x128xbf16>
    %c0_52 = arith.constant 0 : index
    %c164_53 = arith.constant 164 : index
    %39 = vector.load %arg44[%c0_52, %c164_53] : memref<32x292xbf16, #tpu.memory_space<vmem>>, vector<32x128xbf16>
    tpu.vector_store %arg44[%c0_52, %c164_53], %38 {strides = array<i32>} : memref<32x292xbf16, #tpu.memory_space<vmem>>, vector<32x128xbf16>,
    %cst_54 = arith.constant 0.000000e+00 : bf16
    %40 = vector.broadcast %cst_54 : bf16 to vector<32x128xbf16>
    %c0_55 = arith.constant 0 : index
    %c0_56 = arith.constant 0 : index
    %41 = vector.load %arg45[%c0_55, %c0_56] : memref<32x356xbf16, #tpu.memory_space<vmem>>, vector<32x128xbf16>
    tpu.vector_store %arg45[%c0_55, %c0_56], %40 {strides = array<i32>} : memref<32x356xbf16, #tpu.memory_space<vmem>>, vector<32x128xbf16>,
    %cst_57 = arith.constant 0.000000e+00 : bf16
    %42 = vector.broadcast %cst_57 : bf16 to vector<32x128xbf16>
    %c0_58 = arith.constant 0 : index
    %c228_59 = arith.constant 228 : index
    %43 = vector.load %arg45[%c0_58, %c228_59] : memref<32x356xbf16, #tpu.memory_space<vmem>>, vector<32x128xbf16>
    tpu.vector_store %arg45[%c0_58, %c228_59], %42 {strides = array<i32>} : memref<32x356xbf16, #tpu.memory_space<vmem>>, vector<32x128xbf16>,
    %cst_60 = arith.constant 0.000000e+00 : bf16
    %44 = vector.broadcast %cst_60 : bf16 to vector<16x128xbf16>
    %c0_61 = arith.constant 0 : index
    %c0_62 = arith.constant 0 : index
    %45 = vector.load %arg46[%c0_61, %c0_62] : memref<16x356xbf16, #tpu.memory_space<vmem>>, vector<16x128xbf16>
    tpu.vector_store %arg46[%c0_61, %c0_62], %44 {strides = array<i32>} : memref<16x356xbf16, #tpu.memory_space<vmem>>, vector<16x128xbf16>,
    %cst_63 = arith.constant 0.000000e+00 : bf16
    %46 = vector.broadcast %cst_63 : bf16 to vector<16x128xbf16>
    %c0_64 = arith.constant 0 : index
    %c228_65 = arith.constant 228 : index
    %47 = vector.load %arg46[%c0_64, %c228_65] : memref<16x356xbf16, #tpu.memory_space<vmem>>, vector<16x128xbf16>
    tpu.vector_store %arg46[%c0_64, %c228_65], %46 {strides = array<i32>} : memref<16x356xbf16, #tpu.memory_space<vmem>>, vector<16x128xbf16>,
    %cst_66 = arith.constant 0.000000e+00 : bf16
    %48 = vector.broadcast %cst_66 : bf16 to vector<16x128xbf16>
    %c0_67 = arith.constant 0 : index
    %c0_68 = arith.constant 0 : index
    %49 = vector.load %arg47[%c0_67, %c0_68] : memref<16x356xbf16, #tpu.memory_space<vmem>>, vector<16x128xbf16>
    tpu.vector_store %arg47[%c0_67, %c0_68], %48 {strides = array<i32>} : memref<16x356xbf16, #tpu.memory_space<vmem>>, vector<16x128xbf16>,
    %cst_69 = arith.constant 0.000000e+00 : bf16
    %50 = vector.broadcast %cst_69 : bf16 to vector<16x128xbf16>
    %c0_70 = arith.constant 0 : index
    %c228_71 = arith.constant 228 : index
    %51 = vector.load %arg47[%c0_70, %c228_71] : memref<16x356xbf16, #tpu.memory_space<vmem>>, vector<16x128xbf16>
    tpu.vector_store %arg47[%c0_70, %c228_71], %50 {strides = array<i32>} : memref<16x356xbf16, #tpu.memory_space<vmem>>, vector<16x128xbf16>,
    %cst_72 = arith.constant 0.000000e+00 : bf16
    %52 = vector.broadcast %cst_72 : bf16 to vector<16x128xbf16>
    %c0_73 = arith.constant 0 : index
    %c0_74 = arith.constant 0 : index
    %53 = vector.load %arg48[%c0_73, %c0_74] : memref<16x580xbf16, #tpu.memory_space<vmem>>, vector<16x128xbf16>
    tpu.vector_store %arg48[%c0_73, %c0_74], %52 {strides = array<i32>} : memref<16x580xbf16, #tpu.memory_space<vmem>>, vector<16x128xbf16>,
    %cst_75 = arith.constant 0.000000e+00 : bf16
    %54 = vector.broadcast %cst_75 : bf16 to vector<16x128xbf16>
    %c0_76 = arith.constant 0 : index
    %c452_77 = arith.constant 452 : index
    %55 = vector.load %arg48[%c0_76, %c452_77] : memref<16x580xbf16, #tpu.memory_space<vmem>>, vector<16x128xbf16>
    tpu.vector_store %arg48[%c0_76, %c452_77], %54 {strides = array<i32>} : memref<16x580xbf16, #tpu.memory_space<vmem>>, vector<16x128xbf16>,
    %cst_78 = arith.constant 0.000000e+00 : bf16
    %56 = vector.broadcast %cst_78 : bf16 to vector<16x128xbf16>
    %c0_79 = arith.constant 0 : index
    %c0_80 = arith.constant 0 : index
    %57 = vector.load %arg49[%c0_79, %c0_80] : memref<16x580xbf16, #tpu.memory_space<vmem>>, vector<16x128xbf16>
    tpu.vector_store %arg49[%c0_79, %c0_80], %56 {strides = array<i32>} : memref<16x580xbf16, #tpu.memory_space<vmem>>, vector<16x128xbf16>,
    %cst_81 = arith.constant 0.000000e+00 : bf16
    %58 = vector.broadcast %cst_81 : bf16 to vector<16x128xbf16>
    %c0_82 = arith.constant 0 : index
    %c452_83 = arith.constant 452 : index
    %59 = vector.load %arg49[%c0_82, %c452_83] : memref<16x580xbf16, #tpu.memory_space<vmem>>, vector<16x128xbf16>
    tpu.vector_store %arg49[%c0_82, %c452_83], %58 {strides = array<i32>} : memref<16x580xbf16, #tpu.memory_space<vmem>>, vector<16x128xbf16>,
    %cst_84 = arith.constant 0.000000e+00 : bf16
    %60 = vector.broadcast %cst_84 : bf16 to vector<16x128xbf16>
    %c0_85 = arith.constant 0 : index
    %c0_86 = arith.constant 0 : index
    %61 = vector.load %arg50[%c0_85, %c0_86] : memref<16x580xbf16, #tpu.memory_space<vmem>>, vector<16x128xbf16>
    tpu.vector_store %arg50[%c0_85, %c0_86], %60 {strides = array<i32>} : memref<16x580xbf16, #tpu.memory_space<vmem>>, vector<16x128xbf16>,
    %cst_87 = arith.constant 0.000000e+00 : bf16
    %62 = vector.broadcast %cst_87 : bf16 to vector<16x128xbf16>
    %c0_88 = arith.constant 0 : index
    %c452_89 = arith.constant 452 : index
    %63 = vector.load %arg50[%c0_88, %c452_89] : memref<16x580xbf16, #tpu.memory_space<vmem>>, vector<16x128xbf16>
    tpu.vector_store %arg50[%c0_88, %c452_89], %62 {strides = array<i32>} : memref<16x580xbf16, #tpu.memory_space<vmem>>, vector<16x128xbf16>,
    %c0_90 = arith.constant 0 : index
    %c0_91 = arith.constant 0 : index
    %c109 = arith.constant 109 : index
    %64 = vector.load %arg1[%c0_90, %c0_91, %c109] : memref<1x16x580xbf16, #tpu.memory_space<vmem>>, vector<1x16x324xbf16>
    %65 = vector.shape_cast %64 : vector<1x16x324xbf16> to vector<16x324xbf16>
    %c0_92 = arith.constant 0 : index
    %c0_93 = arith.constant 0 : index
    %c110 = arith.constant 110 : index
    %66 = vector.load %arg1[%c0_92, %c0_93, %c110] : memref<1x16x580xbf16, #tpu.memory_space<vmem>>, vector<1x16x324xbf16>
    %67 = vector.shape_cast %66 : vector<1x16x324xbf16> to vector<16x324xbf16>
    %c0_94 = arith.constant 0 : index
    %c0_95 = arith.constant 0 : index
    %c111 = arith.constant 111 : index
    %68 = vector.load %arg1[%c0_94, %c0_95, %c111] : memref<1x16x580xbf16, #tpu.memory_space<vmem>>, vector<1x16x324xbf16>
    %69 = vector.shape_cast %68 : vector<1x16x324xbf16> to vector<16x324xbf16>
    %c0_96 = arith.constant 0 : index
    %c0_97 = arith.constant 0 : index
    %c127 = arith.constant 127 : index
    %70 = vector.load %arg1[%c0_96, %c0_97, %c127] : memref<1x16x580xbf16, #tpu.memory_space<vmem>>, vector<1x16x324xbf16>
    %71 = vector.shape_cast %70 : vector<1x16x324xbf16> to vector<16x324xbf16>
    %c0_98 = arith.constant 0 : index
    %c0_99 = arith.constant 0 : index
    %c128 = arith.constant 128 : index
    %72 = vector.load %arg1[%c0_98, %c0_99, %c128] : memref<1x16x580xbf16, #tpu.memory_space<vmem>>, vector<1x16x324xbf16>
    %73 = vector.shape_cast %72 : vector<1x16x324xbf16> to vector<16x324xbf16>
    %c0_100 = arith.constant 0 : index
    %c0_101 = arith.constant 0 : index
    %c129 = arith.constant 129 : index
    %74 = vector.load %arg1[%c0_100, %c0_101, %c129] : memref<1x16x580xbf16, #tpu.memory_space<vmem>>, vector<1x16x324xbf16>
    %75 = vector.shape_cast %74 : vector<1x16x324xbf16> to vector<16x324xbf16>
    %c0_102 = arith.constant 0 : index
    %c0_103 = arith.constant 0 : index
    %c145 = arith.constant 145 : index
    %76 = vector.load %arg1[%c0_102, %c0_103, %c145] : memref<1x16x580xbf16, #tpu.memory_space<vmem>>, vector<1x16x324xbf16>
    %77 = vector.shape_cast %76 : vector<1x16x324xbf16> to vector<16x324xbf16>
    %c0_104 = arith.constant 0 : index
    %c0_105 = arith.constant 0 : index
    %c146 = arith.constant 146 : index
    %78 = vector.load %arg1[%c0_104, %c0_105, %c146] : memref<1x16x580xbf16, #tpu.memory_space<vmem>>, vector<1x16x324xbf16>
    %79 = vector.shape_cast %78 : vector<1x16x324xbf16> to vector<16x324xbf16>
    %c0_106 = arith.constant 0 : index
    %c0_107 = arith.constant 0 : index
    %c147 = arith.constant 147 : index
    %80 = vector.load %arg1[%c0_106, %c0_107, %c147] : memref<1x16x580xbf16, #tpu.memory_space<vmem>>, vector<1x16x324xbf16>
    %81 = vector.shape_cast %80 : vector<1x16x324xbf16> to vector<16x324xbf16>
    %82 = tpu.concatenate %65, %67, %69, %71, %73, %75, %77, %79, %81 in 0 : vector<16x324xbf16>, vector<16x324xbf16>, vector<16x324xbf16>, vector<16x324xbf16>, vector<16x324xbf16>, vector<16x324xbf16>, vector<16x324xbf16>, vector<16x324xbf16>, vector<16x324xbf16> -> vector<144x324xbf16>
    %c0_108 = arith.constant 0 : index
    %c0_109 = arith.constant 0 : index
    %83 = vector.load %arg2[%c0_108, %c0_109] : memref<16x144xbf16, #tpu.memory_space<vmem>>, vector<16x144xbf16>
    %cst_110 = arith.constant dense<0.000000e+00> : vector<16x324xf32>
    %84 = tpu.matmul %83, %82, %cst_110 {dimension_numbers = #tpu.dot_dimension_numbers<[1], [0], [0], [1], [0, 0, 1, 1], [], []>} : vector<16x144xbf16>, vector<144x324xbf16>, vector<16x324xf32> -> vector<16x324xf32>
    %c0_111 = arith.constant 0 : index
    %c0_112 = arith.constant 0 : index
    %85 = vector.load %arg3[%c0_111, %c0_112] : memref<16x2xf32, #tpu.memory_space<vmem>>, vector<16x2xf32>
    %86 = vector.extract_strided_slice %85 {offsets = [0, 0], sizes = [16, 1], strides = [1, 1]} : vector<16x2xf32> to vector<16x1xf32>
    %87 = vector.broadcast %86 : vector<16x1xf32> to vector<16x324xf32>
    %88 = arith.mulf %84, %87 : vector<16x324xf32>
    %89 = vector.extract_strided_slice %85 {offsets = [0, 1], sizes = [16, 1], strides = [1, 1]} : vector<16x2xf32> to vector<16x1xf32>
    %90 = vector.broadcast %89 : vector<16x1xf32> to vector<16x324xf32>
    %91 = arith.addf %88, %90 : vector<16x324xf32>
    %cst_113 = arith.constant 0.000000e+00 : f32
    %92 = vector.broadcast %cst_113 : f32 to vector<16x324xf32>
    %93 = arith.maximumf %91, %92 : vector<16x324xf32>
    %c0_114 = arith.constant 0 : index
    %c0_115 = arith.constant 0 : index
    %94 = vector.load %arg24[%c0_114, %c0_115] : memref<1x324xf32, #tpu.memory_space<vmem>>, vector<1x324xf32>
    %95 = vector.broadcast %94 : vector<1x324xf32> to vector<16x324xf32>
    %96 = arith.mulf %93, %95 : vector<16x324xf32>
    %97 = arith.truncf %96 : vector<16x324xf32> to vector<16x324xbf16>
    %c0_116 = arith.constant 0 : index
    %c128_117 = arith.constant 128 : index
    %98 = vector.load %arg35[%c0_116, %c128_117] : memref<16x580xbf16, #tpu.memory_space<vmem>>, vector<16x324xbf16>
    tpu.vector_store %arg35[%c0_116, %c128_117], %97 {strides = array<i32>} : memref<16x580xbf16, #tpu.memory_space<vmem>>, vector<16x324xbf16>,
    %c0_118 = arith.constant 0 : index
    %c128_119 = arith.constant 128 : index
    %99 = vector.load %arg35[%c0_118, %c128_119] : memref<16x580xbf16, #tpu.memory_space<vmem>>, vector<16x324xbf16>
    %c0_120 = arith.constant 0 : index
    %c129_121 = arith.constant 129 : index
    %100 = vector.load %arg35[%c0_120, %c129_121] : memref<16x580xbf16, #tpu.memory_space<vmem>>, vector<16x324xbf16>
    %c0_122 = arith.constant 0 : index
    %c146_123 = arith.constant 146 : index
    %101 = vector.load %arg35[%c0_122, %c146_123] : memref<16x580xbf16, #tpu.memory_space<vmem>>, vector<16x324xbf16>
    %c0_124 = arith.constant 0 : index
    %c147_125 = arith.constant 147 : index
    %102 = vector.load %arg35[%c0_124, %c147_125] : memref<16x580xbf16, #tpu.memory_space<vmem>>, vector<16x324xbf16>
    %103 = arith.maximumf %99, %100 : vector<16x324xbf16>
    %104 = arith.maximumf %101, %102 : vector<16x324xbf16>
    %105 = arith.maximumf %103, %104 : vector<16x324xbf16>
    %c0_126 = arith.constant 0 : index
    %c0_127 = arith.constant 0 : index
    %106 = vector.load %arg28[%c0_126, %c0_127] : memref<324x100xbf16, #tpu.memory_space<vmem>>, vector<324x100xbf16>
    %cst_128 = arith.constant dense<0.000000e+00> : vector<16x100xf32>
    %107 = tpu.matmul %105, %106, %cst_128 {dimension_numbers = #tpu.dot_dimension_numbers<[1], [0], [0], [1], [0, 0, 1, 1], [], []>} : vector<16x324xbf16>, vector<324x100xbf16>, vector<16x100xf32> -> vector<16x100xf32>
    %108 = arith.truncf %107 : vector<16x100xf32> to vector<16x100xbf16>
    %c0_129 = arith.constant 0 : index
    %c128_130 = arith.constant 128 : index
    %109 = vector.load %arg36[%c0_129, %c128_130] : memref<16x356xbf16, #tpu.memory_space<vmem>>, vector<16x100xbf16>
    tpu.vector_store %arg36[%c0_129, %c128_130], %108 {strides = array<i32>} : memref<16x356xbf16, #tpu.memory_space<vmem>>, vector<16x100xbf16>,
    %c0_131 = arith.constant 0 : index
    %c117 = arith.constant 117 : index
    %110 = vector.load %arg36[%c0_131, %c117] : memref<16x356xbf16, #tpu.memory_space<vmem>>, vector<16x100xbf16>
    %c0_132 = arith.constant 0 : index
    %c118 = arith.constant 118 : index
    %111 = vector.load %arg36[%c0_132, %c118] : memref<16x356xbf16, #tpu.memory_space<vmem>>, vector<16x100xbf16>
    %c0_133 = arith.constant 0 : index
    %c119 = arith.constant 119 : index
    %112 = vector.load %arg36[%c0_133, %c119] : memref<16x356xbf16, #tpu.memory_space<vmem>>, vector<16x100xbf16>
    %c0_134 = arith.constant 0 : index
    %c127_135 = arith.constant 127 : index
    %113 = vector.load %arg36[%c0_134, %c127_135] : memref<16x356xbf16, #tpu.memory_space<vmem>>, vector<16x100xbf16>
    %c0_136 = arith.constant 0 : index
    %c128_137 = arith.constant 128 : index
    %114 = vector.load %arg36[%c0_136, %c128_137] : memref<16x356xbf16, #tpu.memory_space<vmem>>, vector<16x100xbf16>
    %c0_138 = arith.constant 0 : index
    %c129_139 = arith.constant 129 : index
    %115 = vector.load %arg36[%c0_138, %c129_139] : memref<16x356xbf16, #tpu.memory_space<vmem>>, vector<16x100xbf16>
    %c0_140 = arith.constant 0 : index
    %c137 = arith.constant 137 : index
    %116 = vector.load %arg36[%c0_140, %c137] : memref<16x356xbf16, #tpu.memory_space<vmem>>, vector<16x100xbf16>
    %c0_141 = arith.constant 0 : index
    %c138 = arith.constant 138 : index
    %117 = vector.load %arg36[%c0_141, %c138] : memref<16x356xbf16, #tpu.memory_space<vmem>>, vector<16x100xbf16>
    %c0_142 = arith.constant 0 : index
    %c139 = arith.constant 139 : index
    %118 = vector.load %arg36[%c0_142, %c139] : memref<16x356xbf16, #tpu.memory_space<vmem>>, vector<16x100xbf16>
    %119 = tpu.concatenate %110, %111, %112, %113, %114, %115, %116, %117, %118 in 0 : vector<16x100xbf16>, vector<16x100xbf16>, vector<16x100xbf16>, vector<16x100xbf16>, vector<16x100xbf16>, vector<16x100xbf16>, vector<16x100xbf16>, vector<16x100xbf16>, vector<16x100xbf16> -> vector<144x100xbf16>
    %c0_143 = arith.constant 0 : index
    %c0_144 = arith.constant 0 : index
    %120 = vector.load %arg4[%c0_143, %c0_144] : memref<16x144xbf16, #tpu.memory_space<vmem>>, vector<16x144xbf16>
    %cst_145 = arith.constant dense<0.000000e+00> : vector<16x100xf32>
    %121 = tpu.matmul %120, %119, %cst_145 {dimension_numbers = #tpu.dot_dimension_numbers<[1], [0], [0], [1], [0, 0, 1, 1], [], []>} : vector<16x144xbf16>, vector<144x100xbf16>, vector<16x100xf32> -> vector<16x100xf32>
    %c0_146 = arith.constant 0 : index
    %c0_147 = arith.constant 0 : index
    %122 = vector.load %arg5[%c0_146, %c0_147] : memref<16x2xf32, #tpu.memory_space<vmem>>, vector<16x2xf32>
    %123 = vector.extract_strided_slice %122 {offsets = [0, 0], sizes = [16, 1], strides = [1, 1]} : vector<16x2xf32> to vector<16x1xf32>
    %124 = vector.broadcast %123 : vector<16x1xf32> to vector<16x100xf32>
    %125 = arith.mulf %121, %124 : vector<16x100xf32>
    %126 = vector.extract_strided_slice %122 {offsets = [0, 1], sizes = [16, 1], strides = [1, 1]} : vector<16x2xf32> to vector<16x1xf32>
    %127 = vector.broadcast %126 : vector<16x1xf32> to vector<16x100xf32>
    %128 = arith.addf %125, %127 : vector<16x100xf32>
    %cst_148 = arith.constant 0.000000e+00 : f32
    %129 = vector.broadcast %cst_148 : f32 to vector<16x100xf32>
    %130 = arith.maximumf %128, %129 : vector<16x100xf32>
    %c0_149 = arith.constant 0 : index
    %c0_150 = arith.constant 0 : index
    %131 = vector.load %arg25[%c0_149, %c0_150] : memref<1x100xf32, #tpu.memory_space<vmem>>, vector<1x100xf32>
    %132 = vector.broadcast %131 : vector<1x100xf32> to vector<16x100xf32>
    %133 = arith.mulf %130, %132 : vector<16x100xf32>
    %134 = arith.truncf %133 : vector<16x100xf32> to vector<16x100xbf16>
    %c0_151 = arith.constant 0 : index
    %c128_152 = arith.constant 128 : index
    %135 = vector.load %arg37[%c0_151, %c128_152] : memref<16x356xbf16, #tpu.memory_space<vmem>>, vector<16x100xbf16>
    tpu.vector_store %arg37[%c0_151, %c128_152], %134 {strides = array<i32>} : memref<16x356xbf16, #tpu.memory_space<vmem>>, vector<16x100xbf16>,
    %c0_153 = arith.constant 0 : index
    %c128_154 = arith.constant 128 : index
    %136 = vector.load %arg37[%c0_153, %c128_154] : memref<16x356xbf16, #tpu.memory_space<vmem>>, vector<16x100xbf16>
    %c0_155 = arith.constant 0 : index
    %c129_156 = arith.constant 129 : index
    %137 = vector.load %arg37[%c0_155, %c129_156] : memref<16x356xbf16, #tpu.memory_space<vmem>>, vector<16x100xbf16>
    %c0_157 = arith.constant 0 : index
    %c138_158 = arith.constant 138 : index
    %138 = vector.load %arg37[%c0_157, %c138_158] : memref<16x356xbf16, #tpu.memory_space<vmem>>, vector<16x100xbf16>
    %c0_159 = arith.constant 0 : index
    %c139_160 = arith.constant 139 : index
    %139 = vector.load %arg37[%c0_159, %c139_160] : memref<16x356xbf16, #tpu.memory_space<vmem>>, vector<16x100xbf16>
    %140 = arith.maximumf %136, %137 : vector<16x100xbf16>
    %141 = arith.maximumf %138, %139 : vector<16x100xbf16>
    %142 = arith.maximumf %140, %141 : vector<16x100xbf16>
    %c0_161 = arith.constant 0 : index
    %c0_162 = arith.constant 0 : index
    %143 = vector.load %arg29[%c0_161, %c0_162] : memref<100x36xbf16, #tpu.memory_space<vmem>>, vector<100x36xbf16>
    %cst_163 = arith.constant dense<0.000000e+00> : vector<16x36xf32>
    %144 = tpu.matmul %142, %143, %cst_163 {dimension_numbers = #tpu.dot_dimension_numbers<[1], [0], [0], [1], [0, 0, 1, 1], [], []>} : vector<16x100xbf16>, vector<100x36xbf16>, vector<16x36xf32> -> vector<16x36xf32>
    %145 = arith.truncf %144 : vector<16x36xf32> to vector<16x36xbf16>
    %c0_164 = arith.constant 0 : index
    %c128_165 = arith.constant 128 : index
    %146 = vector.load %arg38[%c0_164, %c128_165] : memref<16x292xbf16, #tpu.memory_space<vmem>>, vector<16x36xbf16>
    tpu.vector_store %arg38[%c0_164, %c128_165], %145 {strides = array<i32>} : memref<16x292xbf16, #tpu.memory_space<vmem>>, vector<16x36xbf16>,
    %c0_166 = arith.constant 0 : index
    %c121 = arith.constant 121 : index
    %147 = vector.load %arg38[%c0_166, %c121] : memref<16x292xbf16, #tpu.memory_space<vmem>>, vector<16x36xbf16>
    %c0_167 = arith.constant 0 : index
    %c122 = arith.constant 122 : index
    %148 = vector.load %arg38[%c0_167, %c122] : memref<16x292xbf16, #tpu.memory_space<vmem>>, vector<16x36xbf16>
    %c0_168 = arith.constant 0 : index
    %c123 = arith.constant 123 : index
    %149 = vector.load %arg38[%c0_168, %c123] : memref<16x292xbf16, #tpu.memory_space<vmem>>, vector<16x36xbf16>
    %c0_169 = arith.constant 0 : index
    %c127_170 = arith.constant 127 : index
    %150 = vector.load %arg38[%c0_169, %c127_170] : memref<16x292xbf16, #tpu.memory_space<vmem>>, vector<16x36xbf16>
    %c0_171 = arith.constant 0 : index
    %c128_172 = arith.constant 128 : index
    %151 = vector.load %arg38[%c0_171, %c128_172] : memref<16x292xbf16, #tpu.memory_space<vmem>>, vector<16x36xbf16>
    %c0_173 = arith.constant 0 : index
    %c129_174 = arith.constant 129 : index
    %152 = vector.load %arg38[%c0_173, %c129_174] : memref<16x292xbf16, #tpu.memory_space<vmem>>, vector<16x36xbf16>
    %c0_175 = arith.constant 0 : index
    %c133 = arith.constant 133 : index
    %153 = vector.load %arg38[%c0_175, %c133] : memref<16x292xbf16, #tpu.memory_space<vmem>>, vector<16x36xbf16>
    %c0_176 = arith.constant 0 : index
    %c134 = arith.constant 134 : index
    %154 = vector.load %arg38[%c0_176, %c134] : memref<16x292xbf16, #tpu.memory_space<vmem>>, vector<16x36xbf16>
    %c0_177 = arith.constant 0 : index
    %c135 = arith.constant 135 : index
    %155 = vector.load %arg38[%c0_177, %c135] : memref<16x292xbf16, #tpu.memory_space<vmem>>, vector<16x36xbf16>
    %156 = tpu.concatenate %147, %148, %149, %150, %151, %152, %153, %154, %155 in 0 : vector<16x36xbf16>, vector<16x36xbf16>, vector<16x36xbf16>, vector<16x36xbf16>, vector<16x36xbf16>, vector<16x36xbf16>, vector<16x36xbf16>, vector<16x36xbf16>, vector<16x36xbf16> -> vector<144x36xbf16>
    %c0_178 = arith.constant 0 : index
    %c0_179 = arith.constant 0 : index
    %157 = vector.load %arg6[%c0_178, %c0_179] : memref<32x144xbf16, #tpu.memory_space<vmem>>, vector<32x144xbf16>
    %cst_180 = arith.constant dense<0.000000e+00> : vector<32x36xf32>
    %158 = tpu.matmul %157, %156, %cst_180 {dimension_numbers = #tpu.dot_dimension_numbers<[1], [0], [0], [1], [0, 0, 1, 1], [], []>} : vector<32x144xbf16>, vector<144x36xbf16>, vector<32x36xf32> -> vector<32x36xf32>
    %c0_181 = arith.constant 0 : index
    %c0_182 = arith.constant 0 : index
    %159 = vector.load %arg7[%c0_181, %c0_182] : memref<32x2xf32, #tpu.memory_space<vmem>>, vector<32x2xf32>
    %160 = vector.extract_strided_slice %159 {offsets = [0, 0], sizes = [32, 1], strides = [1, 1]} : vector<32x2xf32> to vector<32x1xf32>
    %161 = vector.broadcast %160 : vector<32x1xf32> to vector<32x36xf32>
    %162 = arith.mulf %158, %161 : vector<32x36xf32>
    %163 = vector.extract_strided_slice %159 {offsets = [0, 1], sizes = [32, 1], strides = [1, 1]} : vector<32x2xf32> to vector<32x1xf32>
    %164 = vector.broadcast %163 : vector<32x1xf32> to vector<32x36xf32>
    %165 = arith.addf %162, %164 : vector<32x36xf32>
    %cst_183 = arith.constant 0.000000e+00 : f32
    %166 = vector.broadcast %cst_183 : f32 to vector<32x36xf32>
    %167 = arith.maximumf %165, %166 : vector<32x36xf32>
    %c0_184 = arith.constant 0 : index
    %c0_185 = arith.constant 0 : index
    %168 = vector.load %arg26[%c0_184, %c0_185] : memref<1x36xf32, #tpu.memory_space<vmem>>, vector<1x36xf32>
    %169 = vector.broadcast %168 : vector<1x36xf32> to vector<32x36xf32>
    %170 = arith.mulf %167, %169 : vector<32x36xf32>
    %171 = arith.truncf %170 : vector<32x36xf32> to vector<32x36xbf16>
    %c0_186 = arith.constant 0 : index
    %c128_187 = arith.constant 128 : index
    %172 = vector.load %arg39[%c0_186, %c128_187] : memref<32x292xbf16, #tpu.memory_space<vmem>>, vector<32x36xbf16>
    tpu.vector_store %arg39[%c0_186, %c128_187], %171 {strides = array<i32>} : memref<32x292xbf16, #tpu.memory_space<vmem>>, vector<32x36xbf16>,
    %c0_188 = arith.constant 0 : index
    %c128_189 = arith.constant 128 : index
    %173 = vector.load %arg39[%c0_188, %c128_189] : memref<32x292xbf16, #tpu.memory_space<vmem>>, vector<32x36xbf16>
    %c0_190 = arith.constant 0 : index
    %c129_191 = arith.constant 129 : index
    %174 = vector.load %arg39[%c0_190, %c129_191] : memref<32x292xbf16, #tpu.memory_space<vmem>>, vector<32x36xbf16>
    %c0_192 = arith.constant 0 : index
    %c134_193 = arith.constant 134 : index
    %175 = vector.load %arg39[%c0_192, %c134_193] : memref<32x292xbf16, #tpu.memory_space<vmem>>, vector<32x36xbf16>
    %c0_194 = arith.constant 0 : index
    %c135_195 = arith.constant 135 : index
    %176 = vector.load %arg39[%c0_194, %c135_195] : memref<32x292xbf16, #tpu.memory_space<vmem>>, vector<32x36xbf16>
    %177 = arith.maximumf %173, %174 : vector<32x36xbf16>
    %178 = arith.maximumf %175, %176 : vector<32x36xbf16>
    %179 = arith.maximumf %177, %178 : vector<32x36xbf16>
    %c0_196 = arith.constant 0 : index
    %c0_197 = arith.constant 0 : index
    %180 = vector.load %arg30[%c0_196, %c0_197] : memref<36x16xbf16, #tpu.memory_space<vmem>>, vector<36x16xbf16>
    %cst_198 = arith.constant dense<0.000000e+00> : vector<32x16xf32>
    %181 = tpu.matmul %179, %180, %cst_198 {dimension_numbers = #tpu.dot_dimension_numbers<[1], [0], [0], [1], [0, 0, 1, 1], [], []>} : vector<32x36xbf16>, vector<36x16xbf16>, vector<32x16xf32> -> vector<32x16xf32>
    %182 = arith.truncf %181 : vector<32x16xf32> to vector<32x16xbf16>
    %c0_199 = arith.constant 0 : index
    %c128_200 = arith.constant 128 : index
    %183 = vector.load %arg40[%c0_199, %c128_200] : memref<32x272xbf16, #tpu.memory_space<vmem>>, vector<32x16xbf16>
    tpu.vector_store %arg40[%c0_199, %c128_200], %182 {strides = array<i32>} : memref<32x272xbf16, #tpu.memory_space<vmem>>, vector<32x16xbf16>,
    %c0_201 = arith.constant 0 : index
    %c123_202 = arith.constant 123 : index
    %184 = vector.load %arg40[%c0_201, %c123_202] : memref<32x272xbf16, #tpu.memory_space<vmem>>, vector<32x16xbf16>
    %c0_203 = arith.constant 0 : index
    %c124 = arith.constant 124 : index
    %185 = vector.load %arg40[%c0_203, %c124] : memref<32x272xbf16, #tpu.memory_space<vmem>>, vector<32x16xbf16>
    %c0_204 = arith.constant 0 : index
    %c125 = arith.constant 125 : index
    %186 = vector.load %arg40[%c0_204, %c125] : memref<32x272xbf16, #tpu.memory_space<vmem>>, vector<32x16xbf16>
    %c0_205 = arith.constant 0 : index
    %c127_206 = arith.constant 127 : index
    %187 = vector.load %arg40[%c0_205, %c127_206] : memref<32x272xbf16, #tpu.memory_space<vmem>>, vector<32x16xbf16>
    %c0_207 = arith.constant 0 : index
    %c128_208 = arith.constant 128 : index
    %188 = vector.load %arg40[%c0_207, %c128_208] : memref<32x272xbf16, #tpu.memory_space<vmem>>, vector<32x16xbf16>
    %c0_209 = arith.constant 0 : index
    %c129_210 = arith.constant 129 : index
    %189 = vector.load %arg40[%c0_209, %c129_210] : memref<32x272xbf16, #tpu.memory_space<vmem>>, vector<32x16xbf16>
    %c0_211 = arith.constant 0 : index
    %c131 = arith.constant 131 : index
    %190 = vector.load %arg40[%c0_211, %c131] : memref<32x272xbf16, #tpu.memory_space<vmem>>, vector<32x16xbf16>
    %c0_212 = arith.constant 0 : index
    %c132 = arith.constant 132 : index
    %191 = vector.load %arg40[%c0_212, %c132] : memref<32x272xbf16, #tpu.memory_space<vmem>>, vector<32x16xbf16>
    %c0_213 = arith.constant 0 : index
    %c133_214 = arith.constant 133 : index
    %192 = vector.load %arg40[%c0_213, %c133_214] : memref<32x272xbf16, #tpu.memory_space<vmem>>, vector<32x16xbf16>
    %193 = tpu.concatenate %184, %185, %186, %187, %188, %189, %190, %191, %192 in 0 : vector<32x16xbf16>, vector<32x16xbf16>, vector<32x16xbf16>, vector<32x16xbf16>, vector<32x16xbf16>, vector<32x16xbf16>, vector<32x16xbf16>, vector<32x16xbf16>, vector<32x16xbf16> -> vector<288x16xbf16>
    %c0_215 = arith.constant 0 : index
    %c0_216 = arith.constant 0 : index
    %194 = vector.load %arg8[%c0_215, %c0_216] : memref<64x288xbf16, #tpu.memory_space<vmem>>, vector<64x288xbf16>
    %cst_217 = arith.constant dense<0.000000e+00> : vector<64x16xf32>
    %195 = tpu.matmul %194, %193, %cst_217 {dimension_numbers = #tpu.dot_dimension_numbers<[1], [0], [0], [1], [0, 0, 1, 1], [], []>} : vector<64x288xbf16>, vector<288x16xbf16>, vector<64x16xf32> -> vector<64x16xf32>
    %c0_218 = arith.constant 0 : index
    %c0_219 = arith.constant 0 : index
    %196 = vector.load %arg9[%c0_218, %c0_219] : memref<64x2xf32, #tpu.memory_space<vmem>>, vector<64x2xf32>
    %197 = vector.extract_strided_slice %196 {offsets = [0, 0], sizes = [64, 1], strides = [1, 1]} : vector<64x2xf32> to vector<64x1xf32>
    %198 = vector.broadcast %197 : vector<64x1xf32> to vector<64x16xf32>
    %199 = arith.mulf %195, %198 : vector<64x16xf32>
    %200 = vector.extract_strided_slice %196 {offsets = [0, 1], sizes = [64, 1], strides = [1, 1]} : vector<64x2xf32> to vector<64x1xf32>
    %201 = vector.broadcast %200 : vector<64x1xf32> to vector<64x16xf32>
    %202 = arith.addf %199, %201 : vector<64x16xf32>
    %cst_220 = arith.constant 0.000000e+00 : f32
    %203 = vector.broadcast %cst_220 : f32 to vector<64x16xf32>
    %204 = arith.maximumf %202, %203 : vector<64x16xf32>
    %c0_221 = arith.constant 0 : index
    %c0_222 = arith.constant 0 : index
    %205 = vector.load %arg27[%c0_221, %c0_222] : memref<1x16xf32, #tpu.memory_space<vmem>>, vector<1x16xf32>
    %206 = vector.broadcast %205 : vector<1x16xf32> to vector<64x16xf32>
    %207 = arith.mulf %204, %206 : vector<64x16xf32>
    %208 = arith.truncf %207 : vector<64x16xf32> to vector<64x16xbf16>
    %c0_223 = arith.constant 0 : index
    %c128_224 = arith.constant 128 : index
    %209 = vector.load %arg41[%c0_223, %c128_224] : memref<64x272xbf16, #tpu.memory_space<vmem>>, vector<64x16xbf16>
    tpu.vector_store %arg41[%c0_223, %c128_224], %208 {strides = array<i32>} : memref<64x272xbf16, #tpu.memory_space<vmem>>, vector<64x16xbf16>,
    %c0_225 = arith.constant 0 : index
    %c128_226 = arith.constant 128 : index
    %210 = vector.load %arg41[%c0_225, %c128_226] : memref<64x272xbf16, #tpu.memory_space<vmem>>, vector<64x16xbf16>
    %c0_227 = arith.constant 0 : index
    %c0_228 = arith.constant 0 : index
    %211 = vector.load %arg31[%c0_227, %c0_228] : memref<16x36xbf16, #tpu.memory_space<vmem>>, vector<16x36xbf16>
    %cst_229 = arith.constant dense<0.000000e+00> : vector<64x36xf32>
    %212 = tpu.matmul %210, %211, %cst_229 {dimension_numbers = #tpu.dot_dimension_numbers<[1], [0], [0], [1], [0, 0, 1, 1], [], []>} : vector<64x16xbf16>, vector<16x36xbf16>, vector<64x36xf32> -> vector<64x36xf32>
    %213 = arith.truncf %212 : vector<64x36xf32> to vector<64x36xbf16>
    %c0_230 = arith.constant 0 : index
    %c128_231 = arith.constant 128 : index
    %214 = vector.load %arg42[%c0_230, %c128_231] : memref<64x292xbf16, #tpu.memory_space<vmem>>, vector<64x36xbf16>
    tpu.vector_store %arg42[%c0_230, %c128_231], %213 {strides = array<i32>} : memref<64x292xbf16, #tpu.memory_space<vmem>>, vector<64x36xbf16>,
    %c0_232 = arith.constant 0 : index
    %c121_233 = arith.constant 121 : index
    %215 = vector.load %arg42[%c0_232, %c121_233] : memref<64x292xbf16, #tpu.memory_space<vmem>>, vector<64x36xbf16>
    %c0_234 = arith.constant 0 : index
    %c122_235 = arith.constant 122 : index
    %216 = vector.load %arg42[%c0_234, %c122_235] : memref<64x292xbf16, #tpu.memory_space<vmem>>, vector<64x36xbf16>
    %c0_236 = arith.constant 0 : index
    %c123_237 = arith.constant 123 : index
    %217 = vector.load %arg42[%c0_236, %c123_237] : memref<64x292xbf16, #tpu.memory_space<vmem>>, vector<64x36xbf16>
    %c0_238 = arith.constant 0 : index
    %c127_239 = arith.constant 127 : index
    %218 = vector.load %arg42[%c0_238, %c127_239] : memref<64x292xbf16, #tpu.memory_space<vmem>>, vector<64x36xbf16>
    %c0_240 = arith.constant 0 : index
    %c128_241 = arith.constant 128 : index
    %219 = vector.load %arg42[%c0_240, %c128_241] : memref<64x292xbf16, #tpu.memory_space<vmem>>, vector<64x36xbf16>
    %c0_242 = arith.constant 0 : index
    %c129_243 = arith.constant 129 : index
    %220 = vector.load %arg42[%c0_242, %c129_243] : memref<64x292xbf16, #tpu.memory_space<vmem>>, vector<64x36xbf16>
    %c0_244 = arith.constant 0 : index
    %c133_245 = arith.constant 133 : index
    %221 = vector.load %arg42[%c0_244, %c133_245] : memref<64x292xbf16, #tpu.memory_space<vmem>>, vector<64x36xbf16>
    %c0_246 = arith.constant 0 : index
    %c134_247 = arith.constant 134 : index
    %222 = vector.load %arg42[%c0_246, %c134_247] : memref<64x292xbf16, #tpu.memory_space<vmem>>, vector<64x36xbf16>
    %c0_248 = arith.constant 0 : index
    %c135_249 = arith.constant 135 : index
    %223 = vector.load %arg42[%c0_248, %c135_249] : memref<64x292xbf16, #tpu.memory_space<vmem>>, vector<64x36xbf16>
    %224 = tpu.concatenate %215, %216, %217, %218, %219, %220, %221, %222, %223 in 0 : vector<64x36xbf16>, vector<64x36xbf16>, vector<64x36xbf16>, vector<64x36xbf16>, vector<64x36xbf16>, vector<64x36xbf16>, vector<64x36xbf16>, vector<64x36xbf16>, vector<64x36xbf16> -> vector<576x36xbf16>
    %c0_250 = arith.constant 0 : index
    %c0_251 = arith.constant 0 : index
    %225 = vector.load %arg10[%c0_250, %c0_251] : memref<32x576xbf16, #tpu.memory_space<vmem>>, vector<32x576xbf16>
    %cst_252 = arith.constant dense<0.000000e+00> : vector<32x36xf32>
    %226 = tpu.matmul %225, %224, %cst_252 {dimension_numbers = #tpu.dot_dimension_numbers<[1], [0], [0], [1], [0, 0, 1, 1], [], []>} : vector<32x576xbf16>, vector<576x36xbf16>, vector<32x36xf32> -> vector<32x36xf32>
    %c0_253 = arith.constant 0 : index
    %c0_254 = arith.constant 0 : index
    %227 = vector.load %arg11[%c0_253, %c0_254] : memref<32x2xf32, #tpu.memory_space<vmem>>, vector<32x2xf32>
    %228 = vector.extract_strided_slice %227 {offsets = [0, 0], sizes = [32, 1], strides = [1, 1]} : vector<32x2xf32> to vector<32x1xf32>
    %229 = vector.broadcast %228 : vector<32x1xf32> to vector<32x36xf32>
    %230 = arith.mulf %226, %229 : vector<32x36xf32>
    %231 = vector.extract_strided_slice %227 {offsets = [0, 1], sizes = [32, 1], strides = [1, 1]} : vector<32x2xf32> to vector<32x1xf32>
    %232 = vector.broadcast %231 : vector<32x1xf32> to vector<32x36xf32>
    %233 = arith.addf %230, %232 : vector<32x36xf32>
    %c0_255 = arith.constant 0 : index
    %c0_256 = arith.constant 0 : index
    %234 = vector.load %arg26[%c0_255, %c0_256] : memref<1x36xf32, #tpu.memory_space<vmem>>, vector<1x36xf32>
    %235 = vector.broadcast %234 : vector<1x36xf32> to vector<32x36xf32>
    %236 = arith.mulf %233, %235 : vector<32x36xf32>
    %237 = arith.truncf %236 : vector<32x36xf32> to vector<32x36xbf16>
    %c0_257 = arith.constant 0 : index
    %c128_258 = arith.constant 128 : index
    %238 = vector.load %arg43[%c0_257, %c128_258] : memref<32x292xbf16, #tpu.memory_space<vmem>>, vector<32x36xbf16>
    tpu.vector_store %arg43[%c0_257, %c128_258], %237 {strides = array<i32>} : memref<32x292xbf16, #tpu.memory_space<vmem>>, vector<32x36xbf16>,
    %c0_259 = arith.constant 0 : index
    %c121_260 = arith.constant 121 : index
    %239 = vector.load %arg43[%c0_259, %c121_260] : memref<32x292xbf16, #tpu.memory_space<vmem>>, vector<32x36xbf16>
    %c0_261 = arith.constant 0 : index
    %c122_262 = arith.constant 122 : index
    %240 = vector.load %arg43[%c0_261, %c122_262] : memref<32x292xbf16, #tpu.memory_space<vmem>>, vector<32x36xbf16>
    %c0_263 = arith.constant 0 : index
    %c123_264 = arith.constant 123 : index
    %241 = vector.load %arg43[%c0_263, %c123_264] : memref<32x292xbf16, #tpu.memory_space<vmem>>, vector<32x36xbf16>
    %c0_265 = arith.constant 0 : index
    %c127_266 = arith.constant 127 : index
    %242 = vector.load %arg43[%c0_265, %c127_266] : memref<32x292xbf16, #tpu.memory_space<vmem>>, vector<32x36xbf16>
    %c0_267 = arith.constant 0 : index
    %c128_268 = arith.constant 128 : index
    %243 = vector.load %arg43[%c0_267, %c128_268] : memref<32x292xbf16, #tpu.memory_space<vmem>>, vector<32x36xbf16>
    %c0_269 = arith.constant 0 : index
    %c129_270 = arith.constant 129 : index
    %244 = vector.load %arg43[%c0_269, %c129_270] : memref<32x292xbf16, #tpu.memory_space<vmem>>, vector<32x36xbf16>
    %c0_271 = arith.constant 0 : index
    %c133_272 = arith.constant 133 : index
    %245 = vector.load %arg43[%c0_271, %c133_272] : memref<32x292xbf16, #tpu.memory_space<vmem>>, vector<32x36xbf16>
    %c0_273 = arith.constant 0 : index
    %c134_274 = arith.constant 134 : index
    %246 = vector.load %arg43[%c0_273, %c134_274] : memref<32x292xbf16, #tpu.memory_space<vmem>>, vector<32x36xbf16>
    %c0_275 = arith.constant 0 : index
    %c135_276 = arith.constant 135 : index
    %247 = vector.load %arg43[%c0_275, %c135_276] : memref<32x292xbf16, #tpu.memory_space<vmem>>, vector<32x36xbf16>
    %c0_277 = arith.constant 0 : index
    %c121_278 = arith.constant 121 : index
    %248 = vector.load %arg39[%c0_277, %c121_278] : memref<32x292xbf16, #tpu.memory_space<vmem>>, vector<32x36xbf16>
    %c0_279 = arith.constant 0 : index
    %c122_280 = arith.constant 122 : index
    %249 = vector.load %arg39[%c0_279, %c122_280] : memref<32x292xbf16, #tpu.memory_space<vmem>>, vector<32x36xbf16>
    %c0_281 = arith.constant 0 : index
    %c123_282 = arith.constant 123 : index
    %250 = vector.load %arg39[%c0_281, %c123_282] : memref<32x292xbf16, #tpu.memory_space<vmem>>, vector<32x36xbf16>
    %c0_283 = arith.constant 0 : index
    %c127_284 = arith.constant 127 : index
    %251 = vector.load %arg39[%c0_283, %c127_284] : memref<32x292xbf16, #tpu.memory_space<vmem>>, vector<32x36xbf16>
    %c0_285 = arith.constant 0 : index
    %c128_286 = arith.constant 128 : index
    %252 = vector.load %arg39[%c0_285, %c128_286] : memref<32x292xbf16, #tpu.memory_space<vmem>>, vector<32x36xbf16>
    %c0_287 = arith.constant 0 : index
    %c129_288 = arith.constant 129 : index
    %253 = vector.load %arg39[%c0_287, %c129_288] : memref<32x292xbf16, #tpu.memory_space<vmem>>, vector<32x36xbf16>
    %c0_289 = arith.constant 0 : index
    %c133_290 = arith.constant 133 : index
    %254 = vector.load %arg39[%c0_289, %c133_290] : memref<32x292xbf16, #tpu.memory_space<vmem>>, vector<32x36xbf16>
    %c0_291 = arith.constant 0 : index
    %c134_292 = arith.constant 134 : index
    %255 = vector.load %arg39[%c0_291, %c134_292] : memref<32x292xbf16, #tpu.memory_space<vmem>>, vector<32x36xbf16>
    %c0_293 = arith.constant 0 : index
    %c135_294 = arith.constant 135 : index
    %256 = vector.load %arg39[%c0_293, %c135_294] : memref<32x292xbf16, #tpu.memory_space<vmem>>, vector<32x36xbf16>
    %257 = tpu.concatenate %239, %240, %241, %242, %243, %244, %245, %246, %247, %248, %249, %250, %251, %252, %253, %254 in 0 : vector<32x36xbf16>, vector<32x36xbf16>, vector<32x36xbf16>, vector<32x36xbf16>, vector<32x36xbf16>, vector<32x36xbf16>, vector<32x36xbf16>, vector<32x36xbf16>, vector<32x36xbf16>, vector<32x36xbf16>, vector<32x36xbf16>, vector<32x36xbf16>, vector<32x36xbf16>, vector<32x36xbf16>, vector<32x36xbf16>, vector<32x36xbf16> -> vector<512x36xbf16>
    %258 = tpu.concatenate %255, %256 in 0 : vector<32x36xbf16>, vector<32x36xbf16> -> vector<64x36xbf16>
    %259 = tpu.concatenate %257, %258 in 0 : vector<512x36xbf16>, vector<64x36xbf16> -> vector<576x36xbf16>
    %c0_295 = arith.constant 0 : index
    %c0_296 = arith.constant 0 : index
    %260 = vector.load %arg12[%c0_295, %c0_296] : memref<32x576xbf16, #tpu.memory_space<vmem>>, vector<32x576xbf16>
    %cst_297 = arith.constant dense<0.000000e+00> : vector<32x36xf32>
    %261 = tpu.matmul %260, %259, %cst_297 {dimension_numbers = #tpu.dot_dimension_numbers<[1], [0], [0], [1], [0, 0, 1, 1], [], []>} : vector<32x576xbf16>, vector<576x36xbf16>, vector<32x36xf32> -> vector<32x36xf32>
    %c0_298 = arith.constant 0 : index
    %c0_299 = arith.constant 0 : index
    %262 = vector.load %arg13[%c0_298, %c0_299] : memref<32x2xf32, #tpu.memory_space<vmem>>, vector<32x2xf32>
    %263 = vector.extract_strided_slice %262 {offsets = [0, 0], sizes = [32, 1], strides = [1, 1]} : vector<32x2xf32> to vector<32x1xf32>
    %264 = vector.broadcast %263 : vector<32x1xf32> to vector<32x36xf32>
    %265 = arith.mulf %261, %264 : vector<32x36xf32>
    %266 = vector.extract_strided_slice %262 {offsets = [0, 1], sizes = [32, 1], strides = [1, 1]} : vector<32x2xf32> to vector<32x1xf32>
    %267 = vector.broadcast %266 : vector<32x1xf32> to vector<32x36xf32>
    %268 = arith.addf %265, %267 : vector<32x36xf32>
    %cst_300 = arith.constant 0.000000e+00 : f32
    %269 = vector.broadcast %cst_300 : f32 to vector<32x36xf32>
    %270 = arith.maximumf %268, %269 : vector<32x36xf32>
    %c0_301 = arith.constant 0 : index
    %c0_302 = arith.constant 0 : index
    %271 = vector.load %arg26[%c0_301, %c0_302] : memref<1x36xf32, #tpu.memory_space<vmem>>, vector<1x36xf32>
    %272 = vector.broadcast %271 : vector<1x36xf32> to vector<32x36xf32>
    %273 = arith.mulf %270, %272 : vector<32x36xf32>
    %274 = arith.truncf %273 : vector<32x36xf32> to vector<32x36xbf16>
    %c0_303 = arith.constant 0 : index
    %c128_304 = arith.constant 128 : index
    %275 = vector.load %arg44[%c0_303, %c128_304] : memref<32x292xbf16, #tpu.memory_space<vmem>>, vector<32x36xbf16>
    tpu.vector_store %arg44[%c0_303, %c128_304], %274 {strides = array<i32>} : memref<32x292xbf16, #tpu.memory_space<vmem>>, vector<32x36xbf16>,
    %c0_305 = arith.constant 0 : index
    %c128_306 = arith.constant 128 : index
    %276 = vector.load %arg44[%c0_305, %c128_306] : memref<32x292xbf16, #tpu.memory_space<vmem>>, vector<32x36xbf16>
    %c0_307 = arith.constant 0 : index
    %c0_308 = arith.constant 0 : index
    %277 = vector.load %arg32[%c0_307, %c0_308] : memref<36x100xbf16, #tpu.memory_space<vmem>>, vector<36x100xbf16>
    %cst_309 = arith.constant dense<0.000000e+00> : vector<32x100xf32>
    %278 = tpu.matmul %276, %277, %cst_309 {dimension_numbers = #tpu.dot_dimension_numbers<[1], [0], [0], [1], [0, 0, 1, 1], [], []>} : vector<32x36xbf16>, vector<36x100xbf16>, vector<32x100xf32> -> vector<32x100xf32>
    %279 = arith.truncf %278 : vector<32x100xf32> to vector<32x100xbf16>
    %c0_310 = arith.constant 0 : index
    %c128_311 = arith.constant 128 : index
    %280 = vector.load %arg45[%c0_310, %c128_311] : memref<32x356xbf16, #tpu.memory_space<vmem>>, vector<32x100xbf16>
    tpu.vector_store %arg45[%c0_310, %c128_311], %279 {strides = array<i32>} : memref<32x356xbf16, #tpu.memory_space<vmem>>, vector<32x100xbf16>,
    %c0_312 = arith.constant 0 : index
    %c117_313 = arith.constant 117 : index
    %281 = vector.load %arg45[%c0_312, %c117_313] : memref<32x356xbf16, #tpu.memory_space<vmem>>, vector<32x100xbf16>
    %c0_314 = arith.constant 0 : index
    %c118_315 = arith.constant 118 : index
    %282 = vector.load %arg45[%c0_314, %c118_315] : memref<32x356xbf16, #tpu.memory_space<vmem>>, vector<32x100xbf16>
    %c0_316 = arith.constant 0 : index
    %c119_317 = arith.constant 119 : index
    %283 = vector.load %arg45[%c0_316, %c119_317] : memref<32x356xbf16, #tpu.memory_space<vmem>>, vector<32x100xbf16>
    %c0_318 = arith.constant 0 : index
    %c127_319 = arith.constant 127 : index
    %284 = vector.load %arg45[%c0_318, %c127_319] : memref<32x356xbf16, #tpu.memory_space<vmem>>, vector<32x100xbf16>
    %c0_320 = arith.constant 0 : index
    %c128_321 = arith.constant 128 : index
    %285 = vector.load %arg45[%c0_320, %c128_321] : memref<32x356xbf16, #tpu.memory_space<vmem>>, vector<32x100xbf16>
    %c0_322 = arith.constant 0 : index
    %c129_323 = arith.constant 129 : index
    %286 = vector.load %arg45[%c0_322, %c129_323] : memref<32x356xbf16, #tpu.memory_space<vmem>>, vector<32x100xbf16>
    %c0_324 = arith.constant 0 : index
    %c137_325 = arith.constant 137 : index
    %287 = vector.load %arg45[%c0_324, %c137_325] : memref<32x356xbf16, #tpu.memory_space<vmem>>, vector<32x100xbf16>
    %c0_326 = arith.constant 0 : index
    %c138_327 = arith.constant 138 : index
    %288 = vector.load %arg45[%c0_326, %c138_327] : memref<32x356xbf16, #tpu.memory_space<vmem>>, vector<32x100xbf16>
    %c0_328 = arith.constant 0 : index
    %c139_329 = arith.constant 139 : index
    %289 = vector.load %arg45[%c0_328, %c139_329] : memref<32x356xbf16, #tpu.memory_space<vmem>>, vector<32x100xbf16>
    %290 = tpu.concatenate %281, %282, %283, %284, %285, %286, %287, %288, %289 in 0 : vector<32x100xbf16>, vector<32x100xbf16>, vector<32x100xbf16>, vector<32x100xbf16>, vector<32x100xbf16>, vector<32x100xbf16>, vector<32x100xbf16>, vector<32x100xbf16>, vector<32x100xbf16> -> vector<288x100xbf16>
    %c0_330 = arith.constant 0 : index
    %c0_331 = arith.constant 0 : index
    %291 = vector.load %arg14[%c0_330, %c0_331] : memref<16x288xbf16, #tpu.memory_space<vmem>>, vector<16x288xbf16>
    %cst_332 = arith.constant dense<0.000000e+00> : vector<16x100xf32>
    %292 = tpu.matmul %291, %290, %cst_332 {dimension_numbers = #tpu.dot_dimension_numbers<[1], [0], [0], [1], [0, 0, 1, 1], [], []>} : vector<16x288xbf16>, vector<288x100xbf16>, vector<16x100xf32> -> vector<16x100xf32>
    %c0_333 = arith.constant 0 : index
    %c0_334 = arith.constant 0 : index
    %293 = vector.load %arg15[%c0_333, %c0_334] : memref<16x2xf32, #tpu.memory_space<vmem>>, vector<16x2xf32>
    %294 = vector.extract_strided_slice %293 {offsets = [0, 0], sizes = [16, 1], strides = [1, 1]} : vector<16x2xf32> to vector<16x1xf32>
    %295 = vector.broadcast %294 : vector<16x1xf32> to vector<16x100xf32>
    %296 = arith.mulf %292, %295 : vector<16x100xf32>
    %297 = vector.extract_strided_slice %293 {offsets = [0, 1], sizes = [16, 1], strides = [1, 1]} : vector<16x2xf32> to vector<16x1xf32>
    %298 = vector.broadcast %297 : vector<16x1xf32> to vector<16x100xf32>
    %299 = arith.addf %296, %298 : vector<16x100xf32>
    %c0_335 = arith.constant 0 : index
    %c0_336 = arith.constant 0 : index
    %300 = vector.load %arg25[%c0_335, %c0_336] : memref<1x100xf32, #tpu.memory_space<vmem>>, vector<1x100xf32>
    %301 = vector.broadcast %300 : vector<1x100xf32> to vector<16x100xf32>
    %302 = arith.mulf %299, %301 : vector<16x100xf32>
    %303 = arith.truncf %302 : vector<16x100xf32> to vector<16x100xbf16>
    %c0_337 = arith.constant 0 : index
    %c128_338 = arith.constant 128 : index
    %304 = vector.load %arg46[%c0_337, %c128_338] : memref<16x356xbf16, #tpu.memory_space<vmem>>, vector<16x100xbf16>
    tpu.vector_store %arg46[%c0_337, %c128_338], %303 {strides = array<i32>} : memref<16x356xbf16, #tpu.memory_space<vmem>>, vector<16x100xbf16>,
    %c0_339 = arith.constant 0 : index
    %c117_340 = arith.constant 117 : index
    %305 = vector.load %arg46[%c0_339, %c117_340] : memref<16x356xbf16, #tpu.memory_space<vmem>>, vector<16x100xbf16>
    %c0_341 = arith.constant 0 : index
    %c118_342 = arith.constant 118 : index
    %306 = vector.load %arg46[%c0_341, %c118_342] : memref<16x356xbf16, #tpu.memory_space<vmem>>, vector<16x100xbf16>
    %c0_343 = arith.constant 0 : index
    %c119_344 = arith.constant 119 : index
    %307 = vector.load %arg46[%c0_343, %c119_344] : memref<16x356xbf16, #tpu.memory_space<vmem>>, vector<16x100xbf16>
    %c0_345 = arith.constant 0 : index
    %c127_346 = arith.constant 127 : index
    %308 = vector.load %arg46[%c0_345, %c127_346] : memref<16x356xbf16, #tpu.memory_space<vmem>>, vector<16x100xbf16>
    %c0_347 = arith.constant 0 : index
    %c128_348 = arith.constant 128 : index
    %309 = vector.load %arg46[%c0_347, %c128_348] : memref<16x356xbf16, #tpu.memory_space<vmem>>, vector<16x100xbf16>
    %c0_349 = arith.constant 0 : index
    %c129_350 = arith.constant 129 : index
    %310 = vector.load %arg46[%c0_349, %c129_350] : memref<16x356xbf16, #tpu.memory_space<vmem>>, vector<16x100xbf16>
    %c0_351 = arith.constant 0 : index
    %c137_352 = arith.constant 137 : index
    %311 = vector.load %arg46[%c0_351, %c137_352] : memref<16x356xbf16, #tpu.memory_space<vmem>>, vector<16x100xbf16>
    %c0_353 = arith.constant 0 : index
    %c138_354 = arith.constant 138 : index
    %312 = vector.load %arg46[%c0_353, %c138_354] : memref<16x356xbf16, #tpu.memory_space<vmem>>, vector<16x100xbf16>
    %c0_355 = arith.constant 0 : index
    %c139_356 = arith.constant 139 : index
    %313 = vector.load %arg46[%c0_355, %c139_356] : memref<16x356xbf16, #tpu.memory_space<vmem>>, vector<16x100xbf16>
    %c0_357 = arith.constant 0 : index
    %c117_358 = arith.constant 117 : index
    %314 = vector.load %arg37[%c0_357, %c117_358] : memref<16x356xbf16, #tpu.memory_space<vmem>>, vector<16x100xbf16>
    %c0_359 = arith.constant 0 : index
    %c118_360 = arith.constant 118 : index
    %315 = vector.load %arg37[%c0_359, %c118_360] : memref<16x356xbf16, #tpu.memory_space<vmem>>, vector<16x100xbf16>
    %c0_361 = arith.constant 0 : index
    %c119_362 = arith.constant 119 : index
    %316 = vector.load %arg37[%c0_361, %c119_362] : memref<16x356xbf16, #tpu.memory_space<vmem>>, vector<16x100xbf16>
    %c0_363 = arith.constant 0 : index
    %c127_364 = arith.constant 127 : index
    %317 = vector.load %arg37[%c0_363, %c127_364] : memref<16x356xbf16, #tpu.memory_space<vmem>>, vector<16x100xbf16>
    %c0_365 = arith.constant 0 : index
    %c128_366 = arith.constant 128 : index
    %318 = vector.load %arg37[%c0_365, %c128_366] : memref<16x356xbf16, #tpu.memory_space<vmem>>, vector<16x100xbf16>
    %c0_367 = arith.constant 0 : index
    %c129_368 = arith.constant 129 : index
    %319 = vector.load %arg37[%c0_367, %c129_368] : memref<16x356xbf16, #tpu.memory_space<vmem>>, vector<16x100xbf16>
    %c0_369 = arith.constant 0 : index
    %c137_370 = arith.constant 137 : index
    %320 = vector.load %arg37[%c0_369, %c137_370] : memref<16x356xbf16, #tpu.memory_space<vmem>>, vector<16x100xbf16>
    %c0_371 = arith.constant 0 : index
    %c138_372 = arith.constant 138 : index
    %321 = vector.load %arg37[%c0_371, %c138_372] : memref<16x356xbf16, #tpu.memory_space<vmem>>, vector<16x100xbf16>
    %c0_373 = arith.constant 0 : index
    %c139_374 = arith.constant 139 : index
    %322 = vector.load %arg37[%c0_373, %c139_374] : memref<16x356xbf16, #tpu.memory_space<vmem>>, vector<16x100xbf16>
    %323 = tpu.concatenate %305, %306, %307, %308, %309, %310, %311, %312, %313, %314, %315, %316, %317, %318, %319, %320 in 0 : vector<16x100xbf16>, vector<16x100xbf16>, vector<16x100xbf16>, vector<16x100xbf16>, vector<16x100xbf16>, vector<16x100xbf16>, vector<16x100xbf16>, vector<16x100xbf16>, vector<16x100xbf16>, vector<16x100xbf16>, vector<16x100xbf16>, vector<16x100xbf16>, vector<16x100xbf16>, vector<16x100xbf16>, vector<16x100xbf16>, vector<16x100xbf16> -> vector<256x100xbf16>
    %324 = tpu.concatenate %321, %322 in 0 : vector<16x100xbf16>, vector<16x100xbf16> -> vector<32x100xbf16>
    %325 = tpu.concatenate %323, %324 in 0 : vector<256x100xbf16>, vector<32x100xbf16> -> vector<288x100xbf16>
    %c0_375 = arith.constant 0 : index
    %c0_376 = arith.constant 0 : index
    %326 = vector.load %arg16[%c0_375, %c0_376] : memref<16x288xbf16, #tpu.memory_space<vmem>>, vector<16x288xbf16>
    %cst_377 = arith.constant dense<0.000000e+00> : vector<16x100xf32>
    %327 = tpu.matmul %326, %325, %cst_377 {dimension_numbers = #tpu.dot_dimension_numbers<[1], [0], [0], [1], [0, 0, 1, 1], [], []>} : vector<16x288xbf16>, vector<288x100xbf16>, vector<16x100xf32> -> vector<16x100xf32>
    %c0_378 = arith.constant 0 : index
    %c0_379 = arith.constant 0 : index
    %328 = vector.load %arg17[%c0_378, %c0_379] : memref<16x2xf32, #tpu.memory_space<vmem>>, vector<16x2xf32>
    %329 = vector.extract_strided_slice %328 {offsets = [0, 0], sizes = [16, 1], strides = [1, 1]} : vector<16x2xf32> to vector<16x1xf32>
    %330 = vector.broadcast %329 : vector<16x1xf32> to vector<16x100xf32>
    %331 = arith.mulf %327, %330 : vector<16x100xf32>
    %332 = vector.extract_strided_slice %328 {offsets = [0, 1], sizes = [16, 1], strides = [1, 1]} : vector<16x2xf32> to vector<16x1xf32>
    %333 = vector.broadcast %332 : vector<16x1xf32> to vector<16x100xf32>
    %334 = arith.addf %331, %333 : vector<16x100xf32>
    %cst_380 = arith.constant 0.000000e+00 : f32
    %335 = vector.broadcast %cst_380 : f32 to vector<16x100xf32>
    %336 = arith.maximumf %334, %335 : vector<16x100xf32>
    %c0_381 = arith.constant 0 : index
    %c0_382 = arith.constant 0 : index
    %337 = vector.load %arg25[%c0_381, %c0_382] : memref<1x100xf32, #tpu.memory_space<vmem>>, vector<1x100xf32>
    %338 = vector.broadcast %337 : vector<1x100xf32> to vector<16x100xf32>
    %339 = arith.mulf %336, %338 : vector<16x100xf32>
    %340 = arith.truncf %339 : vector<16x100xf32> to vector<16x100xbf16>
    %c0_383 = arith.constant 0 : index
    %c128_384 = arith.constant 128 : index
    %341 = vector.load %arg47[%c0_383, %c128_384] : memref<16x356xbf16, #tpu.memory_space<vmem>>, vector<16x100xbf16>
    tpu.vector_store %arg47[%c0_383, %c128_384], %340 {strides = array<i32>} : memref<16x356xbf16, #tpu.memory_space<vmem>>, vector<16x100xbf16>,
    %c0_385 = arith.constant 0 : index
    %c128_386 = arith.constant 128 : index
    %342 = vector.load %arg47[%c0_385, %c128_386] : memref<16x356xbf16, #tpu.memory_space<vmem>>, vector<16x100xbf16>
    %c0_387 = arith.constant 0 : index
    %c0_388 = arith.constant 0 : index
    %343 = vector.load %arg33[%c0_387, %c0_388] : memref<100x324xbf16, #tpu.memory_space<vmem>>, vector<100x324xbf16>
    %cst_389 = arith.constant dense<0.000000e+00> : vector<16x324xf32>
    %344 = tpu.matmul %342, %343, %cst_389 {dimension_numbers = #tpu.dot_dimension_numbers<[1], [0], [0], [1], [0, 0, 1, 1], [], []>} : vector<16x100xbf16>, vector<100x324xbf16>, vector<16x324xf32> -> vector<16x324xf32>
    %345 = arith.truncf %344 : vector<16x324xf32> to vector<16x324xbf16>
    %c0_390 = arith.constant 0 : index
    %c128_391 = arith.constant 128 : index
    %346 = vector.load %arg48[%c0_390, %c128_391] : memref<16x580xbf16, #tpu.memory_space<vmem>>, vector<16x324xbf16>
    tpu.vector_store %arg48[%c0_390, %c128_391], %345 {strides = array<i32>} : memref<16x580xbf16, #tpu.memory_space<vmem>>, vector<16x324xbf16>,
    %c0_392 = arith.constant 0 : index
    %c109_393 = arith.constant 109 : index
    %347 = vector.load %arg48[%c0_392, %c109_393] : memref<16x580xbf16, #tpu.memory_space<vmem>>, vector<16x324xbf16>
    %c0_394 = arith.constant 0 : index
    %c110_395 = arith.constant 110 : index
    %348 = vector.load %arg48[%c0_394, %c110_395] : memref<16x580xbf16, #tpu.memory_space<vmem>>, vector<16x324xbf16>
    %c0_396 = arith.constant 0 : index
    %c111_397 = arith.constant 111 : index
    %349 = vector.load %arg48[%c0_396, %c111_397] : memref<16x580xbf16, #tpu.memory_space<vmem>>, vector<16x324xbf16>
    %c0_398 = arith.constant 0 : index
    %c127_399 = arith.constant 127 : index
    %350 = vector.load %arg48[%c0_398, %c127_399] : memref<16x580xbf16, #tpu.memory_space<vmem>>, vector<16x324xbf16>
    %c0_400 = arith.constant 0 : index
    %c128_401 = arith.constant 128 : index
    %351 = vector.load %arg48[%c0_400, %c128_401] : memref<16x580xbf16, #tpu.memory_space<vmem>>, vector<16x324xbf16>
    %c0_402 = arith.constant 0 : index
    %c129_403 = arith.constant 129 : index
    %352 = vector.load %arg48[%c0_402, %c129_403] : memref<16x580xbf16, #tpu.memory_space<vmem>>, vector<16x324xbf16>
    %c0_404 = arith.constant 0 : index
    %c145_405 = arith.constant 145 : index
    %353 = vector.load %arg48[%c0_404, %c145_405] : memref<16x580xbf16, #tpu.memory_space<vmem>>, vector<16x324xbf16>
    %c0_406 = arith.constant 0 : index
    %c146_407 = arith.constant 146 : index
    %354 = vector.load %arg48[%c0_406, %c146_407] : memref<16x580xbf16, #tpu.memory_space<vmem>>, vector<16x324xbf16>
    %c0_408 = arith.constant 0 : index
    %c147_409 = arith.constant 147 : index
    %355 = vector.load %arg48[%c0_408, %c147_409] : memref<16x580xbf16, #tpu.memory_space<vmem>>, vector<16x324xbf16>
    %356 = tpu.concatenate %347, %348, %349, %350, %351, %352, %353, %354, %355 in 0 : vector<16x324xbf16>, vector<16x324xbf16>, vector<16x324xbf16>, vector<16x324xbf16>, vector<16x324xbf16>, vector<16x324xbf16>, vector<16x324xbf16>, vector<16x324xbf16>, vector<16x324xbf16> -> vector<144x324xbf16>
    %c0_410 = arith.constant 0 : index
    %c0_411 = arith.constant 0 : index
    %357 = vector.load %arg18[%c0_410, %c0_411] : memref<16x144xbf16, #tpu.memory_space<vmem>>, vector<16x144xbf16>
    %cst_412 = arith.constant dense<0.000000e+00> : vector<16x324xf32>
    %358 = tpu.matmul %357, %356, %cst_412 {dimension_numbers = #tpu.dot_dimension_numbers<[1], [0], [0], [1], [0, 0, 1, 1], [], []>} : vector<16x144xbf16>, vector<144x324xbf16>, vector<16x324xf32> -> vector<16x324xf32>
    %c0_413 = arith.constant 0 : index
    %c0_414 = arith.constant 0 : index
    %359 = vector.load %arg19[%c0_413, %c0_414] : memref<16x2xf32, #tpu.memory_space<vmem>>, vector<16x2xf32>
    %360 = vector.extract_strided_slice %359 {offsets = [0, 0], sizes = [16, 1], strides = [1, 1]} : vector<16x2xf32> to vector<16x1xf32>
    %361 = vector.broadcast %360 : vector<16x1xf32> to vector<16x324xf32>
    %362 = arith.mulf %358, %361 : vector<16x324xf32>
    %363 = vector.extract_strided_slice %359 {offsets = [0, 1], sizes = [16, 1], strides = [1, 1]} : vector<16x2xf32> to vector<16x1xf32>
    %364 = vector.broadcast %363 : vector<16x1xf32> to vector<16x324xf32>
    %365 = arith.addf %362, %364 : vector<16x324xf32>
    %c0_415 = arith.constant 0 : index
    %c0_416 = arith.constant 0 : index
    %366 = vector.load %arg24[%c0_415, %c0_416] : memref<1x324xf32, #tpu.memory_space<vmem>>, vector<1x324xf32>
    %367 = vector.broadcast %366 : vector<1x324xf32> to vector<16x324xf32>
    %368 = arith.mulf %365, %367 : vector<16x324xf32>
    %369 = arith.truncf %368 : vector<16x324xf32> to vector<16x324xbf16>
    %c0_417 = arith.constant 0 : index
    %c128_418 = arith.constant 128 : index
    %370 = vector.load %arg49[%c0_417, %c128_418] : memref<16x580xbf16, #tpu.memory_space<vmem>>, vector<16x324xbf16>
    tpu.vector_store %arg49[%c0_417, %c128_418], %369 {strides = array<i32>} : memref<16x580xbf16, #tpu.memory_space<vmem>>, vector<16x324xbf16>,
    %c0_419 = arith.constant 0 : index
    %c109_420 = arith.constant 109 : index
    %371 = vector.load %arg49[%c0_419, %c109_420] : memref<16x580xbf16, #tpu.memory_space<vmem>>, vector<16x324xbf16>
    %c0_421 = arith.constant 0 : index
    %c110_422 = arith.constant 110 : index
    %372 = vector.load %arg49[%c0_421, %c110_422] : memref<16x580xbf16, #tpu.memory_space<vmem>>, vector<16x324xbf16>
    %c0_423 = arith.constant 0 : index
    %c111_424 = arith.constant 111 : index
    %373 = vector.load %arg49[%c0_423, %c111_424] : memref<16x580xbf16, #tpu.memory_space<vmem>>, vector<16x324xbf16>
    %c0_425 = arith.constant 0 : index
    %c127_426 = arith.constant 127 : index
    %374 = vector.load %arg49[%c0_425, %c127_426] : memref<16x580xbf16, #tpu.memory_space<vmem>>, vector<16x324xbf16>
    %c0_427 = arith.constant 0 : index
    %c128_428 = arith.constant 128 : index
    %375 = vector.load %arg49[%c0_427, %c128_428] : memref<16x580xbf16, #tpu.memory_space<vmem>>, vector<16x324xbf16>
    %c0_429 = arith.constant 0 : index
    %c129_430 = arith.constant 129 : index
    %376 = vector.load %arg49[%c0_429, %c129_430] : memref<16x580xbf16, #tpu.memory_space<vmem>>, vector<16x324xbf16>
    %c0_431 = arith.constant 0 : index
    %c145_432 = arith.constant 145 : index
    %377 = vector.load %arg49[%c0_431, %c145_432] : memref<16x580xbf16, #tpu.memory_space<vmem>>, vector<16x324xbf16>
    %c0_433 = arith.constant 0 : index
    %c146_434 = arith.constant 146 : index
    %378 = vector.load %arg49[%c0_433, %c146_434] : memref<16x580xbf16, #tpu.memory_space<vmem>>, vector<16x324xbf16>
    %c0_435 = arith.constant 0 : index
    %c147_436 = arith.constant 147 : index
    %379 = vector.load %arg49[%c0_435, %c147_436] : memref<16x580xbf16, #tpu.memory_space<vmem>>, vector<16x324xbf16>
    %c0_437 = arith.constant 0 : index
    %c109_438 = arith.constant 109 : index
    %380 = vector.load %arg35[%c0_437, %c109_438] : memref<16x580xbf16, #tpu.memory_space<vmem>>, vector<16x324xbf16>
    %c0_439 = arith.constant 0 : index
    %c110_440 = arith.constant 110 : index
    %381 = vector.load %arg35[%c0_439, %c110_440] : memref<16x580xbf16, #tpu.memory_space<vmem>>, vector<16x324xbf16>
    %c0_441 = arith.constant 0 : index
    %c111_442 = arith.constant 111 : index
    %382 = vector.load %arg35[%c0_441, %c111_442] : memref<16x580xbf16, #tpu.memory_space<vmem>>, vector<16x324xbf16>
    %c0_443 = arith.constant 0 : index
    %c127_444 = arith.constant 127 : index
    %383 = vector.load %arg35[%c0_443, %c127_444] : memref<16x580xbf16, #tpu.memory_space<vmem>>, vector<16x324xbf16>
    %c0_445 = arith.constant 0 : index
    %c128_446 = arith.constant 128 : index
    %384 = vector.load %arg35[%c0_445, %c128_446] : memref<16x580xbf16, #tpu.memory_space<vmem>>, vector<16x324xbf16>
    %c0_447 = arith.constant 0 : index
    %c129_448 = arith.constant 129 : index
    %385 = vector.load %arg35[%c0_447, %c129_448] : memref<16x580xbf16, #tpu.memory_space<vmem>>, vector<16x324xbf16>
    %c0_449 = arith.constant 0 : index
    %c145_450 = arith.constant 145 : index
    %386 = vector.load %arg35[%c0_449, %c145_450] : memref<16x580xbf16, #tpu.memory_space<vmem>>, vector<16x324xbf16>
    %c0_451 = arith.constant 0 : index
    %c146_452 = arith.constant 146 : index
    %387 = vector.load %arg35[%c0_451, %c146_452] : memref<16x580xbf16, #tpu.memory_space<vmem>>, vector<16x324xbf16>
    %c0_453 = arith.constant 0 : index
    %c147_454 = arith.constant 147 : index
    %388 = vector.load %arg35[%c0_453, %c147_454] : memref<16x580xbf16, #tpu.memory_space<vmem>>, vector<16x324xbf16>
    %389 = tpu.concatenate %371, %372, %373, %374, %375, %376, %377, %378, %379, %380, %381, %382, %383, %384, %385, %386 in 0 : vector<16x324xbf16>, vector<16x324xbf16>, vector<16x324xbf16>, vector<16x324xbf16>, vector<16x324xbf16>, vector<16x324xbf16>, vector<16x324xbf16>, vector<16x324xbf16>, vector<16x324xbf16>, vector<16x324xbf16>, vector<16x324xbf16>, vector<16x324xbf16>, vector<16x324xbf16>, vector<16x324xbf16>, vector<16x324xbf16>, vector<16x324xbf16> -> vector<256x324xbf16>
    %390 = tpu.concatenate %387, %388 in 0 : vector<16x324xbf16>, vector<16x324xbf16> -> vector<32x324xbf16>
    %391 = tpu.concatenate %389, %390 in 0 : vector<256x324xbf16>, vector<32x324xbf16> -> vector<288x324xbf16>
    %c0_455 = arith.constant 0 : index
    %c0_456 = arith.constant 0 : index
    %392 = vector.load %arg20[%c0_455, %c0_456] : memref<16x288xbf16, #tpu.memory_space<vmem>>, vector<16x288xbf16>
    %cst_457 = arith.constant dense<0.000000e+00> : vector<16x324xf32>
    %393 = tpu.matmul %392, %391, %cst_457 {dimension_numbers = #tpu.dot_dimension_numbers<[1], [0], [0], [1], [0, 0, 1, 1], [], []>} : vector<16x288xbf16>, vector<288x324xbf16>, vector<16x324xf32> -> vector<16x324xf32>
    %c0_458 = arith.constant 0 : index
    %c0_459 = arith.constant 0 : index
    %394 = vector.load %arg21[%c0_458, %c0_459] : memref<16x2xf32, #tpu.memory_space<vmem>>, vector<16x2xf32>
    %395 = vector.extract_strided_slice %394 {offsets = [0, 0], sizes = [16, 1], strides = [1, 1]} : vector<16x2xf32> to vector<16x1xf32>
    %396 = vector.broadcast %395 : vector<16x1xf32> to vector<16x324xf32>
    %397 = arith.mulf %393, %396 : vector<16x324xf32>
    %398 = vector.extract_strided_slice %394 {offsets = [0, 1], sizes = [16, 1], strides = [1, 1]} : vector<16x2xf32> to vector<16x1xf32>
    %399 = vector.broadcast %398 : vector<16x1xf32> to vector<16x324xf32>
    %400 = arith.addf %397, %399 : vector<16x324xf32>
    %cst_460 = arith.constant 0.000000e+00 : f32
    %401 = vector.broadcast %cst_460 : f32 to vector<16x324xf32>
    %402 = arith.maximumf %400, %401 : vector<16x324xf32>
    %c0_461 = arith.constant 0 : index
    %c0_462 = arith.constant 0 : index
    %403 = vector.load %arg24[%c0_461, %c0_462] : memref<1x324xf32, #tpu.memory_space<vmem>>, vector<1x324xf32>
    %404 = vector.broadcast %403 : vector<1x324xf32> to vector<16x324xf32>
    %405 = arith.mulf %402, %404 : vector<16x324xf32>
    %406 = arith.truncf %405 : vector<16x324xf32> to vector<16x324xbf16>
    %c0_463 = arith.constant 0 : index
    %c128_464 = arith.constant 128 : index
    %407 = vector.load %arg50[%c0_463, %c128_464] : memref<16x580xbf16, #tpu.memory_space<vmem>>, vector<16x324xbf16>
    tpu.vector_store %arg50[%c0_463, %c128_464], %406 {strides = array<i32>} : memref<16x580xbf16, #tpu.memory_space<vmem>>, vector<16x324xbf16>,
    %c0_465 = arith.constant 0 : index
    %c128_466 = arith.constant 128 : index
    %408 = vector.load %arg50[%c0_465, %c128_466] : memref<16x580xbf16, #tpu.memory_space<vmem>>, vector<16x324xbf16>
    %c0_467 = arith.constant 0 : index
    %c0_468 = arith.constant 0 : index
    %409 = vector.load %arg22[%c0_467, %c0_468] : memref<3x16xbf16, #tpu.memory_space<vmem>>, vector<3x16xbf16>
    %cst_469 = arith.constant dense<0.000000e+00> : vector<3x324xf32>
    %410 = tpu.matmul %409, %408, %cst_469 {dimension_numbers = #tpu.dot_dimension_numbers<[1], [0], [0], [1], [0, 0, 1, 1], [], []>} : vector<3x16xbf16>, vector<16x324xbf16>, vector<3x324xf32> -> vector<3x324xf32>
    %c0_470 = arith.constant 0 : index
    %c0_471 = arith.constant 0 : index
    %411 = vector.load %arg23[%c0_470, %c0_471] : memref<3x2xf32, #tpu.memory_space<vmem>>, vector<3x2xf32>
    %412 = vector.extract_strided_slice %411 {offsets = [0, 0], sizes = [3, 1], strides = [1, 1]} : vector<3x2xf32> to vector<3x1xf32>
    %413 = vector.broadcast %412 : vector<3x1xf32> to vector<3x324xf32>
    %414 = arith.mulf %410, %413 : vector<3x324xf32>
    %415 = vector.extract_strided_slice %411 {offsets = [0, 1], sizes = [3, 1], strides = [1, 1]} : vector<3x2xf32> to vector<3x1xf32>
    %416 = vector.broadcast %415 : vector<3x1xf32> to vector<3x324xf32>
    %417 = arith.addf %414, %416 : vector<3x324xf32>
    %c0_472 = arith.constant 0 : index
    %c0_473 = arith.constant 0 : index
    %418 = vector.load %arg24[%c0_472, %c0_473] : memref<1x324xf32, #tpu.memory_space<vmem>>, vector<1x324xf32>
    %419 = vector.broadcast %418 : vector<1x324xf32> to vector<3x324xf32>
    %420 = arith.mulf %417, %419 : vector<3x324xf32>
    %c0_474 = arith.constant 0 : index
    %c0_475 = arith.constant 0 : index
    %c0_476 = arith.constant 0 : index
    %421 = vector.load %arg34[%c0_474, %c0_475, %c0_476] : memref<1x3x324xf32, #tpu.memory_space<vmem>>, vector<1x3x324xf32>
    %422 = vector.shape_cast %421 : vector<1x3x324xf32> to vector<3x324xf32>
    %423 = vector.shape_cast %420 : vector<3x324xf32> to vector<1x3x324xf32>
    tpu.vector_store %arg34[%c0_474, %c0_475, %c0_476], %423 {strides = array<i32>} : memref<1x3x324xf32, #tpu.memory_space<vmem>>, vector<1x3x324xf32>,
    return
  }
  func.func @transform_0(%arg0: i32) -> (i32, i32, i32) {
    %c0_i32 = arith.constant 0 : i32
    %c0_i32_0 = arith.constant 0 : i32
    %c0_i32_1 = arith.constant 0 : i32
    return %arg0, %c0_i32, %c0_i32_0 : i32, i32, i32
  }
  func.func @transform_1(%arg0: i32) -> (i32, i32) {
    %c0_i32 = arith.constant 0 : i32
    %c0_i32_0 = arith.constant 0 : i32
    %c0_i32_1 = arith.constant 0 : i32
    return %c0_i32, %c0_i32_0 : i32, i32
  }
  func.func @transform_2(%arg0: i32) -> (i32, i32) {
    %c0_i32 = arith.constant 0 : i32
    %c0_i32_0 = arith.constant 0 : i32
    %c0_i32_1 = arith.constant 0 : i32
    return %c0_i32, %c0_i32_0 : i32, i32
  }
  func.func @transform_3(%arg0: i32) -> (i32, i32) {
    %c0_i32 = arith.constant 0 : i32
    %c0_i32_0 = arith.constant 0 : i32
    %c0_i32_1 = arith.constant 0 : i32
    return %c0_i32, %c0_i32_0 : i32, i32
  }
  func.func @transform_4(%arg0: i32) -> (i32, i32) {
    %c0_i32 = arith.constant 0 : i32
    %c0_i32_0 = arith.constant 0 : i32
    %c0_i32_1 = arith.constant 0 : i32
    return %c0_i32, %c0_i32_0 : i32, i32
  }
  func.func @transform_5(%arg0: i32) -> (i32, i32) {
    %c0_i32 = arith.constant 0 : i32
    %c0_i32_0 = arith.constant 0 : i32
    %c0_i32_1 = arith.constant 0 : i32
    return %c0_i32, %c0_i32_0 : i32, i32
  }
  func.func @transform_6(%arg0: i32) -> (i32, i32) {
    %c0_i32 = arith.constant 0 : i32
    %c0_i32_0 = arith.constant 0 : i32
    %c0_i32_1 = arith.constant 0 : i32
    return %c0_i32, %c0_i32_0 : i32, i32
  }
  func.func @transform_7(%arg0: i32) -> (i32, i32) {
    %c0_i32 = arith.constant 0 : i32
    %c0_i32_0 = arith.constant 0 : i32
    %c0_i32_1 = arith.constant 0 : i32
    return %c0_i32, %c0_i32_0 : i32, i32
  }
  func.func @transform_8(%arg0: i32) -> (i32, i32) {
    %c0_i32 = arith.constant 0 : i32
    %c0_i32_0 = arith.constant 0 : i32
    %c0_i32_1 = arith.constant 0 : i32
    return %c0_i32, %c0_i32_0 : i32, i32
  }
  func.func @transform_9(%arg0: i32) -> (i32, i32) {
    %c0_i32 = arith.constant 0 : i32
    %c0_i32_0 = arith.constant 0 : i32
    %c0_i32_1 = arith.constant 0 : i32
    return %c0_i32, %c0_i32_0 : i32, i32
  }
  func.func @transform_10(%arg0: i32) -> (i32, i32) {
    %c0_i32 = arith.constant 0 : i32
    %c0_i32_0 = arith.constant 0 : i32
    %c0_i32_1 = arith.constant 0 : i32
    return %c0_i32, %c0_i32_0 : i32, i32
  }
  func.func @transform_11(%arg0: i32) -> (i32, i32) {
    %c0_i32 = arith.constant 0 : i32
    %c0_i32_0 = arith.constant 0 : i32
    %c0_i32_1 = arith.constant 0 : i32
    return %c0_i32, %c0_i32_0 : i32, i32
  }
  func.func @transform_12(%arg0: i32) -> (i32, i32) {
    %c0_i32 = arith.constant 0 : i32
    %c0_i32_0 = arith.constant 0 : i32
    %c0_i32_1 = arith.constant 0 : i32
    return %c0_i32, %c0_i32_0 : i32, i32
  }
  func.func @transform_13(%arg0: i32) -> (i32, i32) {
    %c0_i32 = arith.constant 0 : i32
    %c0_i32_0 = arith.constant 0 : i32
    %c0_i32_1 = arith.constant 0 : i32
    return %c0_i32, %c0_i32_0 : i32, i32
  }
  func.func @transform_14(%arg0: i32) -> (i32, i32) {
    %c0_i32 = arith.constant 0 : i32
    %c0_i32_0 = arith.constant 0 : i32
    %c0_i32_1 = arith.constant 0 : i32
    return %c0_i32, %c0_i32_0 : i32, i32
  }
  func.func @transform_15(%arg0: i32) -> (i32, i32) {
    %c0_i32 = arith.constant 0 : i32
    %c0_i32_0 = arith.constant 0 : i32
    %c0_i32_1 = arith.constant 0 : i32
    return %c0_i32, %c0_i32_0 : i32, i32
  }
  func.func @transform_16(%arg0: i32) -> (i32, i32) {
    %c0_i32 = arith.constant 0 : i32
    %c0_i32_0 = arith.constant 0 : i32
    %c0_i32_1 = arith.constant 0 : i32
    return %c0_i32, %c0_i32_0 : i32, i32
  }
  func.func @transform_17(%arg0: i32) -> (i32, i32) {
    %c0_i32 = arith.constant 0 : i32
    %c0_i32_0 = arith.constant 0 : i32
    %c0_i32_1 = arith.constant 0 : i32
    return %c0_i32, %c0_i32_0 : i32, i32
  }
  func.func @transform_18(%arg0: i32) -> (i32, i32) {
    %c0_i32 = arith.constant 0 : i32
    %c0_i32_0 = arith.constant 0 : i32
    %c0_i32_1 = arith.constant 0 : i32
    return %c0_i32, %c0_i32_0 : i32, i32
  }
  func.func @transform_19(%arg0: i32) -> (i32, i32) {
    %c0_i32 = arith.constant 0 : i32
    %c0_i32_0 = arith.constant 0 : i32
    %c0_i32_1 = arith.constant 0 : i32
    return %c0_i32, %c0_i32_0 : i32, i32
  }
  func.func @transform_20(%arg0: i32) -> (i32, i32) {
    %c0_i32 = arith.constant 0 : i32
    %c0_i32_0 = arith.constant 0 : i32
    %c0_i32_1 = arith.constant 0 : i32
    return %c0_i32, %c0_i32_0 : i32, i32
  }
  func.func @transform_21(%arg0: i32) -> (i32, i32) {
    %c0_i32 = arith.constant 0 : i32
    %c0_i32_0 = arith.constant 0 : i32
    %c0_i32_1 = arith.constant 0 : i32
    return %c0_i32, %c0_i32_0 : i32, i32
  }
  func.func @transform_22(%arg0: i32) -> (i32, i32) {
    %c0_i32 = arith.constant 0 : i32
    %c0_i32_0 = arith.constant 0 : i32
    %c0_i32_1 = arith.constant 0 : i32
    return %c0_i32, %c0_i32_0 : i32, i32
  }
  func.func @transform_23(%arg0: i32) -> (i32, i32) {
    %c0_i32 = arith.constant 0 : i32
    %c0_i32_0 = arith.constant 0 : i32
    %c0_i32_1 = arith.constant 0 : i32
    return %c0_i32, %c0_i32_0 : i32, i32
  }
  func.func @transform_24(%arg0: i32) -> (i32, i32) {
    %c0_i32 = arith.constant 0 : i32
    %c0_i32_0 = arith.constant 0 : i32
    %c0_i32_1 = arith.constant 0 : i32
    return %c0_i32, %c0_i32_0 : i32, i32
  }
  func.func @transform_25(%arg0: i32) -> (i32, i32) {
    %c0_i32 = arith.constant 0 : i32
    %c0_i32_0 = arith.constant 0 : i32
    %c0_i32_1 = arith.constant 0 : i32
    return %c0_i32, %c0_i32_0 : i32, i32
  }
  func.func @transform_26(%arg0: i32) -> (i32, i32) {
    %c0_i32 = arith.constant 0 : i32
    %c0_i32_0 = arith.constant 0 : i32
    %c0_i32_1 = arith.constant 0 : i32
    return %c0_i32, %c0_i32_0 : i32, i32
  }
  func.func @transform_27(%arg0: i32) -> (i32, i32) {
    %c0_i32 = arith.constant 0 : i32
    %c0_i32_0 = arith.constant 0 : i32
    %c0_i32_1 = arith.constant 0 : i32
    return %c0_i32, %c0_i32_0 : i32, i32
  }
  func.func @transform_28(%arg0: i32) -> (i32, i32) {
    %c0_i32 = arith.constant 0 : i32
    %c0_i32_0 = arith.constant 0 : i32
    %c0_i32_1 = arith.constant 0 : i32
    return %c0_i32, %c0_i32_0 : i32, i32
  }
  func.func @transform_29(%arg0: i32) -> (i32, i32) {
    %c0_i32 = arith.constant 0 : i32
    %c0_i32_0 = arith.constant 0 : i32
    %c0_i32_1 = arith.constant 0 : i32
    return %c0_i32, %c0_i32_0 : i32, i32
  }
  func.func @transform_30(%arg0: i32) -> (i32, i32) {
    %c0_i32 = arith.constant 0 : i32
    %c0_i32_0 = arith.constant 0 : i32
    %c0_i32_1 = arith.constant 0 : i32
    return %c0_i32, %c0_i32_0 : i32, i32
  }
  func.func @transform_31(%arg0: i32) -> (i32, i32) {
    %c0_i32 = arith.constant 0 : i32
    %c0_i32_0 = arith.constant 0 : i32
    %c0_i32_1 = arith.constant 0 : i32
    return %c0_i32, %c0_i32_0 : i32, i32
  }
  func.func @transform_32(%arg0: i32) -> (i32, i32) {
    %c0_i32 = arith.constant 0 : i32
    %c0_i32_0 = arith.constant 0 : i32
    %c0_i32_1 = arith.constant 0 : i32
    return %c0_i32, %c0_i32_0 : i32, i32
  }
  func.func @transform_33(%arg0: i32) -> (i32, i32, i32) {
    %c0_i32 = arith.constant 0 : i32
    %c0_i32_0 = arith.constant 0 : i32
    %c0_i32_1 = arith.constant 0 : i32
    return %arg0, %c0_i32, %c0_i32_0 : i32, i32, i32
  }
}

</mosaic_0001>

<llo_original>
// kernel: unet_forward.1
$region0: #{unet_forward.1}
  #allocation0 [shape = 'u32[]', space=smem, size = 0x4, offset = 0x4, fixed_abs, tag = 'smem constant byte address 0x4 - core index']
  #allocation1 [shape = 'u32[72,128]{1,0:T(1,128)}', space=vmem, size = 0x9000, scoped, tag = 'internal scratch']
  #allocation2 [shape = 'bf16[16,580]{1,0:T(8,128)(2,1)}', space=vmem, size = 0x5000, scoped, tag = 'scratch operand']
  #allocation3 [shape = 'bf16[16,356]{1,0:T(8,128)(2,1)}', space=vmem, size = 0x3000, scoped, tag = 'scratch operand']
  #allocation4 [shape = 'bf16[16,356]{1,0:T(8,128)(2,1)}', space=vmem, size = 0x3000, scoped, tag = 'scratch operand']
  #allocation5 [shape = 'bf16[16,292]{1,0:T(8,128)(2,1)}', space=vmem, size = 0x3000, scoped, tag = 'scratch operand']
  #allocation6 [shape = 'bf16[32,292]{1,0:T(8,128)(2,1)}', space=vmem, size = 0x6000, scoped, tag = 'scratch operand']
  #allocation7 [shape = 'bf16[32,272]{1,0:T(8,128)(2,1)}', space=vmem, size = 0x6000, scoped, tag = 'scratch operand']
  #allocation8 [shape = 'bf16[64,272]{1,0:T(8,128)(2,1)}', space=vmem, size = 0xc000, scoped, tag = 'scratch operand']
  #allocation9 [shape = 'bf16[64,292]{1,0:T(8,128)(2,1)}', space=vmem, size = 0xc000, scoped, tag = 'scratch operand']
  #allocation10 [shape = 'bf16[32,292]{1,0:T(8,128)(2,1)}', space=vmem, size = 0x6000, scoped, tag = 'scratch operand']
  #allocation11 [shape = 'bf16[32,292]{1,0:T(8,128)(2,1)}', space=vmem, size = 0x6000, scoped, tag = 'scratch operand']
  #allocation12 [shape = 'bf16[32,356]{1,0:T(8,128)(2,1)}', space=vmem, size = 0x6000, scoped, tag = 'scratch operand']
  #allocation13 [shape = 'bf16[16,356]{1,0:T(8,128)(2,1)}', space=vmem, size = 0x3000, scoped, tag = 'scratch operand']
  #allocation14 [shape = 'bf16[16,356]{1,0:T(8,128)(2,1)}', space=vmem, size = 0x3000, scoped, tag = 'scratch operand']
  #allocation15 [shape = 'bf16[16,580]{1,0:T(8,128)(2,1)}', space=vmem, size = 0x5000, scoped, tag = 'scratch operand']
  #allocation16 [shape = 'bf16[16,580]{1,0:T(8,128)(2,1)}', space=vmem, size = 0x5000, scoped, tag = 'scratch operand']
  #allocation17 [shape = 'bf16[16,580]{1,0:T(8,128)(2,1)}', space=vmem, size = 0x5000, scoped, tag = 'scratch operand']
  %s0 = inlined_call_operand.smem [shape: u32[34], index: -1, kind: input, shape index: {}]
  %s1 = sld [smem:[%s0]]
  %s2 = scalar_lea.smem %s0, 1
  %s3 = sld [smem:[%s2]]
  %s4 = scalar_lea.smem %s0, 2
  %s5 = sld [smem:[%s4]]
  %s6 = scalar_lea.smem %s0, 3
  %s7 = sld [smem:[%s6]]
  %s8 = scalar_lea.smem %s0, 4
  %s9 = sld [smem:[%s8]]
  %s10 = scalar_lea.smem %s0, 5
  %s11 = sld [smem:[%s10]]
  %s12 = scalar_lea.smem %s0, 6
  %s13 = sld [smem:[%s12]]
  %s14 = scalar_lea.smem %s0, 7
  %s15 = sld [smem:[%s14]]
  %s16 = scalar_lea.smem %s0, 8
  %s17 = sld [smem:[%s16]]
  %s18 = scalar_lea.smem %s0, 9
  %s19 = sld [smem:[%s18]]
  %s20 = scalar_lea.smem %s0, 10
  %s21 = sld [smem:[%s20]]
  %s22 = scalar_lea.smem %s0, 11
  %s23 = sld [smem:[%s22]]
  %s24 = scalar_lea.smem %s0, 12
  %s25 = sld [smem:[%s24]]
  %s26 = scalar_lea.smem %s0, 13
  %s27 = sld [smem:[%s26]]
  %s28 = scalar_lea.smem %s0, 14
  %s29 = sld [smem:[%s28]]
  %s30 = scalar_lea.smem %s0, 15
  %s31 = sld [smem:[%s30]]
  %s32 = scalar_lea.smem %s0, 16
  %s33 = sld [smem:[%s32]]
  %s34 = scalar_lea.smem %s0, 17
  %s35 = sld [smem:[%s34]]
  %s36 = scalar_lea.smem %s0, 18
  %s37 = sld [smem:[%s36]]
  %s38 = scalar_lea.smem %s0, 19
  %s39 = sld [smem:[%s38]]
  %s40 = scalar_lea.smem %s0, 20
  %s41 = sld [smem:[%s40]]
  %s42 = scalar_lea.smem %s0, 21
  %s43 = sld [smem:[%s42]]
  %s44 = scalar_lea.smem %s0, 22
  %s45 = sld [smem:[%s44]]
  %s46 = scalar_lea.smem %s0, 23
  %s47 = sld [smem:[%s46]]
  %s48 = scalar_lea.smem %s0, 24
  %s49 = sld [smem:[%s48]]
  %s50 = scalar_lea.smem %s0, 25
  %s51 = sld [smem:[%s50]]
  %s52 = scalar_lea.smem %s0, 26
  %s53 = sld [smem:[%s52]]
  %s54 = scalar_lea.smem %s0, 27
  %s55 = sld [smem:[%s54]]
  %s56 = scalar_lea.smem %s0, 28
  %s57 = sld [smem:[%s56]]
  %s58 = scalar_lea.smem %s0, 29
  %s59 = sld [smem:[%s58]]
  %s60 = scalar_lea.smem %s0, 30
  %s61 = sld [smem:[%s60]]
  %s62 = scalar_lea.smem %s0, 31
  %s63 = sld [smem:[%s62]]
  %s64 = scalar_lea.smem %s0, 32
  %s65 = sld [smem:[%s64]]
  %s66 = scalar_lea.smem %s0, 33
  %s67 = sld [smem:[%s66]]
  %s68 = sld [smem:[#allocation0]]
  $region269: #{unet_forward.1} parent=0
    _
  %s70 = ssub.s32 1, %s68
  %s71 = scalar_select 0, %s70, %s68
  $region1: #{unet_forward.1} parent=0
    #allocation18 [shape = 'u8[8192]{0}', space=vmem, size = 0x2000, scoped, tag = 'input window, operand 1, single buffered']
    #allocation19 [shape = 's32[2]{0}', space=sflag, size = 0x8, scoped, tag = 'scoped memory for unet_forward.1']
    #allocation20 [shape = 'u8[8192]{0}', space=vmem, size = 0x2000, scoped, tag = 'input window, operand 2, single buffered']
    #allocation21 [shape = 's32[1]{0}', space=sflag, size = 0x4, scoped, tag = 'scoped memory for unet_forward.1']
    #allocation22 [shape = 'u8[8192]{0}', space=vmem, size = 0x2000, scoped, tag = 'input window, operand 3, single buffered']
    #allocation23 [shape = 'u8[8192]{0}', space=vmem, size = 0x2000, scoped, tag = 'input window, operand 4, single buffered']
    #allocation24 [shape = 's32[1]{0}', space=sflag, size = 0x4, scoped, tag = 'scoped memory for unet_forward.1']
    #allocation25 [shape = 'u8[16384]{0}', space=vmem, size = 0x4000, scoped, tag = 'input window, operand 6, single buffered']
    #allocation26 [shape = 'u8[32768]{0}', space=vmem, size = 0x8000, scoped, tag = 'input window, operand 8, single buffered']
    #allocation27 [shape = 's32[1]{0}', space=sflag, size = 0x4, scoped, tag = 'scoped memory for unet_forward.1']
    #allocation28 [shape = 'u8[40960]{0}', space=vmem, size = 0xa000, scoped, tag = 'input window, operand 9, single buffered']
    #allocation29 [shape = 'u8[16384]{0}', space=vmem, size = 0x4000, scoped, tag = 'input window, operand 10, single buffered']
    #allocation30 [shape = 's32[1]{0}', space=sflag, size = 0x4, scoped, tag = 'scoped memory for unet_forward.1']
    #allocation31 [shape = 'u8[40960]{0}', space=vmem, size = 0xa000, scoped, tag = 'input window, operand 11, single buffered']
    #allocation32 [shape = 'u8[16384]{0}', space=vmem, size = 0x4000, scoped, tag = 'input window, operand 12, single buffered']
    #allocation33 [shape = 's32[1]{0}', space=sflag, size = 0x4, scoped, tag = 'scoped memory for unet_forward.1']
    #allocation34 [shape = 'u8[12288]{0}', space=vmem, size = 0x3000, scoped, tag = 'input window, operand 13, single buffered']
    #allocation35 [shape = 'u8[8192]{0}', space=vmem, size = 0x2000, scoped, tag = 'input window, operand 14, single buffered']
    #allocation36 [shape = 's32[1]{0}', space=sflag, size = 0x4, scoped, tag = 'scoped memory for unet_forward.1']
    #allocation37 [shape = 'u8[12288]{0}', space=vmem, size = 0x3000, scoped, tag = 'input window, operand 15, single buffered']
    #allocation38 [shape = 'u8[8192]{0}', space=vmem, size = 0x2000, scoped, tag = 'input window, operand 16, single buffered']
    #allocation39 [shape = 's32[1]{0}', space=sflag, size = 0x4, scoped, tag = 'scoped memory for unet_forward.1']
    #allocation40 [shape = 'u8[8192]{0}', space=vmem, size = 0x2000, scoped, tag = 'input window, operand 17, single buffered']
    #allocation41 [shape = 'u8[12288]{0}', space=vmem, size = 0x3000, scoped, tag = 'input window, operand 19, single buffered']
    #allocation42 [shape = 's32[1]{0}', space=sflag, size = 0x4, scoped, tag = 'scoped memory for unet_forward.1']
    #allocation43 [shape = 'u8[8192]{0}', space=vmem, size = 0x2000, scoped, tag = 'input window, operand 20, single buffered']
    #allocation44 [shape = 'u8[2048]{0}', space=vmem, size = 0x800, scoped, tag = 'input window, operand 22, single buffered']
    #allocation45 [shape = 's32[1]{0}', space=sflag, size = 0x4, scoped, tag = 'scoped memory for unet_forward.1']
    #allocation46 [shape = 'u8[1536]{0}', space=vmem, size = 0x800, scoped, tag = 'input window, operand 23, single buffered']
    #allocation47 [shape = 'u8[512]{0}', space=vmem, size = 0x400, scoped, tag = 'input window, operand 24, single buffered']
    #allocation48 [shape = 's32[1]{0}', space=sflag, size = 0x4, scoped, tag = 'scoped memory for unet_forward.1']
    #allocation49 [shape = 'u8[512]{0}', space=vmem, size = 0x400, scoped, tag = 'input window, operand 25, single buffered']
    #allocation50 [shape = 'u8[512]{0}', space=vmem, size = 0x400, scoped, tag = 'input window, operand 26, single buffered']
    #allocation51 [shape = 's32[1]{0}', space=sflag, size = 0x4, scoped, tag = 'scoped memory for unet_forward.1']
    #allocation52 [shape = 'u8[26624]{0}', space=vmem, size = 0x6800, scoped, tag = 'input window, operand 28, single buffered']
    #allocation53 [shape = 'u8[10240]{0}', space=vmem, size = 0x2800, scoped, tag = 'input window, operand 29, single buffered']
    #allocation54 [shape = 's32[1]{0}', space=sflag, size = 0x4, scoped, tag = 'scoped memory for unet_forward.1']
    #allocation55 [shape = 'u8[4096]{0}', space=vmem, size = 0x1000, scoped, tag = 'input window, operand 30, single buffered']
    #allocation56 [shape = 'u8[10240]{0}', space=vmem, size = 0x2800, scoped, tag = 'input window, operand 31, single buffered']
    #allocation57 [shape = 's32[1]{0}', space=sflag, size = 0x4, scoped, tag = 'scoped memory for unet_forward.1']
    %72 = vsyncpa [#allocation19], 0
    %73 = vsyncpa [#allocation21], 0
    %74 = vsyncpa [#allocation24], 0
    %75 = vsyncpa [#allocation27], 0
    %76 = vsyncpa [#allocation30], 0
    %77 = vsyncpa [#allocation33], 0
    %78 = vsyncpa [#allocation36], 0
    %79 = vsyncpa [#allocation39], 0
    %80 = vsyncpa [#allocation42], 0
    %81 = vsyncpa [#allocation45], 0
    %82 = vsyncpa [#allocation48], 0
    %83 = vsyncpa [#allocation51], 0
    %84 = vsyncpa [#allocation54], 0
    %85 = vsyncpa [#allocation57], 0
    loop: start=0, step=1, limit=4
    $region2: #{unet_forward.1} parent=1 // loop_pre_header
      _
    $region3: #{unet_forward.1} parent=1 // loop_header
      %s87 = sphi 0, %s91
      %p88 = scmp.ge.s32.totalorder %s87, 4
      %s97 = sphi 0, %s99
      %s100 = sphi 0, %s97
      %s101 = sphi 0, %s100
      %s117 = sphi 0, %s101
      %s121 = sphi 0, %s121
      %s123 = sphi 0, %s121
      %s124 = sphi 0, %s123
      %s138 = sphi 0, %s124
      %s142 = sphi 0, %s142
      %s144 = sphi 0, %s142
      %s145 = sphi 0, %s144
      %s159 = sphi 0, %s145
      %s163 = sphi 0, %s163
      %s165 = sphi 0, %s163
      %s166 = sphi 0, %s165
      %s180 = sphi 0, %s166
      %s184 = sphi 0, %s184
      %s186 = sphi 0, %s184
      %s187 = sphi 0, %s186
      %s201 = sphi 0, %s187
      %s205 = sphi 0, %s205
      %s207 = sphi 0, %s205
      %s208 = sphi 0, %s207
      %s222 = sphi 0, %s208
      %s226 = sphi 0, %s226
      %s228 = sphi 0, %s226
      %s229 = sphi 0, %s228
      %s243 = sphi 0, %s229
      %s247 = sphi 0, %s247
      %s249 = sphi 0, %s247
      %s250 = sphi 0, %s249
      %s264 = sphi 0, %s250
      %s268 = sphi 0, %s268
      %s270 = sphi 0, %s268
      %s271 = sphi 0, %s270
      %s285 = sphi 0, %s271
      %s289 = sphi 0, %s289
      %s291 = sphi 0, %s289
      %s292 = sphi 0, %s291
      %s306 = sphi 0, %s292
      %s310 = sphi 0, %s310
      %s312 = sphi 0, %s310
      %s313 = sphi 0, %s312
      %s327 = sphi 0, %s313
      %s331 = sphi 0, %s331
      %s333 = sphi 0, %s331
      %s334 = sphi 0, %s333
      %s348 = sphi 0, %s334
      %s352 = sphi 0, %s352
      %s354 = sphi 0, %s352
      %s355 = sphi 0, %s354
      %s369 = sphi 0, %s355
      %s373 = sphi 0, %s373
      %s375 = sphi 0, %s373
      %s376 = sphi 0, %s375
      %s390 = sphi 0, %s376
      %s394 = sphi 0, %s394
      %s396 = sphi 0, %s394
      %s397 = sphi 0, %s396
      %s411 = sphi 0, %s397
      %s415 = sphi 0, %s415
      %s417 = sphi 0, %s415
      %s418 = sphi 0, %s417
      %s432 = sphi 0, %s418
      %s436 = sphi 0, %s436
      %s438 = sphi 0, %s436
      %s439 = sphi 0, %s438
      %s453 = sphi 0, %s439
      %s457 = sphi 0, %s457
      %s459 = sphi 0, %s457
      %s460 = sphi 0, %s459
      %s474 = sphi 0, %s460
      %s478 = sphi 0, %s478
      %s480 = sphi 0, %s478
      %s481 = sphi 0, %s480
      %s495 = sphi 0, %s481
      %s499 = sphi 0, %s499
      %s501 = sphi 0, %s499
      %s502 = sphi 0, %s501
      %s516 = sphi 0, %s502
      %s520 = sphi 0, %s520
      %s522 = sphi 0, %s520
      %s523 = sphi 0, %s522
      %s537 = sphi 0, %s523
      %s541 = sphi 0, %s541
      %s543 = sphi 0, %s541
      %s544 = sphi 0, %s543
      %s558 = sphi 0, %s544
      %s562 = sphi 0, %s562
      %s564 = sphi 0, %s562
      %s565 = sphi 0, %s564
      %s579 = sphi 0, %s565
      %s583 = sphi 0, %s583
      %s585 = sphi 0, %s583
      %s586 = sphi 0, %s585
      %s600 = sphi 0, %s586
      %s604 = sphi 0, %s604
      %s606 = sphi 0, %s604
      %s607 = sphi 0, %s606
      %s621 = sphi 0, %s607
      %s625 = sphi 0, %s625
      %s627 = sphi 0, %s625
      %s628 = sphi 0, %s627
      %s642 = sphi 0, %s628
      %s646 = sphi 0, %s646
      %s648 = sphi 0, %s646
      %s649 = sphi 0, %s648
      %s663 = sphi 0, %s649
      %s667 = sphi 0, %s667
      %s669 = sphi 0, %s667
      %s670 = sphi 0, %s669
      %s684 = sphi 0, %s670
      %s688 = sphi 0, %s688
      %s690 = sphi 0, %s688
      %s691 = sphi 0, %s690
      %s705 = sphi 0, %s691
      %s709 = sphi 0, %s709
      %s711 = sphi 0, %s709
      %s712 = sphi 0, %s711
      %s726 = sphi 0, %s712
      %s730 = sphi 0, %s730
      %s732 = sphi 0, %s730
      %s733 = sphi 0, %s732
      %s747 = sphi 0, %s733
      %s751 = sphi 0, %s751
      %s753 = sphi 0, %s751
      %s754 = sphi 0, %s753
      %s768 = sphi 0, %s754
      %s772 = sphi 0, %s772
      %s774 = sphi 0, %s772
      %s775 = sphi 0, %s774
      %s789 = sphi 0, %s775
      %s795 = sphi 0, %s797
      %s798 = sphi 0, %s795
      %s799 = sphi 0, %s798
      %s815 = sphi 0, %s799
    $region4: #{unet_forward.1} parent=1 // loop_header_branch
      %90 = sbr.rel (%p88) target = $region8
    $region5: #{unet_forward.1} parent=1 // loop_body
      %s92 = ssub.s32 %s87, 1
      %s93 = ssub.s32 %s87, 2
      %s94 = sadd.s32 %s87, 1
      %s95 = ssub.s32 %s87, %s94
      %p96 = scmp.eq.s32.totalorder %s95, 0
      %s98 = sadd.s32 %s97, 1
      %s99 = scalar_select %p96, %s97, %s98
      %p102 = pneg %p96
      %p103 = scmp.eq.s32.totalorder %s87, 1
      %p104 = por %p102, %p103
      %p105 = scmp.ne.s32.totalorder %s97, %s100
      %p106 = scmp.eq.s32.totalorder %s87, 0
      %p107 = por %p105, %p106
      %p108 = scmp.ne.s32.totalorder %s97, %s100
      %p109 = scmp.eq.s32.totalorder %s92, 1
      %p110 = por %p108, %p109
      %p111 = scmp.ne.s32.totalorder %s100, %s101
      %p112 = scmp.eq.s32.totalorder %s92, 0
      %p113 = por %p111, %p112
      %p114 = scmp.ne.s32.totalorder %s100, %s101
      %p115 = scmp.eq.s32.totalorder %s93, 1
      %p116 = por %p114, %p115
      %p118 = scmp.ne.s32.totalorder %s101, %s117
      %p119 = scmp.eq.s32.totalorder %s93, 0
      %p120 = por %p118, %p119
      %s122 = sadd.s32 %s121, 1
      %p125 = scmp.eq.s32.totalorder %s87, 1
      %p126 = scmp.ne.s32.totalorder %s121, %s123
      %p127 = scmp.eq.s32.totalorder %s87, 0
      %p128 = por %p126, %p127
      %p129 = scmp.ne.s32.totalorder %s121, %s123
      %p130 = scmp.eq.s32.totalorder %s92, 1
      %p131 = por %p129, %p130
      %p132 = scmp.ne.s32.totalorder %s123, %s124
      %p133 = scmp.eq.s32.totalorder %s92, 0
      %p134 = por %p132, %p133
      %p135 = scmp.ne.s32.totalorder %s123, %s124
      %p136 = scmp.eq.s32.totalorder %s93, 1
      %p137 = por %p135, %p136
      %p139 = scmp.ne.s32.totalorder %s124, %s138
      %p140 = scmp.eq.s32.totalorder %s93, 0
      %p141 = por %p139, %p140
      %s143 = sadd.s32 %s142, 1
      %p146 = scmp.eq.s32.totalorder %s87, 1
      %p147 = scmp.ne.s32.totalorder %s142, %s144
      %p148 = scmp.eq.s32.totalorder %s87, 0
      %p149 = por %p147, %p148
      %p150 = scmp.ne.s32.totalorder %s142, %s144
      %p151 = scmp.eq.s32.totalorder %s92, 1
      %p152 = por %p150, %p151
      %p153 = scmp.ne.s32.totalorder %s144, %s145
      %p154 = scmp.eq.s32.totalorder %s92, 0
      %p155 = por %p153, %p154
      %p156 = scmp.ne.s32.totalorder %s144, %s145
      %p157 = scmp.eq.s32.totalorder %s93, 1
      %p158 = por %p156, %p157
      %p160 = scmp.ne.s32.totalorder %s145, %s159
      %p161 = scmp.eq.s32.totalorder %s93, 0
      %p162 = por %p160, %p161
      %s164 = sadd.s32 %s163, 1
      %p167 = scmp.eq.s32.totalorder %s87, 1
      %p168 = scmp.ne.s32.totalorder %s163, %s165
      %p169 = scmp.eq.s32.totalorder %s87, 0
      %p170 = por %p168, %p169
      %p171 = scmp.ne.s32.totalorder %s163, %s165
      %p172 = scmp.eq.s32.totalorder %s92, 1
      %p173 = por %p171, %p172
      %p174 = scmp.ne.s32.totalorder %s165, %s166
      %p175 = scmp.eq.s32.totalorder %s92, 0
      %p176 = por %p174, %p175
      %p177 = scmp.ne.s32.totalorder %s165, %s166
      %p178 = scmp.eq.s32.totalorder %s93, 1
      %p179 = por %p177, %p178
      %p181 = scmp.ne.s32.totalorder %s166, %s180
      %p182 = scmp.eq.s32.totalorder %s93, 0
      %p183 = por %p181, %p182
      %s185 = sadd.s32 %s184, 1
      %p188 = scmp.eq.s32.totalorder %s87, 1
      %p189 = scmp.ne.s32.totalorder %s184, %s186
      %p190 = scmp.eq.s32.totalorder %s87, 0
      %p191 = por %p189, %p190
      %p192 = scmp.ne.s32.totalorder %s184, %s186
      %p193 = scmp.eq.s32.totalorder %s92, 1
      %p194 = por %p192, %p193
      %p195 = scmp.ne.s32.totalorder %s186, %s187
      %p196 = scmp.eq.s32.totalorder %s92, 0
      %p197 = por %p195, %p196
      %p198 = scmp.ne.s32.totalorder %s186, %s187
      %p199 = scmp.eq.s32.totalorder %s93, 1
      %p200 = por %p198, %p199
      %p202 = scmp.ne.s32.totalorder %s187, %s201
      %p203 = scmp.eq.s32.totalorder %s93, 0
      %p204 = por %p202, %p203
      %s206 = sadd.s32 %s205, 1
      %p209 = scmp.eq.s32.totalorder %s87, 1
      %p210 = scmp.ne.s32.totalorder %s205, %s207
      %p211 = scmp.eq.s32.totalorder %s87, 0
      %p212 = por %p210, %p211
      %p213 = scmp.ne.s32.totalorder %s205, %s207
      %p214 = scmp.eq.s32.totalorder %s92, 1
      %p215 = por %p213, %p214
      %p216 = scmp.ne.s32.totalorder %s207, %s208
      %p217 = scmp.eq.s32.totalorder %s92, 0
      %p218 = por %p216, %p217
      %p219 = scmp.ne.s32.totalorder %s207, %s208
      %p220 = scmp.eq.s32.totalorder %s93, 1
      %p221 = por %p219, %p220
      %p223 = scmp.ne.s32.totalorder %s208, %s222
      %p224 = scmp.eq.s32.totalorder %s93, 0
      %p225 = por %p223, %p224
      %s227 = sadd.s32 %s226, 1
      %p230 = scmp.eq.s32.totalorder %s87, 1
      %p231 = scmp.ne.s32.totalorder %s226, %s228
      %p232 = scmp.eq.s32.totalorder %s87, 0
      %p233 = por %p231, %p232
      %p234 = scmp.ne.s32.totalorder %s226, %s228
      %p235 = scmp.eq.s32.totalorder %s92, 1
      %p236 = por %p234, %p235
      %p237 = scmp.ne.s32.totalorder %s228, %s229
      %p238 = scmp.eq.s32.totalorder %s92, 0
      %p239 = por %p237, %p238
      %p240 = scmp.ne.s32.totalorder %s228, %s229
      %p241 = scmp.eq.s32.totalorder %s93, 1
      %p242 = por %p240, %p241
      %p244 = scmp.ne.s32.totalorder %s229, %s243
      %p245 = scmp.eq.s32.totalorder %s93, 0
      %p246 = por %p244, %p245
      %s248 = sadd.s32 %s247, 1
      %p251 = scmp.eq.s32.totalorder %s87, 1
      %p252 = scmp.ne.s32.totalorder %s247, %s249
      %p253 = scmp.eq.s32.totalorder %s87, 0
      %p254 = por %p252, %p253
      %p255 = scmp.ne.s32.totalorder %s247, %s249
      %p256 = scmp.eq.s32.totalorder %s92, 1
      %p257 = por %p255, %p256
      %p258 = scmp.ne.s32.totalorder %s249, %s250
      %p259 = scmp.eq.s32.totalorder %s92, 0
      %p260 = por %p258, %p259
      %p261 = scmp.ne.s32.totalorder %s249, %s250
      %p262 = scmp.eq.s32.totalorder %s93, 1
      %p263 = por %p261, %p262
      %p265 = scmp.ne.s32.totalorder %s250, %s264
      %p266 = scmp.eq.s32.totalorder %s93, 0
      %p267 = por %p265, %p266
      %s269 = sadd.s32 %s268, 1
      %p272 = scmp.eq.s32.totalorder %s87, 1
      %p273 = scmp.ne.s32.totalorder %s268, %s270
      %p274 = scmp.eq.s32.totalorder %s87, 0
      %p275 = por %p273, %p274
      %p276 = scmp.ne.s32.totalorder %s268, %s270
      %p277 = scmp.eq.s32.totalorder %s92, 1
      %p278 = por %p276, %p277
      %p279 = scmp.ne.s32.totalorder %s270, %s271
      %p280 = scmp.eq.s32.totalorder %s92, 0
      %p281 = por %p279, %p280
      %p282 = scmp.ne.s32.totalorder %s270, %s271
      %p283 = scmp.eq.s32.totalorder %s93, 1
      %p284 = por %p282, %p283
      %p286 = scmp.ne.s32.totalorder %s271, %s285
      %p287 = scmp.eq.s32.totalorder %s93, 0
      %p288 = por %p286, %p287
      %s290 = sadd.s32 %s289, 1
      %p293 = scmp.eq.s32.totalorder %s87, 1
      %p294 = scmp.ne.s32.totalorder %s289, %s291
      %p295 = scmp.eq.s32.totalorder %s87, 0
      %p296 = por %p294, %p295
      %p297 = scmp.ne.s32.totalorder %s289, %s291
      %p298 = scmp.eq.s32.totalorder %s92, 1
      %p299 = por %p297, %p298
      %p300 = scmp.ne.s32.totalorder %s291, %s292
      %p301 = scmp.eq.s32.totalorder %s92, 0
      %p302 = por %p300, %p301
      %p303 = scmp.ne.s32.totalorder %s291, %s292
      %p304 = scmp.eq.s32.totalorder %s93, 1
      %p305 = por %p303, %p304
      %p307 = scmp.ne.s32.totalorder %s292, %s306
      %p308 = scmp.eq.s32.totalorder %s93, 0
      %p309 = por %p307, %p308
      %s311 = sadd.s32 %s310, 1
      %p314 = scmp.eq.s32.totalorder %s87, 1
      %p315 = scmp.ne.s32.totalorder %s310, %s312
      %p316 = scmp.eq.s32.totalorder %s87, 0
      %p317 = por %p315, %p316
      %p318 = scmp.ne.s32.totalorder %s310, %s312
      %p319 = scmp.eq.s32.totalorder %s92, 1
      %p320 = por %p318, %p319
      %p321 = scmp.ne.s32.totalorder %s312, %s313
      %p322 = scmp.eq.s32.totalorder %s92, 0
      %p323 = por %p321, %p322
      %p324 = scmp.ne.s32.totalorder %s312, %s313
      %p325 = scmp.eq.s32.totalorder %s93, 1
      %p326 = por %p324, %p325
      %p328 = scmp.ne.s32.totalorder %s313, %s327
      %p329 = scmp.eq.s32.totalorder %s93, 0
      %p330 = por %p328, %p329
      %s332 = sadd.s32 %s331, 1
      %p335 = scmp.eq.s32.totalorder %s87, 1
      %p336 = scmp.ne.s32.totalorder %s331, %s333
      %p337 = scmp.eq.s32.totalorder %s87, 0
      %p338 = por %p336, %p337
      %p339 = scmp.ne.s32.totalorder %s331, %s333
      %p340 = scmp.eq.s32.totalorder %s92, 1
      %p341 = por %p339, %p340
      %p342 = scmp.ne.s32.totalorder %s333, %s334
      %p343 = scmp.eq.s32.totalorder %s92, 0
      %p344 = por %p342, %p343
      %p345 = scmp.ne.s32.totalorder %s333, %s334
      %p346 = scmp.eq.s32.totalorder %s93, 1
      %p347 = por %p345, %p346
      %p349 = scmp.ne.s32.totalorder %s334, %s348
      %p350 = scmp.eq.s32.totalorder %s93, 0
      %p351 = por %p349, %p350
      %s353 = sadd.s32 %s352, 1
      %p356 = scmp.eq.s32.totalorder %s87, 1
      %p357 = scmp.ne.s32.totalorder %s352, %s354
      %p358 = scmp.eq.s32.totalorder %s87, 0
      %p359 = por %p357, %p358
      %p360 = scmp.ne.s32.totalorder %s352, %s354
      %p361 = scmp.eq.s32.totalorder %s92, 1
      %p362 = por %p360, %p361
      %p363 = scmp.ne.s32.totalorder %s354, %s355
      %p364 = scmp.eq.s32.totalorder %s92, 0
      %p365 = por %p363, %p364
      %p366 = scmp.ne.s32.totalorder %s354, %s355
      %p367 = scmp.eq.s32.totalorder %s93, 1
      %p368 = por %p366, %p367
      %p370 = scmp.ne.s32.totalorder %s355, %s369
      %p371 = scmp.eq.s32.totalorder %s93, 0
      %p372 = por %p370, %p371
      %s374 = sadd.s32 %s373, 1
      %p377 = scmp.eq.s32.totalorder %s87, 1
      %p378 = scmp.ne.s32.totalorder %s373, %s375
      %p379 = scmp.eq.s32.totalorder %s87, 0
      %p380 = por %p378, %p379
      %p381 = scmp.ne.s32.totalorder %s373, %s375
      %p382 = scmp.eq.s32.totalorder %s92, 1
      %p383 = por %p381, %p382
      %p384 = scmp.ne.s32.totalorder %s375, %s376
      %p385 = scmp.eq.s32.totalorder %s92, 0
      %p386 = por %p384, %p385
      %p387 = scmp.ne.s32.totalorder %s375, %s376
      %p388 = scmp.eq.s32.totalorder %s93, 1
      %p389 = por %p387, %p388
      %p391 = scmp.ne.s32.totalorder %s376, %s390
      %p392 = scmp.eq.s32.totalorder %s93, 0
      %p393 = por %p391, %p392
      %s395 = sadd.s32 %s394, 1
      %p398 = scmp.eq.s32.totalorder %s87, 1
      %p399 = scmp.ne.s32.totalorder %s394, %s396
      %p400 = scmp.eq.s32.totalorder %s87, 0
      %p401 = por %p399, %p400
      %p402 = scmp.ne.s32.totalorder %s394, %s396
      %p403 = scmp.eq.s32.totalorder %s92, 1
      %p404 = por %p402, %p403
      %p405 = scmp.ne.s32.totalorder %s396, %s397
      %p406 = scmp.eq.s32.totalorder %s92, 0
      %p407 = por %p405, %p406
      %p408 = scmp.ne.s32.totalorder %s396, %s397
      %p409 = scmp.eq.s32.totalorder %s93, 1
      %p410 = por %p408, %p409
      %p412 = scmp.ne.s32.totalorder %s397, %s411
      %p413 = scmp.eq.s32.totalorder %s93, 0
      %p414 = por %p412, %p413
      %s416 = sadd.s32 %s415, 1
      %p419 = scmp.eq.s32.totalorder %s87, 1
      %p420 = scmp.ne.s32.totalorder %s415, %s417
      %p421 = scmp.eq.s32.totalorder %s87, 0
      %p422 = por %p420, %p421
      %p423 = scmp.ne.s32.totalorder %s415, %s417
      %p424 = scmp.eq.s32.totalorder %s92, 1
      %p425 = por %p423, %p424
      %p426 = scmp.ne.s32.totalorder %s417, %s418
      %p427 = scmp.eq.s32.totalorder %s92, 0
      %p428 = por %p426, %p427
      %p429 = scmp.ne.s32.totalorder %s417, %s418
      %p430 = scmp.eq.s32.totalorder %s93, 1
      %p431 = por %p429, %p430
      %p433 = scmp.ne.s32.totalorder %s418, %s432
      %p434 = scmp.eq.s32.totalorder %s93, 0
      %p435 = por %p433, %p434
      %s437 = sadd.s32 %s436, 1
      %p440 = scmp.eq.s32.totalorder %s87, 1
      %p441 = scmp.ne.s32.totalorder %s436, %s438
      %p442 = scmp.eq.s32.totalorder %s87, 0
      %p443 = por %p441, %p442
      %p444 = scmp.ne.s32.totalorder %s436, %s438
      %p445 = scmp.eq.s32.totalorder %s92, 1
      %p446 = por %p444, %p445
      %p447 = scmp.ne.s32.totalorder %s438, %s439
      %p448 = scmp.eq.s32.totalorder %s92, 0
      %p449 = por %p447, %p448
      %p450 = scmp.ne.s32.totalorder %s438, %s439
      %p451 = scmp.eq.s32.totalorder %s93, 1
      %p452 = por %p450, %p451
      %p454 = scmp.ne.s32.totalorder %s439, %s453
      %p455 = scmp.eq.s32.totalorder %s93, 0
      %p456 = por %p454, %p455
      %s458 = sadd.s32 %s457, 1
      %p461 = scmp.eq.s32.totalorder %s87, 1
      %p462 = scmp.ne.s32.totalorder %s457, %s459
      %p463 = scmp.eq.s32.totalorder %s87, 0
      %p464 = por %p462, %p463
      %p465 = scmp.ne.s32.totalorder %s457, %s459
      %p466 = scmp.eq.s32.totalorder %s92, 1
      %p467 = por %p465, %p466
      %p468 = scmp.ne.s32.totalorder %s459, %s460
      %p469 = scmp.eq.s32.totalorder %s92, 0
      %p470 = por %p468, %p469
      %p471 = scmp.ne.s32.totalorder %s459, %s460
      %p472 = scmp.eq.s32.totalorder %s93, 1
      %p473 = por %p471, %p472
      %p475 = scmp.ne.s32.totalorder %s460, %s474
      %p476 = scmp.eq.s32.totalorder %s93, 0
      %p477 = por %p475, %p476
      %s479 = sadd.s32 %s478, 1
      %p482 = scmp.eq.s32.totalorder %s87, 1
      %p483 = scmp.ne.s32.totalorder %s478, %s480
      %p484 = scmp.eq.s32.totalorder %s87, 0
      %p485 = por %p483, %p484
      %p486 = scmp.ne.s32.totalorder %s478, %s480
      %p487 = scmp.eq.s32.totalorder %s92, 1
      %p488 = por %p486, %p487
      %p489 = scmp.ne.s32.totalorder %s480, %s481
      %p490 = scmp.eq.s32.totalorder %s92, 0
      %p491 = por %p489, %p490
      %p492 = scmp.ne.s32.totalorder %s480, %s481
      %p493 = scmp.eq.s32.totalorder %s93, 1
      %p494 = por %p492, %p493
      %p496 = scmp.ne.s32.totalorder %s481, %s495
      %p497 = scmp.eq.s32.totalorder %s93, 0
      %p498 = por %p496, %p497
      %s500 = sadd.s32 %s499, 1
      %p503 = scmp.eq.s32.totalorder %s87, 1
      %p504 = scmp.ne.s32.totalorder %s499, %s501
      %p505 = scmp.eq.s32.totalorder %s87, 0
      %p506 = por %p504, %p505
      %p507 = scmp.ne.s32.totalorder %s499, %s501
      %p508 = scmp.eq.s32.totalorder %s92, 1
      %p509 = por %p507, %p508
      %p510 = scmp.ne.s32.totalorder %s501, %s502
      %p511 = scmp.eq.s32.totalorder %s92, 0
      %p512 = por %p510, %p511
      %p513 = scmp.ne.s32.totalorder %s501, %s502
      %p514 = scmp.eq.s32.totalorder %s93, 1
      %p515 = por %p513, %p514
      %p517 = scmp.ne.s32.totalorder %s502, %s516
      %p518 = scmp.eq.s32.totalorder %s93, 0
      %p519 = por %p517, %p518
      %s521 = sadd.s32 %s520, 1
      %p524 = scmp.eq.s32.totalorder %s87, 1
      %p525 = scmp.ne.s32.totalorder %s520, %s522
      %p526 = scmp.eq.s32.totalorder %s87, 0
      %p527 = por %p525, %p526
      %p528 = scmp.ne.s32.totalorder %s520, %s522
      %p529 = scmp.eq.s32.totalorder %s92, 1
      %p530 = por %p528, %p529
      %p531 = scmp.ne.s32.totalorder %s522, %s523
      %p532 = scmp.eq.s32.totalorder %s92, 0
      %p533 = por %p531, %p532
      %p534 = scmp.ne.s32.totalorder %s522, %s523
      %p535 = scmp.eq.s32.totalorder %s93, 1
      %p536 = por %p534, %p535
      %p538 = scmp.ne.s32.totalorder %s523, %s537
      %p539 = scmp.eq.s32.totalorder %s93, 0
      %p540 = por %p538, %p539
      %s542 = sadd.s32 %s541, 1
      %p545 = scmp.eq.s32.totalorder %s87, 1
      %p546 = scmp.ne.s32.totalorder %s541, %s543
      %p547 = scmp.eq.s32.totalorder %s87, 0
      %p548 = por %p546, %p547
      %p549 = scmp.ne.s32.totalorder %s541, %s543
      %p550 = scmp.eq.s32.totalorder %s92, 1
      %p551 = por %p549, %p550
      %p552 = scmp.ne.s32.totalorder %s543, %s544
      %p553 = scmp.eq.s32.totalorder %s92, 0
      %p554 = por %p552, %p553
      %p555 = scmp.ne.s32.totalorder %s543, %s544
      %p556 = scmp.eq.s32.totalorder %s93, 1
      %p557 = por %p555, %p556
      %p559 = scmp.ne.s32.totalorder %s544, %s558
      %p560 = scmp.eq.s32.totalorder %s93, 0
      %p561 = por %p559, %p560
      %s563 = sadd.s32 %s562, 1
      %p566 = scmp.eq.s32.totalorder %s87, 1
      %p567 = scmp.ne.s32.totalorder %s562, %s564
      %p568 = scmp.eq.s32.totalorder %s87, 0
      %p569 = por %p567, %p568
      %p570 = scmp.ne.s32.totalorder %s562, %s564
      %p571 = scmp.eq.s32.totalorder %s92, 1
      %p572 = por %p570, %p571
      %p573 = scmp.ne.s32.totalorder %s564, %s565
      %p574 = scmp.eq.s32.totalorder %s92, 0
      %p575 = por %p573, %p574
      %p576 = scmp.ne.s32.totalorder %s564, %s565
      %p577 = scmp.eq.s32.totalorder %s93, 1
      %p578 = por %p576, %p577
      %p580 = scmp.ne.s32.totalorder %s565, %s579
      %p581 = scmp.eq.s32.totalorder %s93, 0
      %p582 = por %p580, %p581
      %s584 = sadd.s32 %s583, 1
      %p587 = scmp.eq.s32.totalorder %s87, 1
      %p588 = scmp.ne.s32.totalorder %s583, %s585
      %p589 = scmp.eq.s32.totalorder %s87, 0
      %p590 = por %p588, %p589
      %p591 = scmp.ne.s32.totalorder %s583, %s585
      %p592 = scmp.eq.s32.totalorder %s92, 1
      %p593 = por %p591, %p592
      %p594 = scmp.ne.s32.totalorder %s585, %s586
      %p595 = scmp.eq.s32.totalorder %s92, 0
      %p596 = por %p594, %p595
      %p597 = scmp.ne.s32.totalorder %s585, %s586
      %p598 = scmp.eq.s32.totalorder %s93, 1
      %p599 = por %p597, %p598
      %p601 = scmp.ne.s32.totalorder %s586, %s600
      %p602 = scmp.eq.s32.totalorder %s93, 0
      %p603 = por %p601, %p602
      %s605 = sadd.s32 %s604, 1
      %p608 = scmp.eq.s32.totalorder %s87, 1
      %p609 = scmp.ne.s32.totalorder %s604, %s606
      %p610 = scmp.eq.s32.totalorder %s87, 0
      %p611 = por %p609, %p610
      %p612 = scmp.ne.s32.totalorder %s604, %s606
      %p613 = scmp.eq.s32.totalorder %s92, 1
      %p614 = por %p612, %p613
      %p615 = scmp.ne.s32.totalorder %s606, %s607
      %p616 = scmp.eq.s32.totalorder %s92, 0
      %p617 = por %p615, %p616
      %p618 = scmp.ne.s32.totalorder %s606, %s607
      %p619 = scmp.eq.s32.totalorder %s93, 1
      %p620 = por %p618, %p619
      %p622 = scmp.ne.s32.totalorder %s607, %s621
      %p623 = scmp.eq.s32.totalorder %s93, 0
      %p624 = por %p622, %p623
      %s626 = sadd.s32 %s625, 1
      %p629 = scmp.eq.s32.totalorder %s87, 1
      %p630 = scmp.ne.s32.totalorder %s625, %s627
      %p631 = scmp.eq.s32.totalorder %s87, 0
      %p632 = por %p630, %p631
      %p633 = scmp.ne.s32.totalorder %s625, %s627
      %p634 = scmp.eq.s32.totalorder %s92, 1
      %p635 = por %p633, %p634
      %p636 = scmp.ne.s32.totalorder %s627, %s628
      %p637 = scmp.eq.s32.totalorder %s92, 0
      %p638 = por %p636, %p637
      %p639 = scmp.ne.s32.totalorder %s627, %s628
      %p640 = scmp.eq.s32.totalorder %s93, 1
      %p641 = por %p639, %p640
      %p643 = scmp.ne.s32.totalorder %s628, %s642
      %p644 = scmp.eq.s32.totalorder %s93, 0
      %p645 = por %p643, %p644
      %s647 = sadd.s32 %s646, 1
      %p650 = scmp.eq.s32.totalorder %s87, 1
      %p651 = scmp.ne.s32.totalorder %s646, %s648
      %p652 = scmp.eq.s32.totalorder %s87, 0
      %p653 = por %p651, %p652
      %p654 = scmp.ne.s32.totalorder %s646, %s648
      %p655 = scmp.eq.s32.totalorder %s92, 1
      %p656 = por %p654, %p655
      %p657 = scmp.ne.s32.totalorder %s648, %s649
      %p658 = scmp.eq.s32.totalorder %s92, 0
      %p659 = por %p657, %p658
      %p660 = scmp.ne.s32.totalorder %s648, %s649
      %p661 = scmp.eq.s32.totalorder %s93, 1
      %p662 = por %p660, %p661
      %p664 = scmp.ne.s32.totalorder %s649, %s663
      %p665 = scmp.eq.s32.totalorder %s93, 0
      %p666 = por %p664, %p665
      %s668 = sadd.s32 %s667, 1
      %p671 = scmp.eq.s32.totalorder %s87, 1
      %p672 = scmp.ne.s32.totalorder %s667, %s669
      %p673 = scmp.eq.s32.totalorder %s87, 0
      %p674 = por %p672, %p673
      %p675 = scmp.ne.s32.totalorder %s667, %s669
      %p676 = scmp.eq.s32.totalorder %s92, 1
      %p677 = por %p675, %p676
      %p678 = scmp.ne.s32.totalorder %s669, %s670
      %p679 = scmp.eq.s32.totalorder %s92, 0
      %p680 = por %p678, %p679
      %p681 = scmp.ne.s32.totalorder %s669, %s670
      %p682 = scmp.eq.s32.totalorder %s93, 1
      %p683 = por %p681, %p682
      %p685 = scmp.ne.s32.totalorder %s670, %s684
      %p686 = scmp.eq.s32.totalorder %s93, 0
      %p687 = por %p685, %p686
      %s689 = sadd.s32 %s688, 1
      %p692 = scmp.eq.s32.totalorder %s87, 1
      %p693 = scmp.ne.s32.totalorder %s688, %s690
      %p694 = scmp.eq.s32.totalorder %s87, 0
      %p695 = por %p693, %p694
      %p696 = scmp.ne.s32.totalorder %s688, %s690
      %p697 = scmp.eq.s32.totalorder %s92, 1
      %p698 = por %p696, %p697
      %p699 = scmp.ne.s32.totalorder %s690, %s691
      %p700 = scmp.eq.s32.totalorder %s92, 0
      %p701 = por %p699, %p700
      %p702 = scmp.ne.s32.totalorder %s690, %s691
      %p703 = scmp.eq.s32.totalorder %s93, 1
      %p704 = por %p702, %p703
      %p706 = scmp.ne.s32.totalorder %s691, %s705
      %p707 = scmp.eq.s32.totalorder %s93, 0
      %p708 = por %p706, %p707
      %s710 = sadd.s32 %s709, 1
      %p713 = scmp.eq.s32.totalorder %s87, 1
      %p714 = scmp.ne.s32.totalorder %s709, %s711
      %p715 = scmp.eq.s32.totalorder %s87, 0
      %p716 = por %p714, %p715
      %p717 = scmp.ne.s32.totalorder %s709, %s711
      %p718 = scmp.eq.s32.totalorder %s92, 1
      %p719 = por %p717, %p718
      %p720 = scmp.ne.s32.totalorder %s711, %s712
      %p721 = scmp.eq.s32.totalorder %s92, 0
      %p722 = por %p720, %p721
      %p723 = scmp.ne.s32.totalorder %s711, %s712
      %p724 = scmp.eq.s32.totalorder %s93, 1
      %p725 = por %p723, %p724
      %p727 = scmp.ne.s32.totalorder %s712, %s726
      %p728 = scmp.eq.s32.totalorder %s93, 0
      %p729 = por %p727, %p728
      %s731 = sadd.s32 %s730, 1
      %p734 = scmp.eq.s32.totalorder %s87, 1
      %p735 = scmp.ne.s32.totalorder %s730, %s732
      %p736 = scmp.eq.s32.totalorder %s87, 0
      %p737 = por %p735, %p736
      %p738 = scmp.ne.s32.totalorder %s730, %s732
      %p739 = scmp.eq.s32.totalorder %s92, 1
      %p740 = por %p738, %p739
      %p741 = scmp.ne.s32.totalorder %s732, %s733
      %p742 = scmp.eq.s32.totalorder %s92, 0
      %p743 = por %p741, %p742
      %p744 = scmp.ne.s32.totalorder %s732, %s733
      %p745 = scmp.eq.s32.totalorder %s93, 1
      %p746 = por %p744, %p745
      %p748 = scmp.ne.s32.totalorder %s733, %s747
      %p749 = scmp.eq.s32.totalorder %s93, 0
      %p750 = por %p748, %p749
      %s752 = sadd.s32 %s751, 1
      %p755 = scmp.eq.s32.totalorder %s87, 1
      %p756 = scmp.ne.s32.totalorder %s751, %s753
      %p757 = scmp.eq.s32.totalorder %s87, 0
      %p758 = por %p756, %p757
      %p759 = scmp.ne.s32.totalorder %s751, %s753
      %p760 = scmp.eq.s32.totalorder %s92, 1
      %p761 = por %p759, %p760
      %p762 = scmp.ne.s32.totalorder %s753, %s754
      %p763 = scmp.eq.s32.totalorder %s92, 0
      %p764 = por %p762, %p763
      %p765 = scmp.ne.s32.totalorder %s753, %s754
      %p766 = scmp.eq.s32.totalorder %s93, 1
      %p767 = por %p765, %p766
      %p769 = scmp.ne.s32.totalorder %s754, %s768
      %p770 = scmp.eq.s32.totalorder %s93, 0
      %p771 = por %p769, %p770
      %s773 = sadd.s32 %s772, 1
      %p776 = scmp.eq.s32.totalorder %s87, 1
      %p777 = scmp.ne.s32.totalorder %s772, %s774
      %p778 = scmp.eq.s32.totalorder %s87, 0
      %p779 = por %p777, %p778
      %p780 = scmp.ne.s32.totalorder %s772, %s774
      %p781 = scmp.eq.s32.totalorder %s92, 1
      %p782 = por %p780, %p781
      %p783 = scmp.ne.s32.totalorder %s774, %s775
      %p784 = scmp.eq.s32.totalorder %s92, 0
      %p785 = por %p783, %p784
      %p786 = scmp.ne.s32.totalorder %s774, %s775
      %p787 = scmp.eq.s32.totalorder %s93, 1
      %p788 = por %p786, %p787
      %p790 = scmp.ne.s32.totalorder %s775, %s789
      %p791 = scmp.eq.s32.totalorder %s93, 0
      %p792 = por %p790, %p791
      %s793 = ssub.s32 %s87, %s94
      %p794 = scmp.eq.s32.totalorder %s793, 0
      %s796 = sadd.s32 %s795, 1
      %s797 = scalar_select %p794, %s795, %s796
      %p800 = pneg %p794
      %p801 = scmp.eq.s32.totalorder %s87, 1
      %p802 = por %p800, %p801
      %p803 = scmp.ne.s32.totalorder %s795, %s798
      %p804 = scmp.eq.s32.totalorder %s87, 0
      %p805 = por %p803, %p804
      %p806 = scmp.ne.s32.totalorder %s795, %s798
      %p807 = scmp.eq.s32.totalorder %s92, 1
      %p808 = por %p806, %p807
      %p809 = scmp.ne.s32.totalorder %s798, %s799
      %p810 = scmp.eq.s32.totalorder %s92, 0
      %p811 = por %p809, %p810
      %p812 = scmp.ne.s32.totalorder %s798, %s799
      %p813 = scmp.eq.s32.totalorder %s93, 1
      %p814 = por %p812, %p813
      %p816 = scmp.ne.s32.totalorder %s799, %s815
      %p817 = scmp.eq.s32.totalorder %s93, 0
      %p818 = por %p816, %p817
      %p819 = scmp.le.s32.totalorder 1, %s87
      %p820 = scmp.lt.s32.totalorder %s87, 3
      %p821 = pnand %p819, %p820
      %p822 = pneg %p821
      // Predicated region
      $region9: #{unet_forward.1} parent=5 // pred_check
        _
      $region10: #{unet_forward.1} parent=5 // pred_check_branch
        %824 = sbr.rel (%p821) target = $region12
      $region11: #{unet_forward.1} parent=5 // pred_region
        %s825 = ssub.s32 %s87, 1
        // Predicated region
        $region13: #{unet_forward.1} parent=11 // pred_check
          %p826 = pneg %p134
        $region14: #{unet_forward.1} parent=11 // pred_check_branch
          %828 = sbr.rel (%p826) target = $region16
        $region15: #{unet_forward.1} parent=11 // pred_region
          %830 = vsyncadd [#allocation19], 0
          %s831 = sshll.u32 %s3, 4
          %s832 = int_to_ptr.hbm [resolvable:$true] %s831
          %s833 = sshll.u32 [#allocation18], 4
          %s834 = int_to_ptr.vmem [resolvable:$true] %s833
          %839 = dma.hbm_to_vmem [thread:$0]  %s832, 256, %s834, [#allocation19], 128, 128, 8
        $region16: #{unet_forward.1} parent=11 // pred_fallthru
          _
        // Predicated region
        $region17: #{unet_forward.1} parent=11 // pred_check
          %p840 = pneg %p155
        $region18: #{unet_forward.1} parent=11 // pred_check_branch
          %842 = sbr.rel (%p840) target = $region20
        $region19: #{unet_forward.1} parent=11 // pred_region
          %844 = vsyncadd [#allocation21], 0
          %s845 = sshll.u32 %s5, 4
          %s846 = int_to_ptr.hbm [resolvable:$true] %s845
          %s847 = sshll.u32 [#allocation20], 4
          %s848 = int_to_ptr.vmem [resolvable:$true] %s847
          %853 = dma.hbm_to_vmem [thread:$0]  %s846, 256, %s848, [#allocation21], 128, 128, 8
        $region20: #{unet_forward.1} parent=11 // pred_fallthru
          _
        // Predicated region
        $region21: #{unet_forward.1} parent=11 // pred_check
          %p854 = pneg %p176
        $region22: #{unet_forward.1} parent=11 // pred_check_branch
          %856 = sbr.rel (%p854) target = $region24
        $region23: #{unet_forward.1} parent=11 // pred_region
          %858 = vsyncadd [#allocation21], 0
          %s859 = sshll.u32 %s7, 4
          %s860 = int_to_ptr.hbm [resolvable:$true] %s859
          %s861 = sshll.u32 [#allocation22], 4
          %s862 = int_to_ptr.vmem [resolvable:$true] %s861
          %867 = dma.hbm_to_vmem [thread:$0]  %s860, 256, %s862, [#allocation21], 128, 128, 8
        $region24: #{unet_forward.1} parent=11 // pred_fallthru
          _
        // Predicated region
        $region25: #{unet_forward.1} parent=11 // pred_check
          %p868 = pneg %p197
        $region26: #{unet_forward.1} parent=11 // pred_check_branch
          %870 = sbr.rel (%p868) target = $region28
        $region27: #{unet_forward.1} parent=11 // pred_region
          %872 = vsyncadd [#allocation24], 0
          %s873 = sshll.u32 %s9, 4
          %s874 = int_to_ptr.hbm [resolvable:$true] %s873
          %s875 = sshll.u32 [#allocation23], 4
          %s876 = int_to_ptr.vmem [resolvable:$true] %s875
          %881 = dma.hbm_to_vmem [thread:$0]  %s874, 256, %s876, [#allocation24], 128, 128, 8
        $region28: #{unet_forward.1} parent=11 // pred_fallthru
          _
        // Predicated region
        $region29: #{unet_forward.1} parent=11 // pred_check
          %p882 = pneg %p218
        $region30: #{unet_forward.1} parent=11 // pred_check_branch
          %884 = sbr.rel (%p882) target = $region32
        $region31: #{unet_forward.1} parent=11 // pred_region
          _
        $region32: #{unet_forward.1} parent=11 // pred_fallthru
          _
        // Predicated region
        $region33: #{unet_forward.1} parent=11 // pred_check
          %p885 = pneg %p239
        $region34: #{unet_forward.1} parent=11 // pred_check_branch
          %887 = sbr.rel (%p885) target = $region36
        $region35: #{unet_forward.1} parent=11 // pred_region
          %889 = vsyncadd [#allocation24], 0
          %s890 = sshll.u32 %s13, 4
          %s891 = int_to_ptr.hbm [resolvable:$true] %s890
          %s892 = sshll.u32 [#allocation25], 4
          %s893 = int_to_ptr.vmem [resolvable:$true] %s892
          %898 = dma.hbm_to_vmem [thread:$0]  %s891, 512, %s893, [#allocation24], 128, 128, 8
        $region36: #{unet_forward.1} parent=11 // pred_fallthru
          _
        // Predicated region
        $region37: #{unet_forward.1} parent=11 // pred_check
          %p899 = pneg %p260
        $region38: #{unet_forward.1} parent=11 // pred_check_branch
          %901 = sbr.rel (%p899) target = $region40
        $region39: #{unet_forward.1} parent=11 // pred_region
          _
        $region40: #{unet_forward.1} parent=11 // pred_fallthru
          _
        // Predicated region
        $region41: #{unet_forward.1} parent=11 // pred_check
          %p902 = pneg %p281
        $region42: #{unet_forward.1} parent=11 // pred_check_branch
          %904 = sbr.rel (%p902) target = $region44
        $region43: #{unet_forward.1} parent=11 // pred_region
          %906 = vsyncadd [#allocation27], 0
          %s907 = sshll.u32 %s17, 4
          %s908 = int_to_ptr.hbm [resolvable:$true] %s907
          %s909 = sshll.u32 [#allocation26], 4
          %s910 = int_to_ptr.vmem [resolvable:$true] %s909
          %915 = dma.hbm_to_vmem [thread:$0]  %s908, 1024, %s910, [#allocation27], 128, 128, 8
        $region44: #{unet_forward.1} parent=11 // pred_fallthru
          _
        // Predicated region
        $region45: #{unet_forward.1} parent=11 // pred_check
          %p916 = pneg %p302
        $region46: #{unet_forward.1} parent=11 // pred_check_branch
          %918 = sbr.rel (%p916) target = $region48
        $region47: #{unet_forward.1} parent=11 // pred_region
          %920 = vsyncadd [#allocation27], 0
          %s921 = sshll.u32 %s19, 4
          %s922 = int_to_ptr.hbm [resolvable:$true] %s921
          %s923 = sshll.u32 [#allocation28], 4
          %s924 = int_to_ptr.vmem [resolvable:$true] %s923
          %929 = dma.hbm_to_vmem [thread:$0]  %s922, 1280, %s924, [#allocation27], 320, 320, 20
        $region48: #{unet_forward.1} parent=11 // pred_fallthru
          _
        // Predicated region
        $region49: #{unet_forward.1} parent=11 // pred_check
          %p930 = pneg %p323
        $region50: #{unet_forward.1} parent=11 // pred_check_branch
          %932 = sbr.rel (%p930) target = $region52
        $region51: #{unet_forward.1} parent=11 // pred_region
          %934 = vsyncadd [#allocation30], 0
          %s935 = sshll.u32 %s21, 4
          %s936 = int_to_ptr.hbm [resolvable:$true] %s935
          %s937 = sshll.u32 [#allocation29], 4
          %s938 = int_to_ptr.vmem [resolvable:$true] %s937
          %943 = dma.hbm_to_vmem [thread:$0]  %s936, 512, %s938, [#allocation30], 128, 128, 8
        $region52: #{unet_forward.1} parent=11 // pred_fallthru
          _
        // Predicated region
        $region53: #{unet_forward.1} parent=11 // pred_check
          %p944 = pneg %p344
        $region54: #{unet_forward.1} parent=11 // pred_check_branch
          %946 = sbr.rel (%p944) target = $region56
        $region55: #{unet_forward.1} parent=11 // pred_region
          %948 = vsyncadd [#allocation30], 0
          %s949 = sshll.u32 %s23, 4
          %s950 = int_to_ptr.hbm [resolvable:$true] %s949
          %s951 = sshll.u32 [#allocation31], 4
          %s952 = int_to_ptr.vmem [resolvable:$true] %s951
          %957 = dma.hbm_to_vmem [thread:$0]  %s950, 1280, %s952, [#allocation30], 320, 320, 20
        $region56: #{unet_forward.1} parent=11 // pred_fallthru
          _
        // Predicated region
        $region57: #{unet_forward.1} parent=11 // pred_check
          %p958 = pneg %p365
        $region58: #{unet_forward.1} parent=11 // pred_check_branch
          %960 = sbr.rel (%p958) target = $region60
        $region59: #{unet_forward.1} parent=11 // pred_region
          %962 = vsyncadd [#allocation33], 0
          %s963 = sshll.u32 %s25, 4
          %s964 = int_to_ptr.hbm [resolvable:$true] %s963
          %s965 = sshll.u32 [#allocation32], 4
          %s966 = int_to_ptr.vmem [resolvable:$true] %s965
          %971 = dma.hbm_to_vmem [thread:$0]  %s964, 512, %s966, [#allocation33], 128, 128, 8
        $region60: #{unet_forward.1} parent=11 // pred_fallthru
          _
        // Predicated region
        $region61: #{unet_forward.1} parent=11 // pred_check
          %p972 = pneg %p386
        $region62: #{unet_forward.1} parent=11 // pred_check_branch
          %974 = sbr.rel (%p972) target = $region64
        $region63: #{unet_forward.1} parent=11 // pred_region
          %976 = vsyncadd [#allocation33], 0
          %s977 = sshll.u32 %s27, 4
          %s978 = int_to_ptr.hbm [resolvable:$true] %s977
          %s979 = sshll.u32 [#allocation34], 4
          %s980 = int_to_ptr.vmem [resolvable:$true] %s979
          %985 = dma.hbm_to_vmem [thread:$0]  %s978, 384, %s980, [#allocation33], 192, 192, 12
        $region64: #{unet_forward.1} parent=11 // pred_fallthru
          _
        // Predicated region
        $region65: #{unet_forward.1} parent=11 // pred_check
          %p986 = pneg %p407
        $region66: #{unet_forward.1} parent=11 // pred_check_branch
          %988 = sbr.rel (%p986) target = $region68
        $region67: #{unet_forward.1} parent=11 // pred_region
          %990 = vsyncadd [#allocation36], 0
          %s991 = sshll.u32 %s29, 4
          %s992 = int_to_ptr.hbm [resolvable:$true] %s991
          %s993 = sshll.u32 [#allocation35], 4
          %s994 = int_to_ptr.vmem [resolvable:$true] %s993
          %999 = dma.hbm_to_vmem [thread:$0]  %s992, 256, %s994, [#allocation36], 128, 128, 8
        $region68: #{unet_forward.1} parent=11 // pred_fallthru
          _
        // Predicated region
        $region69: #{unet_forward.1} parent=11 // pred_check
          %p1000 = pneg %p428
        $region70: #{unet_forward.1} parent=11 // pred_check_branch
          %1002 = sbr.rel (%p1000) target = $region72
        $region71: #{unet_forward.1} parent=11 // pred_region
          %1004 = vsyncadd [#allocation36], 0
          %s1005 = sshll.u32 %s31, 4
          %s1006 = int_to_ptr.hbm [resolvable:$true] %s1005
          %s1007 = sshll.u32 [#allocation37], 4
          %s1008 = int_to_ptr.vmem [resolvable:$true] %s1007
          %1013 = dma.hbm_to_vmem [thread:$0]  %s1006, 384, %s1008, [#allocation36], 192, 192, 12
        $region72: #{unet_forward.1} parent=11 // pred_fallthru
          _
        // Predicated region
        $region73: #{unet_forward.1} parent=11 // pred_check
          %p1014 = pneg %p449
        $region74: #{unet_forward.1} parent=11 // pred_check_branch
          %1016 = sbr.rel (%p1014) target = $region76
        $region75: #{unet_forward.1} parent=11 // pred_region
          %1018 = vsyncadd [#allocation39], 0
          %s1019 = sshll.u32 %s33, 4
          %s1020 = int_to_ptr.hbm [resolvable:$true] %s1019
          %s1021 = sshll.u32 [#allocation38], 4
          %s1022 = int_to_ptr.vmem [resolvable:$true] %s1021
          %1027 = dma.hbm_to_vmem [thread:$0]  %s1020, 256, %s1022, [#allocation39], 128, 128, 8
        $region76: #{unet_forward.1} parent=11 // pred_fallthru
          _
        // Predicated region
        $region77: #{unet_forward.1} parent=11 // pred_check
          %p1028 = pneg %p470
        $region78: #{unet_forward.1} parent=11 // pred_check_branch
          %1030 = sbr.rel (%p1028) target = $region80
        $region79: #{unet_forward.1} parent=11 // pred_region
          %1032 = vsyncadd [#allocation39], 0
          %s1033 = sshll.u32 %s35, 4
          %s1034 = int_to_ptr.hbm [resolvable:$true] %s1033
          %s1035 = sshll.u32 [#allocation40], 4
          %s1036 = int_to_ptr.vmem [resolvable:$true] %s1035
          %1041 = dma.hbm_to_vmem [thread:$0]  %s1034, 256, %s1036, [#allocation39], 128, 128, 8
        $region80: #{unet_forward.1} parent=11 // pred_fallthru
          _
        // Predicated region
        $region81: #{unet_forward.1} parent=11 // pred_check
          %p1042 = pneg %p491
        $region82: #{unet_forward.1} parent=11 // pred_check_branch
          %1044 = sbr.rel (%p1042) target = $region84
        $region83: #{unet_forward.1} parent=11 // pred_region
          _
        $region84: #{unet_forward.1} parent=11 // pred_fallthru
          _
        // Predicated region
        $region85: #{unet_forward.1} parent=11 // pred_check
          %p1045 = pneg %p512
        $region86: #{unet_forward.1} parent=11 // pred_check_branch
          %1047 = sbr.rel (%p1045) target = $region88
        $region87: #{unet_forward.1} parent=11 // pred_region
          %1049 = vsyncadd [#allocation42], 0
          %s1050 = sshll.u32 %s39, 4
          %s1051 = int_to_ptr.hbm [resolvable:$true] %s1050
          %s1052 = sshll.u32 [#allocation41], 4
          %s1053 = int_to_ptr.vmem [resolvable:$true] %s1052
          %1058 = dma.hbm_to_vmem [thread:$0]  %s1051, 384, %s1053, [#allocation42], 192, 192, 12
        $region88: #{unet_forward.1} parent=11 // pred_fallthru
          _
        // Predicated region
        $region89: #{unet_forward.1} parent=11 // pred_check
          %p1059 = pneg %p533
        $region90: #{unet_forward.1} parent=11 // pred_check_branch
          %1061 = sbr.rel (%p1059) target = $region92
        $region91: #{unet_forward.1} parent=11 // pred_region
          %1063 = vsyncadd [#allocation42], 0
          %s1064 = sshll.u32 %s41, 4
          %s1065 = int_to_ptr.hbm [resolvable:$true] %s1064
          %s1066 = sshll.u32 [#allocation43], 4
          %s1067 = int_to_ptr.vmem [resolvable:$true] %s1066
          %1072 = dma.hbm_to_vmem [thread:$0]  %s1065, 256, %s1067, [#allocation42], 128, 128, 8
        $region92: #{unet_forward.1} parent=11 // pred_fallthru
          _
        // Predicated region
        $region93: #{unet_forward.1} parent=11 // pred_check
          %p1073 = pneg %p554
        $region94: #{unet_forward.1} parent=11 // pred_check_branch
          %1075 = sbr.rel (%p1073) target = $region96
        $region95: #{unet_forward.1} parent=11 // pred_region
          _
        $region96: #{unet_forward.1} parent=11 // pred_fallthru
          _
        // Predicated region
        $region97: #{unet_forward.1} parent=11 // pred_check
          %p1076 = pneg %p575
        $region98: #{unet_forward.1} parent=11 // pred_check_branch
          %1078 = sbr.rel (%p1076) target = $region100
        $region99: #{unet_forward.1} parent=11 // pred_region
          %1080 = vsyncadd [#allocation45], 0
          %s1082 = sshll.u32 %s45, 4
          %s1083 = int_to_ptr.hbm [resolvable:$true] %s1082
          %s1084 = sshll.u32 [#allocation44], 4
          %s1085 = int_to_ptr.vmem [resolvable:$true] %s1084
          %1087 = dma.hbm_to_vmem [thread:$0]  %s1083, 64, %s1085, [#allocation45]
        $region100: #{unet_forward.1} parent=11 // pred_fallthru
          _
        // Predicated region
        $region101: #{unet_forward.1} parent=11 // pred_check
          %p1088 = pneg %p596
        $region102: #{unet_forward.1} parent=11 // pred_check_branch
          %1090 = sbr.rel (%p1088) target = $region104
        $region103: #{unet_forward.1} parent=11 // pred_region
          %1092 = vsyncadd [#allocation45], 0
          %s1094 = sshll.u32 %s47, 4
          %s1095 = int_to_ptr.hbm [resolvable:$true] %s1094
          %s1096 = sshll.u32 [#allocation46], 4
          %s1097 = int_to_ptr.vmem [resolvable:$true] %s1096
          %1099 = dma.hbm_to_vmem [thread:$0]  %s1095, 48, %s1097, [#allocation45]
        $region104: #{unet_forward.1} parent=11 // pred_fallthru
          _
        // Predicated region
        $region105: #{unet_forward.1} parent=11 // pred_check
          %p1100 = pneg %p617
        $region106: #{unet_forward.1} parent=11 // pred_check_branch
          %1102 = sbr.rel (%p1100) target = $region108
        $region107: #{unet_forward.1} parent=11 // pred_region
          %1104 = vsyncadd [#allocation48], 0
          %s1106 = sshll.u32 %s49, 4
          %s1107 = int_to_ptr.hbm [resolvable:$true] %s1106
          %s1108 = sshll.u32 [#allocation47], 4
          %s1109 = int_to_ptr.vmem [resolvable:$true] %s1108
          %1111 = dma.hbm_to_vmem [thread:$0]  %s1107, 16, %s1109, [#allocation48]
        $region108: #{unet_forward.1} parent=11 // pred_fallthru
          _
        // Predicated region
        $region109: #{unet_forward.1} parent=11 // pred_check
          %p1112 = pneg %p638
        $region110: #{unet_forward.1} parent=11 // pred_check_branch
          %1114 = sbr.rel (%p1112) target = $region112
        $region111: #{unet_forward.1} parent=11 // pred_region
          %1116 = vsyncadd [#allocation48], 0
          %s1118 = sshll.u32 %s51, 4
          %s1119 = int_to_ptr.hbm [resolvable:$true] %s1118
          %s1120 = sshll.u32 [#allocation49], 4
          %s1121 = int_to_ptr.vmem [resolvable:$true] %s1120
          %1123 = dma.hbm_to_vmem [thread:$0]  %s1119, 16, %s1121, [#allocation48]
        $region112: #{unet_forward.1} parent=11 // pred_fallthru
          _
        // Predicated region
        $region113: #{unet_forward.1} parent=11 // pred_check
          %p1124 = pneg %p659
        $region114: #{unet_forward.1} parent=11 // pred_check_branch
          %1126 = sbr.rel (%p1124) target = $region116
        $region115: #{unet_forward.1} parent=11 // pred_region
          %1128 = vsyncadd [#allocation51], 0
          %s1130 = sshll.u32 %s53, 4
          %s1131 = int_to_ptr.hbm [resolvable:$true] %s1130
          %s1132 = sshll.u32 [#allocation50], 4
          %s1133 = int_to_ptr.vmem [resolvable:$true] %s1132
          %1135 = dma.hbm_to_vmem [thread:$0]  %s1131, 16, %s1133, [#allocation51]
        $region116: #{unet_forward.1} parent=11 // pred_fallthru
          _
        // Predicated region
        $region117: #{unet_forward.1} parent=11 // pred_check
          %p1136 = pneg %p680
        $region118: #{unet_forward.1} parent=11 // pred_check_branch
          %1138 = sbr.rel (%p1136) target = $region120
        $region119: #{unet_forward.1} parent=11 // pred_region
          _
        $region120: #{unet_forward.1} parent=11 // pred_fallthru
          _
        // Predicated region
        $region121: #{unet_forward.1} parent=11 // pred_check
          %p1139 = pneg %p701
        $region122: #{unet_forward.1} parent=11 // pred_check_branch
          %1141 = sbr.rel (%p1139) target = $region124
        $region123: #{unet_forward.1} parent=11 // pred_region
          %1143 = vsyncadd [#allocation51], 0
          %s1144 = sshll.u32 %s57, 4
          %s1145 = int_to_ptr.hbm [resolvable:$true] %s1144
          %s1146 = sshll.u32 [#allocation52], 4
          %s1147 = int_to_ptr.vmem [resolvable:$true] %s1146
          %1152 = dma.hbm_to_vmem [thread:$0]  %s1145, 832, %s1147, [#allocation51], 64, 64, 4
        $region124: #{unet_forward.1} parent=11 // pred_fallthru
          _
        // Predicated region
        $region125: #{unet_forward.1} parent=11 // pred_check
          %p1153 = pneg %p722
        $region126: #{unet_forward.1} parent=11 // pred_check_branch
          %1155 = sbr.rel (%p1153) target = $region128
        $region127: #{unet_forward.1} parent=11 // pred_region
          %1157 = vsyncadd [#allocation54], 0
          %s1158 = sshll.u32 %s59, 4
          %s1159 = int_to_ptr.hbm [resolvable:$true] %s1158
          %s1160 = sshll.u32 [#allocation53], 4
          %s1161 = int_to_ptr.vmem [resolvable:$true] %s1160
          %1166 = dma.hbm_to_vmem [thread:$0]  %s1159, 320, %s1161, [#allocation54], 64, 64, 4
        $region128: #{unet_forward.1} parent=11 // pred_fallthru
          _
        // Predicated region
        $region129: #{unet_forward.1} parent=11 // pred_check
          %p1167 = pneg %p743
        $region130: #{unet_forward.1} parent=11 // pred_check_branch
          %1169 = sbr.rel (%p1167) target = $region132
        $region131: #{unet_forward.1} parent=11 // pred_region
          %1171 = vsyncadd [#allocation54], 0
          %s1172 = sshll.u32 %s61, 4
          %s1173 = int_to_ptr.hbm [resolvable:$true] %s1172
          %s1174 = sshll.u32 [#allocation55], 4
          %s1175 = int_to_ptr.vmem [resolvable:$true] %s1174
          %1180 = dma.hbm_to_vmem [thread:$0]  %s1173, 128, %s1175, [#allocation54], 64, 64, 4
        $region132: #{unet_forward.1} parent=11 // pred_fallthru
          _
        // Predicated region
        $region133: #{unet_forward.1} parent=11 // pred_check
          %p1181 = pneg %p764
        $region134: #{unet_forward.1} parent=11 // pred_check_branch
          %1183 = sbr.rel (%p1181) target = $region136
        $region135: #{unet_forward.1} parent=11 // pred_region
          %1185 = vsyncadd [#allocation57], 0
          %s1186 = sshll.u32 %s63, 4
          %s1187 = int_to_ptr.hbm [resolvable:$true] %s1186
          %s1188 = sshll.u32 [#allocation56], 4
          %s1189 = int_to_ptr.vmem [resolvable:$true] %s1188
          %1194 = dma.hbm_to_vmem [thread:$0]  %s1187, 320, %s1189, [#allocation57], 64, 64, 4
        $region136: #{unet_forward.1} parent=11 // pred_fallthru
          _
        // Predicated region
        $region137: #{unet_forward.1} parent=11 // pred_check
          %p1195 = pneg %p785
        $region138: #{unet_forward.1} parent=11 // pred_check_branch
          %1197 = sbr.rel (%p1195) target = $region140
        $region139: #{unet_forward.1} parent=11 // pred_region
          _
        $region140: #{unet_forward.1} parent=11 // pred_fallthru
          _
      $region12: #{unet_forward.1} parent=5 // pred_fallthru
        _
      %p1198 = scmp.lt.s32.totalorder %s87, 2
      // Predicated region
      $region141: #{unet_forward.1} parent=5 // pred_check
        %p1199 = pneg %p1198
      $region142: #{unet_forward.1} parent=5 // pred_check_branch
        %1201 = sbr.rel (%p1199) target = $region144
      $region143: #{unet_forward.1} parent=5 // pred_region
        // Predicated region
        $region145: #{unet_forward.1} parent=143 // pred_check
          %p1202 = pneg %p107
        $region146: #{unet_forward.1} parent=143 // pred_check_branch
          %1204 = sbr.rel (%p1202) target = $region148
        $region147: #{unet_forward.1} parent=143 // pred_region
          %p1205 = scmp.lt.s32.totalorder %s87, 1
          %s1206 = scalar_select %p1205, %s87, 1
          %s1207 = smul.addr %s1206, 10
          %s1208 = smul.addr %s1207, 4
          %s1209 = scalar_lea.vmem %s1, %s1208
        $region148: #{unet_forward.1} parent=143 // pred_fallthru
          _
      $region144: #{unet_forward.1} parent=5 // pred_fallthru
        _
      %p1210 = scmp.le.s32.totalorder 1, %s87
      %p1211 = scmp.lt.s32.totalorder %s87, 3
      %p1212 = pnand %p1210, %p1211
      %p1213 = pneg %p1212
      // Predicated region
      $region149: #{unet_forward.1} parent=5 // pred_check
        _
      $region150: #{unet_forward.1} parent=5 // pred_check_branch
        %1215 = sbr.rel (%p1212) target = $region152
      $region151: #{unet_forward.1} parent=5 // pred_region
        %s1216 = ssub.s32 %s87, 1
        // Predicated region
        $region153: #{unet_forward.1} parent=151 // pred_check
          %p1217 = pneg %p134
        $region154: #{unet_forward.1} parent=151 // pred_check_branch
          %1219 = sbr.rel (%p1217) target = $region156
        $region155: #{unet_forward.1} parent=151 // pred_region
          %1221 = dma.done [#allocation19], 256
        $region156: #{unet_forward.1} parent=151 // pred_fallthru
          _
        // Predicated region
        $region157: #{unet_forward.1} parent=151 // pred_check
          %p1222 = pneg %p155
        $region158: #{unet_forward.1} parent=151 // pred_check_branch
          %1224 = sbr.rel (%p1222) target = $region160
        $region159: #{unet_forward.1} parent=151 // pred_region
          %1226 = dma.done [#allocation21], 256
        $region160: #{unet_forward.1} parent=151 // pred_fallthru
          _
        // Predicated region
        $region161: #{unet_forward.1} parent=151 // pred_check
          %p1227 = pneg %p176
        $region162: #{unet_forward.1} parent=151 // pred_check_branch
          %1229 = sbr.rel (%p1227) target = $region164
        $region163: #{unet_forward.1} parent=151 // pred_region
          %1231 = dma.done [#allocation21], 256
        $region164: #{unet_forward.1} parent=151 // pred_fallthru
          _
        // Predicated region
        $region165: #{unet_forward.1} parent=151 // pred_check
          %p1232 = pneg %p197
        $region166: #{unet_forward.1} parent=151 // pred_check_branch
          %1234 = sbr.rel (%p1232) target = $region168
        $region167: #{unet_forward.1} parent=151 // pred_region
          %1236 = dma.done [#allocation24], 256
        $region168: #{unet_forward.1} parent=151 // pred_fallthru
          _
        // Predicated region
        $region169: #{unet_forward.1} parent=151 // pred_check
          %p1237 = pneg %p239
        $region170: #{unet_forward.1} parent=151 // pred_check_branch
          %1239 = sbr.rel (%p1237) target = $region172
        $region171: #{unet_forward.1} parent=151 // pred_region
          %1241 = dma.done [#allocation24], 512
        $region172: #{unet_forward.1} parent=151 // pred_fallthru
          _
        // Predicated region
        $region173: #{unet_forward.1} parent=151 // pred_check
          %p1242 = pneg %p281
        $region174: #{unet_forward.1} parent=151 // pred_check_branch
          %1244 = sbr.rel (%p1242) target = $region176
        $region175: #{unet_forward.1} parent=151 // pred_region
          %1246 = dma.done [#allocation27], 1024
        $region176: #{unet_forward.1} parent=151 // pred_fallthru
          _
        // Predicated region
        $region177: #{unet_forward.1} parent=151 // pred_check
          %p1247 = pneg %p302
        $region178: #{unet_forward.1} parent=151 // pred_check_branch
          %1249 = sbr.rel (%p1247) target = $region180
        $region179: #{unet_forward.1} parent=151 // pred_region
          %1251 = dma.done [#allocation27], 1280
        $region180: #{unet_forward.1} parent=151 // pred_fallthru
          _
        // Predicated region
        $region181: #{unet_forward.1} parent=151 // pred_check
          %p1252 = pneg %p323
        $region182: #{unet_forward.1} parent=151 // pred_check_branch
          %1254 = sbr.rel (%p1252) target = $region184
        $region183: #{unet_forward.1} parent=151 // pred_region
          %1256 = dma.done [#allocation30], 512
        $region184: #{unet_forward.1} parent=151 // pred_fallthru
          _
        // Predicated region
        $region185: #{unet_forward.1} parent=151 // pred_check
          %p1257 = pneg %p344
        $region186: #{unet_forward.1} parent=151 // pred_check_branch
          %1259 = sbr.rel (%p1257) target = $region188
        $region187: #{unet_forward.1} parent=151 // pred_region
          %1261 = dma.done [#allocation30], 1280
        $region188: #{unet_forward.1} parent=151 // pred_fallthru
          _
        // Predicated region
        $region189: #{unet_forward.1} parent=151 // pred_check
          %p1262 = pneg %p365
        $region190: #{unet_forward.1} parent=151 // pred_check_branch
          %1264 = sbr.rel (%p1262) target = $region192
        $region191: #{unet_forward.1} parent=151 // pred_region
          %1266 = dma.done [#allocation33], 512
        $region192: #{unet_forward.1} parent=151 // pred_fallthru
          _
        // Predicated region
        $region193: #{unet_forward.1} parent=151 // pred_check
          %p1267 = pneg %p386
        $region194: #{unet_forward.1} parent=151 // pred_check_branch
          %1269 = sbr.rel (%p1267) target = $region196
        $region195: #{unet_forward.1} parent=151 // pred_region
          %1271 = dma.done [#allocation33], 384
        $region196: #{unet_forward.1} parent=151 // pred_fallthru
          _
        // Predicated region
        $region197: #{unet_forward.1} parent=151 // pred_check
          %p1272 = pneg %p407
        $region198: #{unet_forward.1} parent=151 // pred_check_branch
          %1274 = sbr.rel (%p1272) target = $region200
        $region199: #{unet_forward.1} parent=151 // pred_region
          %1276 = dma.done [#allocation36], 256
        $region200: #{unet_forward.1} parent=151 // pred_fallthru
          _
        // Predicated region
        $region201: #{unet_forward.1} parent=151 // pred_check
          %p1277 = pneg %p428
        $region202: #{unet_forward.1} parent=151 // pred_check_branch
          %1279 = sbr.rel (%p1277) target = $region204
        $region203: #{unet_forward.1} parent=151 // pred_region
          %1281 = dma.done [#allocation36], 384
        $region204: #{unet_forward.1} parent=151 // pred_fallthru
          _
        // Predicated region
        $region205: #{unet_forward.1} parent=151 // pred_check
          %p1282 = pneg %p449
        $region206: #{unet_forward.1} parent=151 // pred_check_branch
          %1284 = sbr.rel (%p1282) target = $region208
        $region207: #{unet_forward.1} parent=151 // pred_region
          %1286 = dma.done [#allocation39], 256
        $region208: #{unet_forward.1} parent=151 // pred_fallthru
          _
        // Predicated region
        $region209: #{unet_forward.1} parent=151 // pred_check
          %p1287 = pneg %p470
        $region210: #{unet_forward.1} parent=151 // pred_check_branch
          %1289 = sbr.rel (%p1287) target = $region212
        $region211: #{unet_forward.1} parent=151 // pred_region
          %1291 = dma.done [#allocation39], 256
        $region212: #{unet_forward.1} parent=151 // pred_fallthru
          _
        // Predicated region
        $region213: #{unet_forward.1} parent=151 // pred_check
          %p1292 = pneg %p512
        $region214: #{unet_forward.1} parent=151 // pred_check_branch
          %1294 = sbr.rel (%p1292) target = $region216
        $region215: #{unet_forward.1} parent=151 // pred_region
          %1296 = dma.done [#allocation42], 384
        $region216: #{unet_forward.1} parent=151 // pred_fallthru
          _
        // Predicated region
        $region217: #{unet_forward.1} parent=151 // pred_check
          %p1297 = pneg %p533
        $region218: #{unet_forward.1} parent=151 // pred_check_branch
          %1299 = sbr.rel (%p1297) target = $region220
        $region219: #{unet_forward.1} parent=151 // pred_region
          %1301 = dma.done [#allocation42], 256
        $region220: #{unet_forward.1} parent=151 // pred_fallthru
          _
        // Predicated region
        $region221: #{unet_forward.1} parent=151 // pred_check
          %p1302 = pneg %p575
        $region222: #{unet_forward.1} parent=151 // pred_check_branch
          %1304 = sbr.rel (%p1302) target = $region224
        $region223: #{unet_forward.1} parent=151 // pred_region
          %1306 = dma.done [#allocation45], 64
        $region224: #{unet_forward.1} parent=151 // pred_fallthru
          _
        // Predicated region
        $region225: #{unet_forward.1} parent=151 // pred_check
          %p1307 = pneg %p596
        $region226: #{unet_forward.1} parent=151 // pred_check_branch
          %1309 = sbr.rel (%p1307) target = $region228
        $region227: #{unet_forward.1} parent=151 // pred_region
          %1311 = dma.done [#allocation45], 48
        $region228: #{unet_forward.1} parent=151 // pred_fallthru
          _
        // Predicated region
        $region229: #{unet_forward.1} parent=151 // pred_check
          %p1312 = pneg %p617
        $region230: #{unet_forward.1} parent=151 // pred_check_branch
          %1314 = sbr.rel (%p1312) target = $region232
        $region231: #{unet_forward.1} parent=151 // pred_region
          %1316 = dma.done [#allocation48], 16
        $region232: #{unet_forward.1} parent=151 // pred_fallthru
          _
        // Predicated region
        $region233: #{unet_forward.1} parent=151 // pred_check
          %p1317 = pneg %p638
        $region234: #{unet_forward.1} parent=151 // pred_check_branch
          %1319 = sbr.rel (%p1317) target = $region236
        $region235: #{unet_forward.1} parent=151 // pred_region
          %1321 = dma.done [#allocation48], 16
        $region236: #{unet_forward.1} parent=151 // pred_fallthru
          _
        // Predicated region
        $region237: #{unet_forward.1} parent=151 // pred_check
          %p1322 = pneg %p659
        $region238: #{unet_forward.1} parent=151 // pred_check_branch
          %1324 = sbr.rel (%p1322) target = $region240
        $region239: #{unet_forward.1} parent=151 // pred_region
          %1326 = dma.done [#allocation51], 16
        $region240: #{unet_forward.1} parent=151 // pred_fallthru
          _
        // Predicated region
        $region241: #{unet_forward.1} parent=151 // pred_check
          %p1327 = pneg %p701
        $region242: #{unet_forward.1} parent=151 // pred_check_branch
          %1329 = sbr.rel (%p1327) target = $region244
        $region243: #{unet_forward.1} parent=151 // pred_region
          %1331 = dma.done [#allocation51], 832
        $region244: #{unet_forward.1} parent=151 // pred_fallthru
          _
        // Predicated region
        $region245: #{unet_forward.1} parent=151 // pred_check
          %p1332 = pneg %p722
        $region246: #{unet_forward.1} parent=151 // pred_check_branch
          %1334 = sbr.rel (%p1332) target = $region248
        $region247: #{unet_forward.1} parent=151 // pred_region
          %1336 = dma.done [#allocation54], 320
        $region248: #{unet_forward.1} parent=151 // pred_fallthru
          _
        // Predicated region
        $region249: #{unet_forward.1} parent=151 // pred_check
          %p1337 = pneg %p743
        $region250: #{unet_forward.1} parent=151 // pred_check_branch
          %1339 = sbr.rel (%p1337) target = $region252
        $region251: #{unet_forward.1} parent=151 // pred_region
          %1341 = dma.done [#allocation54], 128
        $region252: #{unet_forward.1} parent=151 // pred_fallthru
          _
        // Predicated region
        $region253: #{unet_forward.1} parent=151 // pred_check
          %p1342 = pneg %p764
        $region254: #{unet_forward.1} parent=151 // pred_check_branch
          %1344 = sbr.rel (%p1342) target = $region256
        $region255: #{unet_forward.1} parent=151 // pred_region
          %1346 = dma.done [#allocation57], 320
        $region256: #{unet_forward.1} parent=151 // pred_fallthru
          _
        %p1347 = scmp.lt.s32.totalorder %s92, 1
        %s1348 = scalar_select %p1347, %s92, 1
        %s1349 = smul.addr %s1348, 10
        %s1350 = smul.addr %s1349, 4
        %s1351 = scalar_lea.vmem %s1, %s1350
        %p1352 = pneg %p113
        %p1353 = pneg %p110
        %p1354 = pneg %p134
        %p1355 = pneg %p131
        %p1356 = pneg %p155
        %p1357 = pneg %p152
        %p1358 = pneg %p176
        %p1359 = pneg %p173
        %p1360 = pneg %p197
        %p1361 = pneg %p194
        %p1362 = pneg %p218
        %p1363 = pneg %p215
        %p1364 = pneg %p239
        %p1365 = pneg %p236
        %p1366 = pneg %p260
        %p1367 = pneg %p257
        %p1368 = pneg %p281
        %p1369 = pneg %p278
        %p1370 = pneg %p302
        %p1371 = pneg %p299
        %p1372 = pneg %p323
        %p1373 = pneg %p320
        %p1374 = pneg %p344
        %p1375 = pneg %p341
        %p1376 = pneg %p365
        %p1377 = pneg %p362
        %p1378 = pneg %p386
        %p1379 = pneg %p383
        %p1380 = pneg %p407
        %p1381 = pneg %p404
        %p1382 = pneg %p428
        %p1383 = pneg %p425
        %p1384 = pneg %p449
        %p1385 = pneg %p446
        %p1386 = pneg %p470
        %p1387 = pneg %p467
        %p1388 = pneg %p491
        %p1389 = pneg %p488
        %p1390 = pneg %p512
        %p1391 = pneg %p509
        %p1392 = pneg %p533
        %p1393 = pneg %p530
        %p1394 = pneg %p554
        %p1395 = pneg %p551
        %p1396 = pneg %p575
        %p1397 = pneg %p572
        %p1398 = pneg %p596
        %p1399 = pneg %p593
        %p1400 = pneg %p617
        %p1401 = pneg %p614
        %p1402 = pneg %p638
        %p1403 = pneg %p635
        %p1404 = pneg %p659
        %p1405 = pneg %p656
        %p1406 = pneg %p680
        %p1407 = pneg %p677
        %p1408 = pneg %p701
        %p1409 = pneg %p698
        %p1410 = pneg %p722
        %p1411 = pneg %p719
        %p1412 = pneg %p743
        %p1413 = pneg %p740
        %p1414 = pneg %p764
        %p1415 = pneg %p761
        %p1416 = pneg %p785
        %p1417 = pneg %p782
        %p1418 = pneg %p811
        %p1419 = pneg %p808
        %p1420 = scmp.lt.s32.totalorder %s92, 1
        %s1421 = scalar_select %p1420, %s92, 1
        %s1422 = smul.addr %s1421, 3
        %s1423 = smul.addr %s1422, 4
        %s1424 = scalar_lea.vmem %s67, %s1423
        %p1425 = scmp.lt.s32.totalorder %s92, 1
        %s1426 = scalar_select %p1425, %s92, 1
        %s1427 = smul.addr %s1426, 10
        %s1428 = smul.addr %s1427, 4
        %s1429 = scalar_lea.vmem %s1, %s1428
        %p1430 = scmp.lt.s32.totalorder %s92, 1
        %s1431 = scalar_select %p1430, %s92, 1
        %s1432 = smul.addr %s1431, 3
        %s1433 = smul.addr %s1432, 4
        %s1434 = scalar_lea.vmem %s67, %s1433
        %1436 = vst [vmem:[#allocation2] sm:$0xf] 0
        %1437 = vst [vmem:[#allocation2 + $0x14] sm:$0xf] 0
        %vm1438 = vcmask 1044000
        %vm1439 = vcmask 556036
        %vm1440 = vmor %vm1439, %vm1438
        %1441 = vst.msk [vmem:[#allocation2 + $0xc] sm:$0xff] %vm1440, 0
        %1442 = vst.msk [vmem:[#allocation2 + $0x20] sm:$0xff] %vm1440, 0
        %1443 = vst [vmem:[#allocation3] sm:$0xf] 0
        %1444 = vst [vmem:[#allocation3 + $0xc] sm:$0xf] 0
        %vm1445 = vcmask 1044256
        %vm1446 = vcmask 818180
        %vm1447 = vmor %vm1446, %vm1445
        %1448 = vst.msk [vmem:[#allocation3 + $0x4] sm:$0xff] %vm1447, 0
        %1449 = vst.msk [vmem:[#allocation3 + $0x10] sm:$0xff] %vm1447, 0
        %1450 = vst [vmem:[#allocation4] sm:$0xf] 0
        %1451 = vst [vmem:[#allocation4 + $0xc] sm:$0xf] 0
        %1452 = vst.msk [vmem:[#allocation4 + $0x4] sm:$0xff] %vm1447, 0
        %1453 = vst.msk [vmem:[#allocation4 + $0x10] sm:$0xff] %vm1447, 0
        %1454 = vst [vmem:[#allocation5] sm:$0xf] 0
        %1455 = vst [vmem:[#allocation5 + $0xc] sm:$0xf] 0
        %vm1456 = vcmask 1043744
        %vm1457 = vcmask 293892
        %vm1458 = vmor %vm1457, %vm1456
        %1459 = vst.msk [vmem:[#allocation5 + $0x4] sm:$0xff] %vm1458, 0
        %1460 = vst.msk [vmem:[#allocation5 + $0x10] sm:$0xff] %vm1458, 0
        %1461 = vst [vmem:[#allocation6] sm:$0xf] 0
        %1462 = vst [vmem:[#allocation6 + $0xc] sm:$0xf] 0
        %1463 = vst [vmem:[#allocation6 + $0x18] sm:$0xf] 0
        %1464 = vst [vmem:[#allocation6 + $0x24] sm:$0xf] 0
        %1465 = vst.msk [vmem:[#allocation6 + $0x4] sm:$0xff] %vm1458, 0
        %1466 = vst.msk [vmem:[#allocation6 + $0x10] sm:$0xff] %vm1458, 0
        %1467 = vst.msk [vmem:[#allocation6 + $0x1c] sm:$0xff] %vm1458, 0
        %1468 = vst.msk [vmem:[#allocation6 + $0x28] sm:$0xff] %vm1458, 0
        %1469 = vst [vmem:[#allocation7] sm:$0xf] 0
        %1470 = vst [vmem:[#allocation7 + $0xc] sm:$0xf] 0
        %1471 = vst [vmem:[#allocation7 + $0x18] sm:$0xf] 0
        %1472 = vst [vmem:[#allocation7 + $0x24] sm:$0xf] 0
        %vm1473 = vcmask 1043584
        %vm1474 = vcmask 130052
        %vm1475 = vmor %vm1474, %vm1473
        %1476 = vst.msk [vmem:[#allocation7 + $0x4] sm:$0xff] %vm1475, 0
        %1477 = vst.msk [vmem:[#allocation7 + $0x10] sm:$0xff] %vm1475, 0
        %1478 = vst.msk [vmem:[#allocation7 + $0x1c] sm:$0xff] %vm1475, 0
        %1479 = vst.msk [vmem:[#allocation7 + $0x28] sm:$0xff] %vm1475, 0
        %1480 = vst [vmem:[#allocation8] sm:$0xf] 0
        %1481 = vst [vmem:[#allocation8 + $0xc] sm:$0xf] 0
        %1482 = vst [vmem:[#allocation8 + $0x18] sm:$0xf] 0
        %1483 = vst [vmem:[#allocation8 + $0x24] sm:$0xf] 0
        %1484 = vst [vmem:[#allocation8 + $0x30] sm:$0xf] 0
        %1485 = vst [vmem:[#allocation8 + $0x3c] sm:$0xf] 0
        %1486 = vst [vmem:[#allocation8 + $0x48] sm:$0xf] 0
        %1487 = vst [vmem:[#allocation8 + $0x54] sm:$0xf] 0
        %1488 = vst.msk [vmem:[#allocation8 + $0x4] sm:$0xff] %vm1475, 0
        %1489 = vst.msk [vmem:[#allocation8 + $0x10] sm:$0xff] %vm1475, 0
        %1490 = vst.msk [vmem:[#allocation8 + $0x1c] sm:$0xff] %vm1475, 0
        %1491 = vst.msk [vmem:[#allocation8 + $0x28] sm:$0xff] %vm1475, 0
        %1492 = vst.msk [vmem:[#allocation8 + $0x34] sm:$0xff] %vm1475, 0
        %1493 = vst.msk [vmem:[#allocation8 + $0x40] sm:$0xff] %vm1475, 0
        %1494 = vst.msk [vmem:[#allocation8 + $0x4c] sm:$0xff] %vm1475, 0
        %1495 = vst.msk [vmem:[#allocation8 + $0x58] sm:$0xff] %vm1475, 0
        %1496 = vst [vmem:[#allocation9] sm:$0xf] 0
        %1497 = vst [vmem:[#allocation9 + $0xc] sm:$0xf] 0
        %1498 = vst [vmem:[#allocation9 + $0x18] sm:$0xf] 0
        %1499 = vst [vmem:[#allocation9 + $0x24] sm:$0xf] 0
        %1500 = vst [vmem:[#allocation9 + $0x30] sm:$0xf] 0
        %1501 = vst [vmem:[#allocation9 + $0x3c] sm:$0xf] 0
        %1502 = vst [vmem:[#allocation9 + $0x48] sm:$0xf] 0
        %1503 = vst [vmem:[#allocation9 + $0x54] sm:$0xf] 0
        %1504 = vst.msk [vmem:[#allocation9 + $0x4] sm:$0xff] %vm1458, 0
        %1505 = vst.msk [vmem:[#allocation9 + $0x10] sm:$0xff] %vm1458, 0
        %1506 = vst.msk [vmem:[#allocation9 + $0x1c] sm:$0xff] %vm1458, 0
        %1507 = vst.msk [vmem:[#allocation9 + $0x28] sm:$0xff] %vm1458, 0
        %1508 = vst.msk [vmem:[#allocation9 + $0x34] sm:$0xff] %vm1458, 0
        %1509 = vst.msk [vmem:[#allocation9 + $0x40] sm:$0xff] %vm1458, 0
        %1510 = vst.msk [vmem:[#allocation9 + $0x4c] sm:$0xff] %vm1458, 0
        %1511 = vst.msk [vmem:[#allocation9 + $0x58] sm:$0xff] %vm1458, 0
        %1512 = vst [vmem:[#allocation10] sm:$0xf] 0
        %1513 = vst [vmem:[#allocation10 + $0xc] sm:$0xf] 0
        %1514 = vst [vmem:[#allocation10 + $0x18] sm:$0xf] 0
        %1515 = vst [vmem:[#allocation10 + $0x24] sm:$0xf] 0
        %1516 = vst.msk [vmem:[#allocation10 + $0x4] sm:$0xff] %vm1458, 0
        %1517 = vst.msk [vmem:[#allocation10 + $0x10] sm:$0xff] %vm1458, 0
        %1518 = vst.msk [vmem:[#allocation10 + $0x1c] sm:$0xff] %vm1458, 0
        %1519 = vst.msk [vmem:[#allocation10 + $0x28] sm:$0xff] %vm1458, 0
        %1520 = vst [vmem:[#allocation11] sm:$0xf] 0
        %1521 = vst [vmem:[#allocation11 + $0xc] sm:$0xf] 0
        %1522 = vst [vmem:[#allocation11 + $0x18] sm:$0xf] 0
        %1523 = vst [vmem:[#allocation11 + $0x24] sm:$0xf] 0
        %1524 = vst.msk [vmem:[#allocation11 + $0x4] sm:$0xff] %vm1458, 0
        %1525 = vst.msk [vmem:[#allocation11 + $0x10] sm:$0xff] %vm1458, 0
        %1526 = vst.msk [vmem:[#allocation11 + $0x1c] sm:$0xff] %vm1458, 0
        %1527 = vst.msk [vmem:[#allocation11 + $0x28] sm:$0xff] %vm1458, 0
        %1528 = vst [vmem:[#allocation12] sm:$0xf] 0
        %1529 = vst [vmem:[#allocation12 + $0xc] sm:$0xf] 0
        %1530 = vst [vmem:[#allocation12 + $0x18] sm:$0xf] 0
        %1531 = vst [vmem:[#allocation12 + $0x24] sm:$0xf] 0
        %1532 = vst.msk [vmem:[#allocation12 + $0x4] sm:$0xff] %vm1447, 0
        %1533 = vst.msk [vmem:[#allocation12 + $0x10] sm:$0xff] %vm1447, 0
        %1534 = vst.msk [vmem:[#allocation12 + $0x1c] sm:$0xff] %vm1447, 0
        %1535 = vst.msk [vmem:[#allocation12 + $0x28] sm:$0xff] %vm1447, 0
        %1536 = vst [vmem:[#allocation13] sm:$0xf] 0
        %1537 = vst [vmem:[#allocation13 + $0xc] sm:$0xf] 0
        %1538 = vst.msk [vmem:[#allocation13 + $0x4] sm:$0xff] %vm1447, 0
        %1539 = vst.msk [vmem:[#allocation13 + $0x10] sm:$0xff] %vm1447, 0
        %1540 = vst [vmem:[#allocation14] sm:$0xf] 0
        %1541 = vst [vmem:[#allocation14 + $0xc] sm:$0xf] 0
        %1542 = vst.msk [vmem:[#allocation14 + $0x4] sm:$0xff] %vm1447, 0
        %1543 = vst.msk [vmem:[#allocation14 + $0x10] sm:$0xff] %vm1447, 0
        %1544 = vst [vmem:[#allocation15] sm:$0xf] 0
        %1545 = vst [vmem:[#allocation15 + $0x14] sm:$0xf] 0
        %1546 = vst.msk [vmem:[#allocation15 + $0xc] sm:$0xff] %vm1440, 0
        %1547 = vst.msk [vmem:[#allocation15 + $0x20] sm:$0xff] %vm1440, 0
        %1548 = vst [vmem:[#allocation16] sm:$0xf] 0
        %1549 = vst [vmem:[#allocation16 + $0x14] sm:$0xf] 0
        %1550 = vst.msk [vmem:[#allocation16 + $0xc] sm:$0xff] %vm1440, 0
        %1551 = vst.msk [vmem:[#allocation16 + $0x20] sm:$0xff] %vm1440, 0
        %1552 = vst [vmem:[#allocation17] sm:$0xf] 0
        %1553 = vst [vmem:[#allocation17 + $0x14] sm:$0xf] 0
        %1554 = vst.msk [vmem:[#allocation17 + $0xc] sm:$0xff] %vm1440, 0
        %1555 = vst.msk [vmem:[#allocation17 + $0x20] sm:$0xff] %vm1440, 0
        %v1556 = vld [vmem:[%s1429] sm:$0xff]
        %v1557 = vld [vmem:[%s1429 + $0x8] sm:$0xff]
        %v1558 = vld [vmem:[%s1429 + $0x14] sm:$0xff]
        %v1559 = vld [vmem:[%s1429 + $0x1c] sm:$0xff]
        %v1560 = vld [vmem:[%s1429 + $0x4] sm:$0xff]
        %v1561 = vld [vmem:[%s1429 + $0xc] sm:$0xf]
        %v1562 = vld [vmem:[%s1429 + $0x18] sm:$0xff]
        %v1563 = vld [vmem:[%s1429 + $0x20] sm:$0xf]
        %v1568 = vunpack.c.l.b16 %v1556
        %v1569 = vunpack.c.h.b16 %v1556
        %v1570 = vunpack.c.l.b16 %v1557
        %v1571 = vunpack.c.h.b16 %v1557
        %v1572 = vunpack.c.l.b16 %v1558
        %v1573 = vunpack.c.h.b16 %v1558
        %v1574 = vunpack.c.l.b16 %v1559
        %v1575 = vunpack.c.h.b16 %v1559
        %v1576 = vpack.c.b16 %v1572, %v1568
        %v1577 = vpack.c.b16 %v1573, %v1569
        %v1578 = vpack.c.b16 %v1574, %v1570
        %v1579 = vpack.c.b16 %v1575, %v1571
        %1580 = vrot.lane.b32.xlu0 %v1576, 127
        %v1581 = vpop.permute.xlu0 %1580
        %1582 = vrot.lane.b32.xlu0 %v1577, 127
        %v1583 = vpop.permute.xlu0 %1582
        %1584 = vrot.lane.b32.xlu0 %v1578, 127
        %v1585 = vpop.permute.xlu0 %1584
        %1586 = vrot.lane.b32.xlu0 %v1579, 127
        %v1587 = vpop.permute.xlu0 %1586
        %vm1588 = vcmask 1039360
        %v1589 = vsel %vm1588, %v1581, %v1583
        %v1590 = vsel %vm1588, %v1583, %v1585
        %v1591 = vsel %vm1588, %v1585, %v1587
        %1592 = vrot.lane.b32.xlu0 %v1576, 126
        %v1593 = vpop.permute.xlu0 %1592
        %1594 = vrot.lane.b32.xlu0 %v1577, 126
        %v1595 = vpop.permute.xlu0 %1594
        %1596 = vrot.lane.b32.xlu0 %v1578, 126
        %v1597 = vpop.permute.xlu0 %1596
        %1598 = vrot.lane.b32.xlu0 %v1579, 126
        %v1599 = vpop.permute.xlu0 %1598
        %vm1600 = vcmask 1031168
        %v1601 = vsel %vm1600, %v1593, %v1595
        %v1602 = vsel %vm1600, %v1595, %v1597
        %v1603 = vsel %vm1600, %v1597, %v1599
        %1604 = vrot.lane.b32.xlu0 %v1576, 110
        %v1605 = vpop.permute.xlu0 %1604
        %1606 = vrot.lane.b32.xlu0 %v1577, 110
        %v1607 = vpop.permute.xlu0 %1606
        %1608 = vrot.lane.b32.xlu0 %v1578, 110
        %v1609 = vpop.permute.xlu0 %1608
        %1610 = vrot.lane.b32.xlu0 %v1579, 110
        %v1611 = vpop.permute.xlu0 %1610
        %vm1612 = vcmask 900096
        %v1613 = vsel %vm1612, %v1605, %v1607
        %v1614 = vsel %vm1612, %v1607, %v1609
        %v1615 = vsel %vm1612, %v1609, %v1611
        %v1620 = vunpack.c.l.b16 %v1560
        %v1621 = vunpack.c.h.b16 %v1560
        %v1622 = vunpack.c.l.b16 %v1561
        %v1623 = vunpack.c.l.b16 %v1562
        %v1624 = vunpack.c.h.b16 %v1562
        %v1625 = vunpack.c.l.b16 %v1563
        %v1626 = vpack.c.b16 %v1623, %v1620
        %v1627 = vpack.c.b16 %v1624, %v1621
        %v1628 = vpack.c.b16 %v1625, %v1622
        %1629 = vrot.lane.b32.xlu0 %v1626, 109
        %v1630 = vpop.permute.xlu0 %1629
        %1631 = vrot.lane.b32.xlu0 %v1627, 109
        %v1632 = vpop.permute.xlu0 %1631
        %1633 = vrot.lane.b32.xlu0 %v1628, 109
        %v1634 = vpop.permute.xlu0 %1633
        %vm1635 = vcmask 891904
        %v1636 = vsel %vm1635, %v1630, %v1632
        %v1637 = vsel %vm1635, %v1632, %v1634
        %1638 = vrot.lane.b32.xlu0 %v1626, 108
        %v1639 = vpop.permute.xlu0 %1638
        %1640 = vrot.lane.b32.xlu0 %v1627, 108
        %v1641 = vpop.permute.xlu0 %1640
        %1642 = vrot.lane.b32.xlu0 %v1628, 108
        %v1643 = vpop.permute.xlu0 %1642
        %vm1644 = vcmask 883712
        %v1645 = vsel %vm1644, %v1639, %v1641
        %v1646 = vsel %vm1644, %v1641, %v1643
        %1647 = vrot.lane.b32.xlu0 %v1626, 92
        %v1648 = vpop.permute.xlu0 %1647
        %1649 = vrot.lane.b32.xlu0 %v1627, 92
        %v1650 = vpop.permute.xlu0 %1649
        %1651 = vrot.lane.b32.xlu0 %v1628, 92
        %v1652 = vpop.permute.xlu0 %1651
        %vm1653 = vcmask 752640
        %v1654 = vsel %vm1653, %v1648, %v1650
        %v1655 = vsel %vm1653, %v1650, %v1652
        %1656 = vrot.lane.b32.xlu0 %v1626, 91
        %v1657 = vpop.permute.xlu0 %1656
        %1658 = vrot.lane.b32.xlu0 %v1627, 91
        %v1659 = vpop.permute.xlu0 %1658
        %1660 = vrot.lane.b32.xlu0 %v1628, 91
        %v1661 = vpop.permute.xlu0 %1660
        %vm1662 = vcmask 744448
        %v1663 = vsel %vm1662, %v1657, %v1659
        %v1664 = vsel %vm1662, %v1659, %v1661
        %1665 = vrot.lane.b32.xlu0 %v1626, 90
        %v1666 = vpop.permute.xlu0 %1665
        %1667 = vrot.lane.b32.xlu0 %v1627, 90
        %v1668 = vpop.permute.xlu0 %1667
        %1669 = vrot.lane.b32.xlu0 %v1628, 90
        %v1670 = vpop.permute.xlu0 %1669
        %vm1671 = vcmask 736256
        %v1672 = vsel %vm1671, %v1666, %v1668
        %v1673 = vsel %vm1671, %v1668, %v1670
        %v1674 = vld [vmem:[#allocation18] sm:$0xff]
        %v1675 = vld [vmem:[#allocation18 + $0x8] sm:$0xff]
        %v1678 = vunpack.c.l.b16 %v1674
        %v1679 = vunpack.c.h.b16 %v1674
        %v1680 = vunpack.c.l.b16 %v1675
        %v1681 = vunpack.c.h.b16 %v1675
        %v1682 = vpack.c.b16 %v1680, %v1678
        %v1683 = vpack.c.b16 %v1681, %v1679
        %1685 = vrot.lane.b32.xlu0 %v1576, 19
        %v1686 = vpop.permute.xlu0 %1685
        %1687 = vrot.lane.b32.xlu0 %v1577, 19
        %v1688 = vpop.permute.xlu0 %1687
        %1689 = vrot.lane.b32.xlu0 %v1578, 19
        %v1690 = vpop.permute.xlu0 %1689
        %1691 = vrot.lane.b32.xlu0 %v1579, 19
        %v1692 = vpop.permute.xlu0 %1691
        %1693 = vrot.lane.b32.xlu0 %v1589, 19
        %v1694 = vpop.permute.xlu0 %1693
        %1695 = vrot.lane.b32.xlu0 %v1590, 19
        %v1696 = vpop.permute.xlu0 %1695
        %1697 = vrot.lane.b32.xlu0 %v1591, 19
        %v1698 = vpop.permute.xlu0 %1697
        %1699 = vrot.lane.b32.xlu0 %v1587, 19
        %v1700 = vpop.permute.xlu0 %1699
        %1701 = vrot.lane.b32.xlu0 %v1601, 19
        %v1702 = vpop.permute.xlu0 %1701
        %1703 = vrot.lane.b32.xlu0 %v1602, 19
        %v1704 = vpop.permute.xlu0 %1703
        %1705 = vrot.lane.b32.xlu0 %v1603, 19
        %v1706 = vpop.permute.xlu0 %1705
        %1707 = vrot.lane.b32.xlu0 %v1599, 19
        %v1708 = vpop.permute.xlu0 %1707
        %1709 = vrot.lane.b32.xlu0 %v1613, 19
        %v1710 = vpop.permute.xlu0 %1709
        %1711 = vrot.lane.b32.xlu0 %v1614, 19
        %v1712 = vpop.permute.xlu0 %1711
        %1713 = vrot.lane.b32.xlu0 %v1615, 19
        %v1714 = vpop.permute.xlu0 %1713
        %1715 = vrot.lane.b32.xlu0 %v1611, 19
        %v1716 = vpop.permute.xlu0 %1715
        %1717 = vrot.lane.b32.xlu0 %v1630, 19
        %v1718 = vpop.permute.xlu0 %1717
        %1719 = vrot.lane.b32.xlu0 %v1636, 19
        %v1720 = vpop.permute.xlu0 %1719
        %1721 = vrot.lane.b32.xlu0 %v1637, 19
        %v1722 = vpop.permute.xlu0 %1721
        %1723 = vrot.lane.b32.xlu0 %v1634, 19
        %v1724 = vpop.permute.xlu0 %1723
        %1725 = vrot.lane.b32.xlu0 %v1639, 19
        %v1726 = vpop.permute.xlu0 %1725
        %1727 = vrot.lane.b32.xlu0 %v1645, 19
        %v1728 = vpop.permute.xlu0 %1727
        %1729 = vrot.lane.b32.xlu0 %v1646, 19
        %v1730 = vpop.permute.xlu0 %1729
        %1731 = vrot.lane.b32.xlu0 %v1643, 19
        %v1732 = vpop.permute.xlu0 %1731
        %1733 = vrot.lane.b32.xlu0 %v1648, 19
        %v1734 = vpop.permute.xlu0 %1733
        %1735 = vrot.lane.b32.xlu0 %v1654, 19
        %v1736 = vpop.permute.xlu0 %1735
        %1737 = vrot.lane.b32.xlu0 %v1655, 19
        %v1738 = vpop.permute.xlu0 %1737
        %1739 = vrot.lane.b32.xlu0 %v1652, 19
        %v1740 = vpop.permute.xlu0 %1739
        %1741 = vrot.lane.b32.xlu0 %v1657, 19
        %v1742 = vpop.permute.xlu0 %1741
        %1743 = vrot.lane.b32.xlu0 %v1663, 19
        %v1744 = vpop.permute.xlu0 %1743
        %1745 = vrot.lane.b32.xlu0 %v1664, 19
        %v1746 = vpop.permute.xlu0 %1745
        %1747 = vrot.lane.b32.xlu0 %v1661, 19
        %v1748 = vpop.permute.xlu0 %1747
        %1749 = vrot.lane.b32.xlu0 %v1666, 19
        %v1750 = vpop.permute.xlu0 %1749
        %1751 = vrot.lane.b32.xlu0 %v1672, 19
        %v1752 = vpop.permute.xlu0 %1751
        %1753 = vrot.lane.b32.xlu0 %v1673, 19
        %v1754 = vpop.permute.xlu0 %1753
        %1755 = vrot.lane.b32.xlu0 %v1670, 19
        %v1756 = vpop.permute.xlu0 %1755
        %vm1757 = vcmask 154624
        %v1758 = vsel %vm1757, %v1686, %v1688
        %v1759 = vsel %vm1757, %v1688, %v1690
        %v1760 = vsel %vm1757, %v1690, %v1692
        %v1761 = vsel %vm1757, %v1694, %v1696
        %v1762 = vsel %vm1757, %v1696, %v1698
        %v1763 = vsel %vm1757, %v1698, %v1700
        %v1764 = vsel %vm1757, %v1702, %v1704
        %v1765 = vsel %vm1757, %v1704, %v1706
        %v1766 = vsel %vm1757, %v1706, %v1708
        %v1767 = vsel %vm1757, %v1710, %v1712
        %v1768 = vsel %vm1757, %v1712, %v1714
        %v1769 = vsel %vm1757, %v1714, %v1716
        %v1770 = vsel %vm1757, %v1718, %v1720
        %v1771 = vsel %vm1757, %v1720, %v1722
        %v1772 = vsel %vm1757, %v1722, %v1724
        %v1773 = vsel %vm1757, %v1726, %v1728
        %v1774 = vsel %vm1757, %v1728, %v1730
        %v1775 = vsel %vm1757, %v1730, %v1732
        %v1776 = vsel %vm1757, %v1734, %v1736
        %v1777 = vsel %vm1757, %v1736, %v1738
        %v1778 = vsel %vm1757, %v1738, %v1740
        %v1779 = vsel %vm1757, %v1742, %v1744
        %v1780 = vsel %vm1757, %v1744, %v1746
        %v1781 = vsel %vm1757, %v1746, %v1748
        %v1782 = vsel %vm1757, %v1750, %v1752
        %v1783 = vsel %vm1757, %v1752, %v1754
        %v1784 = vsel %vm1757, %v1754, %v1756
        %vm1812 = vcmask 130048
        %v1814 = vsel %vm1812, %v1683, 0
        %1816 = vmatpush.bf16.msra.mxu0 %v1779
        %1817 = vmatpush.bf16.msra.mxu0 %v1776
        %1818 = vmatpush.bf16.msra.mxu0 %v1773
        %1819 = vmatpush.bf16.msra.mxu0 %v1770
        %1820 = vmatpush.bf16.msra.mxu0 %v1767
        %1821 = vmatpush.bf16.msra.mxu0 %v1764
        %1822 = vmatpush.bf16.msra.mxu0 %v1761
        %1823 = vmatpush.bf16.msra.mxu0 %v1758
        %1824 = vmatmul.bf16.gmra.mxu0 %v1682
        %v1825 = vpop.f32.mrf.mxu0
        %v1826 = vadd.f32 0.0, %v1825
        %v1827 = vpop.f32.mrf.mxu0
        %v1828 = vadd.f32 0.0, %v1827
        %1829 = vdwg.mxu0
        %1830 = vmatpush.bf16.msra.mxu0 0
        %1831 = vmatpush.bf16.msra.mxu0 0
        %1832 = vmatpush.bf16.msra.mxu0 0
        %1833 = vmatpush.bf16.msra.mxu0 0
        %1834 = vmatpush.bf16.msra.mxu0 0
        %1835 = vmatpush.bf16.msra.mxu0 0
        %1836 = vmatpush.bf16.msra.mxu0 0
        %1837 = vmatpush.bf16.msra.mxu0 %v1782
        %1838 = vmatmul.bf16.gmra.mxu0 %v1814
        %v1839 = vpop.f32.mrf.mxu0
        %v1840 = vadd.f32 %v1826, %v1839
        %v1841 = vpop.f32.mrf.mxu0
        %v1842 = vadd.f32 %v1828, %v1841
        %1843 = vdwg.mxu0
        %1844 = vmatpush.bf16.msra.mxu0 %v1780
        %1845 = vmatpush.bf16.msra.mxu0 %v1777
        %1846 = vmatpush.bf16.msra.mxu0 %v1774
        %1847 = vmatpush.bf16.msra.mxu0 %v1771
        %1848 = vmatpush.bf16.msra.mxu0 %v1768
        %1849 = vmatpush.bf16.msra.mxu0 %v1765
        %1850 = vmatpush.bf16.msra.mxu0 %v1762
        %1851 = vmatpush.bf16.msra.mxu0 %v1759
        %1852 = vmatmul.bf16.gmra.mxu0 %v1682
        %v1853 = vpop.f32.mrf.mxu0
        %v1854 = vadd.f32 0.0, %v1853
        %v1855 = vpop.f32.mrf.mxu0
        %v1856 = vadd.f32 0.0, %v1855
        %1857 = vdwg.mxu0
        %1858 = vmatpush.bf16.msra.mxu0 0
        %1859 = vmatpush.bf16.msra.mxu0 0
        %1860 = vmatpush.bf16.msra.mxu0 0
        %1861 = vmatpush.bf16.msra.mxu0 0
        %1862 = vmatpush.bf16.msra.mxu0 0
        %1863 = vmatpush.bf16.msra.mxu0 0
        %1864 = vmatpush.bf16.msra.mxu0 0
        %1865 = vmatpush.bf16.msra.mxu0 %v1783
        %1866 = vmatmul.bf16.gmra.mxu0 %v1814
        %v1867 = vpop.f32.mrf.mxu0
        %v1868 = vadd.f32 %v1854, %v1867
        %v1869 = vpop.f32.mrf.mxu0
        %v1870 = vadd.f32 %v1856, %v1869
        %1871 = vdwg.mxu0
        %1872 = vmatpush.bf16.msra.mxu0 %v1781
        %1873 = vmatpush.bf16.msra.mxu0 %v1778
        %1874 = vmatpush.bf16.msra.mxu0 %v1775
        %1875 = vmatpush.bf16.msra.mxu0 %v1772
        %1876 = vmatpush.bf16.msra.mxu0 %v1769
        %1877 = vmatpush.bf16.msra.mxu0 %v1766
        %1878 = vmatpush.bf16.msra.mxu0 %v1763
        %1879 = vmatpush.bf16.msra.mxu0 %v1760
        %1880 = vmatmul.bf16.gmra.mxu0 %v1682
        %v1881 = vpop.f32.mrf.mxu0
        %v1882 = vadd.f32 0.0, %v1881
        %v1883 = vpop.f32.mrf.mxu0
        %v1884 = vadd.f32 0.0, %v1883
        %1885 = vdwg.mxu0
        %1886 = vmatpush.bf16.msra.mxu0 0
        %1887 = vmatpush.bf16.msra.mxu0 0
        %1888 = vmatpush.bf16.msra.mxu0 0
        %1889 = vmatpush.bf16.msra.mxu0 0
        %1890 = vmatpush.bf16.msra.mxu0 0
        %1891 = vmatpush.bf16.msra.mxu0 0
        %1892 = vmatpush.bf16.msra.mxu0 0
        %1893 = vmatpush.bf16.msra.mxu0 %v1784
        %1894 = vmatmul.bf16.gmra.mxu0 %v1814
        %v1895 = vpop.f32.mrf.mxu0
        %v1896 = vadd.f32 %v1882, %v1895
        %v1897 = vpop.f32.mrf.mxu0
        %v1898 = vadd.f32 %v1884, %v1897
        %1899 = vdwg.mxu0
        %v1900 = vld [vmem:[#allocation20] sm:$0xff]
        %v1901 = vld [vmem:[#allocation20 + $0x8] sm:$0xff]
        %1903 = vset.pattern.permute.xlu0 0
        %1904 = vperm.xlu0 %1903, %v1900
        %v1905 = vpop.permute.xlu0 %1904
        %1908 = vset.pattern.permute.xlu0 0
        %1909 = vperm.xlu0 %1908, %v1901
        %v1910 = vpop.permute.xlu0 %1909
        %v1912 = vmul.f32 %v1840, %v1905
        %v1913 = vmul.f32 %v1868, %v1905
        %v1914 = vmul.f32 %v1896, %v1905
        %v1915 = vmul.f32 %v1842, %v1910
        %v1916 = vmul.f32 %v1870, %v1910
        %v1917 = vmul.f32 %v1898, %v1910
        %1918 = vset.pattern.permute.xlu0 1
        %1919 = vperm.xlu0 %1918, %v1900
        %v1920 = vpop.permute.xlu0 %1919
        %1922 = vset.pattern.permute.xlu0 1
        %1923 = vperm.xlu0 %1922, %v1901
        %v1924 = vpop.permute.xlu0 %1923
        %v1926 = vadd.f32 %v1912, %v1920
        %v1927 = vadd.f32 %v1913, %v1920
        %v1928 = vadd.f32 %v1914, %v1920
        %v1929 = vadd.f32 %v1915, %v1924
        %v1930 = vadd.f32 %v1916, %v1924
        %v1931 = vadd.f32 %v1917, %v1924
        %v1932 = vmax.f32 %v1926, 0.0
        %v1933 = vmax.f32 %v1927, 0.0
        %v1934 = vmax.f32 %v1928, 0.0
        %v1935 = vmax.f32 %v1929, 0.0
        %v1936 = vmax.f32 %v1930, 0.0
        %v1937 = vmax.f32 %v1931, 0.0
        %v1938 = vld [vmem:[#allocation46] sm:$0x7]
        %v1940 = vperm.slane %v1938, 0
        %v1941 = vperm.slane %v1938, 1
        %v1942 = vperm.slane %v1938, 2
        %v1946 = vmul.f32 %v1932, %v1940
        %v1947 = vmul.f32 %v1933, %v1941
        %v1948 = vmul.f32 %v1934, %v1942
        %v1949 = vmul.f32 %v1935, %v1940
        %v1950 = vmul.f32 %v1936, %v1941
        %v1951 = vmul.f32 %v1937, %v1942
        %v1952 = vpack.c.bf16 %v1947, %v1946
        %v1953 = vpack.c.bf16 %v1948, %v1948
        %v1954 = vpack.c.bf16 %v1950, %v1949
        %v1955 = vpack.c.bf16 %v1951, %v1951
        %1956 = vst [vmem:[#allocation2 + $0x4] sm:$0xff] %v1952
        %vm1957 = vcmask 551936
        %1958 = vst.msk [vmem:[#allocation2 + $0xc] sm:$0xf] %vm1957, %v1953
        %1959 = vst [vmem:[#allocation2 + $0x18] sm:$0xff] %v1954
        %1960 = vst.msk [vmem:[#allocation2 + $0x20] sm:$0xf] %vm1957, %v1955
        %v1961 = vld [vmem:[#allocation2 + $0x4] sm:$0xff]
        %v1962 = vld [vmem:[#allocation2 + $0xc] sm:$0xf]
        %v1963 = vld [vmem:[#allocation2 + $0x18] sm:$0xff]
        %v1964 = vld [vmem:[#allocation2 + $0x20] sm:$0xf]
        %v1965 = vunpack.c.l.bf16 %v1961
        %v1966 = vunpack.c.h.bf16 %v1961
        %v1967 = vunpack.c.l.bf16 %v1962
        %v1968 = vunpack.c.l.bf16 %v1963
        %v1969 = vunpack.c.h.bf16 %v1963
        %v1970 = vunpack.c.l.bf16 %v1964
        %1977 = vrot.lane.b32.xlu0 %v1965, 127
        %v1978 = vpop.permute.xlu0 %1977
        %1979 = vrot.lane.b32.xlu0 %v1966, 127
        %v1980 = vpop.permute.xlu0 %1979
        %1981 = vrot.lane.b32.xlu0 %v1967, 127
        %v1982 = vpop.permute.xlu0 %1981
        %1983 = vrot.lane.b32.xlu0 %v1968, 127
        %v1984 = vpop.permute.xlu0 %1983
        %1985 = vrot.lane.b32.xlu0 %v1969, 127
        %v1986 = vpop.permute.xlu0 %1985
        %1987 = vrot.lane.b32.xlu0 %v1970, 127
        %v1988 = vpop.permute.xlu0 %1987
        %vm1989 = vcmask 1039360
        %v1990 = vsel %vm1989, %v1978, %v1980
        %v1991 = vsel %vm1989, %v1980, %v1982
        %v1992 = vsel %vm1989, %v1984, %v1986
        %v1993 = vsel %vm1989, %v1986, %v1988
        %v2000 = vmax.f32 %v1965, %v1990
        %v2001 = vmax.f32 %v1966, %v1991
        %v2002 = vmax.f32 %v1967, %v1982
        %v2003 = vmax.f32 %v1968, %v1992
        %v2004 = vmax.f32 %v1969, %v1993
        %v2005 = vmax.f32 %v1970, %v1988
        %v2006 = vpack.c.bf16 %v2001, %v2000
        %v2007 = vpack.c.bf16 %v2002, %v2002
        %v2008 = vpack.c.bf16 %v2004, %v2003
        %v2009 = vpack.c.bf16 %v2005, %v2005
        %v2010 = vunpack.c.l.bf16 %v2006
        %v2011 = vunpack.c.h.bf16 %v2006
        %v2012 = vunpack.c.l.bf16 %v2007
        %v2013 = vunpack.c.l.bf16 %v2008
        %v2014 = vunpack.c.h.bf16 %v2008
        %v2015 = vunpack.c.l.bf16 %v2009
        %2022 = vrot.lane.b32.xlu0 %v2010, 110
        %v2023 = vpop.permute.xlu0 %2022
        %2024 = vrot.lane.b32.xlu0 %v2011, 110
        %v2025 = vpop.permute.xlu0 %2024
        %2026 = vrot.lane.b32.xlu0 %v2012, 110
        %v2027 = vpop.permute.xlu0 %2026
        %2028 = vrot.lane.b32.xlu0 %v2013, 110
        %v2029 = vpop.permute.xlu0 %2028
        %2030 = vrot.lane.b32.xlu0 %v2014, 110
        %v2031 = vpop.permute.xlu0 %2030
        %2032 = vrot.lane.b32.xlu0 %v2015, 110
        %v2033 = vpop.permute.xlu0 %2032
        %vm2034 = vcmask 900096
        %v2035 = vsel %vm2034, %v2023, %v2025
        %v2036 = vsel %vm2034, %v2025, %v2027
        %v2037 = vsel %vm2034, %v2029, %v2031
        %v2038 = vsel %vm2034, %v2031, %v2033
        %v2045 = vmax.f32 %v2010, %v2035
        %v2046 = vmax.f32 %v2011, %v2036
        %v2047 = vmax.f32 %v2012, %v2027
        %v2048 = vmax.f32 %v2013, %v2037
        %v2049 = vmax.f32 %v2014, %v2038
        %v2050 = vmax.f32 %v2015, %v2033
        %v2051 = vpack.c.bf16 %v2048, %v2045
        %v2052 = vpack.c.bf16 %v2049, %v2046
        %v2053 = vpack.c.bf16 %v2050, %v2047
        %v2054 = vld [vmem:[%s55] sm:$0xf]
        %v2055 = vld [vmem:[%s55 + $0x4] sm:$0xf]
        %v2056 = vld [vmem:[%s55 + $0x8] sm:$0xf]
        %v2057 = vld [vmem:[%s55 + $0xc] sm:$0xf]
        %v2058 = vld [vmem:[%s55 + $0x10] sm:$0xf]
        %v2059 = vld [vmem:[%s55 + $0x14] sm:$0xf]
        %v2060 = vld [vmem:[%s55 + $0x18] sm:$0xf]
        %v2061 = vld [vmem:[%s55 + $0x1c] sm:$0xf]
        %v2062 = vld [vmem:[%s55 + $0x20] sm:$0xf]
        %v2063 = vld [vmem:[%s55 + $0x24] sm:$0xf]
        %v2064 = vld [vmem:[%s55 + $0x28] sm:$0xf]
        %v2065 = vld [vmem:[%s55 + $0x2c] sm:$0xf]
        %v2066 = vld [vmem:[%s55 + $0x30] sm:$0xf]
        %v2067 = vld [vmem:[%s55 + $0x34] sm:$0xf]
        %v2068 = vld [vmem:[%s55 + $0x38] sm:$0xf]
        %v2069 = vld [vmem:[%s55 + $0x3c] sm:$0xf]
        %v2070 = vld [vmem:[%s55 + $0x40] sm:$0xf]
        %v2071 = vld [vmem:[%s55 + $0x44] sm:$0xf]
        %v2072 = vld [vmem:[%s55 + $0x48] sm:$0xf]
        %v2073 = vld [vmem:[%s55 + $0x4c] sm:$0xf]
        %v2074 = vld [vmem:[%s55 + $0x50] sm:$0xf]
        %v2075 = vld [vmem:[%s55 + $0x54] sm:$0xf]
        %v2076 = vld [vmem:[%s55 + $0x58] sm:$0xf]
        %v2077 = vld [vmem:[%s55 + $0x5c] sm:$0xf]
        %v2078 = vld [vmem:[%s55 + $0x60] sm:$0xf]
        %v2079 = vld [vmem:[%s55 + $0x64] sm:$0xf]
        %v2080 = vld [vmem:[%s55 + $0x68] sm:$0xf]
        %v2081 = vld [vmem:[%s55 + $0x6c] sm:$0xf]
        %v2082 = vld [vmem:[%s55 + $0x70] sm:$0xf]
        %v2083 = vld [vmem:[%s55 + $0x74] sm:$0xf]
        %v2084 = vld [vmem:[%s55 + $0x78] sm:$0xf]
        %v2085 = vld [vmem:[%s55 + $0x7c] sm:$0xf]
        %v2086 = vld [vmem:[%s55 + $0x80] sm:$0xf]
        %v2087 = vld [vmem:[%s55 + $0x84] sm:$0xf]
        %v2088 = vld [vmem:[%s55 + $0x88] sm:$0xf]
        %v2089 = vld [vmem:[%s55 + $0x8c] sm:$0xf]
        %v2090 = vld [vmem:[%s55 + $0x90] sm:$0xf]
        %v2091 = vld [vmem:[%s55 + $0x94] sm:$0xf]
        %v2092 = vld [vmem:[%s55 + $0x98] sm:$0xf]
        %v2093 = vld [vmem:[%s55 + $0x9c] sm:$0xf]
        %v2094 = vld [vmem:[%s55 + $0xa0] sm:$0x3]
        %v2136 = vunpack.c.l.b16 %v2054
        %v2137 = vunpack.c.l.b16 %v2055
        %v2138 = vunpack.c.l.b16 %v2056
        %v2139 = vunpack.c.l.b16 %v2057
        %v2140 = vunpack.c.l.b16 %v2058
        %v2141 = vunpack.c.l.b16 %v2059
        %v2142 = vunpack.c.l.b16 %v2060
        %v2143 = vunpack.c.l.b16 %v2061
        %v2144 = vunpack.c.l.b16 %v2062
        %v2145 = vunpack.c.l.b16 %v2063
        %v2146 = vunpack.c.l.b16 %v2064
        %v2147 = vunpack.c.l.b16 %v2065
        %v2148 = vunpack.c.l.b16 %v2066
        %v2149 = vunpack.c.l.b16 %v2067
        %v2150 = vunpack.c.l.b16 %v2068
        %v2151 = vunpack.c.l.b16 %v2069
        %v2152 = vunpack.c.l.b16 %v2070
        %v2153 = vunpack.c.l.b16 %v2071
        %v2154 = vunpack.c.l.b16 %v2072
        %v2155 = vunpack.c.l.b16 %v2073
        %v2156 = vunpack.c.l.b16 %v2074
        %v2157 = vunpack.c.l.b16 %v2075
        %v2158 = vunpack.c.l.b16 %v2076
        %v2159 = vunpack.c.l.b16 %v2077
        %v2160 = vunpack.c.l.b16 %v2078
        %v2161 = vunpack.c.l.b16 %v2079
        %v2162 = vunpack.c.l.b16 %v2080
        %v2163 = vunpack.c.l.b16 %v2081
        %v2164 = vunpack.c.l.b16 %v2082
        %v2165 = vunpack.c.l.b16 %v2083
        %v2166 = vunpack.c.l.b16 %v2084
        %v2167 = vunpack.c.l.b16 %v2085
        %v2168 = vunpack.c.l.b16 %v2086
        %v2169 = vunpack.c.l.b16 %v2087
        %v2170 = vunpack.c.l.b16 %v2088
        %v2171 = vunpack.c.l.b16 %v2089
        %v2172 = vunpack.c.l.b16 %v2090
        %v2173 = vunpack.c.l.b16 %v2091
        %v2174 = vunpack.c.l.b16 %v2092
        %v2175 = vunpack.c.l.b16 %v2093
        %v2176 = vunpack.c.l.b16 %v2094
        %v2177 = vpack.c.b16 %v2137, %v2136
        %v2178 = vpack.c.b16 %v2139, %v2138
        %v2179 = vpack.c.b16 %v2141, %v2140
        %v2180 = vpack.c.b16 %v2143, %v2142
        %v2181 = vpack.c.b16 %v2145, %v2144
        %v2182 = vpack.c.b16 %v2147, %v2146
        %v2183 = vpack.c.b16 %v2149, %v2148
        %v2184 = vpack.c.b16 %v2151, %v2150
        %v2185 = vpack.c.b16 %v2153, %v2152
        %v2186 = vpack.c.b16 %v2155, %v2154
        %v2187 = vpack.c.b16 %v2157, %v2156
        %v2188 = vpack.c.b16 %v2159, %v2158
        %v2189 = vpack.c.b16 %v2161, %v2160
        %v2190 = vpack.c.b16 %v2163, %v2162
        %v2191 = vpack.c.b16 %v2165, %v2164
        %v2192 = vpack.c.b16 %v2167, %v2166
        %v2193 = vpack.c.b16 %v2169, %v2168
        %v2194 = vpack.c.b16 %v2171, %v2170
        %v2195 = vpack.c.b16 %v2173, %v2172
        %v2196 = vpack.c.b16 %v2175, %v2174
        %v2197 = vpack.c.b16 %v2176, %v2176
        %vm2218 = vcmask 556032
        %v2220 = vsel %vm2218, %v2053, 0
        %vm2222 = vcmask 1041408
        %v2224 = vsel %vm2222, %v2197, 0
        %2226 = vmatpush.bf16.msra.mxu0 %v2184
        %2227 = vmatpush.bf16.msra.mxu0 %v2183
        %2228 = vmatpush.bf16.msra.mxu0 %v2182
        %2229 = vmatpush.bf16.msra.mxu0 %v2181
        %2230 = vmatpush.bf16.msra.mxu0 %v2180
        %2231 = vmatpush.bf16.msra.mxu0 %v2179
        %2232 = vmatpush.bf16.msra.mxu0 %v2178
        %2233 = vmatpush.bf16.msra.mxu0 %v2177
        %2234 = vmatmul.bf16.gmra.mxu0 %v2051
        %v2235 = vpop.f32.mrf.mxu0
        %v2236 = vadd.f32 0.0, %v2235
        %v2237 = vpop.f32.mrf.mxu0
        %v2238 = vadd.f32 0.0, %v2237
        %2239 = vdwg.mxu0
        %2240 = vmatpush.bf16.msra.mxu0 %v2192
        %2241 = vmatpush.bf16.msra.mxu0 %v2191
        %2242 = vmatpush.bf16.msra.mxu0 %v2190
        %2243 = vmatpush.bf16.msra.mxu0 %v2189
        %2244 = vmatpush.bf16.msra.mxu0 %v2188
        %2245 = vmatpush.bf16.msra.mxu0 %v2187
        %2246 = vmatpush.bf16.msra.mxu0 %v2186
        %2247 = vmatpush.bf16.msra.mxu0 %v2185
        %2248 = vmatmul.bf16.gmra.mxu0 %v2052
        %v2249 = vpop.f32.mrf.mxu0
        %v2250 = vadd.f32 %v2236, %v2249
        %v2251 = vpop.f32.mrf.mxu0
        %v2252 = vadd.f32 %v2238, %v2251
        %2253 = vdwg.mxu0
        %2254 = vmatpush.bf16.msra.mxu0 0
        %2255 = vmatpush.bf16.msra.mxu0 0
        %2256 = vmatpush.bf16.msra.mxu0 0
        %2257 = vmatpush.bf16.msra.mxu0 %v2224
        %2258 = vmatpush.bf16.msra.mxu0 %v2196
        %2259 = vmatpush.bf16.msra.mxu0 %v2195
        %2260 = vmatpush.bf16.msra.mxu0 %v2194
        %2261 = vmatpush.bf16.msra.mxu0 %v2193
        %2262 = vmatmul.bf16.gmra.mxu0 %v2220
        %v2263 = vpop.f32.mrf.mxu0
        %v2264 = vadd.f32 %v2250, %v2263
        %v2265 = vpop.f32.mrf.mxu0
        %v2266 = vadd.f32 %v2252, %v2265
        %2267 = vdwg.mxu0
        %v2268 = vpack.c.bf16 %v2264, %v2264
        %v2269 = vpack.c.bf16 %v2266, %v2266
        %vm2270 = vcmask 814080
        %2271 = vst.msk [vmem:[#allocation3 + $0x4] sm:$0xf] %vm2270, %v2268
        %2272 = vst.msk [vmem:[#allocation3 + $0x10] sm:$0xf] %vm2270, %v2269
        %v2273 = vld [vmem:[#allocation3] sm:$0xff]
        %v2274 = vld [vmem:[#allocation3 + $0xc] sm:$0xff]
        %v2275 = vld [vmem:[#allocation3 + $0x4] sm:$0xf]
        %v2276 = vld [vmem:[#allocation3 + $0x10] sm:$0xf]
        %v2279 = vunpack.c.l.b16 %v2273
        %v2280 = vunpack.c.h.b16 %v2273
        %v2281 = vunpack.c.l.b16 %v2274
        %v2282 = vunpack.c.h.b16 %v2274
        %v2283 = vpack.c.b16 %v2281, %v2279
        %v2284 = vpack.c.b16 %v2282, %v2280
        %2285 = vrot.lane.b32.xlu0 %v2283, 127
        %v2286 = vpop.permute.xlu0 %2285
        %2287 = vrot.lane.b32.xlu0 %v2284, 127
        %v2288 = vpop.permute.xlu0 %2287
        %v2289 = vsel %vm1588, %v2286, %v2288
        %2290 = vrot.lane.b32.xlu0 %v2283, 126
        %v2291 = vpop.permute.xlu0 %2290
        %2292 = vrot.lane.b32.xlu0 %v2284, 126
        %v2293 = vpop.permute.xlu0 %2292
        %v2294 = vsel %vm1600, %v2291, %v2293
        %2295 = vrot.lane.b32.xlu0 %v2283, 118
        %v2296 = vpop.permute.xlu0 %2295
        %2297 = vrot.lane.b32.xlu0 %v2284, 118
        %v2298 = vpop.permute.xlu0 %2297
        %vm2299 = vcmask 965632
        %v2300 = vsel %vm2299, %v2296, %v2298
        %v2303 = vunpack.c.l.b16 %v2275
        %v2304 = vunpack.c.l.b16 %v2276
        %v2305 = vpack.c.b16 %v2304, %v2303
        %2306 = vrot.lane.b32.xlu0 %v2305, 117
        %v2307 = vpop.permute.xlu0 %2306
        %2308 = vrot.lane.b32.xlu0 %v2305, 116
        %v2309 = vpop.permute.xlu0 %2308
        %2310 = vrot.lane.b32.xlu0 %v2305, 108
        %v2311 = vpop.permute.xlu0 %2310
        %2312 = vrot.lane.b32.xlu0 %v2305, 107
        %v2313 = vpop.permute.xlu0 %2312
        %2314 = vrot.lane.b32.xlu0 %v2305, 106
        %v2315 = vpop.permute.xlu0 %2314
        %v2316 = vld [vmem:[#allocation22] sm:$0xff]
        %v2317 = vld [vmem:[#allocation22 + $0x8] sm:$0xff]
        %v2320 = vunpack.c.l.b16 %v2316
        %v2321 = vunpack.c.h.b16 %v2316
        %v2322 = vunpack.c.l.b16 %v2317
        %v2323 = vunpack.c.h.b16 %v2317
        %v2324 = vpack.c.b16 %v2322, %v2320
        %v2325 = vpack.c.b16 %v2323, %v2321
        %2327 = vrot.lane.b32.xlu0 %v2283, 11
        %v2328 = vpop.permute.xlu0 %2327
        %2329 = vrot.lane.b32.xlu0 %v2284, 11
        %v2330 = vpop.permute.xlu0 %2329
        %2331 = vrot.lane.b32.xlu0 %v2289, 11
        %v2332 = vpop.permute.xlu0 %2331
        %2333 = vrot.lane.b32.xlu0 %v2288, 11
        %v2334 = vpop.permute.xlu0 %2333
        %2335 = vrot.lane.b32.xlu0 %v2294, 11
        %v2336 = vpop.permute.xlu0 %2335
        %2337 = vrot.lane.b32.xlu0 %v2293, 11
        %v2338 = vpop.permute.xlu0 %2337
        %2339 = vrot.lane.b32.xlu0 %v2300, 11
        %v2340 = vpop.permute.xlu0 %2339
        %2341 = vrot.lane.b32.xlu0 %v2298, 11
        %v2342 = vpop.permute.xlu0 %2341
        %2343 = vrot.lane.b32.xlu0 %v2307, 11
        %v2344 = vpop.permute.xlu0 %2343
        %2345 = vrot.lane.b32.xlu0 %v2309, 11
        %v2346 = vpop.permute.xlu0 %2345
        %2347 = vrot.lane.b32.xlu0 %v2311, 11
        %v2348 = vpop.permute.xlu0 %2347
        %2349 = vrot.lane.b32.xlu0 %v2313, 11
        %v2350 = vpop.permute.xlu0 %2349
        %2351 = vrot.lane.b32.xlu0 %v2315, 11
        %v2352 = vpop.permute.xlu0 %2351
        %vm2353 = vcmask 89088
        %v2354 = vsel %vm2353, %v2328, %v2330
        %v2355 = vsel %vm2353, %v2332, %v2334
        %v2356 = vsel %vm2353, %v2336, %v2338
        %v2357 = vsel %vm2353, %v2340, %v2342
        %v2368 = vsel %vm1812, %v2325, 0
        %2370 = vmatpush.bf16.msra.mxu0 %v2350
        %2371 = vmatpush.bf16.msra.mxu0 %v2348
        %2372 = vmatpush.bf16.msra.mxu0 %v2346
        %2373 = vmatpush.bf16.msra.mxu0 %v2344
        %2374 = vmatpush.bf16.msra.mxu0 %v2357
        %2375 = vmatpush.bf16.msra.mxu0 %v2356
        %2376 = vmatpush.bf16.msra.mxu0 %v2355
        %2377 = vmatpush.bf16.msra.mxu0 %v2354
        %2378 = vmatmul.bf16.gmra.mxu0 %v2324
        %v2379 = vpop.f32.mrf.mxu0
        %v2380 = vadd.f32 0.0, %v2379
        %v2381 = vpop.f32.mrf.mxu0
        %v2382 = vadd.f32 0.0, %v2381
        %2383 = vdwg.mxu0
        %2384 = vmatpush.bf16.msra.mxu0 0
        %2385 = vmatpush.bf16.msra.mxu0 0
        %2386 = vmatpush.bf16.msra.mxu0 0
        %2387 = vmatpush.bf16.msra.mxu0 0
        %2388 = vmatpush.bf16.msra.mxu0 0
        %2389 = vmatpush.bf16.msra.mxu0 0
        %2390 = vmatpush.bf16.msra.mxu0 0
        %2391 = vmatpush.bf16.msra.mxu0 %v2352
        %2392 = vmatmul.bf16.gmra.mxu0 %v2368
        %v2393 = vpop.f32.mrf.mxu0
        %v2394 = vadd.f32 %v2380, %v2393
        %v2395 = vpop.f32.mrf.mxu0
        %v2396 = vadd.f32 %v2382, %v2395
        %2397 = vdwg.mxu0
        %v2398 = vld [vmem:[#allocation23] sm:$0xff]
        %v2399 = vld [vmem:[#allocation23 + $0x8] sm:$0xff]
        %2401 = vset.pattern.permute.xlu0 0
        %2402 = vperm.xlu0 %2401, %v2398
        %v2403 = vpop.permute.xlu0 %2402
        %2406 = vset.pattern.permute.xlu0 0
        %2407 = vperm.xlu0 %2406, %v2399
        %v2408 = vpop.permute.xlu0 %2407
        %v2410 = vmul.f32 %v2394, %v2403
        %v2411 = vmul.f32 %v2396, %v2408
        %2412 = vset.pattern.permute.xlu0 1
        %2413 = vperm.xlu0 %2412, %v2398
        %v2414 = vpop.permute.xlu0 %2413
        %2416 = vset.pattern.permute.xlu0 1
        %2417 = vperm.xlu0 %2416, %v2399
        %v2418 = vpop.permute.xlu0 %2417
        %v2420 = vadd.f32 %v2410, %v2414
        %v2421 = vadd.f32 %v2411, %v2418
        %v2422 = vmax.f32 %v2420, 0.0
        %v2423 = vmax.f32 %v2421, 0.0
        %v2424 = vld [vmem:[#allocation47] sm:$0x1]
        %v2426 = vperm.slane %v2424, 0
        %v2428 = vmul.f32 %v2422, %v2426
        %v2429 = vmul.f32 %v2423, %v2426
        %v2430 = vpack.c.bf16 %v2428, %v2428
        %v2431 = vpack.c.bf16 %v2429, %v2429
        %2432 = vst.msk [vmem:[#allocation4 + $0x4] sm:$0xf] %vm2270, %v2430
        %2433 = vst.msk [vmem:[#allocation4 + $0x10] sm:$0xf] %vm2270, %v2431
        %v2434 = vld [vmem:[#allocation4 + $0x4] sm:$0xf]
        %v2435 = vld [vmem:[#allocation4 + $0x10] sm:$0xf]
        %v2436 = vunpack.c.l.bf16 %v2434
        %v2437 = vunpack.c.l.bf16 %v2435
        %2440 = vrot.lane.b32.xlu0 %v2436, 127
        %v2441 = vpop.permute.xlu0 %2440
        %2442 = vrot.lane.b32.xlu0 %v2437, 127
        %v2443 = vpop.permute.xlu0 %2442
        %v2446 = vmax.f32 %v2436, %v2441
        %v2447 = vmax.f32 %v2437, %v2443
        %v2448 = vpack.c.bf16 %v2446, %v2446
        %v2449 = vpack.c.bf16 %v2447, %v2447
        %v2450 = vunpack.c.l.bf16 %v2448
        %v2451 = vunpack.c.l.bf16 %v2449
        %2454 = vrot.lane.b32.xlu0 %v2450, 118
        %v2455 = vpop.permute.xlu0 %2454
        %2456 = vrot.lane.b32.xlu0 %v2451, 118
        %v2457 = vpop.permute.xlu0 %2456
        %v2460 = vmax.f32 %v2450, %v2455
        %v2461 = vmax.f32 %v2451, %v2457
        %v2462 = vpack.c.bf16 %v2461, %v2460
        %v2463 = vld [vmem:[#allocation52] sm:$0xf]
        %v2464 = vld [vmem:[#allocation52 + $0x4] sm:$0xf]
        %v2465 = vld [vmem:[#allocation52 + $0x8] sm:$0xf]
        %v2466 = vld [vmem:[#allocation52 + $0xc] sm:$0xf]
        %v2467 = vld [vmem:[#allocation52 + $0x10] sm:$0xf]
        %v2468 = vld [vmem:[#allocation52 + $0x14] sm:$0xf]
        %v2469 = vld [vmem:[#allocation52 + $0x18] sm:$0xf]
        %v2470 = vld [vmem:[#allocation52 + $0x1c] sm:$0xf]
        %v2471 = vld [vmem:[#allocation52 + $0x20] sm:$0xf]
        %v2472 = vld [vmem:[#allocation52 + $0x24] sm:$0xf]
        %v2473 = vld [vmem:[#allocation52 + $0x28] sm:$0xf]
        %v2474 = vld [vmem:[#allocation52 + $0x2c] sm:$0xf]
        %v2475 = vld [vmem:[#allocation52 + $0x30] sm:$0x3]
        %v2489 = vunpack.c.l.b16 %v2463
        %v2490 = vunpack.c.l.b16 %v2464
        %v2491 = vunpack.c.l.b16 %v2465
        %v2492 = vunpack.c.l.b16 %v2466
        %v2493 = vunpack.c.l.b16 %v2467
        %v2494 = vunpack.c.l.b16 %v2468
        %v2495 = vunpack.c.l.b16 %v2469
        %v2496 = vunpack.c.l.b16 %v2470
        %v2497 = vunpack.c.l.b16 %v2471
        %v2498 = vunpack.c.l.b16 %v2472
        %v2499 = vunpack.c.l.b16 %v2473
        %v2500 = vunpack.c.l.b16 %v2474
        %v2501 = vunpack.c.l.b16 %v2475
        %v2502 = vpack.c.b16 %v2490, %v2489
        %v2503 = vpack.c.b16 %v2492, %v2491
        %v2504 = vpack.c.b16 %v2494, %v2493
        %v2505 = vpack.c.b16 %v2496, %v2495
        %v2506 = vpack.c.b16 %v2498, %v2497
        %v2507 = vpack.c.b16 %v2500, %v2499
        %v2508 = vpack.c.b16 %v2501, %v2501
        %vm2515 = vcmask 818176
        %v2517 = vsel %vm2515, %v2462, 0
        %v2520 = vsel %vm2222, %v2508, 0
        %2522 = vmatpush.bf16.msra.mxu0 0
        %2523 = vmatpush.bf16.msra.mxu0 %v2520
        %2524 = vmatpush.bf16.msra.mxu0 %v2507
        %2525 = vmatpush.bf16.msra.mxu0 %v2506
        %2526 = vmatpush.bf16.msra.mxu0 %v2505
        %2527 = vmatpush.bf16.msra.mxu0 %v2504
        %2528 = vmatpush.bf16.msra.mxu0 %v2503
        %2529 = vmatpush.bf16.msra.mxu0 %v2502
        %2530 = vmatmul.bf16.gmra.mxu0 %v2517
        %v2531 = vpop.f32.mrf.mxu0
        %v2532 = vadd.f32 0.0, %v2531
        %v2533 = vpop.f32.mrf.mxu0
        %v2534 = vadd.f32 0.0, %v2533
        %2535 = vdwg.mxu0
        %v2536 = vpack.c.bf16 %v2532, %v2532
        %v2537 = vpack.c.bf16 %v2534, %v2534
        %vm2538 = vcmask 289792
        %2539 = vst.msk [vmem:[#allocation5 + $0x4] sm:$0xf] %vm2538, %v2536
        %2540 = vst.msk [vmem:[#allocation5 + $0x10] sm:$0xf] %vm2538, %v2537
        %v2541 = vld [vmem:[#allocation5] sm:$0xff]
        %v2542 = vld [vmem:[#allocation5 + $0xc] sm:$0xff]
        %v2543 = vld [vmem:[#allocation5 + $0x4] sm:$0xf]
        %v2544 = vld [vmem:[#allocation5 + $0x10] sm:$0xf]
        %v2547 = vunpack.c.l.b16 %v2541
        %v2548 = vunpack.c.h.b16 %v2541
        %v2549 = vunpack.c.l.b16 %v2542
        %v2550 = vunpack.c.h.b16 %v2542
        %v2551 = vpack.c.b16 %v2549, %v2547
        %v2552 = vpack.c.b16 %v2550, %v2548
        %2553 = vrot.lane.b32.xlu0 %v2551, 127
        %v2554 = vpop.permute.xlu0 %2553
        %2555 = vrot.lane.b32.xlu0 %v2552, 127
        %v2556 = vpop.permute.xlu0 %2555
        %v2557 = vsel %vm1588, %v2554, %v2556
        %2558 = vrot.lane.b32.xlu0 %v2551, 126
        %v2559 = vpop.permute.xlu0 %2558
        %2560 = vrot.lane.b32.xlu0 %v2552, 126
        %v2561 = vpop.permute.xlu0 %2560
        %v2562 = vsel %vm1600, %v2559, %v2561
        %2563 = vrot.lane.b32.xlu0 %v2551, 122
        %v2564 = vpop.permute.xlu0 %2563
        %2565 = vrot.lane.b32.xlu0 %v2552, 122
        %v2566 = vpop.permute.xlu0 %2565
        %vm2567 = vcmask 998400
        %v2568 = vsel %vm2567, %v2564, %v2566
        %v2571 = vunpack.c.l.b16 %v2543
        %v2572 = vunpack.c.l.b16 %v2544
        %v2573 = vpack.c.b16 %v2572, %v2571
        %2574 = vrot.lane.b32.xlu0 %v2573, 121
        %v2575 = vpop.permute.xlu0 %2574
        %2576 = vrot.lane.b32.xlu0 %v2573, 120
        %v2577 = vpop.permute.xlu0 %2576
        %2578 = vrot.lane.b32.xlu0 %v2573, 116
        %v2579 = vpop.permute.xlu0 %2578
        %2580 = vrot.lane.b32.xlu0 %v2573, 115
        %v2581 = vpop.permute.xlu0 %2580
        %2582 = vrot.lane.b32.xlu0 %v2573, 114
        %v2583 = vpop.permute.xlu0 %2582
        %v2584 = vld [vmem:[%s11] sm:$0xff]
        %v2585 = vld [vmem:[%s11 + $0x8] sm:$0xff]
        %v2586 = vld [vmem:[%s11 + $0x10] sm:$0xff]
        %v2587 = vld [vmem:[%s11 + $0x18] sm:$0xff]
        %v2592 = vunpack.c.l.b16 %v2584
        %v2593 = vunpack.c.h.b16 %v2584
        %v2594 = vunpack.c.l.b16 %v2585
        %v2595 = vunpack.c.h.b16 %v2585
        %v2596 = vunpack.c.l.b16 %v2586
        %v2597 = vunpack.c.h.b16 %v2586
        %v2598 = vunpack.c.l.b16 %v2587
        %v2599 = vunpack.c.h.b16 %v2587
        %v2600 = vpack.c.b16 %v2594, %v2592
        %v2601 = vpack.c.b16 %v2595, %v2593
        %v2602 = vpack.c.b16 %v2598, %v2596
        %v2603 = vpack.c.b16 %v2599, %v2597
        %2606 = vrot.lane.b32.xlu0 %v2551, 7
        %v2607 = vpop.permute.xlu0 %2606
        %2608 = vrot.lane.b32.xlu0 %v2552, 7
        %v2609 = vpop.permute.xlu0 %2608
        %2610 = vrot.lane.b32.xlu0 %v2557, 7
        %v2611 = vpop.permute.xlu0 %2610
        %2612 = vrot.lane.b32.xlu0 %v2556, 7
        %v2613 = vpop.permute.xlu0 %2612
        %2614 = vrot.lane.b32.xlu0 %v2562, 7
        %v2615 = vpop.permute.xlu0 %2614
        %2616 = vrot.lane.b32.xlu0 %v2561, 7
        %v2617 = vpop.permute.xlu0 %2616
        %2618 = vrot.lane.b32.xlu0 %v2568, 7
        %v2619 = vpop.permute.xlu0 %2618
        %2620 = vrot.lane.b32.xlu0 %v2566, 7
        %v2621 = vpop.permute.xlu0 %2620
        %2622 = vrot.lane.b32.xlu0 %v2575, 7
        %v2623 = vpop.permute.xlu0 %2622
        %2624 = vrot.lane.b32.xlu0 %v2577, 7
        %v2625 = vpop.permute.xlu0 %2624
        %2626 = vrot.lane.b32.xlu0 %v2579, 7
        %v2627 = vpop.permute.xlu0 %2626
        %2628 = vrot.lane.b32.xlu0 %v2581, 7
        %v2629 = vpop.permute.xlu0 %2628
        %2630 = vrot.lane.b32.xlu0 %v2583, 7
        %v2631 = vpop.permute.xlu0 %2630
        %vm2632 = vcmask 56320
        %v2633 = vsel %vm2632, %v2607, %v2609
        %v2634 = vsel %vm2632, %v2611, %v2613
        %v2635 = vsel %vm2632, %v2615, %v2617
        %v2636 = vsel %vm2632, %v2619, %v2621
        %v2647 = vsel %vm1812, %v2601, 0
        %v2650 = vsel %vm1812, %v2603, 0
        %2652 = vmatpush.bf16.msra.mxu0 %v2629
        %2653 = vmatpush.bf16.msra.mxu0 %v2627
        %2654 = vmatpush.bf16.msra.mxu0 %v2625
        %2655 = vmatpush.bf16.msra.mxu0 %v2623
        %2656 = vmatpush.bf16.msra.mxu0 %v2636
        %2657 = vmatpush.bf16.msra.mxu0 %v2635
        %2658 = vmatpush.bf16.msra.mxu0 %v2634
        %2659 = vmatpush.bf16.msra.mxu0 %v2633
        %2660 = vmatmul.bf16.gmra.mxu0 %v2600
        %v2661 = vpop.f32.mrf.mxu0
        %v2662 = vadd.f32 0.0, %v2661
        %v2663 = vpop.f32.mrf.mxu0
        %v2664 = vadd.f32 0.0, %v2663
        %2665 = vmatmul.bf16.gmra.mxu0 %v2602
        %v2666 = vpop.f32.mrf.mxu0
        %v2667 = vadd.f32 0.0, %v2666
        %v2668 = vpop.f32.mrf.mxu0
        %v2669 = vadd.f32 0.0, %v2668
        %2670 = vdwg.mxu0
        %2671 = vmatpush.bf16.msra.mxu0 0
        %2672 = vmatpush.bf16.msra.mxu0 0
        %2673 = vmatpush.bf16.msra.mxu0 0
        %2674 = vmatpush.bf16.msra.mxu0 0
        %2675 = vmatpush.bf16.msra.mxu0 0
        %2676 = vmatpush.bf16.msra.mxu0 0
        %2677 = vmatpush.bf16.msra.mxu0 0
        %2678 = vmatpush.bf16.msra.mxu0 %v2631
        %2679 = vmatmul.bf16.gmra.mxu0 %v2647
        %v2680 = vpop.f32.mrf.mxu0
        %v2681 = vadd.f32 %v2662, %v2680
        %v2682 = vpop.f32.mrf.mxu0
        %v2683 = vadd.f32 %v2664, %v2682
        %2684 = vmatmul.bf16.gmra.mxu0 %v2650
        %v2685 = vpop.f32.mrf.mxu0
        %v2686 = vadd.f32 %v2667, %v2685
        %v2687 = vpop.f32.mrf.mxu0
        %v2688 = vadd.f32 %v2669, %v2687
        %2689 = vdwg.mxu0
        %v2690 = vld [vmem:[#allocation25] sm:$0xff]
        %v2691 = vld [vmem:[#allocation25 + $0x8] sm:$0xff]
        %v2692 = vld [vmem:[#allocation25 + $0x10] sm:$0xff]
        %v2693 = vld [vmem:[#allocation25 + $0x18] sm:$0xff]
        %2695 = vset.pattern.permute.xlu0 0
        %2696 = vperm.xlu0 %2695, %v2690
        %v2697 = vpop.permute.xlu0 %2696
        %2700 = vset.pattern.permute.xlu0 0
        %2701 = vperm.xlu0 %2700, %v2691
        %v2702 = vpop.permute.xlu0 %2701
        %2705 = vset.pattern.permute.xlu0 0
        %2706 = vperm.xlu0 %2705, %v2692
        %v2707 = vpop.permute.xlu0 %2706
        %2710 = vset.pattern.permute.xlu0 0
        %2711 = vperm.xlu0 %2710, %v2693
        %v2712 = vpop.permute.xlu0 %2711
        %v2714 = vmul.f32 %v2681, %v2697
        %v2715 = vmul.f32 %v2683, %v2702
        %v2716 = vmul.f32 %v2686, %v2707
        %v2717 = vmul.f32 %v2688, %v2712
        %2718 = vset.pattern.permute.xlu0 1
        %2719 = vperm.xlu0 %2718, %v2690
        %v2720 = vpop.permute.xlu0 %2719
        %2722 = vset.pattern.permute.xlu0 1
        %2723 = vperm.xlu0 %2722, %v2691
        %v2724 = vpop.permute.xlu0 %2723
        %2726 = vset.pattern.permute.xlu0 1
        %2727 = vperm.xlu0 %2726, %v2692
        %v2728 = vpop.permute.xlu0 %2727
        %2730 = vset.pattern.permute.xlu0 1
        %2731 = vperm.xlu0 %2730, %v2693
        %v2732 = vpop.permute.xlu0 %2731
        %v2734 = vadd.f32 %v2714, %v2720
        %v2735 = vadd.f32 %v2715, %v2724
        %v2736 = vadd.f32 %v2716, %v2728
        %v2737 = vadd.f32 %v2717, %v2732
        %v2738 = vmax.f32 %v2734, 0.0
        %v2739 = vmax.f32 %v2735, 0.0
        %v2740 = vmax.f32 %v2736, 0.0
        %v2741 = vmax.f32 %v2737, 0.0
        %v2742 = vld [vmem:[#allocation49] sm:$0x1]
        %v2744 = vperm.slane %v2742, 0
        %v2746 = vmul.f32 %v2738, %v2744
        %v2747 = vmul.f32 %v2739, %v2744
        %v2748 = vmul.f32 %v2740, %v2744
        %v2749 = vmul.f32 %v2741, %v2744
        %v2750 = vpack.c.bf16 %v2746, %v2746
        %v2751 = vpack.c.bf16 %v2747, %v2747
        %v2752 = vpack.c.bf16 %v2748, %v2748
        %v2753 = vpack.c.bf16 %v2749, %v2749
        %2754 = vst.msk [vmem:[#allocation6 + $0x4] sm:$0xf] %vm2538, %v2750
        %2755 = vst.msk [vmem:[#allocation6 + $0x10] sm:$0xf] %vm2538, %v2751
        %2756 = vst.msk [vmem:[#allocation6 + $0x1c] sm:$0xf] %vm2538, %v2752
        %2757 = vst.msk [vmem:[#allocation6 + $0x28] sm:$0xf] %vm2538, %v2753
        %v2758 = vld [vmem:[#allocation6 + $0x4] sm:$0xf]
        %v2759 = vld [vmem:[#allocation6 + $0x10] sm:$0xf]
        %v2760 = vld [vmem:[#allocation6 + $0x1c] sm:$0xf]
        %v2761 = vld [vmem:[#allocation6 + $0x28] sm:$0xf]
        %v2762 = vunpack.c.l.bf16 %v2758
        %v2763 = vunpack.c.l.bf16 %v2759
        %v2764 = vunpack.c.l.bf16 %v2760
        %v2765 = vunpack.c.l.bf16 %v2761
        %2770 = vrot.lane.b32.xlu0 %v2762, 127
        %v2771 = vpop.permute.xlu0 %2770
        %2772 = vrot.lane.b32.xlu0 %v2763, 127
        %v2773 = vpop.permute.xlu0 %2772
        %2774 = vrot.lane.b32.xlu0 %v2764, 127
        %v2775 = vpop.permute.xlu0 %2774
        %2776 = vrot.lane.b32.xlu0 %v2765, 127
        %v2777 = vpop.permute.xlu0 %2776
        %v2782 = vmax.f32 %v2762, %v2771
        %v2783 = vmax.f32 %v2763, %v2773
        %v2784 = vmax.f32 %v2764, %v2775
        %v2785 = vmax.f32 %v2765, %v2777
        %v2786 = vpack.c.bf16 %v2782, %v2782
        %v2787 = vpack.c.bf16 %v2783, %v2783
        %v2788 = vpack.c.bf16 %v2784, %v2784
        %v2789 = vpack.c.bf16 %v2785, %v2785
        %v2790 = vunpack.c.l.bf16 %v2786
        %v2791 = vunpack.c.l.bf16 %v2787
        %v2792 = vunpack.c.l.bf16 %v2788
        %v2793 = vunpack.c.l.bf16 %v2789
        %2798 = vrot.lane.b32.xlu0 %v2790, 122
        %v2799 = vpop.permute.xlu0 %2798
        %2800 = vrot.lane.b32.xlu0 %v2791, 122
        %v2801 = vpop.permute.xlu0 %2800
        %2802 = vrot.lane.b32.xlu0 %v2792, 122
        %v2803 = vpop.permute.xlu0 %2802
        %2804 = vrot.lane.b32.xlu0 %v2793, 122
        %v2805 = vpop.permute.xlu0 %2804
        %v2810 = vmax.f32 %v2790, %v2799
        %v2811 = vmax.f32 %v2791, %v2801
        %v2812 = vmax.f32 %v2792, %v2803
        %v2813 = vmax.f32 %v2793, %v2805
        %v2814 = vpack.c.bf16 %v2811, %v2810
        %v2815 = vpack.c.bf16 %v2813, %v2812
        %v2816 = vld [vmem:[#allocation53] sm:$0xf]
        %v2817 = vld [vmem:[#allocation53 + $0x4] sm:$0xf]
        %v2818 = vld [vmem:[#allocation53 + $0x8] sm:$0xf]
        %v2819 = vld [vmem:[#allocation53 + $0xc] sm:$0xf]
        %v2820 = vld [vmem:[#allocation53 + $0x10] sm:$0x3]
        %v2826 = vunpack.c.l.b16 %v2816
        %v2827 = vunpack.c.l.b16 %v2817
        %v2828 = vunpack.c.l.b16 %v2818
        %v2829 = vunpack.c.l.b16 %v2819
        %v2830 = vunpack.c.l.b16 %v2820
        %v2831 = vpack.c.b16 %v2827, %v2826
        %v2832 = vpack.c.b16 %v2829, %v2828
        %v2833 = vpack.c.b16 %v2830, %v2830
        %vm2836 = vcmask 293888
        %v2838 = vsel %vm2836, %v2814, 0
        %v2841 = vsel %vm2836, %v2815, 0
        %v2844 = vsel %vm2222, %v2833, 0
        %2846 = vmatpush.bf16.msra.mxu0 0
        %2847 = vmatpush.bf16.msra.mxu0 0
        %2848 = vmatpush.bf16.msra.mxu0 0
        %2849 = vmatpush.bf16.msra.mxu0 0
        %2850 = vmatpush.bf16.msra.mxu0 0
        %2851 = vmatpush.bf16.msra.mxu0 %v2844
        %2852 = vmatpush.bf16.msra.mxu0 %v2832
        %2853 = vmatpush.bf16.msra.mxu0 %v2831
        %2854 = vmatmul.bf16.gmra.mxu0 %v2838
        %v2855 = vpop.f32.mrf.mxu0
        %v2856 = vadd.f32 0.0, %v2855
        %v2857 = vpop.f32.mrf.mxu0
        %v2858 = vadd.f32 0.0, %v2857
        %2859 = vmatmul.bf16.gmra.mxu0 %v2841
        %v2860 = vpop.f32.mrf.mxu0
        %v2861 = vadd.f32 0.0, %v2860
        %v2862 = vpop.f32.mrf.mxu0
        %v2863 = vadd.f32 0.0, %v2862
        %2864 = vdwg.mxu0
        %v2865 = vpack.c.bf16 %v2856, %v2856
        %v2866 = vpack.c.bf16 %v2858, %v2858
        %v2867 = vpack.c.bf16 %v2861, %v2861
        %v2868 = vpack.c.bf16 %v2863, %v2863
        %vm2869 = vcmask 125952
        %2870 = vst.msk [vmem:[#allocation7 + $0x4] sm:$0xf] %vm2869, %v2865
        %2871 = vst.msk [vmem:[#allocation7 + $0x10] sm:$0xf] %vm2869, %v2866
        %2872 = vst.msk [vmem:[#allocation7 + $0x1c] sm:$0xf] %vm2869, %v2867
        %2873 = vst.msk [vmem:[#allocation7 + $0x28] sm:$0xf] %vm2869, %v2868
        %v2874 = vld [vmem:[#allocation7] sm:$0xff]
        %v2875 = vld [vmem:[#allocation7 + $0xc] sm:$0xff]
        %v2876 = vld [vmem:[#allocation7 + $0x18] sm:$0xff]
        %v2877 = vld [vmem:[#allocation7 + $0x24] sm:$0xff]
        %v2878 = vld [vmem:[#allocation7 + $0x4] sm:$0xf]
        %v2879 = vld [vmem:[#allocation7 + $0x10] sm:$0xf]
        %v2880 = vld [vmem:[#allocation7 + $0x1c] sm:$0xf]
        %v2881 = vld [vmem:[#allocation7 + $0x28] sm:$0xf]
        %v2886 = vunpack.c.l.b16 %v2874
        %v2887 = vunpack.c.h.b16 %v2874
        %v2888 = vunpack.c.l.b16 %v2875
        %v2889 = vunpack.c.h.b16 %v2875
        %v2890 = vunpack.c.l.b16 %v2876
        %v2891 = vunpack.c.h.b16 %v2876
        %v2892 = vunpack.c.l.b16 %v2877
        %v2893 = vunpack.c.h.b16 %v2877
        %v2894 = vpack.c.b16 %v2888, %v2886
        %v2895 = vpack.c.b16 %v2889, %v2887
        %v2896 = vpack.c.b16 %v2892, %v2890
        %v2897 = vpack.c.b16 %v2893, %v2891
        %2898 = vrot.lane.b32.xlu0 %v2894, 127
        %v2899 = vpop.permute.xlu0 %2898
        %2900 = vrot.lane.b32.xlu0 %v2895, 127
        %v2901 = vpop.permute.xlu0 %2900
        %2902 = vrot.lane.b32.xlu0 %v2896, 127
        %v2903 = vpop.permute.xlu0 %2902
        %2904 = vrot.lane.b32.xlu0 %v2897, 127
        %v2905 = vpop.permute.xlu0 %2904
        %v2906 = vsel %vm1588, %v2899, %v2901
        %v2907 = vsel %vm1588, %v2903, %v2905
        %2908 = vrot.lane.b32.xlu0 %v2894, 126
        %v2909 = vpop.permute.xlu0 %2908
        %2910 = vrot.lane.b32.xlu0 %v2895, 126
        %v2911 = vpop.permute.xlu0 %2910
        %2912 = vrot.lane.b32.xlu0 %v2896, 126
        %v2913 = vpop.permute.xlu0 %2912
        %2914 = vrot.lane.b32.xlu0 %v2897, 126
        %v2915 = vpop.permute.xlu0 %2914
        %v2916 = vsel %vm1600, %v2909, %v2911
        %v2917 = vsel %vm1600, %v2913, %v2915
        %2918 = vrot.lane.b32.xlu0 %v2894, 124
        %v2919 = vpop.permute.xlu0 %2918
        %2920 = vrot.lane.b32.xlu0 %v2895, 124
        %v2921 = vpop.permute.xlu0 %2920
        %2922 = vrot.lane.b32.xlu0 %v2896, 124
        %v2923 = vpop.permute.xlu0 %2922
        %2924 = vrot.lane.b32.xlu0 %v2897, 124
        %v2925 = vpop.permute.xlu0 %2924
        %vm2926 = vcmask 1014784
        %v2927 = vsel %vm2926, %v2919, %v2921
        %v2928 = vsel %vm2926, %v2923, %v2925
        %v2933 = vunpack.c.l.b16 %v2878
        %v2934 = vunpack.c.l.b16 %v2879
        %v2935 = vunpack.c.l.b16 %v2880
        %v2936 = vunpack.c.l.b16 %v2881
        %v2937 = vpack.c.b16 %v2934, %v2933
        %v2938 = vpack.c.b16 %v2936, %v2935
        %2939 = vrot.lane.b32.xlu0 %v2937, 123
        %v2940 = vpop.permute.xlu0 %2939
        %2941 = vrot.lane.b32.xlu0 %v2938, 123
        %v2942 = vpop.permute.xlu0 %2941
        %2943 = vrot.lane.b32.xlu0 %v2937, 122
        %v2944 = vpop.permute.xlu0 %2943
        %2945 = vrot.lane.b32.xlu0 %v2938, 122
        %v2946 = vpop.permute.xlu0 %2945
        %2947 = vrot.lane.b32.xlu0 %v2937, 120
        %v2948 = vpop.permute.xlu0 %2947
        %2949 = vrot.lane.b32.xlu0 %v2938, 120
        %v2950 = vpop.permute.xlu0 %2949
        %2951 = vrot.lane.b32.xlu0 %v2937, 119
        %v2952 = vpop.permute.xlu0 %2951
        %2953 = vrot.lane.b32.xlu0 %v2938, 119
        %v2954 = vpop.permute.xlu0 %2953
        %2955 = vrot.lane.b32.xlu0 %v2937, 118
        %v2956 = vpop.permute.xlu0 %2955
        %2957 = vrot.lane.b32.xlu0 %v2938, 118
        %v2958 = vpop.permute.xlu0 %2957
        %v2959 = vld [vmem:[%s15] sm:$0xff]
        %v2960 = vld [vmem:[%s15 + $0x8] sm:$0xf]
        %v2961 = vld [vmem:[%s15 + $0xc] sm:$0xff]
        %v2962 = vld [vmem:[%s15 + $0x14] sm:$0xf]
        %v2963 = vld [vmem:[%s15 + $0x18] sm:$0xff]
        %v2964 = vld [vmem:[%s15 + $0x20] sm:$0xf]
        %v2965 = vld [vmem:[%s15 + $0x24] sm:$0xff]
        %v2966 = vld [vmem:[%s15 + $0x2c] sm:$0xf]
        %v2967 = vld [vmem:[%s15 + $0x30] sm:$0xff]
        %v2968 = vld [vmem:[%s15 + $0x38] sm:$0xf]
        %v2969 = vld [vmem:[%s15 + $0x3c] sm:$0xff]
        %v2970 = vld [vmem:[%s15 + $0x44] sm:$0xf]
        %v2971 = vld [vmem:[%s15 + $0x48] sm:$0xff]
        %v2972 = vld [vmem:[%s15 + $0x50] sm:$0xf]
        %v2973 = vld [vmem:[%s15 + $0x54] sm:$0xff]
        %v2974 = vld [vmem:[%s15 + $0x5c] sm:$0xf]
        %v2991 = vunpack.c.l.b16 %v2959
        %v2992 = vunpack.c.h.b16 %v2959
        %v2993 = vunpack.c.l.b16 %v2960
        %v2994 = vunpack.c.l.b16 %v2961
        %v2995 = vunpack.c.h.b16 %v2961
        %v2996 = vunpack.c.l.b16 %v2962
        %v2997 = vunpack.c.l.b16 %v2963
        %v2998 = vunpack.c.h.b16 %v2963
        %v2999 = vunpack.c.l.b16 %v2964
        %v3000 = vunpack.c.l.b16 %v2965
        %v3001 = vunpack.c.h.b16 %v2965
        %v3002 = vunpack.c.l.b16 %v2966
        %v3003 = vunpack.c.l.b16 %v2967
        %v3004 = vunpack.c.h.b16 %v2967
        %v3005 = vunpack.c.l.b16 %v2968
        %v3006 = vunpack.c.l.b16 %v2969
        %v3007 = vunpack.c.h.b16 %v2969
        %v3008 = vunpack.c.l.b16 %v2970
        %v3009 = vunpack.c.l.b16 %v2971
        %v3010 = vunpack.c.h.b16 %v2971
        %v3011 = vunpack.c.l.b16 %v2972
        %v3012 = vunpack.c.l.b16 %v2973
        %v3013 = vunpack.c.h.b16 %v2973
        %v3014 = vunpack.c.l.b16 %v2974
        %v3015 = vpack.c.b16 %v2994, %v2991
        %v3016 = vpack.c.b16 %v2995, %v2992
        %v3017 = vpack.c.b16 %v2996, %v2993
        %v3018 = vpack.c.b16 %v3000, %v2997
        %v3019 = vpack.c.b16 %v3001, %v2998
        %v3020 = vpack.c.b16 %v3002, %v2999
        %v3021 = vpack.c.b16 %v3006, %v3003
        %v3022 = vpack.c.b16 %v3007, %v3004
        %v3023 = vpack.c.b16 %v3008, %v3005
        %v3024 = vpack.c.b16 %v3012, %v3009
        %v3025 = vpack.c.b16 %v3013, %v3010
        %v3026 = vpack.c.b16 %v3014, %v3011
        %3035 = vrot.lane.b32.xlu0 %v2894, 5
        %v3036 = vpop.permute.xlu0 %3035
        %3037 = vrot.lane.b32.xlu0 %v2895, 5
        %v3038 = vpop.permute.xlu0 %3037
        %3039 = vrot.lane.b32.xlu0 %v2896, 5
        %v3040 = vpop.permute.xlu0 %3039
        %3041 = vrot.lane.b32.xlu0 %v2897, 5
        %v3042 = vpop.permute.xlu0 %3041
        %3043 = vrot.lane.b32.xlu0 %v2906, 5
        %v3044 = vpop.permute.xlu0 %3043
        %3045 = vrot.lane.b32.xlu0 %v2901, 5
        %v3046 = vpop.permute.xlu0 %3045
        %3047 = vrot.lane.b32.xlu0 %v2907, 5
        %v3048 = vpop.permute.xlu0 %3047
        %3049 = vrot.lane.b32.xlu0 %v2905, 5
        %v3050 = vpop.permute.xlu0 %3049
        %3051 = vrot.lane.b32.xlu0 %v2916, 5
        %v3052 = vpop.permute.xlu0 %3051
        %3053 = vrot.lane.b32.xlu0 %v2911, 5
        %v3054 = vpop.permute.xlu0 %3053
        %3055 = vrot.lane.b32.xlu0 %v2917, 5
        %v3056 = vpop.permute.xlu0 %3055
        %3057 = vrot.lane.b32.xlu0 %v2915, 5
        %v3058 = vpop.permute.xlu0 %3057
        %3059 = vrot.lane.b32.xlu0 %v2927, 5
        %v3060 = vpop.permute.xlu0 %3059
        %3061 = vrot.lane.b32.xlu0 %v2921, 5
        %v3062 = vpop.permute.xlu0 %3061
        %3063 = vrot.lane.b32.xlu0 %v2928, 5
        %v3064 = vpop.permute.xlu0 %3063
        %3065 = vrot.lane.b32.xlu0 %v2925, 5
        %v3066 = vpop.permute.xlu0 %3065
        %3067 = vrot.lane.b32.xlu0 %v2940, 5
        %v3068 = vpop.permute.xlu0 %3067
        %3069 = vrot.lane.b32.xlu0 %v2942, 5
        %v3070 = vpop.permute.xlu0 %3069
        %3071 = vrot.lane.b32.xlu0 %v2944, 5
        %v3072 = vpop.permute.xlu0 %3071
        %3073 = vrot.lane.b32.xlu0 %v2946, 5
        %v3074 = vpop.permute.xlu0 %3073
        %3075 = vrot.lane.b32.xlu0 %v2948, 5
        %v3076 = vpop.permute.xlu0 %3075
        %3077 = vrot.lane.b32.xlu0 %v2950, 5
        %v3078 = vpop.permute.xlu0 %3077
        %3079 = vrot.lane.b32.xlu0 %v2952, 5
        %v3080 = vpop.permute.xlu0 %3079
        %3081 = vrot.lane.b32.xlu0 %v2954, 5
        %v3082 = vpop.permute.xlu0 %3081
        %3083 = vrot.lane.b32.xlu0 %v2956, 5
        %v3084 = vpop.permute.xlu0 %3083
        %3085 = vrot.lane.b32.xlu0 %v2958, 5
        %v3086 = vpop.permute.xlu0 %3085
        %vm3087 = vcmask 39936
        %v3088 = vsel %vm3087, %v3036, %v3038
        %v3089 = vsel %vm3087, %v3040, %v3042
        %v3090 = vsel %vm3087, %v3044, %v3046
        %v3091 = vsel %vm3087, %v3048, %v3050
        %v3092 = vsel %vm3087, %v3052, %v3054
        %v3093 = vsel %vm3087, %v3056, %v3058
        %v3094 = vsel %vm3087, %v3060, %v3062
        %v3095 = vsel %vm3087, %v3064, %v3066
        %vm3114 = vcmask 261120
        %v3116 = vsel %vm3114, %v3017, 0
        %v3119 = vsel %vm3114, %v3020, 0
        %v3122 = vsel %vm3114, %v3023, 0
        %v3125 = vsel %vm3114, %v3026, 0
        %3127 = vmatpush.bf16.msra.mxu0 %v3095
        %3128 = vmatpush.bf16.msra.mxu0 %v3094
        %3129 = vmatpush.bf16.msra.mxu0 %v3093
        %3130 = vmatpush.bf16.msra.mxu0 %v3092
        %3131 = vmatpush.bf16.msra.mxu0 %v3091
        %3132 = vmatpush.bf16.msra.mxu0 %v3090
        %3133 = vmatpush.bf16.msra.mxu0 %v3089
        %3134 = vmatpush.bf16.msra.mxu0 %v3088
        %3135 = vmatmul.bf16.gmra.mxu0 %v3015
        %v3136 = vpop.f32.mrf.mxu0
        %v3137 = vadd.f32 0.0, %v3136
        %v3138 = vpop.f32.mrf.mxu0
        %v3139 = vadd.f32 0.0, %v3138
        %3140 = vmatmul.bf16.gmra.mxu0 %v3018
        %v3141 = vpop.f32.mrf.mxu0
        %v3142 = vadd.f32 0.0, %v3141
        %v3143 = vpop.f32.mrf.mxu0
        %v3144 = vadd.f32 0.0, %v3143
        %3145 = vmatmul.bf16.gmra.mxu0 %v3021
        %v3146 = vpop.f32.mrf.mxu0
        %v3147 = vadd.f32 0.0, %v3146
        %v3148 = vpop.f32.mrf.mxu0
        %v3149 = vadd.f32 0.0, %v3148
        %3150 = vmatmul.bf16.gmra.mxu0 %v3024
        %v3151 = vpop.f32.mrf.mxu0
        %v3152 = vadd.f32 0.0, %v3151
        %v3153 = vpop.f32.mrf.mxu0
        %v3154 = vadd.f32 0.0, %v3153
        %3155 = vdwg.mxu0
        %3156 = vmatpush.bf16.msra.mxu0 %v3082
        %3157 = vmatpush.bf16.msra.mxu0 %v3080
        %3158 = vmatpush.bf16.msra.mxu0 %v3078
        %3159 = vmatpush.bf16.msra.mxu0 %v3076
        %3160 = vmatpush.bf16.msra.mxu0 %v3074
        %3161 = vmatpush.bf16.msra.mxu0 %v3072
        %3162 = vmatpush.bf16.msra.mxu0 %v3070
        %3163 = vmatpush.bf16.msra.mxu0 %v3068
        %3164 = vmatmul.bf16.gmra.mxu0 %v3016
        %v3165 = vpop.f32.mrf.mxu0
        %v3166 = vadd.f32 %v3137, %v3165
        %v3167 = vpop.f32.mrf.mxu0
        %v3168 = vadd.f32 %v3139, %v3167
        %3169 = vmatmul.bf16.gmra.mxu0 %v3019
        %v3170 = vpop.f32.mrf.mxu0
        %v3171 = vadd.f32 %v3142, %v3170
        %v3172 = vpop.f32.mrf.mxu0
        %v3173 = vadd.f32 %v3144, %v3172
        %3174 = vmatmul.bf16.gmra.mxu0 %v3022
        %v3175 = vpop.f32.mrf.mxu0
        %v3176 = vadd.f32 %v3147, %v3175
        %v3177 = vpop.f32.mrf.mxu0
        %v3178 = vadd.f32 %v3149, %v3177
        %3179 = vmatmul.bf16.gmra.mxu0 %v3025
        %v3180 = vpop.f32.mrf.mxu0
        %v3181 = vadd.f32 %v3152, %v3180
        %v3182 = vpop.f32.mrf.mxu0
        %v3183 = vadd.f32 %v3154, %v3182
        %3184 = vdwg.mxu0
        %3185 = vmatpush.bf16.msra.mxu0 0
        %3186 = vmatpush.bf16.msra.mxu0 0
        %3187 = vmatpush.bf16.msra.mxu0 0
        %3188 = vmatpush.bf16.msra.mxu0 0
        %3189 = vmatpush.bf16.msra.mxu0 0
        %3190 = vmatpush.bf16.msra.mxu0 0
        %3191 = vmatpush.bf16.msra.mxu0 %v3086
        %3192 = vmatpush.bf16.msra.mxu0 %v3084
        %3193 = vmatmul.bf16.gmra.mxu0 %v3116
        %v3194 = vpop.f32.mrf.mxu0
        %v3195 = vadd.f32 %v3166, %v3194
        %v3196 = vpop.f32.mrf.mxu0
        %v3197 = vadd.f32 %v3168, %v3196
        %3198 = vmatmul.bf16.gmra.mxu0 %v3119
        %v3199 = vpop.f32.mrf.mxu0
        %v3200 = vadd.f32 %v3171, %v3199
        %v3201 = vpop.f32.mrf.mxu0
        %v3202 = vadd.f32 %v3173, %v3201
        %3203 = vmatmul.bf16.gmra.mxu0 %v3122
        %v3204 = vpop.f32.mrf.mxu0
        %v3205 = vadd.f32 %v3176, %v3204
        %v3206 = vpop.f32.mrf.mxu0
        %v3207 = vadd.f32 %v3178, %v3206
        %3208 = vmatmul.bf16.gmra.mxu0 %v3125
        %v3209 = vpop.f32.mrf.mxu0
        %v3210 = vadd.f32 %v3181, %v3209
        %v3211 = vpop.f32.mrf.mxu0
        %v3212 = vadd.f32 %v3183, %v3211
        %3213 = vdwg.mxu0
        %v3214 = vld [vmem:[#allocation26] sm:$0xff]
        %v3215 = vld [vmem:[#allocation26 + $0x8] sm:$0xff]
        %v3216 = vld [vmem:[#allocation26 + $0x10] sm:$0xff]
        %v3217 = vld [vmem:[#allocation26 + $0x18] sm:$0xff]
        %v3218 = vld [vmem:[#allocation26 + $0x20] sm:$0xff]
        %v3219 = vld [vmem:[#allocation26 + $0x28] sm:$0xff]
        %v3220 = vld [vmem:[#allocation26 + $0x30] sm:$0xff]
        %v3221 = vld [vmem:[#allocation26 + $0x38] sm:$0xff]
        %3223 = vset.pattern.permute.xlu0 0
        %3224 = vperm.xlu0 %3223, %v3214
        %v3225 = vpop.permute.xlu0 %3224
        %3228 = vset.pattern.permute.xlu0 0
        %3229 = vperm.xlu0 %3228, %v3215
        %v3230 = vpop.permute.xlu0 %3229
        %3233 = vset.pattern.permute.xlu0 0
        %3234 = vperm.xlu0 %3233, %v3216
        %v3235 = vpop.permute.xlu0 %3234
        %3238 = vset.pattern.permute.xlu0 0
        %3239 = vperm.xlu0 %3238, %v3217
        %v3240 = vpop.permute.xlu0 %3239
        %3243 = vset.pattern.permute.xlu0 0
        %3244 = vperm.xlu0 %3243, %v3218
        %v3245 = vpop.permute.xlu0 %3244
        %3248 = vset.pattern.permute.xlu0 0
        %3249 = vperm.xlu0 %3248, %v3219
        %v3250 = vpop.permute.xlu0 %3249
        %3253 = vset.pattern.permute.xlu0 0
        %3254 = vperm.xlu0 %3253, %v3220
        %v3255 = vpop.permute.xlu0 %3254
        %3258 = vset.pattern.permute.xlu0 0
        %3259 = vperm.xlu0 %3258, %v3221
        %v3260 = vpop.permute.xlu0 %3259
        %v3262 = vmul.f32 %v3195, %v3225
        %v3263 = vmul.f32 %v3197, %v3230
        %v3264 = vmul.f32 %v3200, %v3235
        %v3265 = vmul.f32 %v3202, %v3240
        %v3266 = vmul.f32 %v3205, %v3245
        %v3267 = vmul.f32 %v3207, %v3250
        %v3268 = vmul.f32 %v3210, %v3255
        %v3269 = vmul.f32 %v3212, %v3260
        %3270 = vset.pattern.permute.xlu0 1
        %3271 = vperm.xlu0 %3270, %v3214
        %v3272 = vpop.permute.xlu0 %3271
        %3274 = vset.pattern.permute.xlu0 1
        %3275 = vperm.xlu0 %3274, %v3215
        %v3276 = vpop.permute.xlu0 %3275
        %3278 = vset.pattern.permute.xlu0 1
        %3279 = vperm.xlu0 %3278, %v3216
        %v3280 = vpop.permute.xlu0 %3279
        %3282 = vset.pattern.permute.xlu0 1
        %3283 = vperm.xlu0 %3282, %v3217
        %v3284 = vpop.permute.xlu0 %3283
        %3286 = vset.pattern.permute.xlu0 1
        %3287 = vperm.xlu0 %3286, %v3218
        %v3288 = vpop.permute.xlu0 %3287
        %3290 = vset.pattern.permute.xlu0 1
        %3291 = vperm.xlu0 %3290, %v3219
        %v3292 = vpop.permute.xlu0 %3291
        %3294 = vset.pattern.permute.xlu0 1
        %3295 = vperm.xlu0 %3294, %v3220
        %v3296 = vpop.permute.xlu0 %3295
        %3298 = vset.pattern.permute.xlu0 1
        %3299 = vperm.xlu0 %3298, %v3221
        %v3300 = vpop.permute.xlu0 %3299
        %v3302 = vadd.f32 %v3262, %v3272
        %v3303 = vadd.f32 %v3263, %v3276
        %v3304 = vadd.f32 %v3264, %v3280
        %v3305 = vadd.f32 %v3265, %v3284
        %v3306 = vadd.f32 %v3266, %v3288
        %v3307 = vadd.f32 %v3267, %v3292
        %v3308 = vadd.f32 %v3268, %v3296
        %v3309 = vadd.f32 %v3269, %v3300
        %v3310 = vmax.f32 %v3302, 0.0
        %v3311 = vmax.f32 %v3303, 0.0
        %v3312 = vmax.f32 %v3304, 0.0
        %v3313 = vmax.f32 %v3305, 0.0
        %v3314 = vmax.f32 %v3306, 0.0
        %v3315 = vmax.f32 %v3307, 0.0
        %v3316 = vmax.f32 %v3308, 0.0
        %v3317 = vmax.f32 %v3309, 0.0
        %v3318 = vld [vmem:[#allocation50] sm:$0x1]
        %v3320 = vperm.slane %v3318, 0
        %v3322 = vmul.f32 %v3310, %v3320
        %v3323 = vmul.f32 %v3311, %v3320
        %v3324 = vmul.f32 %v3312, %v3320
        %v3325 = vmul.f32 %v3313, %v3320
        %v3326 = vmul.f32 %v3314, %v3320
        %v3327 = vmul.f32 %v3315, %v3320
        %v3328 = vmul.f32 %v3316, %v3320
        %v3329 = vmul.f32 %v3317, %v3320
        %v3330 = vpack.c.bf16 %v3322, %v3322
        %v3331 = vpack.c.bf16 %v3323, %v3323
        %v3332 = vpack.c.bf16 %v3324, %v3324
        %v3333 = vpack.c.bf16 %v3325, %v3325
        %v3334 = vpack.c.bf16 %v3326, %v3326
        %v3335 = vpack.c.bf16 %v3327, %v3327
        %v3336 = vpack.c.bf16 %v3328, %v3328
        %v3337 = vpack.c.bf16 %v3329, %v3329
        %3338 = vst.msk [vmem:[#allocation8 + $0x4] sm:$0xf] %vm2869, %v3330
        %3339 = vst.msk [vmem:[#allocation8 + $0x10] sm:$0xf] %vm2869, %v3331
        %3340 = vst.msk [vmem:[#allocation8 + $0x1c] sm:$0xf] %vm2869, %v3332
        %3341 = vst.msk [vmem:[#allocation8 + $0x28] sm:$0xf] %vm2869, %v3333
        %3342 = vst.msk [vmem:[#allocation8 + $0x34] sm:$0xf] %vm2869, %v3334
        %3343 = vst.msk [vmem:[#allocation8 + $0x40] sm:$0xf] %vm2869, %v3335
        %3344 = vst.msk [vmem:[#allocation8 + $0x4c] sm:$0xf] %vm2869, %v3336
        %3345 = vst.msk [vmem:[#allocation8 + $0x58] sm:$0xf] %vm2869, %v3337
        %v3346 = vld [vmem:[#allocation8 + $0x4] sm:$0xf]
        %v3347 = vld [vmem:[#allocation8 + $0x10] sm:$0xf]
        %v3348 = vld [vmem:[#allocation8 + $0x1c] sm:$0xf]
        %v3349 = vld [vmem:[#allocation8 + $0x28] sm:$0xf]
        %v3350 = vld [vmem:[#allocation8 + $0x34] sm:$0xf]
        %v3351 = vld [vmem:[#allocation8 + $0x40] sm:$0xf]
        %v3352 = vld [vmem:[#allocation8 + $0x4c] sm:$0xf]
        %v3353 = vld [vmem:[#allocation8 + $0x58] sm:$0xf]
        %v3354 = vld [vmem:[#allocation55] sm:$0xf]
        %v3355 = vld [vmem:[#allocation55 + $0x4] sm:$0xf]
        %v3364 = vunpack.c.l.b16 %v3346
        %v3365 = vunpack.c.l.b16 %v3347
        %v3366 = vunpack.c.l.b16 %v3348
        %v3367 = vunpack.c.l.b16 %v3349
        %v3368 = vunpack.c.l.b16 %v3350
        %v3369 = vunpack.c.l.b16 %v3351
        %v3370 = vunpack.c.l.b16 %v3352
        %v3371 = vunpack.c.l.b16 %v3353
        %v3372 = vpack.c.b16 %v3365, %v3364
        %v3373 = vpack.c.b16 %v3367, %v3366
        %v3374 = vpack.c.b16 %v3369, %v3368
        %v3375 = vpack.c.b16 %v3371, %v3370
        %v3378 = vunpack.c.l.b16 %v3354
        %v3379 = vunpack.c.l.b16 %v3355
        %v3380 = vpack.c.b16 %v3379, %v3378
        %v3383 = vsel %vm1812, %v3372, 0
        %v3386 = vsel %vm1812, %v3373, 0
        %v3389 = vsel %vm1812, %v3374, 0
        %v3392 = vsel %vm1812, %v3375, 0
        %3394 = vmatpush.bf16.msra.mxu0 0
        %3395 = vmatpush.bf16.msra.mxu0 0
        %3396 = vmatpush.bf16.msra.mxu0 0
        %3397 = vmatpush.bf16.msra.mxu0 0
        %3398 = vmatpush.bf16.msra.mxu0 0
        %3399 = vmatpush.bf16.msra.mxu0 0
        %3400 = vmatpush.bf16.msra.mxu0 0
        %3401 = vmatpush.bf16.msra.mxu0 %v3380
        %3402 = vmatmul.bf16.gmra.mxu0 %v3383
        %v3403 = vpop.f32.mrf.mxu0
        %v3404 = vadd.f32 0.0, %v3403
        %v3405 = vpop.f32.mrf.mxu0
        %v3406 = vadd.f32 0.0, %v3405
        %3407 = vmatmul.bf16.gmra.mxu0 %v3386
        %v3408 = vpop.f32.mrf.mxu0
        %v3409 = vadd.f32 0.0, %v3408
        %v3410 = vpop.f32.mrf.mxu0
        %v3411 = vadd.f32 0.0, %v3410
        %3412 = vmatmul.bf16.gmra.mxu0 %v3389
        %v3413 = vpop.f32.mrf.mxu0
        %v3414 = vadd.f32 0.0, %v3413
        %v3415 = vpop.f32.mrf.mxu0
        %v3416 = vadd.f32 0.0, %v3415
        %3417 = vmatmul.bf16.gmra.mxu0 %v3392
        %v3418 = vpop.f32.mrf.mxu0
        %v3419 = vadd.f32 0.0, %v3418
        %v3420 = vpop.f32.mrf.mxu0
        %v3421 = vadd.f32 0.0, %v3420
        %3422 = vdwg.mxu0
        %v3423 = vpack.c.bf16 %v3404, %v3404
        %v3424 = vpack.c.bf16 %v3406, %v3406
        %v3425 = vpack.c.bf16 %v3409, %v3409
        %v3426 = vpack.c.bf16 %v3411, %v3411
        %v3427 = vpack.c.bf16 %v3414, %v3414
        %v3428 = vpack.c.bf16 %v3416, %v3416
        %v3429 = vpack.c.bf16 %v3419, %v3419
        %v3430 = vpack.c.bf16 %v3421, %v3421
        %3431 = vst.msk [vmem:[#allocation9 + $0x4] sm:$0xf] %vm2538, %v3423
        %3432 = vst.msk [vmem:[#allocation9 + $0x10] sm:$0xf] %vm2538, %v3424
        %3433 = vst.msk [vmem:[#allocation9 + $0x1c] sm:$0xf] %vm2538, %v3425
        %3434 = vst.msk [vmem:[#allocation9 + $0x28] sm:$0xf] %vm2538, %v3426
        %3435 = vst.msk [vmem:[#allocation9 + $0x34] sm:$0xf] %vm2538, %v3427
        %3436 = vst.msk [vmem:[#allocation9 + $0x40] sm:$0xf] %vm2538, %v3428
        %3437 = vst.msk [vmem:[#allocation9 + $0x4c] sm:$0xf] %vm2538, %v3429
        %3438 = vst.msk [vmem:[#allocation9 + $0x58] sm:$0xf] %vm2538, %v3430
        %v3439 = vld [vmem:[#allocation9] sm:$0xff]
        %v3440 = vld [vmem:[#allocation9 + $0xc] sm:$0xff]
        %v3441 = vld [vmem:[#allocation9 + $0x18] sm:$0xff]
        %v3442 = vld [vmem:[#allocation9 + $0x24] sm:$0xff]
        %v3443 = vld [vmem:[#allocation9 + $0x30] sm:$0xff]
        %v3444 = vld [vmem:[#allocation9 + $0x3c] sm:$0xff]
        %v3445 = vld [vmem:[#allocation9 + $0x48] sm:$0xff]
        %v3446 = vld [vmem:[#allocation9 + $0x54] sm:$0xff]
        %v3447 = vld [vmem:[#allocation9 + $0x4] sm:$0xf]
        %v3448 = vld [vmem:[#allocation9 + $0x10] sm:$0xf]
        %v3449 = vld [vmem:[#allocation9 + $0x1c] sm:$0xf]
        %v3450 = vld [vmem:[#allocation9 + $0x28] sm:$0xf]
        %v3451 = vld [vmem:[#allocation9 + $0x34] sm:$0xf]
        %v3452 = vld [vmem:[#allocation9 + $0x40] sm:$0xf]
        %v3453 = vld [vmem:[#allocation9 + $0x4c] sm:$0xf]
        %v3454 = vld [vmem:[#allocation9 + $0x58] sm:$0xf]
        %v3463 = vunpack.c.l.b16 %v3439
        %v3464 = vunpack.c.h.b16 %v3439
        %v3465 = vunpack.c.l.b16 %v3440
        %v3466 = vunpack.c.h.b16 %v3440
        %v3467 = vunpack.c.l.b16 %v3441
        %v3468 = vunpack.c.h.b16 %v3441
        %v3469 = vunpack.c.l.b16 %v3442
        %v3470 = vunpack.c.h.b16 %v3442
        %v3471 = vunpack.c.l.b16 %v3443
        %v3472 = vunpack.c.h.b16 %v3443
        %v3473 = vunpack.c.l.b16 %v3444
        %v3474 = vunpack.c.h.b16 %v3444
        %v3475 = vunpack.c.l.b16 %v3445
        %v3476 = vunpack.c.h.b16 %v3445
        %v3477 = vunpack.c.l.b16 %v3446
        %v3478 = vunpack.c.h.b16 %v3446
        %v3479 = vpack.c.b16 %v3465, %v3463
        %v3480 = vpack.c.b16 %v3466, %v3464
        %v3481 = vpack.c.b16 %v3469, %v3467
        %v3482 = vpack.c.b16 %v3470, %v3468
        %v3483 = vpack.c.b16 %v3473, %v3471
        %v3484 = vpack.c.b16 %v3474, %v3472
        %v3485 = vpack.c.b16 %v3477, %v3475
        %v3486 = vpack.c.b16 %v3478, %v3476
        %3487 = vrot.lane.b32.xlu0 %v3479, 127
        %v3488 = vpop.permute.xlu0 %3487
        %3489 = vrot.lane.b32.xlu0 %v3480, 127
        %v3490 = vpop.permute.xlu0 %3489
        %3491 = vrot.lane.b32.xlu0 %v3481, 127
        %v3492 = vpop.permute.xlu0 %3491
        %3493 = vrot.lane.b32.xlu0 %v3482, 127
        %v3494 = vpop.permute.xlu0 %3493
        %3495 = vrot.lane.b32.xlu0 %v3483, 127
        %v3496 = vpop.permute.xlu0 %3495
        %3497 = vrot.lane.b32.xlu0 %v3484, 127
        %v3498 = vpop.permute.xlu0 %3497
        %3499 = vrot.lane.b32.xlu0 %v3485, 127
        %v3500 = vpop.permute.xlu0 %3499
        %3501 = vrot.lane.b32.xlu0 %v3486, 127
        %v3502 = vpop.permute.xlu0 %3501
        %v3503 = vsel %vm1588, %v3488, %v3490
        %v3504 = vsel %vm1588, %v3492, %v3494
        %v3505 = vsel %vm1588, %v3496, %v3498
        %v3506 = vsel %vm1588, %v3500, %v3502
        %3507 = vrot.lane.b32.xlu0 %v3479, 126
        %v3508 = vpop.permute.xlu0 %3507
        %3509 = vrot.lane.b32.xlu0 %v3480, 126
        %v3510 = vpop.permute.xlu0 %3509
        %3511 = vrot.lane.b32.xlu0 %v3481, 126
        %v3512 = vpop.permute.xlu0 %3511
        %3513 = vrot.lane.b32.xlu0 %v3482, 126
        %v3514 = vpop.permute.xlu0 %3513
        %3515 = vrot.lane.b32.xlu0 %v3483, 126
        %v3516 = vpop.permute.xlu0 %3515
        %3517 = vrot.lane.b32.xlu0 %v3484, 126
        %v3518 = vpop.permute.xlu0 %3517
        %3519 = vrot.lane.b32.xlu0 %v3485, 126
        %v3520 = vpop.permute.xlu0 %3519
        %3521 = vrot.lane.b32.xlu0 %v3486, 126
        %v3522 = vpop.permute.xlu0 %3521
        %v3523 = vsel %vm1600, %v3508, %v3510
        %v3524 = vsel %vm1600, %v3512, %v3514
        %v3525 = vsel %vm1600, %v3516, %v3518
        %v3526 = vsel %vm1600, %v3520, %v3522
        %3527 = vrot.lane.b32.xlu0 %v3479, 122
        %v3528 = vpop.permute.xlu0 %3527
        %3529 = vrot.lane.b32.xlu0 %v3480, 122
        %v3530 = vpop.permute.xlu0 %3529
        %3531 = vrot.lane.b32.xlu0 %v3481, 122
        %v3532 = vpop.permute.xlu0 %3531
        %3533 = vrot.lane.b32.xlu0 %v3482, 122
        %v3534 = vpop.permute.xlu0 %3533
        %3535 = vrot.lane.b32.xlu0 %v3483, 122
        %v3536 = vpop.permute.xlu0 %3535
        %3537 = vrot.lane.b32.xlu0 %v3484, 122
        %v3538 = vpop.permute.xlu0 %3537
        %3539 = vrot.lane.b32.xlu0 %v3485, 122
        %v3540 = vpop.permute.xlu0 %3539
        %3541 = vrot.lane.b32.xlu0 %v3486, 122
        %v3542 = vpop.permute.xlu0 %3541
        %v3543 = vsel %vm2567, %v3528, %v3530
        %v3544 = vsel %vm2567, %v3532, %v3534
        %v3545 = vsel %vm2567, %v3536, %v3538
        %v3546 = vsel %vm2567, %v3540, %v3542
        %v3555 = vunpack.c.l.b16 %v3447
        %v3556 = vunpack.c.l.b16 %v3448
        %v3557 = vunpack.c.l.b16 %v3449
        %v3558 = vunpack.c.l.b16 %v3450
        %v3559 = vunpack.c.l.b16 %v3451
        %v3560 = vunpack.c.l.b16 %v3452
        %v3561 = vunpack.c.l.b16 %v3453
        %v3562 = vunpack.c.l.b16 %v3454
        %v3563 = vpack.c.b16 %v3556, %v3555
        %v3564 = vpack.c.b16 %v3558, %v3557
        %v3565 = vpack.c.b16 %v3560, %v3559
        %v3566 = vpack.c.b16 %v3562, %v3561
        %3567 = vrot.lane.b32.xlu0 %v3563, 121
        %v3568 = vpop.permute.xlu0 %3567
        %3569 = vrot.lane.b32.xlu0 %v3564, 121
        %v3570 = vpop.permute.xlu0 %3569
        %3571 = vrot.lane.b32.xlu0 %v3565, 121
        %v3572 = vpop.permute.xlu0 %3571
        %3573 = vrot.lane.b32.xlu0 %v3566, 121
        %v3574 = vpop.permute.xlu0 %3573
        %3575 = vrot.lane.b32.xlu0 %v3563, 120
        %v3576 = vpop.permute.xlu0 %3575
        %3577 = vrot.lane.b32.xlu0 %v3564, 120
        %v3578 = vpop.permute.xlu0 %3577
        %3579 = vrot.lane.b32.xlu0 %v3565, 120
        %v3580 = vpop.permute.xlu0 %3579
        %3581 = vrot.lane.b32.xlu0 %v3566, 120
        %v3582 = vpop.permute.xlu0 %3581
        %3583 = vrot.lane.b32.xlu0 %v3563, 116
        %v3584 = vpop.permute.xlu0 %3583
        %3585 = vrot.lane.b32.xlu0 %v3564, 116
        %v3586 = vpop.permute.xlu0 %3585
        %3587 = vrot.lane.b32.xlu0 %v3565, 116
        %v3588 = vpop.permute.xlu0 %3587
        %3589 = vrot.lane.b32.xlu0 %v3566, 116
        %v3590 = vpop.permute.xlu0 %3589
        %3591 = vrot.lane.b32.xlu0 %v3563, 115
        %v3592 = vpop.permute.xlu0 %3591
        %3593 = vrot.lane.b32.xlu0 %v3564, 115
        %v3594 = vpop.permute.xlu0 %3593
        %3595 = vrot.lane.b32.xlu0 %v3565, 115
        %v3596 = vpop.permute.xlu0 %3595
        %3597 = vrot.lane.b32.xlu0 %v3566, 115
        %v3598 = vpop.permute.xlu0 %3597
        %3599 = vrot.lane.b32.xlu0 %v3563, 114
        %v3600 = vpop.permute.xlu0 %3599
        %3601 = vrot.lane.b32.xlu0 %v3564, 114
        %v3602 = vpop.permute.xlu0 %3601
        %3603 = vrot.lane.b32.xlu0 %v3565, 114
        %v3604 = vpop.permute.xlu0 %3603
        %3605 = vrot.lane.b32.xlu0 %v3566, 114
        %v3606 = vpop.permute.xlu0 %3605
        %v3607 = vld [vmem:[#allocation28] sm:$0xff]
        %v3608 = vld [vmem:[#allocation28 + $0x8] sm:$0xff]
        %v3609 = vld [vmem:[#allocation28 + $0x10] sm:$0xf]
        %v3610 = vld [vmem:[#allocation28 + $0x14] sm:$0xff]
        %v3611 = vld [vmem:[#allocation28 + $0x1c] sm:$0xff]
        %v3612 = vld [vmem:[#allocation28 + $0x24] sm:$0xf]
        %v3613 = vld [vmem:[#allocation28 + $0x28] sm:$0xff]
        %v3614 = vld [vmem:[#allocation28 + $0x30] sm:$0xff]
        %v3615 = vld [vmem:[#allocation28 + $0x38] sm:$0xf]
        %v3616 = vld [vmem:[#allocation28 + $0x3c] sm:$0xff]
        %v3617 = vld [vmem:[#allocation28 + $0x44] sm:$0xff]
        %v3618 = vld [vmem:[#allocation28 + $0x4c] sm:$0xf]
        %v3631 = vunpack.c.l.b16 %v3607
        %v3632 = vunpack.c.h.b16 %v3607
        %v3633 = vunpack.c.l.b16 %v3608
        %v3634 = vunpack.c.h.b16 %v3608
        %v3635 = vunpack.c.l.b16 %v3609
        %v3636 = vunpack.c.l.b16 %v3610
        %v3637 = vunpack.c.h.b16 %v3610
        %v3638 = vunpack.c.l.b16 %v3611
        %v3639 = vunpack.c.h.b16 %v3611
        %v3640 = vunpack.c.l.b16 %v3612
        %v3641 = vunpack.c.l.b16 %v3613
        %v3642 = vunpack.c.h.b16 %v3613
        %v3643 = vunpack.c.l.b16 %v3614
        %v3644 = vunpack.c.h.b16 %v3614
        %v3645 = vunpack.c.l.b16 %v3615
        %v3646 = vunpack.c.l.b16 %v3616
        %v3647 = vunpack.c.h.b16 %v3616
        %v3648 = vunpack.c.l.b16 %v3617
        %v3649 = vunpack.c.h.b16 %v3617
        %v3650 = vunpack.c.l.b16 %v3618
        %v3651 = vpack.c.b16 %v3636, %v3631
        %v3652 = vpack.c.b16 %v3637, %v3632
        %v3653 = vpack.c.b16 %v3638, %v3633
        %v3654 = vpack.c.b16 %v3639, %v3634
        %v3655 = vpack.c.b16 %v3640, %v3635
        %v3656 = vpack.c.b16 %v3646, %v3641
        %v3657 = vpack.c.b16 %v3647, %v3642
        %v3658 = vpack.c.b16 %v3648, %v3643
        %v3659 = vpack.c.b16 %v3649, %v3644
        %v3660 = vpack.c.b16 %v3650, %v3645
        %3669 = vrot.lane.b32.xlu0 %v3479, 7
        %v3670 = vpop.permute.xlu0 %3669
        %3671 = vrot.lane.b32.xlu0 %v3480, 7
        %v3672 = vpop.permute.xlu0 %3671
        %3673 = vrot.lane.b32.xlu0 %v3481, 7
        %v3674 = vpop.permute.xlu0 %3673
        %3675 = vrot.lane.b32.xlu0 %v3482, 7
        %v3676 = vpop.permute.xlu0 %3675
        %3677 = vrot.lane.b32.xlu0 %v3483, 7
        %v3678 = vpop.permute.xlu0 %3677
        %3679 = vrot.lane.b32.xlu0 %v3484, 7
        %v3680 = vpop.permute.xlu0 %3679
        %3681 = vrot.lane.b32.xlu0 %v3485, 7
        %v3682 = vpop.permute.xlu0 %3681
        %3683 = vrot.lane.b32.xlu0 %v3486, 7
        %v3684 = vpop.permute.xlu0 %3683
        %3685 = vrot.lane.b32.xlu0 %v3503, 7
        %v3686 = vpop.permute.xlu0 %3685
        %3687 = vrot.lane.b32.xlu0 %v3490, 7
        %v3688 = vpop.permute.xlu0 %3687
        %3689 = vrot.lane.b32.xlu0 %v3504, 7
        %v3690 = vpop.permute.xlu0 %3689
        %3691 = vrot.lane.b32.xlu0 %v3494, 7
        %v3692 = vpop.permute.xlu0 %3691
        %3693 = vrot.lane.b32.xlu0 %v3505, 7
        %v3694 = vpop.permute.xlu0 %3693
        %3695 = vrot.lane.b32.xlu0 %v3498, 7
        %v3696 = vpop.permute.xlu0 %3695
        %3697 = vrot.lane.b32.xlu0 %v3506, 7
        %v3698 = vpop.permute.xlu0 %3697
        %3699 = vrot.lane.b32.xlu0 %v3502, 7
        %v3700 = vpop.permute.xlu0 %3699
        %3701 = vrot.lane.b32.xlu0 %v3523, 7
        %v3702 = vpop.permute.xlu0 %3701
        %3703 = vrot.lane.b32.xlu0 %v3510, 7
        %v3704 = vpop.permute.xlu0 %3703
        %3705 = vrot.lane.b32.xlu0 %v3524, 7
        %v3706 = vpop.permute.xlu0 %3705
        %3707 = vrot.lane.b32.xlu0 %v3514, 7
        %v3708 = vpop.permute.xlu0 %3707
        %3709 = vrot.lane.b32.xlu0 %v3525, 7
        %v3710 = vpop.permute.xlu0 %3709
        %3711 = vrot.lane.b32.xlu0 %v3518, 7
        %v3712 = vpop.permute.xlu0 %3711
        %3713 = vrot.lane.b32.xlu0 %v3526, 7
        %v3714 = vpop.permute.xlu0 %3713
        %3715 = vrot.lane.b32.xlu0 %v3522, 7
        %v3716 = vpop.permute.xlu0 %3715
        %3717 = vrot.lane.b32.xlu0 %v3543, 7
        %v3718 = vpop.permute.xlu0 %3717
        %3719 = vrot.lane.b32.xlu0 %v3530, 7
        %v3720 = vpop.permute.xlu0 %3719
        %3721 = vrot.lane.b32.xlu0 %v3544, 7
        %v3722 = vpop.permute.xlu0 %3721
        %3723 = vrot.lane.b32.xlu0 %v3534, 7
        %v3724 = vpop.permute.xlu0 %3723
        %3725 = vrot.lane.b32.xlu0 %v3545, 7
        %v3726 = vpop.permute.xlu0 %3725
        %3727 = vrot.lane.b32.xlu0 %v3538, 7
        %v3728 = vpop.permute.xlu0 %3727
        %3729 = vrot.lane.b32.xlu0 %v3546, 7
        %v3730 = vpop.permute.xlu0 %3729
        %3731 = vrot.lane.b32.xlu0 %v3542, 7
        %v3732 = vpop.permute.xlu0 %3731
        %3733 = vrot.lane.b32.xlu0 %v3568, 7
        %v3734 = vpop.permute.xlu0 %3733
        %3735 = vrot.lane.b32.xlu0 %v3570, 7
        %v3736 = vpop.permute.xlu0 %3735
        %3737 = vrot.lane.b32.xlu0 %v3572, 7
        %v3738 = vpop.permute.xlu0 %3737
        %3739 = vrot.lane.b32.xlu0 %v3574, 7
        %v3740 = vpop.permute.xlu0 %3739
        %3741 = vrot.lane.b32.xlu0 %v3576, 7
        %v3742 = vpop.permute.xlu0 %3741
        %3743 = vrot.lane.b32.xlu0 %v3578, 7
        %v3744 = vpop.permute.xlu0 %3743
        %3745 = vrot.lane.b32.xlu0 %v3580, 7
        %v3746 = vpop.permute.xlu0 %3745
        %3747 = vrot.lane.b32.xlu0 %v3582, 7
        %v3748 = vpop.permute.xlu0 %3747
        %3749 = vrot.lane.b32.xlu0 %v3584, 7
        %v3750 = vpop.permute.xlu0 %3749
        %3751 = vrot.lane.b32.xlu0 %v3586, 7
        %v3752 = vpop.permute.xlu0 %3751
        %3753 = vrot.lane.b32.xlu0 %v3588, 7
        %v3754 = vpop.permute.xlu0 %3753
        %3755 = vrot.lane.b32.xlu0 %v3590, 7
        %v3756 = vpop.permute.xlu0 %3755
        %3757 = vrot.lane.b32.xlu0 %v3592, 7
        %v3758 = vpop.permute.xlu0 %3757
        %3759 = vrot.lane.b32.xlu0 %v3594, 7
        %v3760 = vpop.permute.xlu0 %3759
        %3761 = vrot.lane.b32.xlu0 %v3596, 7
        %v3762 = vpop.permute.xlu0 %3761
        %3763 = vrot.lane.b32.xlu0 %v3598, 7
        %v3764 = vpop.permute.xlu0 %3763
        %3765 = vrot.lane.b32.xlu0 %v3600, 7
        %v3766 = vpop.permute.xlu0 %3765
        %3767 = vrot.lane.b32.xlu0 %v3602, 7
        %v3768 = vpop.permute.xlu0 %3767
        %3769 = vrot.lane.b32.xlu0 %v3604, 7
        %v3770 = vpop.permute.xlu0 %3769
        %3771 = vrot.lane.b32.xlu0 %v3606, 7
        %v3772 = vpop.permute.xlu0 %3771
        %v3773 = vsel %vm2632, %v3670, %v3672
        %v3774 = vsel %vm2632, %v3674, %v3676
        %v3775 = vsel %vm2632, %v3678, %v3680
        %v3776 = vsel %vm2632, %v3682, %v3684
        %v3777 = vsel %vm2632, %v3686, %v3688
        %v3778 = vsel %vm2632, %v3690, %v3692
        %v3779 = vsel %vm2632, %v3694, %v3696
        %v3780 = vsel %vm2632, %v3698, %v3700
        %v3781 = vsel %vm2632, %v3702, %v3704
        %v3782 = vsel %vm2632, %v3706, %v3708
        %v3783 = vsel %vm2632, %v3710, %v3712
        %v3784 = vsel %vm2632, %v3714, %v3716
        %v3785 = vsel %vm2632, %v3718, %v3720
        %v3786 = vsel %vm2632, %v3722, %v3724
        %v3787 = vsel %vm2632, %v3726, %v3728
        %v3788 = vsel %vm2632, %v3730, %v3732
        %vm3825 = vcmask 523264
        %v3827 = vsel %vm3825, %v3655, 0
        %v3830 = vsel %vm3825, %v3660, 0
        %3832 = vmatpush.bf16.msra.mxu0 %v3780
        %3833 = vmatpush.bf16.msra.mxu0 %v3779
        %3834 = vmatpush.bf16.msra.mxu0 %v3778
        %3835 = vmatpush.bf16.msra.mxu0 %v3777
        %3836 = vmatpush.bf16.msra.mxu0 %v3776
        %3837 = vmatpush.bf16.msra.mxu0 %v3775
        %3838 = vmatpush.bf16.msra.mxu0 %v3774
        %3839 = vmatpush.bf16.msra.mxu0 %v3773
        %3840 = vmatmul.bf16.gmra.mxu0 %v3651
        %v3841 = vpop.f32.mrf.mxu0
        %v3842 = vadd.f32 0.0, %v3841
        %v3843 = vpop.f32.mrf.mxu0
        %v3844 = vadd.f32 0.0, %v3843
        %3845 = vmatmul.bf16.gmra.mxu0 %v3656
        %v3846 = vpop.f32.mrf.mxu0
        %v3847 = vadd.f32 0.0, %v3846
        %v3848 = vpop.f32.mrf.mxu0
        %v3849 = vadd.f32 0.0, %v3848
        %3850 = vdwg.mxu0
        %3851 = vmatpush.bf16.msra.mxu0 %v3788
        %3852 = vmatpush.bf16.msra.mxu0 %v3787
        %3853 = vmatpush.bf16.msra.mxu0 %v3786
        %3854 = vmatpush.bf16.msra.mxu0 %v3785
        %3855 = vmatpush.bf16.msra.mxu0 %v3784
        %3856 = vmatpush.bf16.msra.mxu0 %v3783
        %3857 = vmatpush.bf16.msra.mxu0 %v3782
        %3858 = vmatpush.bf16.msra.mxu0 %v3781
        %3859 = vmatmul.bf16.gmra.mxu0 %v3652
        %v3860 = vpop.f32.mrf.mxu0
        %v3861 = vadd.f32 %v3842, %v3860
        %v3862 = vpop.f32.mrf.mxu0
        %v3863 = vadd.f32 %v3844, %v3862
        %3864 = vmatmul.bf16.gmra.mxu0 %v3657
        %v3865 = vpop.f32.mrf.mxu0
        %v3866 = vadd.f32 %v3847, %v3865
        %v3867 = vpop.f32.mrf.mxu0
        %v3868 = vadd.f32 %v3849, %v3867
        %3869 = vdwg.mxu0
        %3870 = vmatpush.bf16.msra.mxu0 %v3748
        %3871 = vmatpush.bf16.msra.mxu0 %v3746
        %3872 = vmatpush.bf16.msra.mxu0 %v3744
        %3873 = vmatpush.bf16.msra.mxu0 %v3742
        %3874 = vmatpush.bf16.msra.mxu0 %v3740
        %3875 = vmatpush.bf16.msra.mxu0 %v3738
        %3876 = vmatpush.bf16.msra.mxu0 %v3736
        %3877 = vmatpush.bf16.msra.mxu0 %v3734
        %3878 = vmatmul.bf16.gmra.mxu0 %v3653
        %v3879 = vpop.f32.mrf.mxu0
        %v3880 = vadd.f32 %v3861, %v3879
        %v3881 = vpop.f32.mrf.mxu0
        %v3882 = vadd.f32 %v3863, %v3881
        %3883 = vmatmul.bf16.gmra.mxu0 %v3658
        %v3884 = vpop.f32.mrf.mxu0
        %v3885 = vadd.f32 %v3866, %v3884
        %v3886 = vpop.f32.mrf.mxu0
        %v3887 = vadd.f32 %v3868, %v3886
        %3888 = vdwg.mxu0
        %3889 = vmatpush.bf16.msra.mxu0 %v3764
        %3890 = vmatpush.bf16.msra.mxu0 %v3762
        %3891 = vmatpush.bf16.msra.mxu0 %v3760
        %3892 = vmatpush.bf16.msra.mxu0 %v3758
        %3893 = vmatpush.bf16.msra.mxu0 %v3756
        %3894 = vmatpush.bf16.msra.mxu0 %v3754
        %3895 = vmatpush.bf16.msra.mxu0 %v3752
        %3896 = vmatpush.bf16.msra.mxu0 %v3750
        %3897 = vmatmul.bf16.gmra.mxu0 %v3654
        %v3898 = vpop.f32.mrf.mxu0
        %v3899 = vadd.f32 %v3880, %v3898
        %v3900 = vpop.f32.mrf.mxu0
        %v3901 = vadd.f32 %v3882, %v3900
        %3902 = vmatmul.bf16.gmra.mxu0 %v3659
        %v3903 = vpop.f32.mrf.mxu0
        %v3904 = vadd.f32 %v3885, %v3903
        %v3905 = vpop.f32.mrf.mxu0
        %v3906 = vadd.f32 %v3887, %v3905
        %3907 = vdwg.mxu0
        %3908 = vmatpush.bf16.msra.mxu0 0
        %3909 = vmatpush.bf16.msra.mxu0 0
        %3910 = vmatpush.bf16.msra.mxu0 0
        %3911 = vmatpush.bf16.msra.mxu0 0
        %3912 = vmatpush.bf16.msra.mxu0 %v3772
        %3913 = vmatpush.bf16.msra.mxu0 %v3770
        %3914 = vmatpush.bf16.msra.mxu0 %v3768
        %3915 = vmatpush.bf16.msra.mxu0 %v3766
        %3916 = vmatmul.bf16.gmra.mxu0 %v3827
        %v3917 = vpop.f32.mrf.mxu0
        %v3918 = vadd.f32 %v3899, %v3917
        %v3919 = vpop.f32.mrf.mxu0
        %v3920 = vadd.f32 %v3901, %v3919
        %3921 = vmatmul.bf16.gmra.mxu0 %v3830
        %v3922 = vpop.f32.mrf.mxu0
        %v3923 = vadd.f32 %v3904, %v3922
        %v3924 = vpop.f32.mrf.mxu0
        %v3925 = vadd.f32 %v3906, %v3924
        %3926 = vdwg.mxu0
        %v3927 = vld [vmem:[#allocation29] sm:$0xff]
        %v3928 = vld [vmem:[#allocation29 + $0x8] sm:$0xff]
        %v3929 = vld [vmem:[#allocation29 + $0x10] sm:$0xff]
        %v3930 = vld [vmem:[#allocation29 + $0x18] sm:$0xff]
        %3932 = vset.pattern.permute.xlu0 0
        %3933 = vperm.xlu0 %3932, %v3927
        %v3934 = vpop.permute.xlu0 %3933
        %3937 = vset.pattern.permute.xlu0 0
        %3938 = vperm.xlu0 %3937, %v3928
        %v3939 = vpop.permute.xlu0 %3938
        %3942 = vset.pattern.permute.xlu0 0
        %3943 = vperm.xlu0 %3942, %v3929
        %v3944 = vpop.permute.xlu0 %3943
        %3947 = vset.pattern.permute.xlu0 0
        %3948 = vperm.xlu0 %3947, %v3930
        %v3949 = vpop.permute.xlu0 %3948
        %v3951 = vmul.f32 %v3918, %v3934
        %v3952 = vmul.f32 %v3920, %v3939
        %v3953 = vmul.f32 %v3923, %v3944
        %v3954 = vmul.f32 %v3925, %v3949
        %3955 = vset.pattern.permute.xlu0 1
        %3956 = vperm.xlu0 %3955, %v3927
        %v3957 = vpop.permute.xlu0 %3956
        %3959 = vset.pattern.permute.xlu0 1
        %3960 = vperm.xlu0 %3959, %v3928
        %v3961 = vpop.permute.xlu0 %3960
        %3963 = vset.pattern.permute.xlu0 1
        %3964 = vperm.xlu0 %3963, %v3929
        %v3965 = vpop.permute.xlu0 %3964
        %3967 = vset.pattern.permute.xlu0 1
        %3968 = vperm.xlu0 %3967, %v3930
        %v3969 = vpop.permute.xlu0 %3968
        %v3971 = vadd.f32 %v3951, %v3957
        %v3972 = vadd.f32 %v3952, %v3961
        %v3973 = vadd.f32 %v3953, %v3965
        %v3974 = vadd.f32 %v3954, %v3969
        %v3975 = vld [vmem:[#allocation49] sm:$0x1]
        %v3977 = vperm.slane %v3975, 0
        %v3979 = vmul.f32 %v3971, %v3977
        %v3980 = vmul.f32 %v3972, %v3977
        %v3981 = vmul.f32 %v3973, %v3977
        %v3982 = vmul.f32 %v3974, %v3977
        %v3983 = vpack.c.bf16 %v3979, %v3979
        %v3984 = vpack.c.bf16 %v3980, %v3980
        %v3985 = vpack.c.bf16 %v3981, %v3981
        %v3986 = vpack.c.bf16 %v3982, %v3982
        %3987 = vst.msk [vmem:[#allocation10 + $0x4] sm:$0xf] %vm2538, %v3983
        %3988 = vst.msk [vmem:[#allocation10 + $0x10] sm:$0xf] %vm2538, %v3984
        %3989 = vst.msk [vmem:[#allocation10 + $0x1c] sm:$0xf] %vm2538, %v3985
        %3990 = vst.msk [vmem:[#allocation10 + $0x28] sm:$0xf] %vm2538, %v3986
        %v3991 = vld [vmem:[#allocation10] sm:$0xff]
        %v3992 = vld [vmem:[#allocation10 + $0xc] sm:$0xff]
        %v3993 = vld [vmem:[#allocation10 + $0x18] sm:$0xff]
        %v3994 = vld [vmem:[#allocation10 + $0x24] sm:$0xff]
        %v3995 = vld [vmem:[#allocation10 + $0x4] sm:$0xf]
        %v3996 = vld [vmem:[#allocation10 + $0x10] sm:$0xf]
        %v3997 = vld [vmem:[#allocation10 + $0x1c] sm:$0xf]
        %v3998 = vld [vmem:[#allocation10 + $0x28] sm:$0xf]
        %v3999 = vld [vmem:[#allocation6] sm:$0xff]
        %v4000 = vld [vmem:[#allocation6 + $0xc] sm:$0xff]
        %v4001 = vld [vmem:[#allocation6 + $0x18] sm:$0xff]
        %v4002 = vld [vmem:[#allocation6 + $0x24] sm:$0xff]
        %v4003 = vld [vmem:[#allocation6 + $0x4] sm:$0xf]
        %v4004 = vld [vmem:[#allocation6 + $0x10] sm:$0xf]
        %v4005 = vld [vmem:[#allocation6 + $0x1c] sm:$0xf]
        %v4006 = vld [vmem:[#allocation6 + $0x28] sm:$0xf]
        %v4011 = vunpack.c.l.b16 %v3991
        %v4012 = vunpack.c.h.b16 %v3991
        %v4013 = vunpack.c.l.b16 %v3992
        %v4014 = vunpack.c.h.b16 %v3992
        %v4015 = vunpack.c.l.b16 %v3993
        %v4016 = vunpack.c.h.b16 %v3993
        %v4017 = vunpack.c.l.b16 %v3994
        %v4018 = vunpack.c.h.b16 %v3994
        %v4019 = vpack.c.b16 %v4013, %v4011
        %v4020 = vpack.c.b16 %v4014, %v4012
        %v4021 = vpack.c.b16 %v4017, %v4015
        %v4022 = vpack.c.b16 %v4018, %v4016
        %4023 = vrot.lane.b32.xlu0 %v4019, 127
        %v4024 = vpop.permute.xlu0 %4023
        %4025 = vrot.lane.b32.xlu0 %v4020, 127
        %v4026 = vpop.permute.xlu0 %4025
        %4027 = vrot.lane.b32.xlu0 %v4021, 127
        %v4028 = vpop.permute.xlu0 %4027
        %4029 = vrot.lane.b32.xlu0 %v4022, 127
        %v4030 = vpop.permute.xlu0 %4029
        %v4031 = vsel %vm1588, %v4024, %v4026
        %v4032 = vsel %vm1588, %v4028, %v4030
        %4033 = vrot.lane.b32.xlu0 %v4019, 126
        %v4034 = vpop.permute.xlu0 %4033
        %4035 = vrot.lane.b32.xlu0 %v4020, 126
        %v4036 = vpop.permute.xlu0 %4035
        %4037 = vrot.lane.b32.xlu0 %v4021, 126
        %v4038 = vpop.permute.xlu0 %4037
        %4039 = vrot.lane.b32.xlu0 %v4022, 126
        %v4040 = vpop.permute.xlu0 %4039
        %v4041 = vsel %vm1600, %v4034, %v4036
        %v4042 = vsel %vm1600, %v4038, %v4040
        %4043 = vrot.lane.b32.xlu0 %v4019, 122
        %v4044 = vpop.permute.xlu0 %4043
        %4045 = vrot.lane.b32.xlu0 %v4020, 122
        %v4046 = vpop.permute.xlu0 %4045
        %4047 = vrot.lane.b32.xlu0 %v4021, 122
        %v4048 = vpop.permute.xlu0 %4047
        %4049 = vrot.lane.b32.xlu0 %v4022, 122
        %v4050 = vpop.permute.xlu0 %4049
        %v4051 = vsel %vm2567, %v4044, %v4046
        %v4052 = vsel %vm2567, %v4048, %v4050
        %v4057 = vunpack.c.l.b16 %v3995
        %v4058 = vunpack.c.l.b16 %v3996
        %v4059 = vunpack.c.l.b16 %v3997
        %v4060 = vunpack.c.l.b16 %v3998
        %v4061 = vpack.c.b16 %v4058, %v4057
        %v4062 = vpack.c.b16 %v4060, %v4059
        %4063 = vrot.lane.b32.xlu0 %v4061, 121
        %v4064 = vpop.permute.xlu0 %4063
        %4065 = vrot.lane.b32.xlu0 %v4062, 121
        %v4066 = vpop.permute.xlu0 %4065
        %4067 = vrot.lane.b32.xlu0 %v4061, 120
        %v4068 = vpop.permute.xlu0 %4067
        %4069 = vrot.lane.b32.xlu0 %v4062, 120
        %v4070 = vpop.permute.xlu0 %4069
        %4071 = vrot.lane.b32.xlu0 %v4061, 116
        %v4072 = vpop.permute.xlu0 %4071
        %4073 = vrot.lane.b32.xlu0 %v4062, 116
        %v4074 = vpop.permute.xlu0 %4073
        %4075 = vrot.lane.b32.xlu0 %v4061, 115
        %v4076 = vpop.permute.xlu0 %4075
        %4077 = vrot.lane.b32.xlu0 %v4062, 115
        %v4078 = vpop.permute.xlu0 %4077
        %4079 = vrot.lane.b32.xlu0 %v4061, 114
        %v4080 = vpop.permute.xlu0 %4079
        %4081 = vrot.lane.b32.xlu0 %v4062, 114
        %v4082 = vpop.permute.xlu0 %4081
        %v4087 = vunpack.c.l.b16 %v3999
        %v4088 = vunpack.c.h.b16 %v3999
        %v4089 = vunpack.c.l.b16 %v4000
        %v4090 = vunpack.c.h.b16 %v4000
        %v4091 = vunpack.c.l.b16 %v4001
        %v4092 = vunpack.c.h.b16 %v4001
        %v4093 = vunpack.c.l.b16 %v4002
        %v4094 = vunpack.c.h.b16 %v4002
        %v4095 = vpack.c.b16 %v4089, %v4087
        %v4096 = vpack.c.b16 %v4090, %v4088
        %v4097 = vpack.c.b16 %v4093, %v4091
        %v4098 = vpack.c.b16 %v4094, %v4092
        %4099 = vrot.lane.b32.xlu0 %v4095, 127
        %v4100 = vpop.permute.xlu0 %4099
        %4101 = vrot.lane.b32.xlu0 %v4096, 127
        %v4102 = vpop.permute.xlu0 %4101
        %4103 = vrot.lane.b32.xlu0 %v4097, 127
        %v4104 = vpop.permute.xlu0 %4103
        %4105 = vrot.lane.b32.xlu0 %v4098, 127
        %v4106 = vpop.permute.xlu0 %4105
        %v4107 = vsel %vm1588, %v4100, %v4102
        %v4108 = vsel %vm1588, %v4104, %v4106
        %4109 = vrot.lane.b32.xlu0 %v4095, 126
        %v4110 = vpop.permute.xlu0 %4109
        %4111 = vrot.lane.b32.xlu0 %v4096, 126
        %v4112 = vpop.permute.xlu0 %4111
        %4113 = vrot.lane.b32.xlu0 %v4097, 126
        %v4114 = vpop.permute.xlu0 %4113
        %4115 = vrot.lane.b32.xlu0 %v4098, 126
        %v4116 = vpop.permute.xlu0 %4115
        %v4117 = vsel %vm1600, %v4110, %v4112
        %v4118 = vsel %vm1600, %v4114, %v4116
        %4119 = vrot.lane.b32.xlu0 %v4095, 122
        %v4120 = vpop.permute.xlu0 %4119
        %4121 = vrot.lane.b32.xlu0 %v4096, 122
        %v4122 = vpop.permute.xlu0 %4121
        %4123 = vrot.lane.b32.xlu0 %v4097, 122
        %v4124 = vpop.permute.xlu0 %4123
        %4125 = vrot.lane.b32.xlu0 %v4098, 122
        %v4126 = vpop.permute.xlu0 %4125
        %v4127 = vsel %vm2567, %v4120, %v4122
        %v4128 = vsel %vm2567, %v4124, %v4126
        %v4133 = vunpack.c.l.b16 %v4003
        %v4134 = vunpack.c.l.b16 %v4004
        %v4135 = vunpack.c.l.b16 %v4005
        %v4136 = vunpack.c.l.b16 %v4006
        %v4137 = vpack.c.b16 %v4134, %v4133
        %v4138 = vpack.c.b16 %v4136, %v4135
        %4139 = vrot.lane.b32.xlu0 %v4137, 121
        %v4140 = vpop.permute.xlu0 %4139
        %4141 = vrot.lane.b32.xlu0 %v4138, 121
        %v4142 = vpop.permute.xlu0 %4141
        %4143 = vrot.lane.b32.xlu0 %v4137, 120
        %v4144 = vpop.permute.xlu0 %4143
        %4145 = vrot.lane.b32.xlu0 %v4138, 120
        %v4146 = vpop.permute.xlu0 %4145
        %4147 = vrot.lane.b32.xlu0 %v4137, 116
        %v4148 = vpop.permute.xlu0 %4147
        %4149 = vrot.lane.b32.xlu0 %v4138, 116
        %v4150 = vpop.permute.xlu0 %4149
        %4151 = vrot.lane.b32.xlu0 %v4137, 127
        %v4152 = vpop.permute.xlu0 %4151
        %4153 = vrot.lane.b32.xlu0 %v4138, 127
        %v4154 = vpop.permute.xlu0 %4153
        %4155 = vrot.lane.b32.xlu0 %v4137, 115
        %v4156 = vpop.permute.xlu0 %4155
        %4157 = vrot.lane.b32.xlu0 %v4138, 115
        %v4158 = vpop.permute.xlu0 %4157
        %4159 = vrot.lane.b32.xlu0 %v4152, 115
        %v4160 = vpop.permute.xlu0 %4159
        %4161 = vrot.lane.b32.xlu0 %v4154, 115
        %v4162 = vpop.permute.xlu0 %4161
        %v4163 = vld [vmem:[#allocation31] sm:$0xff]
        %v4164 = vld [vmem:[#allocation31 + $0x8] sm:$0xff]
        %v4165 = vld [vmem:[#allocation31 + $0x10] sm:$0xf]
        %v4166 = vld [vmem:[#allocation31 + $0x14] sm:$0xff]
        %v4167 = vld [vmem:[#allocation31 + $0x1c] sm:$0xff]
        %v4168 = vld [vmem:[#allocation31 + $0x24] sm:$0xf]
        %v4169 = vld [vmem:[#allocation31 + $0x28] sm:$0xff]
        %v4170 = vld [vmem:[#allocation31 + $0x30] sm:$0xff]
        %v4171 = vld [vmem:[#allocation31 + $0x38] sm:$0xf]
        %v4172 = vld [vmem:[#allocation31 + $0x3c] sm:$0xff]
        %v4173 = vld [vmem:[#allocation31 + $0x44] sm:$0xff]
        %v4174 = vld [vmem:[#allocation31 + $0x4c] sm:$0xf]
        %v4187 = vunpack.c.l.b16 %v4163
        %v4188 = vunpack.c.h.b16 %v4163
        %v4189 = vunpack.c.l.b16 %v4164
        %v4190 = vunpack.c.h.b16 %v4164
        %v4191 = vunpack.c.l.b16 %v4165
        %v4192 = vunpack.c.l.b16 %v4166
        %v4193 = vunpack.c.h.b16 %v4166
        %v4194 = vunpack.c.l.b16 %v4167
        %v4195 = vunpack.c.h.b16 %v4167
        %v4196 = vunpack.c.l.b16 %v4168
        %v4197 = vunpack.c.l.b16 %v4169
        %v4198 = vunpack.c.h.b16 %v4169
        %v4199 = vunpack.c.l.b16 %v4170
        %v4200 = vunpack.c.h.b16 %v4170
        %v4201 = vunpack.c.l.b16 %v4171
        %v4202 = vunpack.c.l.b16 %v4172
        %v4203 = vunpack.c.h.b16 %v4172
        %v4204 = vunpack.c.l.b16 %v4173
        %v4205 = vunpack.c.h.b16 %v4173
        %v4206 = vunpack.c.l.b16 %v4174
        %v4207 = vpack.c.b16 %v4192, %v4187
        %v4208 = vpack.c.b16 %v4193, %v4188
        %v4209 = vpack.c.b16 %v4194, %v4189
        %v4210 = vpack.c.b16 %v4195, %v4190
        %v4211 = vpack.c.b16 %v4196, %v4191
        %v4212 = vpack.c.b16 %v4202, %v4197
        %v4213 = vpack.c.b16 %v4203, %v4198
        %v4214 = vpack.c.b16 %v4204, %v4199
        %v4215 = vpack.c.b16 %v4205, %v4200
        %v4216 = vpack.c.b16 %v4206, %v4201
        %4225 = vrot.lane.b32.xlu0 %v4019, 7
        %v4226 = vpop.permute.xlu0 %4225
        %4227 = vrot.lane.b32.xlu0 %v4020, 7
        %v4228 = vpop.permute.xlu0 %4227
        %4229 = vrot.lane.b32.xlu0 %v4021, 7
        %v4230 = vpop.permute.xlu0 %4229
        %4231 = vrot.lane.b32.xlu0 %v4022, 7
        %v4232 = vpop.permute.xlu0 %4231
        %4233 = vrot.lane.b32.xlu0 %v4031, 7
        %v4234 = vpop.permute.xlu0 %4233
        %4235 = vrot.lane.b32.xlu0 %v4026, 7
        %v4236 = vpop.permute.xlu0 %4235
        %4237 = vrot.lane.b32.xlu0 %v4032, 7
        %v4238 = vpop.permute.xlu0 %4237
        %4239 = vrot.lane.b32.xlu0 %v4030, 7
        %v4240 = vpop.permute.xlu0 %4239
        %4241 = vrot.lane.b32.xlu0 %v4041, 7
        %v4242 = vpop.permute.xlu0 %4241
        %4243 = vrot.lane.b32.xlu0 %v4036, 7
        %v4244 = vpop.permute.xlu0 %4243
        %4245 = vrot.lane.b32.xlu0 %v4042, 7
        %v4246 = vpop.permute.xlu0 %4245
        %4247 = vrot.lane.b32.xlu0 %v4040, 7
        %v4248 = vpop.permute.xlu0 %4247
        %4249 = vrot.lane.b32.xlu0 %v4051, 7
        %v4250 = vpop.permute.xlu0 %4249
        %4251 = vrot.lane.b32.xlu0 %v4046, 7
        %v4252 = vpop.permute.xlu0 %4251
        %4253 = vrot.lane.b32.xlu0 %v4052, 7
        %v4254 = vpop.permute.xlu0 %4253
        %4255 = vrot.lane.b32.xlu0 %v4050, 7
        %v4256 = vpop.permute.xlu0 %4255
        %4257 = vrot.lane.b32.xlu0 %v4064, 7
        %v4258 = vpop.permute.xlu0 %4257
        %4259 = vrot.lane.b32.xlu0 %v4066, 7
        %v4260 = vpop.permute.xlu0 %4259
        %4261 = vrot.lane.b32.xlu0 %v4068, 7
        %v4262 = vpop.permute.xlu0 %4261
        %4263 = vrot.lane.b32.xlu0 %v4070, 7
        %v4264 = vpop.permute.xlu0 %4263
        %4265 = vrot.lane.b32.xlu0 %v4072, 7
        %v4266 = vpop.permute.xlu0 %4265
        %4267 = vrot.lane.b32.xlu0 %v4074, 7
        %v4268 = vpop.permute.xlu0 %4267
        %4269 = vrot.lane.b32.xlu0 %v4076, 7
        %v4270 = vpop.permute.xlu0 %4269
        %4271 = vrot.lane.b32.xlu0 %v4078, 7
        %v4272 = vpop.permute.xlu0 %4271
        %4273 = vrot.lane.b32.xlu0 %v4080, 7
        %v4274 = vpop.permute.xlu0 %4273
        %4275 = vrot.lane.b32.xlu0 %v4082, 7
        %v4276 = vpop.permute.xlu0 %4275
        %4277 = vrot.lane.b32.xlu0 %v4095, 7
        %v4278 = vpop.permute.xlu0 %4277
        %4279 = vrot.lane.b32.xlu0 %v4096, 7
        %v4280 = vpop.permute.xlu0 %4279
        %4281 = vrot.lane.b32.xlu0 %v4097, 7
        %v4282 = vpop.permute.xlu0 %4281
        %4283 = vrot.lane.b32.xlu0 %v4098, 7
        %v4284 = vpop.permute.xlu0 %4283
        %4285 = vrot.lane.b32.xlu0 %v4107, 7
        %v4286 = vpop.permute.xlu0 %4285
        %4287 = vrot.lane.b32.xlu0 %v4102, 7
        %v4288 = vpop.permute.xlu0 %4287
        %4289 = vrot.lane.b32.xlu0 %v4108, 7
        %v4290 = vpop.permute.xlu0 %4289
        %4291 = vrot.lane.b32.xlu0 %v4106, 7
        %v4292 = vpop.permute.xlu0 %4291
        %4293 = vrot.lane.b32.xlu0 %v4117, 7
        %v4294 = vpop.permute.xlu0 %4293
        %4295 = vrot.lane.b32.xlu0 %v4112, 7
        %v4296 = vpop.permute.xlu0 %4295
        %4297 = vrot.lane.b32.xlu0 %v4118, 7
        %v4298 = vpop.permute.xlu0 %4297
        %4299 = vrot.lane.b32.xlu0 %v4116, 7
        %v4300 = vpop.permute.xlu0 %4299
        %4301 = vrot.lane.b32.xlu0 %v4127, 7
        %v4302 = vpop.permute.xlu0 %4301
        %4303 = vrot.lane.b32.xlu0 %v4122, 7
        %v4304 = vpop.permute.xlu0 %4303
        %4305 = vrot.lane.b32.xlu0 %v4128, 7
        %v4306 = vpop.permute.xlu0 %4305
        %4307 = vrot.lane.b32.xlu0 %v4126, 7
        %v4308 = vpop.permute.xlu0 %4307
        %4309 = vrot.lane.b32.xlu0 %v4140, 7
        %v4310 = vpop.permute.xlu0 %4309
        %4311 = vrot.lane.b32.xlu0 %v4142, 7
        %v4312 = vpop.permute.xlu0 %4311
        %4313 = vrot.lane.b32.xlu0 %v4144, 7
        %v4314 = vpop.permute.xlu0 %4313
        %4315 = vrot.lane.b32.xlu0 %v4146, 7
        %v4316 = vpop.permute.xlu0 %4315
        %4317 = vrot.lane.b32.xlu0 %v4148, 7
        %v4318 = vpop.permute.xlu0 %4317
        %4319 = vrot.lane.b32.xlu0 %v4150, 7
        %v4320 = vpop.permute.xlu0 %4319
        %4321 = vrot.lane.b32.xlu0 %v4156, 7
        %v4322 = vpop.permute.xlu0 %4321
        %4323 = vrot.lane.b32.xlu0 %v4158, 7
        %v4324 = vpop.permute.xlu0 %4323
        %4325 = vrot.lane.b32.xlu0 %v4160, 7
        %v4326 = vpop.permute.xlu0 %4325
        %4327 = vrot.lane.b32.xlu0 %v4162, 7
        %v4328 = vpop.permute.xlu0 %4327
        %v4329 = vsel %vm2632, %v4226, %v4228
        %v4330 = vsel %vm2632, %v4230, %v4232
        %v4331 = vsel %vm2632, %v4234, %v4236
        %v4332 = vsel %vm2632, %v4238, %v4240
        %v4333 = vsel %vm2632, %v4242, %v4244
        %v4334 = vsel %vm2632, %v4246, %v4248
        %v4335 = vsel %vm2632, %v4250, %v4252
        %v4336 = vsel %vm2632, %v4254, %v4256
        %v4337 = vsel %vm2632, %v4278, %v4280
        %v4338 = vsel %vm2632, %v4282, %v4284
        %v4339 = vsel %vm2632, %v4286, %v4288
        %v4340 = vsel %vm2632, %v4290, %v4292
        %v4341 = vsel %vm2632, %v4294, %v4296
        %v4342 = vsel %vm2632, %v4298, %v4300
        %v4343 = vsel %vm2632, %v4302, %v4304
        %v4344 = vsel %vm2632, %v4306, %v4308
        %v4382 = vsel %vm3825, %v4211, 0
        %v4385 = vsel %vm3825, %v4216, 0
        %4387 = vmatpush.bf16.msra.mxu0 %v4336
        %4388 = vmatpush.bf16.msra.mxu0 %v4335
        %4389 = vmatpush.bf16.msra.mxu0 %v4334
        %4390 = vmatpush.bf16.msra.mxu0 %v4333
        %4391 = vmatpush.bf16.msra.mxu0 %v4332
        %4392 = vmatpush.bf16.msra.mxu0 %v4331
        %4393 = vmatpush.bf16.msra.mxu0 %v4330
        %4394 = vmatpush.bf16.msra.mxu0 %v4329
        %4395 = vmatmul.bf16.gmra.mxu0 %v4207
        %v4396 = vpop.f32.mrf.mxu0
        %v4397 = vadd.f32 0.0, %v4396
        %v4398 = vpop.f32.mrf.mxu0
        %v4399 = vadd.f32 0.0, %v4398
        %4400 = vmatmul.bf16.gmra.mxu0 %v4212
        %v4401 = vpop.f32.mrf.mxu0
        %v4402 = vadd.f32 0.0, %v4401
        %v4403 = vpop.f32.mrf.mxu0
        %v4404 = vadd.f32 0.0, %v4403
        %4405 = vdwg.mxu0
        %4406 = vmatpush.bf16.msra.mxu0 %v4272
        %4407 = vmatpush.bf16.msra.mxu0 %v4270
        %4408 = vmatpush.bf16.msra.mxu0 %v4268
        %4409 = vmatpush.bf16.msra.mxu0 %v4266
        %4410 = vmatpush.bf16.msra.mxu0 %v4264
        %4411 = vmatpush.bf16.msra.mxu0 %v4262
        %4412 = vmatpush.bf16.msra.mxu0 %v4260
        %4413 = vmatpush.bf16.msra.mxu0 %v4258
        %4414 = vmatmul.bf16.gmra.mxu0 %v4208
        %v4415 = vpop.f32.mrf.mxu0
        %v4416 = vadd.f32 %v4397, %v4415
        %v4417 = vpop.f32.mrf.mxu0
        %v4418 = vadd.f32 %v4399, %v4417
        %4419 = vmatmul.bf16.gmra.mxu0 %v4213
        %v4420 = vpop.f32.mrf.mxu0
        %v4421 = vadd.f32 %v4402, %v4420
        %v4422 = vpop.f32.mrf.mxu0
        %v4423 = vadd.f32 %v4404, %v4422
        %4424 = vdwg.mxu0
        %4425 = vmatpush.bf16.msra.mxu0 %v4342
        %4426 = vmatpush.bf16.msra.mxu0 %v4341
        %4427 = vmatpush.bf16.msra.mxu0 %v4340
        %4428 = vmatpush.bf16.msra.mxu0 %v4339
        %4429 = vmatpush.bf16.msra.mxu0 %v4338
        %4430 = vmatpush.bf16.msra.mxu0 %v4337
        %4431 = vmatpush.bf16.msra.mxu0 %v4276
        %4432 = vmatpush.bf16.msra.mxu0 %v4274
        %4433 = vmatmul.bf16.gmra.mxu0 %v4209
        %v4434 = vpop.f32.mrf.mxu0
        %v4435 = vadd.f32 %v4416, %v4434
        %v4436 = vpop.f32.mrf.mxu0
        %v4437 = vadd.f32 %v4418, %v4436
        %4438 = vmatmul.bf16.gmra.mxu0 %v4214
        %v4439 = vpop.f32.mrf.mxu0
        %v4440 = vadd.f32 %v4421, %v4439
        %v4441 = vpop.f32.mrf.mxu0
        %v4442 = vadd.f32 %v4423, %v4441
        %4443 = vdwg.mxu0
        %4444 = vmatpush.bf16.msra.mxu0 %v4320
        %4445 = vmatpush.bf16.msra.mxu0 %v4318
        %4446 = vmatpush.bf16.msra.mxu0 %v4316
        %4447 = vmatpush.bf16.msra.mxu0 %v4314
        %4448 = vmatpush.bf16.msra.mxu0 %v4312
        %4449 = vmatpush.bf16.msra.mxu0 %v4310
        %4450 = vmatpush.bf16.msra.mxu0 %v4344
        %4451 = vmatpush.bf16.msra.mxu0 %v4343
        %4452 = vmatmul.bf16.gmra.mxu0 %v4210
        %v4453 = vpop.f32.mrf.mxu0
        %v4454 = vadd.f32 %v4435, %v4453
        %v4455 = vpop.f32.mrf.mxu0
        %v4456 = vadd.f32 %v4437, %v4455
        %4457 = vmatmul.bf16.gmra.mxu0 %v4215
        %v4458 = vpop.f32.mrf.mxu0
        %v4459 = vadd.f32 %v4440, %v4458
        %v4460 = vpop.f32.mrf.mxu0
        %v4461 = vadd.f32 %v4442, %v4460
        %4462 = vdwg.mxu0
        %4463 = vmatpush.bf16.msra.mxu0 0
        %4464 = vmatpush.bf16.msra.mxu0 0
        %4465 = vmatpush.bf16.msra.mxu0 0
        %4466 = vmatpush.bf16.msra.mxu0 0
        %4467 = vmatpush.bf16.msra.mxu0 %v4328
        %4468 = vmatpush.bf16.msra.mxu0 %v4326
        %4469 = vmatpush.bf16.msra.mxu0 %v4324
        %4470 = vmatpush.bf16.msra.mxu0 %v4322
        %4471 = vmatmul.bf16.gmra.mxu0 %v4382
        %v4472 = vpop.f32.mrf.mxu0
        %v4473 = vadd.f32 %v4454, %v4472
        %v4474 = vpop.f32.mrf.mxu0
        %v4475 = vadd.f32 %v4456, %v4474
        %4476 = vmatmul.bf16.gmra.mxu0 %v4385
        %v4477 = vpop.f32.mrf.mxu0
        %v4478 = vadd.f32 %v4459, %v4477
        %v4479 = vpop.f32.mrf.mxu0
        %v4480 = vadd.f32 %v4461, %v4479
        %4481 = vdwg.mxu0
        %v4482 = vld [vmem:[#allocation32] sm:$0xff]
        %v4483 = vld [vmem:[#allocation32 + $0x8] sm:$0xff]
        %v4484 = vld [vmem:[#allocation32 + $0x10] sm:$0xff]
        %v4485 = vld [vmem:[#allocation32 + $0x18] sm:$0xff]
        %4487 = vset.pattern.permute.xlu0 0
        %4488 = vperm.xlu0 %4487, %v4482
        %v4489 = vpop.permute.xlu0 %4488
        %4492 = vset.pattern.permute.xlu0 0
        %4493 = vperm.xlu0 %4492, %v4483
        %v4494 = vpop.permute.xlu0 %4493
        %4497 = vset.pattern.permute.xlu0 0
        %4498 = vperm.xlu0 %4497, %v4484
        %v4499 = vpop.permute.xlu0 %4498
        %4502 = vset.pattern.permute.xlu0 0
        %4503 = vperm.xlu0 %4502, %v4485
        %v4504 = vpop.permute.xlu0 %4503
        %v4506 = vmul.f32 %v4473, %v4489
        %v4507 = vmul.f32 %v4475, %v4494
        %v4508 = vmul.f32 %v4478, %v4499
        %v4509 = vmul.f32 %v4480, %v4504
        %4510 = vset.pattern.permute.xlu0 1
        %4511 = vperm.xlu0 %4510, %v4482
        %v4512 = vpop.permute.xlu0 %4511
        %4514 = vset.pattern.permute.xlu0 1
        %4515 = vperm.xlu0 %4514, %v4483
        %v4516 = vpop.permute.xlu0 %4515
        %4518 = vset.pattern.permute.xlu0 1
        %4519 = vperm.xlu0 %4518, %v4484
        %v4520 = vpop.permute.xlu0 %4519
        %4522 = vset.pattern.permute.xlu0 1
        %4523 = vperm.xlu0 %4522, %v4485
        %v4524 = vpop.permute.xlu0 %4523
        %v4526 = vadd.f32 %v4506, %v4512
        %v4527 = vadd.f32 %v4507, %v4516
        %v4528 = vadd.f32 %v4508, %v4520
        %v4529 = vadd.f32 %v4509, %v4524
        %v4530 = vmax.f32 %v4526, 0.0
        %v4531 = vmax.f32 %v4527, 0.0
        %v4532 = vmax.f32 %v4528, 0.0
        %v4533 = vmax.f32 %v4529, 0.0
        %v4534 = vld [vmem:[#allocation49] sm:$0x1]
        %v4536 = vperm.slane %v4534, 0
        %v4538 = vmul.f32 %v4530, %v4536
        %v4539 = vmul.f32 %v4531, %v4536
        %v4540 = vmul.f32 %v4532, %v4536
        %v4541 = vmul.f32 %v4533, %v4536
        %v4542 = vpack.c.bf16 %v4538, %v4538
        %v4543 = vpack.c.bf16 %v4539, %v4539
        %v4544 = vpack.c.bf16 %v4540, %v4540
        %v4545 = vpack.c.bf16 %v4541, %v4541
        %4546 = vst.msk [vmem:[#allocation11 + $0x4] sm:$0xf] %vm2538, %v4542
        %4547 = vst.msk [vmem:[#allocation11 + $0x10] sm:$0xf] %vm2538, %v4543
        %4548 = vst.msk [vmem:[#allocation11 + $0x1c] sm:$0xf] %vm2538, %v4544
        %4549 = vst.msk [vmem:[#allocation11 + $0x28] sm:$0xf] %vm2538, %v4545
        %v4550 = vld [vmem:[#allocation11 + $0x4] sm:$0xf]
        %v4551 = vld [vmem:[#allocation11 + $0x10] sm:$0xf]
        %v4552 = vld [vmem:[#allocation11 + $0x1c] sm:$0xf]
        %v4553 = vld [vmem:[#allocation11 + $0x28] sm:$0xf]
        %v4554 = vld [vmem:[#allocation56] sm:$0xf]
        %v4555 = vld [vmem:[#allocation56 + $0x4] sm:$0xf]
        %v4556 = vld [vmem:[#allocation56 + $0x8] sm:$0xf]
        %v4557 = vld [vmem:[#allocation56 + $0xc] sm:$0xf]
        %v4558 = vld [vmem:[#allocation56 + $0x10] sm:$0x3]
        %v4563 = vunpack.c.l.b16 %v4550
        %v4564 = vunpack.c.l.b16 %v4551
        %v4565 = vunpack.c.l.b16 %v4552
        %v4566 = vunpack.c.l.b16 %v4553
        %v4567 = vpack.c.b16 %v4564, %v4563
        %v4568 = vpack.c.b16 %v4566, %v4565
        %v4574 = vunpack.c.l.b16 %v4554
        %v4575 = vunpack.c.l.b16 %v4555
        %v4576 = vunpack.c.l.b16 %v4556
        %v4577 = vunpack.c.l.b16 %v4557
        %v4578 = vunpack.c.l.b16 %v4558
        %v4579 = vpack.c.b16 %v4575, %v4574
        %v4580 = vpack.c.b16 %v4577, %v4576
        %v4581 = vpack.c.b16 %v4578, %v4578
        %v4585 = vsel %vm2836, %v4567, 0
        %v4588 = vsel %vm2836, %v4568, 0
        %v4591 = vsel %vm2222, %v4581, 0
        %4593 = vmatpush.bf16.msra.mxu0 0
        %4594 = vmatpush.bf16.msra.mxu0 0
        %4595 = vmatpush.bf16.msra.mxu0 0
        %4596 = vmatpush.bf16.msra.mxu0 0
        %4597 = vmatpush.bf16.msra.mxu0 0
        %4598 = vmatpush.bf16.msra.mxu0 %v4591
        %4599 = vmatpush.bf16.msra.mxu0 %v4580
        %4600 = vmatpush.bf16.msra.mxu0 %v4579
        %4601 = vmatmul.bf16.gmra.mxu0 %v4585
        %v4602 = vpop.f32.mrf.mxu0
        %v4603 = vadd.f32 0.0, %v4602
        %v4604 = vpop.f32.mrf.mxu0
        %v4605 = vadd.f32 0.0, %v4604
        %4606 = vmatmul.bf16.gmra.mxu0 %v4588
        %v4607 = vpop.f32.mrf.mxu0
        %v4608 = vadd.f32 0.0, %v4607
        %v4609 = vpop.f32.mrf.mxu0
        %v4610 = vadd.f32 0.0, %v4609
        %4611 = vdwg.mxu0
        %v4612 = vpack.c.bf16 %v4603, %v4603
        %v4613 = vpack.c.bf16 %v4605, %v4605
        %v4614 = vpack.c.bf16 %v4608, %v4608
        %v4615 = vpack.c.bf16 %v4610, %v4610
        %4616 = vst.msk [vmem:[#allocation12 + $0x4] sm:$0xf] %vm2270, %v4612
        %4617 = vst.msk [vmem:[#allocation12 + $0x10] sm:$0xf] %vm2270, %v4613
        %4618 = vst.msk [vmem:[#allocation12 + $0x1c] sm:$0xf] %vm2270, %v4614
        %4619 = vst.msk [vmem:[#allocation12 + $0x28] sm:$0xf] %vm2270, %v4615
        %v4620 = vld [vmem:[#allocation12] sm:$0xff]
        %v4621 = vld [vmem:[#allocation12 + $0xc] sm:$0xff]
        %v4622 = vld [vmem:[#allocation12 + $0x18] sm:$0xff]
        %v4623 = vld [vmem:[#allocation12 + $0x24] sm:$0xff]
        %v4624 = vld [vmem:[#allocation12 + $0x4] sm:$0xf]
        %v4625 = vld [vmem:[#allocation12 + $0x10] sm:$0xf]
        %v4626 = vld [vmem:[#allocation12 + $0x1c] sm:$0xf]
        %v4627 = vld [vmem:[#allocation12 + $0x28] sm:$0xf]
        %v4632 = vunpack.c.l.b16 %v4620
        %v4633 = vunpack.c.h.b16 %v4620
        %v4634 = vunpack.c.l.b16 %v4621
        %v4635 = vunpack.c.h.b16 %v4621
        %v4636 = vunpack.c.l.b16 %v4622
        %v4637 = vunpack.c.h.b16 %v4622
        %v4638 = vunpack.c.l.b16 %v4623
        %v4639 = vunpack.c.h.b16 %v4623
        %v4640 = vpack.c.b16 %v4634, %v4632
        %v4641 = vpack.c.b16 %v4635, %v4633
        %v4642 = vpack.c.b16 %v4638, %v4636
        %v4643 = vpack.c.b16 %v4639, %v4637
        %4644 = vrot.lane.b32.xlu0 %v4640, 127
        %v4645 = vpop.permute.xlu0 %4644
        %4646 = vrot.lane.b32.xlu0 %v4641, 127
        %v4647 = vpop.permute.xlu0 %4646
        %4648 = vrot.lane.b32.xlu0 %v4642, 127
        %v4649 = vpop.permute.xlu0 %4648
        %4650 = vrot.lane.b32.xlu0 %v4643, 127
        %v4651 = vpop.permute.xlu0 %4650
        %v4652 = vsel %vm1588, %v4645, %v4647
        %v4653 = vsel %vm1588, %v4649, %v4651
        %4654 = vrot.lane.b32.xlu0 %v4640, 126
        %v4655 = vpop.permute.xlu0 %4654
        %4656 = vrot.lane.b32.xlu0 %v4641, 126
        %v4657 = vpop.permute.xlu0 %4656
        %4658 = vrot.lane.b32.xlu0 %v4642, 126
        %v4659 = vpop.permute.xlu0 %4658
        %4660 = vrot.lane.b32.xlu0 %v4643, 126
        %v4661 = vpop.permute.xlu0 %4660
        %v4662 = vsel %vm1600, %v4655, %v4657
        %v4663 = vsel %vm1600, %v4659, %v4661
        %4664 = vrot.lane.b32.xlu0 %v4640, 118
        %v4665 = vpop.permute.xlu0 %4664
        %4666 = vrot.lane.b32.xlu0 %v4641, 118
        %v4667 = vpop.permute.xlu0 %4666
        %4668 = vrot.lane.b32.xlu0 %v4642, 118
        %v4669 = vpop.permute.xlu0 %4668
        %4670 = vrot.lane.b32.xlu0 %v4643, 118
        %v4671 = vpop.permute.xlu0 %4670
        %v4672 = vsel %vm2299, %v4665, %v4667
        %v4673 = vsel %vm2299, %v4669, %v4671
        %v4678 = vunpack.c.l.b16 %v4624
        %v4679 = vunpack.c.l.b16 %v4625
        %v4680 = vunpack.c.l.b16 %v4626
        %v4681 = vunpack.c.l.b16 %v4627
        %v4682 = vpack.c.b16 %v4679, %v4678
        %v4683 = vpack.c.b16 %v4681, %v4680
        %4684 = vrot.lane.b32.xlu0 %v4682, 117
        %v4685 = vpop.permute.xlu0 %4684
        %4686 = vrot.lane.b32.xlu0 %v4683, 117
        %v4687 = vpop.permute.xlu0 %4686
        %4688 = vrot.lane.b32.xlu0 %v4682, 116
        %v4689 = vpop.permute.xlu0 %4688
        %4690 = vrot.lane.b32.xlu0 %v4683, 116
        %v4691 = vpop.permute.xlu0 %4690
        %4692 = vrot.lane.b32.xlu0 %v4682, 108
        %v4693 = vpop.permute.xlu0 %4692
        %4694 = vrot.lane.b32.xlu0 %v4683, 108
        %v4695 = vpop.permute.xlu0 %4694
        %4696 = vrot.lane.b32.xlu0 %v4682, 107
        %v4697 = vpop.permute.xlu0 %4696
        %4698 = vrot.lane.b32.xlu0 %v4683, 107
        %v4699 = vpop.permute.xlu0 %4698
        %4700 = vrot.lane.b32.xlu0 %v4682, 106
        %v4701 = vpop.permute.xlu0 %4700
        %4702 = vrot.lane.b32.xlu0 %v4683, 106
        %v4703 = vpop.permute.xlu0 %4702
        %v4704 = vld [vmem:[#allocation34] sm:$0xff]
        %v4705 = vld [vmem:[#allocation34 + $0x8] sm:$0xf]
        %v4706 = vld [vmem:[#allocation34 + $0xc] sm:$0xff]
        %v4707 = vld [vmem:[#allocation34 + $0x14] sm:$0xf]
        %v4712 = vunpack.c.l.b16 %v4704
        %v4713 = vunpack.c.h.b16 %v4704
        %v4714 = vunpack.c.l.b16 %v4705
        %v4715 = vunpack.c.l.b16 %v4706
        %v4716 = vunpack.c.h.b16 %v4706
        %v4717 = vunpack.c.l.b16 %v4707
        %v4718 = vpack.c.b16 %v4715, %v4712
        %v4719 = vpack.c.b16 %v4716, %v4713
        %v4720 = vpack.c.b16 %v4717, %v4714
        %4723 = vrot.lane.b32.xlu0 %v4640, 11
        %v4724 = vpop.permute.xlu0 %4723
        %4725 = vrot.lane.b32.xlu0 %v4641, 11
        %v4726 = vpop.permute.xlu0 %4725
        %4727 = vrot.lane.b32.xlu0 %v4642, 11
        %v4728 = vpop.permute.xlu0 %4727
        %4729 = vrot.lane.b32.xlu0 %v4643, 11
        %v4730 = vpop.permute.xlu0 %4729
        %4731 = vrot.lane.b32.xlu0 %v4652, 11
        %v4732 = vpop.permute.xlu0 %4731
        %4733 = vrot.lane.b32.xlu0 %v4647, 11
        %v4734 = vpop.permute.xlu0 %4733
        %4735 = vrot.lane.b32.xlu0 %v4653, 11
        %v4736 = vpop.permute.xlu0 %4735
        %4737 = vrot.lane.b32.xlu0 %v4651, 11
        %v4738 = vpop.permute.xlu0 %4737
        %4739 = vrot.lane.b32.xlu0 %v4662, 11
        %v4740 = vpop.permute.xlu0 %4739
        %4741 = vrot.lane.b32.xlu0 %v4657, 11
        %v4742 = vpop.permute.xlu0 %4741
        %4743 = vrot.lane.b32.xlu0 %v4663, 11
        %v4744 = vpop.permute.xlu0 %4743
        %4745 = vrot.lane.b32.xlu0 %v4661, 11
        %v4746 = vpop.permute.xlu0 %4745
        %4747 = vrot.lane.b32.xlu0 %v4672, 11
        %v4748 = vpop.permute.xlu0 %4747
        %4749 = vrot.lane.b32.xlu0 %v4667, 11
        %v4750 = vpop.permute.xlu0 %4749
        %4751 = vrot.lane.b32.xlu0 %v4673, 11
        %v4752 = vpop.permute.xlu0 %4751
        %4753 = vrot.lane.b32.xlu0 %v4671, 11
        %v4754 = vpop.permute.xlu0 %4753
        %4755 = vrot.lane.b32.xlu0 %v4685, 11
        %v4756 = vpop.permute.xlu0 %4755
        %4757 = vrot.lane.b32.xlu0 %v4687, 11
        %v4758 = vpop.permute.xlu0 %4757
        %4759 = vrot.lane.b32.xlu0 %v4689, 11
        %v4760 = vpop.permute.xlu0 %4759
        %4761 = vrot.lane.b32.xlu0 %v4691, 11
        %v4762 = vpop.permute.xlu0 %4761
        %4763 = vrot.lane.b32.xlu0 %v4693, 11
        %v4764 = vpop.permute.xlu0 %4763
        %4765 = vrot.lane.b32.xlu0 %v4695, 11
        %v4766 = vpop.permute.xlu0 %4765
        %4767 = vrot.lane.b32.xlu0 %v4697, 11
        %v4768 = vpop.permute.xlu0 %4767
        %4769 = vrot.lane.b32.xlu0 %v4699, 11
        %v4770 = vpop.permute.xlu0 %4769
        %4771 = vrot.lane.b32.xlu0 %v4701, 11
        %v4772 = vpop.permute.xlu0 %4771
        %4773 = vrot.lane.b32.xlu0 %v4703, 11
        %v4774 = vpop.permute.xlu0 %4773
        %v4775 = vsel %vm2353, %v4724, %v4726
        %v4776 = vsel %vm2353, %v4728, %v4730
        %v4777 = vsel %vm2353, %v4732, %v4734
        %v4778 = vsel %vm2353, %v4736, %v4738
        %v4779 = vsel %vm2353, %v4740, %v4742
        %v4780 = vsel %vm2353, %v4744, %v4746
        %v4781 = vsel %vm2353, %v4748, %v4750
        %v4782 = vsel %vm2353, %v4752, %v4754
        %v4802 = vsel %vm3114, %v4720, 0
        %4804 = vmatpush.bf16.msra.mxu0 %v4782
        %4805 = vmatpush.bf16.msra.mxu0 %v4781
        %4806 = vmatpush.bf16.msra.mxu0 %v4780
        %4807 = vmatpush.bf16.msra.mxu0 %v4779
        %4808 = vmatpush.bf16.msra.mxu0 %v4778
        %4809 = vmatpush.bf16.msra.mxu0 %v4777
        %4810 = vmatpush.bf16.msra.mxu0 %v4776
        %4811 = vmatpush.bf16.msra.mxu0 %v4775
        %4812 = vmatmul.bf16.gmra.mxu0 %v4718
        %v4813 = vpop.f32.mrf.mxu0
        %v4814 = vadd.f32 0.0, %v4813
        %v4815 = vpop.f32.mrf.mxu0
        %v4816 = vadd.f32 0.0, %v4815
        %4817 = vdwg.mxu0
        %4818 = vmatpush.bf16.msra.mxu0 %v4770
        %4819 = vmatpush.bf16.msra.mxu0 %v4768
        %4820 = vmatpush.bf16.msra.mxu0 %v4766
        %4821 = vmatpush.bf16.msra.mxu0 %v4764
        %4822 = vmatpush.bf16.msra.mxu0 %v4762
        %4823 = vmatpush.bf16.msra.mxu0 %v4760
        %4824 = vmatpush.bf16.msra.mxu0 %v4758
        %4825 = vmatpush.bf16.msra.mxu0 %v4756
        %4826 = vmatmul.bf16.gmra.mxu0 %v4719
        %v4827 = vpop.f32.mrf.mxu0
        %v4828 = vadd.f32 %v4814, %v4827
        %v4829 = vpop.f32.mrf.mxu0
        %v4830 = vadd.f32 %v4816, %v4829
        %4831 = vdwg.mxu0
        %4832 = vmatpush.bf16.msra.mxu0 0
        %4833 = vmatpush.bf16.msra.mxu0 0
        %4834 = vmatpush.bf16.msra.mxu0 0
        %4835 = vmatpush.bf16.msra.mxu0 0
        %4836 = vmatpush.bf16.msra.mxu0 0
        %4837 = vmatpush.bf16.msra.mxu0 0
        %4838 = vmatpush.bf16.msra.mxu0 %v4774
        %4839 = vmatpush.bf16.msra.mxu0 %v4772
        %4840 = vmatmul.bf16.gmra.mxu0 %v4802
        %v4841 = vpop.f32.mrf.mxu0
        %v4842 = vadd.f32 %v4828, %v4841
        %v4843 = vpop.f32.mrf.mxu0
        %v4844 = vadd.f32 %v4830, %v4843
        %4845 = vdwg.mxu0
        %v4846 = vld [vmem:[#allocation35] sm:$0xff]
        %v4847 = vld [vmem:[#allocation35 + $0x8] sm:$0xff]
        %4849 = vset.pattern.permute.xlu0 0
        %4850 = vperm.xlu0 %4849, %v4846
        %v4851 = vpop.permute.xlu0 %4850
        %4854 = vset.pattern.permute.xlu0 0
        %4855 = vperm.xlu0 %4854, %v4847
        %v4856 = vpop.permute.xlu0 %4855
        %v4858 = vmul.f32 %v4842, %v4851
        %v4859 = vmul.f32 %v4844, %v4856
        %4860 = vset.pattern.permute.xlu0 1
        %4861 = vperm.xlu0 %4860, %v4846
        %v4862 = vpop.permute.xlu0 %4861
        %4864 = vset.pattern.permute.xlu0 1
        %4865 = vperm.xlu0 %4864, %v4847
        %v4866 = vpop.permute.xlu0 %4865
        %v4868 = vadd.f32 %v4858, %v4862
        %v4869 = vadd.f32 %v4859, %v4866
        %v4870 = vld [vmem:[#allocation47] sm:$0x1]
        %v4872 = vperm.slane %v4870, 0
        %v4874 = vmul.f32 %v4868, %v4872
        %v4875 = vmul.f32 %v4869, %v4872
        %v4876 = vpack.c.bf16 %v4874, %v4874
        %v4877 = vpack.c.bf16 %v4875, %v4875
        %4878 = vst.msk [vmem:[#allocation13 + $0x4] sm:$0xf] %vm2270, %v4876
        %4879 = vst.msk [vmem:[#allocation13 + $0x10] sm:$0xf] %vm2270, %v4877
        %v4880 = vld [vmem:[#allocation13] sm:$0xff]
        %v4881 = vld [vmem:[#allocation13 + $0xc] sm:$0xff]
        %v4882 = vld [vmem:[#allocation13 + $0x4] sm:$0xf]
        %v4883 = vld [vmem:[#allocation13 + $0x10] sm:$0xf]
        %v4884 = vld [vmem:[#allocation4] sm:$0xff]
        %v4885 = vld [vmem:[#allocation4 + $0xc] sm:$0xff]
        %v4886 = vld [vmem:[#allocation4 + $0x4] sm:$0xf]
        %v4887 = vld [vmem:[#allocation4 + $0x10] sm:$0xf]
        %v4890 = vunpack.c.l.b16 %v4880
        %v4891 = vunpack.c.h.b16 %v4880
        %v4892 = vunpack.c.l.b16 %v4881
        %v4893 = vunpack.c.h.b16 %v4881
        %v4894 = vpack.c.b16 %v4892, %v4890
        %v4895 = vpack.c.b16 %v4893, %v4891
        %4896 = vrot.lane.b32.xlu0 %v4894, 127
        %v4897 = vpop.permute.xlu0 %4896
        %4898 = vrot.lane.b32.xlu0 %v4895, 127
        %v4899 = vpop.permute.xlu0 %4898
        %v4900 = vsel %vm1588, %v4897, %v4899
        %4901 = vrot.lane.b32.xlu0 %v4894, 126
        %v4902 = vpop.permute.xlu0 %4901
        %4903 = vrot.lane.b32.xlu0 %v4895, 126
        %v4904 = vpop.permute.xlu0 %4903
        %v4905 = vsel %vm1600, %v4902, %v4904
        %4906 = vrot.lane.b32.xlu0 %v4894, 118
        %v4907 = vpop.permute.xlu0 %4906
        %4908 = vrot.lane.b32.xlu0 %v4895, 118
        %v4909 = vpop.permute.xlu0 %4908
        %v4910 = vsel %vm2299, %v4907, %v4909
        %v4913 = vunpack.c.l.b16 %v4882
        %v4914 = vunpack.c.l.b16 %v4883
        %v4915 = vpack.c.b16 %v4914, %v4913
        %4916 = vrot.lane.b32.xlu0 %v4915, 117
        %v4917 = vpop.permute.xlu0 %4916
        %4918 = vrot.lane.b32.xlu0 %v4915, 116
        %v4919 = vpop.permute.xlu0 %4918
        %4920 = vrot.lane.b32.xlu0 %v4915, 108
        %v4921 = vpop.permute.xlu0 %4920
        %4922 = vrot.lane.b32.xlu0 %v4915, 107
        %v4923 = vpop.permute.xlu0 %4922
        %4924 = vrot.lane.b32.xlu0 %v4915, 106
        %v4925 = vpop.permute.xlu0 %4924
        %v4928 = vunpack.c.l.b16 %v4884
        %v4929 = vunpack.c.h.b16 %v4884
        %v4930 = vunpack.c.l.b16 %v4885
        %v4931 = vunpack.c.h.b16 %v4885
        %v4932 = vpack.c.b16 %v4930, %v4928
        %v4933 = vpack.c.b16 %v4931, %v4929
        %4934 = vrot.lane.b32.xlu0 %v4932, 127
        %v4935 = vpop.permute.xlu0 %4934
        %4936 = vrot.lane.b32.xlu0 %v4933, 127
        %v4937 = vpop.permute.xlu0 %4936
        %v4938 = vsel %vm1588, %v4935, %v4937
        %4939 = vrot.lane.b32.xlu0 %v4932, 126
        %v4940 = vpop.permute.xlu0 %4939
        %4941 = vrot.lane.b32.xlu0 %v4933, 126
        %v4942 = vpop.permute.xlu0 %4941
        %v4943 = vsel %vm1600, %v4940, %v4942
        %4944 = vrot.lane.b32.xlu0 %v4932, 118
        %v4945 = vpop.permute.xlu0 %4944
        %4946 = vrot.lane.b32.xlu0 %v4933, 118
        %v4947 = vpop.permute.xlu0 %4946
        %v4948 = vsel %vm2299, %v4945, %v4947
        %v4951 = vunpack.c.l.b16 %v4886
        %v4952 = vunpack.c.l.b16 %v4887
        %v4953 = vpack.c.b16 %v4952, %v4951
        %4954 = vrot.lane.b32.xlu0 %v4953, 117
        %v4955 = vpop.permute.xlu0 %4954
        %4956 = vrot.lane.b32.xlu0 %v4953, 116
        %v4957 = vpop.permute.xlu0 %4956
        %4958 = vrot.lane.b32.xlu0 %v4953, 108
        %v4959 = vpop.permute.xlu0 %4958
        %4960 = vrot.lane.b32.xlu0 %v4953, 127
        %v4961 = vpop.permute.xlu0 %4960
        %4962 = vrot.lane.b32.xlu0 %v4953, 107
        %v4963 = vpop.permute.xlu0 %4962
        %4964 = vrot.lane.b32.xlu0 %v4961, 107
        %v4965 = vpop.permute.xlu0 %4964
        %v4966 = vld [vmem:[#allocation37] sm:$0xff]
        %v4967 = vld [vmem:[#allocation37 + $0x8] sm:$0xf]
        %v4968 = vld [vmem:[#allocation37 + $0xc] sm:$0xff]
        %v4969 = vld [vmem:[#allocation37 + $0x14] sm:$0xf]
        %v4974 = vunpack.c.l.b16 %v4966
        %v4975 = vunpack.c.h.b16 %v4966
        %v4976 = vunpack.c.l.b16 %v4967
        %v4977 = vunpack.c.l.b16 %v4968
        %v4978 = vunpack.c.h.b16 %v4968
        %v4979 = vunpack.c.l.b16 %v4969
        %v4980 = vpack.c.b16 %v4977, %v4974
        %v4981 = vpack.c.b16 %v4978, %v4975
        %v4982 = vpack.c.b16 %v4979, %v4976
        %4985 = vrot.lane.b32.xlu0 %v4894, 11
        %v4986 = vpop.permute.xlu0 %4985
        %4987 = vrot.lane.b32.xlu0 %v4895, 11
        %v4988 = vpop.permute.xlu0 %4987
        %4989 = vrot.lane.b32.xlu0 %v4900, 11
        %v4990 = vpop.permute.xlu0 %4989
        %4991 = vrot.lane.b32.xlu0 %v4899, 11
        %v4992 = vpop.permute.xlu0 %4991
        %4993 = vrot.lane.b32.xlu0 %v4905, 11
        %v4994 = vpop.permute.xlu0 %4993
        %4995 = vrot.lane.b32.xlu0 %v4904, 11
        %v4996 = vpop.permute.xlu0 %4995
        %4997 = vrot.lane.b32.xlu0 %v4910, 11
        %v4998 = vpop.permute.xlu0 %4997
        %4999 = vrot.lane.b32.xlu0 %v4909, 11
        %v5000 = vpop.permute.xlu0 %4999
        %5001 = vrot.lane.b32.xlu0 %v4917, 11
        %v5002 = vpop.permute.xlu0 %5001
        %5003 = vrot.lane.b32.xlu0 %v4919, 11
        %v5004 = vpop.permute.xlu0 %5003
        %5005 = vrot.lane.b32.xlu0 %v4921, 11
        %v5006 = vpop.permute.xlu0 %5005
        %5007 = vrot.lane.b32.xlu0 %v4923, 11
        %v5008 = vpop.permute.xlu0 %5007
        %5009 = vrot.lane.b32.xlu0 %v4925, 11
        %v5010 = vpop.permute.xlu0 %5009
        %5011 = vrot.lane.b32.xlu0 %v4932, 11
        %v5012 = vpop.permute.xlu0 %5011
        %5013 = vrot.lane.b32.xlu0 %v4933, 11
        %v5014 = vpop.permute.xlu0 %5013
        %5015 = vrot.lane.b32.xlu0 %v4938, 11
        %v5016 = vpop.permute.xlu0 %5015
        %5017 = vrot.lane.b32.xlu0 %v4937, 11
        %v5018 = vpop.permute.xlu0 %5017
        %5019 = vrot.lane.b32.xlu0 %v4943, 11
        %v5020 = vpop.permute.xlu0 %5019
        %5021 = vrot.lane.b32.xlu0 %v4942, 11
        %v5022 = vpop.permute.xlu0 %5021
        %5023 = vrot.lane.b32.xlu0 %v4948, 11
        %v5024 = vpop.permute.xlu0 %5023
        %5025 = vrot.lane.b32.xlu0 %v4947, 11
        %v5026 = vpop.permute.xlu0 %5025
        %5027 = vrot.lane.b32.xlu0 %v4955, 11
        %v5028 = vpop.permute.xlu0 %5027
        %5029 = vrot.lane.b32.xlu0 %v4957, 11
        %v5030 = vpop.permute.xlu0 %5029
        %5031 = vrot.lane.b32.xlu0 %v4959, 11
        %v5032 = vpop.permute.xlu0 %5031
        %5033 = vrot.lane.b32.xlu0 %v4963, 11
        %v5034 = vpop.permute.xlu0 %5033
        %5035 = vrot.lane.b32.xlu0 %v4965, 11
        %v5036 = vpop.permute.xlu0 %5035
        %v5037 = vsel %vm2353, %v4986, %v4988
        %v5038 = vsel %vm2353, %v4990, %v4992
        %v5039 = vsel %vm2353, %v4994, %v4996
        %v5040 = vsel %vm2353, %v4998, %v5000
        %v5041 = vsel %vm2353, %v5012, %v5014
        %v5042 = vsel %vm2353, %v5016, %v5018
        %v5043 = vsel %vm2353, %v5020, %v5022
        %v5044 = vsel %vm2353, %v5024, %v5026
        %v5064 = vsel %vm3114, %v4982, 0
        %5066 = vmatpush.bf16.msra.mxu0 %v5008
        %5067 = vmatpush.bf16.msra.mxu0 %v5006
        %5068 = vmatpush.bf16.msra.mxu0 %v5004
        %5069 = vmatpush.bf16.msra.mxu0 %v5002
        %5070 = vmatpush.bf16.msra.mxu0 %v5040
        %5071 = vmatpush.bf16.msra.mxu0 %v5039
        %5072 = vmatpush.bf16.msra.mxu0 %v5038
        %5073 = vmatpush.bf16.msra.mxu0 %v5037
        %5074 = vmatmul.bf16.gmra.mxu0 %v4980
        %v5075 = vpop.f32.mrf.mxu0
        %v5076 = vadd.f32 0.0, %v5075
        %v5077 = vpop.f32.mrf.mxu0
        %v5078 = vadd.f32 0.0, %v5077
        %5079 = vdwg.mxu0
        %5080 = vmatpush.bf16.msra.mxu0 %v5032
        %5081 = vmatpush.bf16.msra.mxu0 %v5030
        %5082 = vmatpush.bf16.msra.mxu0 %v5028
        %5083 = vmatpush.bf16.msra.mxu0 %v5044
        %5084 = vmatpush.bf16.msra.mxu0 %v5043
        %5085 = vmatpush.bf16.msra.mxu0 %v5042
        %5086 = vmatpush.bf16.msra.mxu0 %v5041
        %5087 = vmatpush.bf16.msra.mxu0 %v5010
        %5088 = vmatmul.bf16.gmra.mxu0 %v4981
        %v5089 = vpop.f32.mrf.mxu0
        %v5090 = vadd.f32 %v5076, %v5089
        %v5091 = vpop.f32.mrf.mxu0
        %v5092 = vadd.f32 %v5078, %v5091
        %5093 = vdwg.mxu0
        %5094 = vmatpush.bf16.msra.mxu0 0
        %5095 = vmatpush.bf16.msra.mxu0 0
        %5096 = vmatpush.bf16.msra.mxu0 0
        %5097 = vmatpush.bf16.msra.mxu0 0
        %5098 = vmatpush.bf16.msra.mxu0 0
        %5099 = vmatpush.bf16.msra.mxu0 0
        %5100 = vmatpush.bf16.msra.mxu0 %v5036
        %5101 = vmatpush.bf16.msra.mxu0 %v5034
        %5102 = vmatmul.bf16.gmra.mxu0 %v5064
        %v5103 = vpop.f32.mrf.mxu0
        %v5104 = vadd.f32 %v5090, %v5103
        %v5105 = vpop.f32.mrf.mxu0
        %v5106 = vadd.f32 %v5092, %v5105
        %5107 = vdwg.mxu0
        %v5108 = vld [vmem:[#allocation38] sm:$0xff]
        %v5109 = vld [vmem:[#allocation38 + $0x8] sm:$0xff]
        %5111 = vset.pattern.permute.xlu0 0
        %5112 = vperm.xlu0 %5111, %v5108
        %v5113 = vpop.permute.xlu0 %5112
        %5116 = vset.pattern.permute.xlu0 0
        %5117 = vperm.xlu0 %5116, %v5109
        %v5118 = vpop.permute.xlu0 %5117
        %v5120 = vmul.f32 %v5104, %v5113
        %v5121 = vmul.f32 %v5106, %v5118
        %5122 = vset.pattern.permute.xlu0 1
        %5123 = vperm.xlu0 %5122, %v5108
        %v5124 = vpop.permute.xlu0 %5123
        %5126 = vset.pattern.permute.xlu0 1
        %5127 = vperm.xlu0 %5126, %v5109
        %v5128 = vpop.permute.xlu0 %5127
        %v5130 = vadd.f32 %v5120, %v5124
        %v5131 = vadd.f32 %v5121, %v5128
        %v5132 = vmax.f32 %v5130, 0.0
        %v5133 = vmax.f32 %v5131, 0.0
        %v5134 = vld [vmem:[#allocation47] sm:$0x1]
        %v5136 = vperm.slane %v5134, 0
        %v5138 = vmul.f32 %v5132, %v5136
        %v5139 = vmul.f32 %v5133, %v5136
        %v5140 = vpack.c.bf16 %v5138, %v5138
        %v5141 = vpack.c.bf16 %v5139, %v5139
        %5142 = vst.msk [vmem:[#allocation14 + $0x4] sm:$0xf] %vm2270, %v5140
        %5143 = vst.msk [vmem:[#allocation14 + $0x10] sm:$0xf] %vm2270, %v5141
        %v5144 = vld [vmem:[#allocation14 + $0x4] sm:$0xf]
        %v5145 = vld [vmem:[#allocation14 + $0x10] sm:$0xf]
        %v5146 = vld [vmem:[%s65] sm:$0xff]
        %v5147 = vld [vmem:[%s65 + $0x8] sm:$0xf]
        %v5148 = vld [vmem:[%s65 + $0xc] sm:$0xff]
        %v5149 = vld [vmem:[%s65 + $0x14] sm:$0xf]
        %v5150 = vld [vmem:[%s65 + $0x18] sm:$0xff]
        %v5151 = vld [vmem:[%s65 + $0x20] sm:$0xf]
        %v5152 = vld [vmem:[%s65 + $0x24] sm:$0xff]
        %v5153 = vld [vmem:[%s65 + $0x2c] sm:$0xf]
        %v5154 = vld [vmem:[%s65 + $0x30] sm:$0xff]
        %v5155 = vld [vmem:[%s65 + $0x38] sm:$0xf]
        %v5156 = vld [vmem:[%s65 + $0x3c] sm:$0xff]
        %v5157 = vld [vmem:[%s65 + $0x44] sm:$0xf]
        %v5158 = vld [vmem:[%s65 + $0x48] sm:$0xff]
        %v5159 = vld [vmem:[%s65 + $0x50] sm:$0xf]
        %v5160 = vld [vmem:[%s65 + $0x54] sm:$0xff]
        %v5161 = vld [vmem:[%s65 + $0x5c] sm:$0xf]
        %v5162 = vld [vmem:[%s65 + $0x60] sm:$0xff]
        %v5163 = vld [vmem:[%s65 + $0x68] sm:$0xf]
        %v5164 = vld [vmem:[%s65 + $0x6c] sm:$0xff]
        %v5165 = vld [vmem:[%s65 + $0x74] sm:$0xf]
        %v5166 = vld [vmem:[%s65 + $0x78] sm:$0xff]
        %v5167 = vld [vmem:[%s65 + $0x80] sm:$0xf]
        %v5168 = vld [vmem:[%s65 + $0x84] sm:$0xff]
        %v5169 = vld [vmem:[%s65 + $0x8c] sm:$0xf]
        %v5170 = vld [vmem:[%s65 + $0x90] sm:$0x33]
        %v5171 = vld [vmem:[%s65 + $0x98] sm:$0x3]
        %v5174 = vunpack.c.l.b16 %v5144
        %v5175 = vunpack.c.l.b16 %v5145
        %v5176 = vpack.c.b16 %v5175, %v5174
        %v5203 = vunpack.c.l.b16 %v5146
        %v5204 = vunpack.c.h.b16 %v5146
        %v5205 = vunpack.c.l.b16 %v5147
        %v5206 = vunpack.c.l.b16 %v5148
        %v5207 = vunpack.c.h.b16 %v5148
        %v5208 = vunpack.c.l.b16 %v5149
        %v5209 = vunpack.c.l.b16 %v5150
        %v5210 = vunpack.c.h.b16 %v5150
        %v5211 = vunpack.c.l.b16 %v5151
        %v5212 = vunpack.c.l.b16 %v5152
        %v5213 = vunpack.c.h.b16 %v5152
        %v5214 = vunpack.c.l.b16 %v5153
        %v5215 = vunpack.c.l.b16 %v5154
        %v5216 = vunpack.c.h.b16 %v5154
        %v5217 = vunpack.c.l.b16 %v5155
        %v5218 = vunpack.c.l.b16 %v5156
        %v5219 = vunpack.c.h.b16 %v5156
        %v5220 = vunpack.c.l.b16 %v5157
        %v5221 = vunpack.c.l.b16 %v5158
        %v5222 = vunpack.c.h.b16 %v5158
        %v5223 = vunpack.c.l.b16 %v5159
        %v5224 = vunpack.c.l.b16 %v5160
        %v5225 = vunpack.c.h.b16 %v5160
        %v5226 = vunpack.c.l.b16 %v5161
        %v5227 = vunpack.c.l.b16 %v5162
        %v5228 = vunpack.c.h.b16 %v5162
        %v5229 = vunpack.c.l.b16 %v5163
        %v5230 = vunpack.c.l.b16 %v5164
        %v5231 = vunpack.c.h.b16 %v5164
        %v5232 = vunpack.c.l.b16 %v5165
        %v5233 = vunpack.c.l.b16 %v5166
        %v5234 = vunpack.c.h.b16 %v5166
        %v5235 = vunpack.c.l.b16 %v5167
        %v5236 = vunpack.c.l.b16 %v5168
        %v5237 = vunpack.c.h.b16 %v5168
        %v5238 = vunpack.c.l.b16 %v5169
        %v5239 = vunpack.c.l.b16 %v5170
        %v5240 = vunpack.c.h.b16 %v5170
        %v5241 = vunpack.c.l.b16 %v5171
        %v5242 = vpack.c.b16 %v5206, %v5203
        %v5243 = vpack.c.b16 %v5207, %v5204
        %v5244 = vpack.c.b16 %v5208, %v5205
        %v5245 = vpack.c.b16 %v5212, %v5209
        %v5246 = vpack.c.b16 %v5213, %v5210
        %v5247 = vpack.c.b16 %v5214, %v5211
        %v5248 = vpack.c.b16 %v5218, %v5215
        %v5249 = vpack.c.b16 %v5219, %v5216
        %v5250 = vpack.c.b16 %v5220, %v5217
        %v5251 = vpack.c.b16 %v5224, %v5221
        %v5252 = vpack.c.b16 %v5225, %v5222
        %v5253 = vpack.c.b16 %v5226, %v5223
        %v5254 = vpack.c.b16 %v5230, %v5227
        %v5255 = vpack.c.b16 %v5231, %v5228
        %v5256 = vpack.c.b16 %v5232, %v5229
        %v5257 = vpack.c.b16 %v5236, %v5233
        %v5258 = vpack.c.b16 %v5237, %v5234
        %v5259 = vpack.c.b16 %v5238, %v5235
        %v5260 = vpack.c.b16 %v5239, %v5239
        %v5261 = vpack.c.b16 %v5240, %v5240
        %v5262 = vpack.c.b16 %v5241, %v5241
        %v5282 = vsel %vm2515, %v5176, 0
        %v5285 = vsel %vm2222, %v5260, 0
        %v5288 = vsel %vm2222, %v5261, 0
        %v5291 = vsel %vm2222, %v5262, 0
        %5293 = vmatpush.bf16.msra.mxu0 0
        %5294 = vmatpush.bf16.msra.mxu0 %v5285
        %5295 = vmatpush.bf16.msra.mxu0 %v5257
        %5296 = vmatpush.bf16.msra.mxu0 %v5254
        %5297 = vmatpush.bf16.msra.mxu0 %v5251
        %5298 = vmatpush.bf16.msra.mxu0 %v5248
        %5299 = vmatpush.bf16.msra.mxu0 %v5245
        %5300 = vmatpush.bf16.msra.mxu0 %v5242
        %5301 = vmatmul.bf16.gmra.mxu0 %v5282
        %v5302 = vpop.f32.mrf.mxu0
        %v5303 = vadd.f32 0.0, %v5302
        %v5304 = vpop.f32.mrf.mxu0
        %v5305 = vadd.f32 0.0, %v5304
        %5306 = vdwg.mxu0
        %5307 = vmatpush.bf16.msra.mxu0 0
        %5308 = vmatpush.bf16.msra.mxu0 %v5288
        %5309 = vmatpush.bf16.msra.mxu0 %v5258
        %5310 = vmatpush.bf16.msra.mxu0 %v5255
        %5311 = vmatpush.bf16.msra.mxu0 %v5252
        %5312 = vmatpush.bf16.msra.mxu0 %v5249
        %5313 = vmatpush.bf16.msra.mxu0 %v5246
        %5314 = vmatpush.bf16.msra.mxu0 %v5243
        %5315 = vmatmul.bf16.gmra.mxu0 %v5282
        %v5316 = vpop.f32.mrf.mxu0
        %v5317 = vadd.f32 0.0, %v5316
        %v5318 = vpop.f32.mrf.mxu0
        %v5319 = vadd.f32 0.0, %v5318
        %5320 = vdwg.mxu0
        %5321 = vmatpush.bf16.msra.mxu0 0
        %5322 = vmatpush.bf16.msra.mxu0 %v5291
        %5323 = vmatpush.bf16.msra.mxu0 %v5259
        %5324 = vmatpush.bf16.msra.mxu0 %v5256
        %5325 = vmatpush.bf16.msra.mxu0 %v5253
        %5326 = vmatpush.bf16.msra.mxu0 %v5250
        %5327 = vmatpush.bf16.msra.mxu0 %v5247
        %5328 = vmatpush.bf16.msra.mxu0 %v5244
        %5329 = vmatmul.bf16.gmra.mxu0 %v5282
        %v5330 = vpop.f32.mrf.mxu0
        %v5331 = vadd.f32 0.0, %v5330
        %v5332 = vpop.f32.mrf.mxu0
        %v5333 = vadd.f32 0.0, %v5332
        %5334 = vdwg.mxu0
        %v5335 = vpack.c.bf16 %v5317, %v5303
        %v5336 = vpack.c.bf16 %v5331, %v5331
        %v5337 = vpack.c.bf16 %v5319, %v5305
        %v5338 = vpack.c.bf16 %v5333, %v5333
        %5339 = vst [vmem:[#allocation15 + $0x4] sm:$0xff] %v5335
        %5340 = vst.msk [vmem:[#allocation15 + $0xc] sm:$0xf] %vm1957, %v5336
        %5341 = vst [vmem:[#allocation15 + $0x18] sm:$0xff] %v5337
        %5342 = vst.msk [vmem:[#allocation15 + $0x20] sm:$0xf] %vm1957, %v5338
        %v5343 = vld [vmem:[#allocation15] sm:$0xff]
        %v5344 = vld [vmem:[#allocation15 + $0x8] sm:$0xff]
        %v5345 = vld [vmem:[#allocation15 + $0x14] sm:$0xff]
        %v5346 = vld [vmem:[#allocation15 + $0x1c] sm:$0xff]
        %v5347 = vld [vmem:[#allocation15 + $0x4] sm:$0xff]
        %v5348 = vld [vmem:[#allocation15 + $0xc] sm:$0xf]
        %v5349 = vld [vmem:[#allocation15 + $0x18] sm:$0xff]
        %v5350 = vld [vmem:[#allocation15 + $0x20] sm:$0xf]
        %v5355 = vunpack.c.l.b16 %v5343
        %v5356 = vunpack.c.h.b16 %v5343
        %v5357 = vunpack.c.l.b16 %v5344
        %v5358 = vunpack.c.h.b16 %v5344
        %v5359 = vunpack.c.l.b16 %v5345
        %v5360 = vunpack.c.h.b16 %v5345
        %v5361 = vunpack.c.l.b16 %v5346
        %v5362 = vunpack.c.h.b16 %v5346
        %v5363 = vpack.c.b16 %v5359, %v5355
        %v5364 = vpack.c.b16 %v5360, %v5356
        %v5365 = vpack.c.b16 %v5361, %v5357
        %v5366 = vpack.c.b16 %v5362, %v5358
        %5367 = vrot.lane.b32.xlu0 %v5363, 127
        %v5368 = vpop.permute.xlu0 %5367
        %5369 = vrot.lane.b32.xlu0 %v5364, 127
        %v5370 = vpop.permute.xlu0 %5369
        %5371 = vrot.lane.b32.xlu0 %v5365, 127
        %v5372 = vpop.permute.xlu0 %5371
        %5373 = vrot.lane.b32.xlu0 %v5366, 127
        %v5374 = vpop.permute.xlu0 %5373
        %v5375 = vsel %vm1588, %v5368, %v5370
        %v5376 = vsel %vm1588, %v5370, %v5372
        %v5377 = vsel %vm1588, %v5372, %v5374
        %5378 = vrot.lane.b32.xlu0 %v5363, 126
        %v5379 = vpop.permute.xlu0 %5378
        %5380 = vrot.lane.b32.xlu0 %v5364, 126
        %v5381 = vpop.permute.xlu0 %5380
        %5382 = vrot.lane.b32.xlu0 %v5365, 126
        %v5383 = vpop.permute.xlu0 %5382
        %5384 = vrot.lane.b32.xlu0 %v5366, 126
        %v5385 = vpop.permute.xlu0 %5384
        %v5386 = vsel %vm1600, %v5379, %v5381
        %v5387 = vsel %vm1600, %v5381, %v5383
        %v5388 = vsel %vm1600, %v5383, %v5385
        %5389 = vrot.lane.b32.xlu0 %v5363, 110
        %v5390 = vpop.permute.xlu0 %5389
        %5391 = vrot.lane.b32.xlu0 %v5364, 110
        %v5392 = vpop.permute.xlu0 %5391
        %5393 = vrot.lane.b32.xlu0 %v5365, 110
        %v5394 = vpop.permute.xlu0 %5393
        %5395 = vrot.lane.b32.xlu0 %v5366, 110
        %v5396 = vpop.permute.xlu0 %5395
        %v5397 = vsel %vm1612, %v5390, %v5392
        %v5398 = vsel %vm1612, %v5392, %v5394
        %v5399 = vsel %vm1612, %v5394, %v5396
        %v5404 = vunpack.c.l.b16 %v5347
        %v5405 = vunpack.c.h.b16 %v5347
        %v5406 = vunpack.c.l.b16 %v5348
        %v5407 = vunpack.c.l.b16 %v5349
        %v5408 = vunpack.c.h.b16 %v5349
        %v5409 = vunpack.c.l.b16 %v5350
        %v5410 = vpack.c.b16 %v5407, %v5404
        %v5411 = vpack.c.b16 %v5408, %v5405
        %v5412 = vpack.c.b16 %v5409, %v5406
        %5413 = vrot.lane.b32.xlu0 %v5410, 109
        %v5414 = vpop.permute.xlu0 %5413
        %5415 = vrot.lane.b32.xlu0 %v5411, 109
        %v5416 = vpop.permute.xlu0 %5415
        %5417 = vrot.lane.b32.xlu0 %v5412, 109
        %v5418 = vpop.permute.xlu0 %5417
        %v5419 = vsel %vm1635, %v5414, %v5416
        %v5420 = vsel %vm1635, %v5416, %v5418
        %5421 = vrot.lane.b32.xlu0 %v5410, 108
        %v5422 = vpop.permute.xlu0 %5421
        %5423 = vrot.lane.b32.xlu0 %v5411, 108
        %v5424 = vpop.permute.xlu0 %5423
        %5425 = vrot.lane.b32.xlu0 %v5412, 108
        %v5426 = vpop.permute.xlu0 %5425
        %v5427 = vsel %vm1644, %v5422, %v5424
        %v5428 = vsel %vm1644, %v5424, %v5426
        %5429 = vrot.lane.b32.xlu0 %v5410, 92
        %v5430 = vpop.permute.xlu0 %5429
        %5431 = vrot.lane.b32.xlu0 %v5411, 92
        %v5432 = vpop.permute.xlu0 %5431
        %5433 = vrot.lane.b32.xlu0 %v5412, 92
        %v5434 = vpop.permute.xlu0 %5433
        %v5435 = vsel %vm1653, %v5430, %v5432
        %v5436 = vsel %vm1653, %v5432, %v5434
        %5437 = vrot.lane.b32.xlu0 %v5410, 91
        %v5438 = vpop.permute.xlu0 %5437
        %5439 = vrot.lane.b32.xlu0 %v5411, 91
        %v5440 = vpop.permute.xlu0 %5439
        %5441 = vrot.lane.b32.xlu0 %v5412, 91
        %v5442 = vpop.permute.xlu0 %5441
        %v5443 = vsel %vm1662, %v5438, %v5440
        %v5444 = vsel %vm1662, %v5440, %v5442
        %5445 = vrot.lane.b32.xlu0 %v5410, 90
        %v5446 = vpop.permute.xlu0 %5445
        %5447 = vrot.lane.b32.xlu0 %v5411, 90
        %v5448 = vpop.permute.xlu0 %5447
        %5449 = vrot.lane.b32.xlu0 %v5412, 90
        %v5450 = vpop.permute.xlu0 %5449
        %v5451 = vsel %vm1671, %v5446, %v5448
        %v5452 = vsel %vm1671, %v5448, %v5450
        %v5453 = vld [vmem:[#allocation40] sm:$0xff]
        %v5454 = vld [vmem:[#allocation40 + $0x8] sm:$0xff]
        %v5457 = vunpack.c.l.b16 %v5453
        %v5458 = vunpack.c.h.b16 %v5453
        %v5459 = vunpack.c.l.b16 %v5454
        %v5460 = vunpack.c.h.b16 %v5454
        %v5461 = vpack.c.b16 %v5459, %v5457
        %v5462 = vpack.c.b16 %v5460, %v5458
        %5464 = vrot.lane.b32.xlu0 %v5363, 19
        %v5465 = vpop.permute.xlu0 %5464
        %5466 = vrot.lane.b32.xlu0 %v5364, 19
        %v5467 = vpop.permute.xlu0 %5466
        %5468 = vrot.lane.b32.xlu0 %v5365, 19
        %v5469 = vpop.permute.xlu0 %5468
        %5470 = vrot.lane.b32.xlu0 %v5366, 19
        %v5471 = vpop.permute.xlu0 %5470
        %5472 = vrot.lane.b32.xlu0 %v5375, 19
        %v5473 = vpop.permute.xlu0 %5472
        %5474 = vrot.lane.b32.xlu0 %v5376, 19
        %v5475 = vpop.permute.xlu0 %5474
        %5476 = vrot.lane.b32.xlu0 %v5377, 19
        %v5477 = vpop.permute.xlu0 %5476
        %5478 = vrot.lane.b32.xlu0 %v5374, 19
        %v5479 = vpop.permute.xlu0 %5478
        %5480 = vrot.lane.b32.xlu0 %v5386, 19
        %v5481 = vpop.permute.xlu0 %5480
        %5482 = vrot.lane.b32.xlu0 %v5387, 19
        %v5483 = vpop.permute.xlu0 %5482
        %5484 = vrot.lane.b32.xlu0 %v5388, 19
        %v5485 = vpop.permute.xlu0 %5484
        %5486 = vrot.lane.b32.xlu0 %v5385, 19
        %v5487 = vpop.permute.xlu0 %5486
        %5488 = vrot.lane.b32.xlu0 %v5397, 19
        %v5489 = vpop.permute.xlu0 %5488
        %5490 = vrot.lane.b32.xlu0 %v5398, 19
        %v5491 = vpop.permute.xlu0 %5490
        %5492 = vrot.lane.b32.xlu0 %v5399, 19
        %v5493 = vpop.permute.xlu0 %5492
        %5494 = vrot.lane.b32.xlu0 %v5396, 19
        %v5495 = vpop.permute.xlu0 %5494
        %5496 = vrot.lane.b32.xlu0 %v5414, 19
        %v5497 = vpop.permute.xlu0 %5496
        %5498 = vrot.lane.b32.xlu0 %v5419, 19
        %v5499 = vpop.permute.xlu0 %5498
        %5500 = vrot.lane.b32.xlu0 %v5420, 19
        %v5501 = vpop.permute.xlu0 %5500
        %5502 = vrot.lane.b32.xlu0 %v5418, 19
        %v5503 = vpop.permute.xlu0 %5502
        %5504 = vrot.lane.b32.xlu0 %v5422, 19
        %v5505 = vpop.permute.xlu0 %5504
        %5506 = vrot.lane.b32.xlu0 %v5427, 19
        %v5507 = vpop.permute.xlu0 %5506
        %5508 = vrot.lane.b32.xlu0 %v5428, 19
        %v5509 = vpop.permute.xlu0 %5508
        %5510 = vrot.lane.b32.xlu0 %v5426, 19
        %v5511 = vpop.permute.xlu0 %5510
        %5512 = vrot.lane.b32.xlu0 %v5430, 19
        %v5513 = vpop.permute.xlu0 %5512
        %5514 = vrot.lane.b32.xlu0 %v5435, 19
        %v5515 = vpop.permute.xlu0 %5514
        %5516 = vrot.lane.b32.xlu0 %v5436, 19
        %v5517 = vpop.permute.xlu0 %5516
        %5518 = vrot.lane.b32.xlu0 %v5434, 19
        %v5519 = vpop.permute.xlu0 %5518
        %5520 = vrot.lane.b32.xlu0 %v5438, 19
        %v5521 = vpop.permute.xlu0 %5520
        %5522 = vrot.lane.b32.xlu0 %v5443, 19
        %v5523 = vpop.permute.xlu0 %5522
        %5524 = vrot.lane.b32.xlu0 %v5444, 19
        %v5525 = vpop.permute.xlu0 %5524
        %5526 = vrot.lane.b32.xlu0 %v5442, 19
        %v5527 = vpop.permute.xlu0 %5526
        %5528 = vrot.lane.b32.xlu0 %v5446, 19
        %v5529 = vpop.permute.xlu0 %5528
        %5530 = vrot.lane.b32.xlu0 %v5451, 19
        %v5531 = vpop.permute.xlu0 %5530
        %5532 = vrot.lane.b32.xlu0 %v5452, 19
        %v5533 = vpop.permute.xlu0 %5532
        %5534 = vrot.lane.b32.xlu0 %v5450, 19
        %v5535 = vpop.permute.xlu0 %5534
        %v5536 = vsel %vm1757, %v5465, %v5467
        %v5537 = vsel %vm1757, %v5467, %v5469
        %v5538 = vsel %vm1757, %v5469, %v5471
        %v5539 = vsel %vm1757, %v5473, %v5475
        %v5540 = vsel %vm1757, %v5475, %v5477
        %v5541 = vsel %vm1757, %v5477, %v5479
        %v5542 = vsel %vm1757, %v5481, %v5483
        %v5543 = vsel %vm1757, %v5483, %v5485
        %v5544 = vsel %vm1757, %v5485, %v5487
        %v5545 = vsel %vm1757, %v5489, %v5491
        %v5546 = vsel %vm1757, %v5491, %v5493
        %v5547 = vsel %vm1757, %v5493, %v5495
        %v5548 = vsel %vm1757, %v5497, %v5499
        %v5549 = vsel %vm1757, %v5499, %v5501
        %v5550 = vsel %vm1757, %v5501, %v5503
        %v5551 = vsel %vm1757, %v5505, %v5507
        %v5552 = vsel %vm1757, %v5507, %v5509
        %v5553 = vsel %vm1757, %v5509, %v5511
        %v5554 = vsel %vm1757, %v5513, %v5515
        %v5555 = vsel %vm1757, %v5515, %v5517
        %v5556 = vsel %vm1757, %v5517, %v5519
        %v5557 = vsel %vm1757, %v5521, %v5523
        %v5558 = vsel %vm1757, %v5523, %v5525
        %v5559 = vsel %vm1757, %v5525, %v5527
        %v5560 = vsel %vm1757, %v5529, %v5531
        %v5561 = vsel %vm1757, %v5531, %v5533
        %v5562 = vsel %vm1757, %v5533, %v5535
        %v5591 = vsel %vm1812, %v5462, 0
        %5593 = vmatpush.bf16.msra.mxu0 %v5557
        %5594 = vmatpush.bf16.msra.mxu0 %v5554
        %5595 = vmatpush.bf16.msra.mxu0 %v5551
        %5596 = vmatpush.bf16.msra.mxu0 %v5548
        %5597 = vmatpush.bf16.msra.mxu0 %v5545
        %5598 = vmatpush.bf16.msra.mxu0 %v5542
        %5599 = vmatpush.bf16.msra.mxu0 %v5539
        %5600 = vmatpush.bf16.msra.mxu0 %v5536
        %5601 = vmatmul.bf16.gmra.mxu0 %v5461
        %v5602 = vpop.f32.mrf.mxu0
        %v5603 = vadd.f32 0.0, %v5602
        %v5604 = vpop.f32.mrf.mxu0
        %v5605 = vadd.f32 0.0, %v5604
        %5606 = vdwg.mxu0
        %5607 = vmatpush.bf16.msra.mxu0 0
        %5608 = vmatpush.bf16.msra.mxu0 0
        %5609 = vmatpush.bf16.msra.mxu0 0
        %5610 = vmatpush.bf16.msra.mxu0 0
        %5611 = vmatpush.bf16.msra.mxu0 0
        %5612 = vmatpush.bf16.msra.mxu0 0
        %5613 = vmatpush.bf16.msra.mxu0 0
        %5614 = vmatpush.bf16.msra.mxu0 %v5560
        %5615 = vmatmul.bf16.gmra.mxu0 %v5591
        %v5616 = vpop.f32.mrf.mxu0
        %v5617 = vadd.f32 %v5603, %v5616
        %v5618 = vpop.f32.mrf.mxu0
        %v5619 = vadd.f32 %v5605, %v5618
        %5620 = vdwg.mxu0
        %5621 = vmatpush.bf16.msra.mxu0 %v5558
        %5622 = vmatpush.bf16.msra.mxu0 %v5555
        %5623 = vmatpush.bf16.msra.mxu0 %v5552
        %5624 = vmatpush.bf16.msra.mxu0 %v5549
        %5625 = vmatpush.bf16.msra.mxu0 %v5546
        %5626 = vmatpush.bf16.msra.mxu0 %v5543
        %5627 = vmatpush.bf16.msra.mxu0 %v5540
        %5628 = vmatpush.bf16.msra.mxu0 %v5537
        %5629 = vmatmul.bf16.gmra.mxu0 %v5461
        %v5630 = vpop.f32.mrf.mxu0
        %v5631 = vadd.f32 0.0, %v5630
        %v5632 = vpop.f32.mrf.mxu0
        %v5633 = vadd.f32 0.0, %v5632
        %5634 = vdwg.mxu0
        %5635 = vmatpush.bf16.msra.mxu0 0
        %5636 = vmatpush.bf16.msra.mxu0 0
        %5637 = vmatpush.bf16.msra.mxu0 0
        %5638 = vmatpush.bf16.msra.mxu0 0
        %5639 = vmatpush.bf16.msra.mxu0 0
        %5640 = vmatpush.bf16.msra.mxu0 0
        %5641 = vmatpush.bf16.msra.mxu0 0
        %5642 = vmatpush.bf16.msra.mxu0 %v5561
        %5643 = vmatmul.bf16.gmra.mxu0 %v5591
        %v5644 = vpop.f32.mrf.mxu0
        %v5645 = vadd.f32 %v5631, %v5644
        %v5646 = vpop.f32.mrf.mxu0
        %v5647 = vadd.f32 %v5633, %v5646
        %5648 = vdwg.mxu0
        %5649 = vmatpush.bf16.msra.mxu0 %v5559
        %5650 = vmatpush.bf16.msra.mxu0 %v5556
        %5651 = vmatpush.bf16.msra.mxu0 %v5553
        %5652 = vmatpush.bf16.msra.mxu0 %v5550
        %5653 = vmatpush.bf16.msra.mxu0 %v5547
        %5654 = vmatpush.bf16.msra.mxu0 %v5544
        %5655 = vmatpush.bf16.msra.mxu0 %v5541
        %5656 = vmatpush.bf16.msra.mxu0 %v5538
        %5657 = vmatmul.bf16.gmra.mxu0 %v5461
        %v5658 = vpop.f32.mrf.mxu0
        %v5659 = vadd.f32 0.0, %v5658
        %v5660 = vpop.f32.mrf.mxu0
        %v5661 = vadd.f32 0.0, %v5660
        %5662 = vdwg.mxu0
        %5663 = vmatpush.bf16.msra.mxu0 0
        %5664 = vmatpush.bf16.msra.mxu0 0
        %5665 = vmatpush.bf16.msra.mxu0 0
        %5666 = vmatpush.bf16.msra.mxu0 0
        %5667 = vmatpush.bf16.msra.mxu0 0
        %5668 = vmatpush.bf16.msra.mxu0 0
        %5669 = vmatpush.bf16.msra.mxu0 0
        %5670 = vmatpush.bf16.msra.mxu0 %v5562
        %5671 = vmatmul.bf16.gmra.mxu0 %v5591
        %v5672 = vpop.f32.mrf.mxu0
        %v5673 = vadd.f32 %v5659, %v5672
        %v5674 = vpop.f32.mrf.mxu0
        %v5675 = vadd.f32 %v5661, %v5674
        %5676 = vdwg.mxu0
        %v5677 = vld [vmem:[%s37] sm:$0xff]
        %v5678 = vld [vmem:[%s37 + $0x8] sm:$0xff]
        %5680 = vset.pattern.permute.xlu0 0
        %5681 = vperm.xlu0 %5680, %v5677
        %v5682 = vpop.permute.xlu0 %5681
        %5685 = vset.pattern.permute.xlu0 0
        %5686 = vperm.xlu0 %5685, %v5678
        %v5687 = vpop.permute.xlu0 %5686
        %v5689 = vmul.f32 %v5617, %v5682
        %v5690 = vmul.f32 %v5645, %v5682
        %v5691 = vmul.f32 %v5673, %v5682
        %v5692 = vmul.f32 %v5619, %v5687
        %v5693 = vmul.f32 %v5647, %v5687
        %v5694 = vmul.f32 %v5675, %v5687
        %5695 = vset.pattern.permute.xlu0 1
        %5696 = vperm.xlu0 %5695, %v5677
        %v5697 = vpop.permute.xlu0 %5696
        %5699 = vset.pattern.permute.xlu0 1
        %5700 = vperm.xlu0 %5699, %v5678
        %v5701 = vpop.permute.xlu0 %5700
        %v5703 = vadd.f32 %v5689, %v5697
        %v5704 = vadd.f32 %v5690, %v5697
        %v5705 = vadd.f32 %v5691, %v5697
        %v5706 = vadd.f32 %v5692, %v5701
        %v5707 = vadd.f32 %v5693, %v5701
        %v5708 = vadd.f32 %v5694, %v5701
        %v5709 = vld [vmem:[#allocation46] sm:$0x7]
        %v5711 = vperm.slane %v5709, 0
        %v5712 = vperm.slane %v5709, 1
        %v5713 = vperm.slane %v5709, 2
        %v5717 = vmul.f32 %v5703, %v5711
        %v5718 = vmul.f32 %v5704, %v5712
        %v5719 = vmul.f32 %v5705, %v5713
        %v5720 = vmul.f32 %v5706, %v5711
        %v5721 = vmul.f32 %v5707, %v5712
        %v5722 = vmul.f32 %v5708, %v5713
        %v5723 = vpack.c.bf16 %v5718, %v5717
        %v5724 = vpack.c.bf16 %v5719, %v5719
        %v5725 = vpack.c.bf16 %v5721, %v5720
        %v5726 = vpack.c.bf16 %v5722, %v5722
        %5727 = vst [vmem:[#allocation16 + $0x4] sm:$0xff] %v5723
        %5728 = vst.msk [vmem:[#allocation16 + $0xc] sm:$0xf] %vm1957, %v5724
        %5729 = vst [vmem:[#allocation16 + $0x18] sm:$0xff] %v5725
        %5730 = vst.msk [vmem:[#allocation16 + $0x20] sm:$0xf] %vm1957, %v5726
        %v5731 = vld [vmem:[#allocation16] sm:$0xff]
        %v5732 = vld [vmem:[#allocation16 + $0x8] sm:$0xff]
        %v5733 = vld [vmem:[#allocation16 + $0x14] sm:$0xff]
        %v5734 = vld [vmem:[#allocation16 + $0x1c] sm:$0xff]
        %v5735 = vld [vmem:[#allocation16 + $0x4] sm:$0xff]
        %v5736 = vld [vmem:[#allocation16 + $0xc] sm:$0xf]
        %v5737 = vld [vmem:[#allocation16 + $0x18] sm:$0xff]
        %v5738 = vld [vmem:[#allocation16 + $0x20] sm:$0xf]
        %v5739 = vld [vmem:[#allocation2] sm:$0xff]
        %v5740 = vld [vmem:[#allocation2 + $0x8] sm:$0xff]
        %v5741 = vld [vmem:[#allocation2 + $0x14] sm:$0xff]
        %v5742 = vld [vmem:[#allocation2 + $0x1c] sm:$0xff]
        %v5743 = vld [vmem:[#allocation2 + $0x4] sm:$0xff]
        %v5744 = vld [vmem:[#allocation2 + $0xc] sm:$0xf]
        %v5745 = vld [vmem:[#allocation2 + $0x18] sm:$0xff]
        %v5746 = vld [vmem:[#allocation2 + $0x20] sm:$0xf]
        %v5751 = vunpack.c.l.b16 %v5731
        %v5752 = vunpack.c.h.b16 %v5731
        %v5753 = vunpack.c.l.b16 %v5732
        %v5754 = vunpack.c.h.b16 %v5732
        %v5755 = vunpack.c.l.b16 %v5733
        %v5756 = vunpack.c.h.b16 %v5733
        %v5757 = vunpack.c.l.b16 %v5734
        %v5758 = vunpack.c.h.b16 %v5734
        %v5759 = vpack.c.b16 %v5755, %v5751
        %v5760 = vpack.c.b16 %v5756, %v5752
        %v5761 = vpack.c.b16 %v5757, %v5753
        %v5762 = vpack.c.b16 %v5758, %v5754
        %5763 = vrot.lane.b32.xlu0 %v5759, 127
        %v5764 = vpop.permute.xlu0 %5763
        %5765 = vrot.lane.b32.xlu0 %v5760, 127
        %v5766 = vpop.permute.xlu0 %5765
        %5767 = vrot.lane.b32.xlu0 %v5761, 127
        %v5768 = vpop.permute.xlu0 %5767
        %5769 = vrot.lane.b32.xlu0 %v5762, 127
        %v5770 = vpop.permute.xlu0 %5769
        %v5771 = vsel %vm1588, %v5764, %v5766
        %v5772 = vsel %vm1588, %v5766, %v5768
        %v5773 = vsel %vm1588, %v5768, %v5770
        %5774 = vrot.lane.b32.xlu0 %v5759, 126
        %v5775 = vpop.permute.xlu0 %5774
        %5776 = vrot.lane.b32.xlu0 %v5760, 126
        %v5777 = vpop.permute.xlu0 %5776
        %5778 = vrot.lane.b32.xlu0 %v5761, 126
        %v5779 = vpop.permute.xlu0 %5778
        %5780 = vrot.lane.b32.xlu0 %v5762, 126
        %v5781 = vpop.permute.xlu0 %5780
        %v5782 = vsel %vm1600, %v5775, %v5777
        %v5783 = vsel %vm1600, %v5777, %v5779
        %v5784 = vsel %vm1600, %v5779, %v5781
        %5785 = vrot.lane.b32.xlu0 %v5759, 110
        %v5786 = vpop.permute.xlu0 %5785
        %5787 = vrot.lane.b32.xlu0 %v5760, 110
        %v5788 = vpop.permute.xlu0 %5787
        %5789 = vrot.lane.b32.xlu0 %v5761, 110
        %v5790 = vpop.permute.xlu0 %5789
        %5791 = vrot.lane.b32.xlu0 %v5762, 110
        %v5792 = vpop.permute.xlu0 %5791
        %v5793 = vsel %vm1612, %v5786, %v5788
        %v5794 = vsel %vm1612, %v5788, %v5790
        %v5795 = vsel %vm1612, %v5790, %v5792
        %v5800 = vunpack.c.l.b16 %v5735
        %v5801 = vunpack.c.h.b16 %v5735
        %v5802 = vunpack.c.l.b16 %v5736
        %v5803 = vunpack.c.l.b16 %v5737
        %v5804 = vunpack.c.h.b16 %v5737
        %v5805 = vunpack.c.l.b16 %v5738
        %v5806 = vpack.c.b16 %v5803, %v5800
        %v5807 = vpack.c.b16 %v5804, %v5801
        %v5808 = vpack.c.b16 %v5805, %v5802
        %5809 = vrot.lane.b32.xlu0 %v5806, 109
        %v5810 = vpop.permute.xlu0 %5809
        %5811 = vrot.lane.b32.xlu0 %v5807, 109
        %v5812 = vpop.permute.xlu0 %5811
        %5813 = vrot.lane.b32.xlu0 %v5808, 109
        %v5814 = vpop.permute.xlu0 %5813
        %v5815 = vsel %vm1635, %v5810, %v5812
        %v5816 = vsel %vm1635, %v5812, %v5814
        %5817 = vrot.lane.b32.xlu0 %v5806, 108
        %v5818 = vpop.permute.xlu0 %5817
        %5819 = vrot.lane.b32.xlu0 %v5807, 108
        %v5820 = vpop.permute.xlu0 %5819
        %5821 = vrot.lane.b32.xlu0 %v5808, 108
        %v5822 = vpop.permute.xlu0 %5821
        %v5823 = vsel %vm1644, %v5818, %v5820
        %v5824 = vsel %vm1644, %v5820, %v5822
        %5825 = vrot.lane.b32.xlu0 %v5806, 92
        %v5826 = vpop.permute.xlu0 %5825
        %5827 = vrot.lane.b32.xlu0 %v5807, 92
        %v5828 = vpop.permute.xlu0 %5827
        %5829 = vrot.lane.b32.xlu0 %v5808, 92
        %v5830 = vpop.permute.xlu0 %5829
        %v5831 = vsel %vm1653, %v5826, %v5828
        %v5832 = vsel %vm1653, %v5828, %v5830
        %5833 = vrot.lane.b32.xlu0 %v5806, 91
        %v5834 = vpop.permute.xlu0 %5833
        %5835 = vrot.lane.b32.xlu0 %v5807, 91
        %v5836 = vpop.permute.xlu0 %5835
        %5837 = vrot.lane.b32.xlu0 %v5808, 91
        %v5838 = vpop.permute.xlu0 %5837
        %v5839 = vsel %vm1662, %v5834, %v5836
        %v5840 = vsel %vm1662, %v5836, %v5838
        %5841 = vrot.lane.b32.xlu0 %v5806, 90
        %v5842 = vpop.permute.xlu0 %5841
        %5843 = vrot.lane.b32.xlu0 %v5807, 90
        %v5844 = vpop.permute.xlu0 %5843
        %5845 = vrot.lane.b32.xlu0 %v5808, 90
        %v5846 = vpop.permute.xlu0 %5845
        %v5847 = vsel %vm1671, %v5842, %v5844
        %v5848 = vsel %vm1671, %v5844, %v5846
        %v5853 = vunpack.c.l.b16 %v5739
        %v5854 = vunpack.c.h.b16 %v5739
        %v5855 = vunpack.c.l.b16 %v5740
        %v5856 = vunpack.c.h.b16 %v5740
        %v5857 = vunpack.c.l.b16 %v5741
        %v5858 = vunpack.c.h.b16 %v5741
        %v5859 = vunpack.c.l.b16 %v5742
        %v5860 = vunpack.c.h.b16 %v5742
        %v5861 = vpack.c.b16 %v5857, %v5853
        %v5862 = vpack.c.b16 %v5858, %v5854
        %v5863 = vpack.c.b16 %v5859, %v5855
        %v5864 = vpack.c.b16 %v5860, %v5856
        %5865 = vrot.lane.b32.xlu0 %v5861, 127
        %v5866 = vpop.permute.xlu0 %5865
        %5867 = vrot.lane.b32.xlu0 %v5862, 127
        %v5868 = vpop.permute.xlu0 %5867
        %5869 = vrot.lane.b32.xlu0 %v5863, 127
        %v5870 = vpop.permute.xlu0 %5869
        %5871 = vrot.lane.b32.xlu0 %v5864, 127
        %v5872 = vpop.permute.xlu0 %5871
        %v5873 = vsel %vm1588, %v5866, %v5868
        %v5874 = vsel %vm1588, %v5868, %v5870
        %v5875 = vsel %vm1588, %v5870, %v5872
        %5876 = vrot.lane.b32.xlu0 %v5861, 126
        %v5877 = vpop.permute.xlu0 %5876
        %5878 = vrot.lane.b32.xlu0 %v5862, 126
        %v5879 = vpop.permute.xlu0 %5878
        %5880 = vrot.lane.b32.xlu0 %v5863, 126
        %v5881 = vpop.permute.xlu0 %5880
        %5882 = vrot.lane.b32.xlu0 %v5864, 126
        %v5883 = vpop.permute.xlu0 %5882
        %v5884 = vsel %vm1600, %v5877, %v5879
        %v5885 = vsel %vm1600, %v5879, %v5881
        %v5886 = vsel %vm1600, %v5881, %v5883
        %5887 = vrot.lane.b32.xlu0 %v5861, 110
        %v5888 = vpop.permute.xlu0 %5887
        %5889 = vrot.lane.b32.xlu0 %v5862, 110
        %v5890 = vpop.permute.xlu0 %5889
        %5891 = vrot.lane.b32.xlu0 %v5863, 110
        %v5892 = vpop.permute.xlu0 %5891
        %5893 = vrot.lane.b32.xlu0 %v5864, 110
        %v5894 = vpop.permute.xlu0 %5893
        %v5895 = vsel %vm1612, %v5888, %v5890
        %v5896 = vsel %vm1612, %v5890, %v5892
        %v5897 = vsel %vm1612, %v5892, %v5894
        %v5902 = vunpack.c.l.b16 %v5743
        %v5903 = vunpack.c.h.b16 %v5743
        %v5904 = vunpack.c.l.b16 %v5744
        %v5905 = vunpack.c.l.b16 %v5745
        %v5906 = vunpack.c.h.b16 %v5745
        %v5907 = vunpack.c.l.b16 %v5746
        %v5908 = vpack.c.b16 %v5905, %v5902
        %v5909 = vpack.c.b16 %v5906, %v5903
        %v5910 = vpack.c.b16 %v5907, %v5904
        %5911 = vrot.lane.b32.xlu0 %v5908, 109
        %v5912 = vpop.permute.xlu0 %5911
        %5913 = vrot.lane.b32.xlu0 %v5909, 109
        %v5914 = vpop.permute.xlu0 %5913
        %5915 = vrot.lane.b32.xlu0 %v5910, 109
        %v5916 = vpop.permute.xlu0 %5915
        %v5917 = vsel %vm1635, %v5912, %v5914
        %v5918 = vsel %vm1635, %v5914, %v5916
        %5919 = vrot.lane.b32.xlu0 %v5908, 108
        %v5920 = vpop.permute.xlu0 %5919
        %5921 = vrot.lane.b32.xlu0 %v5909, 108
        %v5922 = vpop.permute.xlu0 %5921
        %5923 = vrot.lane.b32.xlu0 %v5910, 108
        %v5924 = vpop.permute.xlu0 %5923
        %v5925 = vsel %vm1644, %v5920, %v5922
        %v5926 = vsel %vm1644, %v5922, %v5924
        %5927 = vrot.lane.b32.xlu0 %v5908, 92
        %v5928 = vpop.permute.xlu0 %5927
        %5929 = vrot.lane.b32.xlu0 %v5909, 92
        %v5930 = vpop.permute.xlu0 %5929
        %5931 = vrot.lane.b32.xlu0 %v5910, 92
        %v5932 = vpop.permute.xlu0 %5931
        %v5933 = vsel %vm1653, %v5928, %v5930
        %v5934 = vsel %vm1653, %v5930, %v5932
        %5935 = vrot.lane.b32.xlu0 %v5908, 127
        %v5936 = vpop.permute.xlu0 %5935
        %5937 = vrot.lane.b32.xlu0 %v5909, 127
        %v5938 = vpop.permute.xlu0 %5937
        %5939 = vrot.lane.b32.xlu0 %v5910, 127
        %v5940 = vpop.permute.xlu0 %5939
        %v5941 = vsel %vm1588, %v5936, %v5938
        %v5942 = vsel %vm1588, %v5938, %v5940
        %5943 = vrot.lane.b32.xlu0 %v5908, 91
        %v5944 = vpop.permute.xlu0 %5943
        %5945 = vrot.lane.b32.xlu0 %v5909, 91
        %v5946 = vpop.permute.xlu0 %5945
        %5947 = vrot.lane.b32.xlu0 %v5910, 91
        %v5948 = vpop.permute.xlu0 %5947
        %5949 = vrot.lane.b32.xlu0 %v5941, 91
        %v5950 = vpop.permute.xlu0 %5949
        %5951 = vrot.lane.b32.xlu0 %v5942, 91
        %v5952 = vpop.permute.xlu0 %5951
        %5953 = vrot.lane.b32.xlu0 %v5940, 91
        %v5954 = vpop.permute.xlu0 %5953
        %v5955 = vsel %vm1662, %v5944, %v5946
        %v5956 = vsel %vm1662, %v5946, %v5948
        %v5957 = vsel %vm1662, %v5950, %v5952
        %v5958 = vsel %vm1662, %v5952, %v5954
        %v5959 = vld [vmem:[#allocation41] sm:$0xff]
        %v5960 = vld [vmem:[#allocation41 + $0x8] sm:$0xf]
        %v5961 = vld [vmem:[#allocation41 + $0xc] sm:$0xff]
        %v5962 = vld [vmem:[#allocation41 + $0x14] sm:$0xf]
        %v5967 = vunpack.c.l.b16 %v5959
        %v5968 = vunpack.c.h.b16 %v5959
        %v5969 = vunpack.c.l.b16 %v5960
        %v5970 = vunpack.c.l.b16 %v5961
        %v5971 = vunpack.c.h.b16 %v5961
        %v5972 = vunpack.c.l.b16 %v5962
        %v5973 = vpack.c.b16 %v5970, %v5967
        %v5974 = vpack.c.b16 %v5971, %v5968
        %v5975 = vpack.c.b16 %v5972, %v5969
        %5978 = vrot.lane.b32.xlu0 %v5759, 19
        %v5979 = vpop.permute.xlu0 %5978
        %5980 = vrot.lane.b32.xlu0 %v5760, 19
        %v5981 = vpop.permute.xlu0 %5980
        %5982 = vrot.lane.b32.xlu0 %v5761, 19
        %v5983 = vpop.permute.xlu0 %5982
        %5984 = vrot.lane.b32.xlu0 %v5762, 19
        %v5985 = vpop.permute.xlu0 %5984
        %5986 = vrot.lane.b32.xlu0 %v5771, 19
        %v5987 = vpop.permute.xlu0 %5986
        %5988 = vrot.lane.b32.xlu0 %v5772, 19
        %v5989 = vpop.permute.xlu0 %5988
        %5990 = vrot.lane.b32.xlu0 %v5773, 19
        %v5991 = vpop.permute.xlu0 %5990
        %5992 = vrot.lane.b32.xlu0 %v5770, 19
        %v5993 = vpop.permute.xlu0 %5992
        %5994 = vrot.lane.b32.xlu0 %v5782, 19
        %v5995 = vpop.permute.xlu0 %5994
        %5996 = vrot.lane.b32.xlu0 %v5783, 19
        %v5997 = vpop.permute.xlu0 %5996
        %5998 = vrot.lane.b32.xlu0 %v5784, 19
        %v5999 = vpop.permute.xlu0 %5998
        %6000 = vrot.lane.b32.xlu0 %v5781, 19
        %v6001 = vpop.permute.xlu0 %6000
        %6002 = vrot.lane.b32.xlu0 %v5793, 19
        %v6003 = vpop.permute.xlu0 %6002
        %6004 = vrot.lane.b32.xlu0 %v5794, 19
        %v6005 = vpop.permute.xlu0 %6004
        %6006 = vrot.lane.b32.xlu0 %v5795, 19
        %v6007 = vpop.permute.xlu0 %6006
        %6008 = vrot.lane.b32.xlu0 %v5792, 19
        %v6009 = vpop.permute.xlu0 %6008
        %6010 = vrot.lane.b32.xlu0 %v5810, 19
        %v6011 = vpop.permute.xlu0 %6010
        %6012 = vrot.lane.b32.xlu0 %v5815, 19
        %v6013 = vpop.permute.xlu0 %6012
        %6014 = vrot.lane.b32.xlu0 %v5816, 19
        %v6015 = vpop.permute.xlu0 %6014
        %6016 = vrot.lane.b32.xlu0 %v5814, 19
        %v6017 = vpop.permute.xlu0 %6016
        %6018 = vrot.lane.b32.xlu0 %v5818, 19
        %v6019 = vpop.permute.xlu0 %6018
        %6020 = vrot.lane.b32.xlu0 %v5823, 19
        %v6021 = vpop.permute.xlu0 %6020
        %6022 = vrot.lane.b32.xlu0 %v5824, 19
        %v6023 = vpop.permute.xlu0 %6022
        %6024 = vrot.lane.b32.xlu0 %v5822, 19
        %v6025 = vpop.permute.xlu0 %6024
        %6026 = vrot.lane.b32.xlu0 %v5826, 19
        %v6027 = vpop.permute.xlu0 %6026
        %6028 = vrot.lane.b32.xlu0 %v5831, 19
        %v6029 = vpop.permute.xlu0 %6028
        %6030 = vrot.lane.b32.xlu0 %v5832, 19
        %v6031 = vpop.permute.xlu0 %6030
        %6032 = vrot.lane.b32.xlu0 %v5830, 19
        %v6033 = vpop.permute.xlu0 %6032
        %6034 = vrot.lane.b32.xlu0 %v5834, 19
        %v6035 = vpop.permute.xlu0 %6034
        %6036 = vrot.lane.b32.xlu0 %v5839, 19
        %v6037 = vpop.permute.xlu0 %6036
        %6038 = vrot.lane.b32.xlu0 %v5840, 19
        %v6039 = vpop.permute.xlu0 %6038
        %6040 = vrot.lane.b32.xlu0 %v5838, 19
        %v6041 = vpop.permute.xlu0 %6040
        %6042 = vrot.lane.b32.xlu0 %v5842, 19
        %v6043 = vpop.permute.xlu0 %6042
        %6044 = vrot.lane.b32.xlu0 %v5847, 19
        %v6045 = vpop.permute.xlu0 %6044
        %6046 = vrot.lane.b32.xlu0 %v5848, 19
        %v6047 = vpop.permute.xlu0 %6046
        %6048 = vrot.lane.b32.xlu0 %v5846, 19
        %v6049 = vpop.permute.xlu0 %6048
        %6050 = vrot.lane.b32.xlu0 %v5861, 19
        %v6051 = vpop.permute.xlu0 %6050
        %6052 = vrot.lane.b32.xlu0 %v5862, 19
        %v6053 = vpop.permute.xlu0 %6052
        %6054 = vrot.lane.b32.xlu0 %v5863, 19
        %v6055 = vpop.permute.xlu0 %6054
        %6056 = vrot.lane.b32.xlu0 %v5864, 19
        %v6057 = vpop.permute.xlu0 %6056
        %6058 = vrot.lane.b32.xlu0 %v5873, 19
        %v6059 = vpop.permute.xlu0 %6058
        %6060 = vrot.lane.b32.xlu0 %v5874, 19
        %v6061 = vpop.permute.xlu0 %6060
        %6062 = vrot.lane.b32.xlu0 %v5875, 19
        %v6063 = vpop.permute.xlu0 %6062
        %6064 = vrot.lane.b32.xlu0 %v5872, 19
        %v6065 = vpop.permute.xlu0 %6064
        %6066 = vrot.lane.b32.xlu0 %v5884, 19
        %v6067 = vpop.permute.xlu0 %6066
        %6068 = vrot.lane.b32.xlu0 %v5885, 19
        %v6069 = vpop.permute.xlu0 %6068
        %6070 = vrot.lane.b32.xlu0 %v5886, 19
        %v6071 = vpop.permute.xlu0 %6070
        %6072 = vrot.lane.b32.xlu0 %v5883, 19
        %v6073 = vpop.permute.xlu0 %6072
        %6074 = vrot.lane.b32.xlu0 %v5895, 19
        %v6075 = vpop.permute.xlu0 %6074
        %6076 = vrot.lane.b32.xlu0 %v5896, 19
        %v6077 = vpop.permute.xlu0 %6076
        %6078 = vrot.lane.b32.xlu0 %v5897, 19
        %v6079 = vpop.permute.xlu0 %6078
        %6080 = vrot.lane.b32.xlu0 %v5894, 19
        %v6081 = vpop.permute.xlu0 %6080
        %6082 = vrot.lane.b32.xlu0 %v5912, 19
        %v6083 = vpop.permute.xlu0 %6082
        %6084 = vrot.lane.b32.xlu0 %v5917, 19
        %v6085 = vpop.permute.xlu0 %6084
        %6086 = vrot.lane.b32.xlu0 %v5918, 19
        %v6087 = vpop.permute.xlu0 %6086
        %6088 = vrot.lane.b32.xlu0 %v5916, 19
        %v6089 = vpop.permute.xlu0 %6088
        %6090 = vrot.lane.b32.xlu0 %v5920, 19
        %v6091 = vpop.permute.xlu0 %6090
        %6092 = vrot.lane.b32.xlu0 %v5925, 19
        %v6093 = vpop.permute.xlu0 %6092
        %6094 = vrot.lane.b32.xlu0 %v5926, 19
        %v6095 = vpop.permute.xlu0 %6094
        %6096 = vrot.lane.b32.xlu0 %v5924, 19
        %v6097 = vpop.permute.xlu0 %6096
        %6098 = vrot.lane.b32.xlu0 %v5928, 19
        %v6099 = vpop.permute.xlu0 %6098
        %6100 = vrot.lane.b32.xlu0 %v5933, 19
        %v6101 = vpop.permute.xlu0 %6100
        %6102 = vrot.lane.b32.xlu0 %v5934, 19
        %v6103 = vpop.permute.xlu0 %6102
        %6104 = vrot.lane.b32.xlu0 %v5932, 19
        %v6105 = vpop.permute.xlu0 %6104
        %6106 = vrot.lane.b32.xlu0 %v5944, 19
        %v6107 = vpop.permute.xlu0 %6106
        %6108 = vrot.lane.b32.xlu0 %v5955, 19
        %v6109 = vpop.permute.xlu0 %6108
        %6110 = vrot.lane.b32.xlu0 %v5956, 19
        %v6111 = vpop.permute.xlu0 %6110
        %6112 = vrot.lane.b32.xlu0 %v5948, 19
        %v6113 = vpop.permute.xlu0 %6112
        %6114 = vrot.lane.b32.xlu0 %v5950, 19
        %v6115 = vpop.permute.xlu0 %6114
        %6116 = vrot.lane.b32.xlu0 %v5957, 19
        %v6117 = vpop.permute.xlu0 %6116
        %6118 = vrot.lane.b32.xlu0 %v5958, 19
        %v6119 = vpop.permute.xlu0 %6118
        %6120 = vrot.lane.b32.xlu0 %v5954, 19
        %v6121 = vpop.permute.xlu0 %6120
        %v6122 = vsel %vm1757, %v5979, %v5981
        %v6123 = vsel %vm1757, %v5981, %v5983
        %v6124 = vsel %vm1757, %v5983, %v5985
        %v6125 = vsel %vm1757, %v5987, %v5989
        %v6126 = vsel %vm1757, %v5989, %v5991
        %v6127 = vsel %vm1757, %v5991, %v5993
        %v6128 = vsel %vm1757, %v5995, %v5997
        %v6129 = vsel %vm1757, %v5997, %v5999
        %v6130 = vsel %vm1757, %v5999, %v6001
        %v6131 = vsel %vm1757, %v6003, %v6005
        %v6132 = vsel %vm1757, %v6005, %v6007
        %v6133 = vsel %vm1757, %v6007, %v6009
        %v6134 = vsel %vm1757, %v6011, %v6013
        %v6135 = vsel %vm1757, %v6013, %v6015
        %v6136 = vsel %vm1757, %v6015, %v6017
        %v6137 = vsel %vm1757, %v6019, %v6021
        %v6138 = vsel %vm1757, %v6021, %v6023
        %v6139 = vsel %vm1757, %v6023, %v6025
        %v6140 = vsel %vm1757, %v6027, %v6029
        %v6141 = vsel %vm1757, %v6029, %v6031
        %v6142 = vsel %vm1757, %v6031, %v6033
        %v6143 = vsel %vm1757, %v6035, %v6037
        %v6144 = vsel %vm1757, %v6037, %v6039
        %v6145 = vsel %vm1757, %v6039, %v6041
        %v6146 = vsel %vm1757, %v6043, %v6045
        %v6147 = vsel %vm1757, %v6045, %v6047
        %v6148 = vsel %vm1757, %v6047, %v6049
        %v6149 = vsel %vm1757, %v6051, %v6053
        %v6150 = vsel %vm1757, %v6053, %v6055
        %v6151 = vsel %vm1757, %v6055, %v6057
        %v6152 = vsel %vm1757, %v6059, %v6061
        %v6153 = vsel %vm1757, %v6061, %v6063
        %v6154 = vsel %vm1757, %v6063, %v6065
        %v6155 = vsel %vm1757, %v6067, %v6069
        %v6156 = vsel %vm1757, %v6069, %v6071
        %v6157 = vsel %vm1757, %v6071, %v6073
        %v6158 = vsel %vm1757, %v6075, %v6077
        %v6159 = vsel %vm1757, %v6077, %v6079
        %v6160 = vsel %vm1757, %v6079, %v6081
        %v6161 = vsel %vm1757, %v6083, %v6085
        %v6162 = vsel %vm1757, %v6085, %v6087
        %v6163 = vsel %vm1757, %v6087, %v6089
        %v6164 = vsel %vm1757, %v6091, %v6093
        %v6165 = vsel %vm1757, %v6093, %v6095
        %v6166 = vsel %vm1757, %v6095, %v6097
        %v6167 = vsel %vm1757, %v6099, %v6101
        %v6168 = vsel %vm1757, %v6101, %v6103
        %v6169 = vsel %vm1757, %v6103, %v6105
        %v6170 = vsel %vm1757, %v6107, %v6109
        %v6171 = vsel %vm1757, %v6109, %v6111
        %v6172 = vsel %vm1757, %v6111, %v6113
        %v6173 = vsel %vm1757, %v6115, %v6117
        %v6174 = vsel %vm1757, %v6117, %v6119
        %v6175 = vsel %vm1757, %v6119, %v6121
        %v6231 = vsel %vm3114, %v5975, 0
        %6233 = vmatpush.bf16.msra.mxu0 %v6143
        %6234 = vmatpush.bf16.msra.mxu0 %v6140
        %6235 = vmatpush.bf16.msra.mxu0 %v6137
        %6236 = vmatpush.bf16.msra.mxu0 %v6134
        %6237 = vmatpush.bf16.msra.mxu0 %v6131
        %6238 = vmatpush.bf16.msra.mxu0 %v6128
        %6239 = vmatpush.bf16.msra.mxu0 %v6125
        %6240 = vmatpush.bf16.msra.mxu0 %v6122
        %6241 = vmatmul.bf16.gmra.mxu0 %v5973
        %v6242 = vpop.f32.mrf.mxu0
        %v6243 = vadd.f32 0.0, %v6242
        %v6244 = vpop.f32.mrf.mxu0
        %v6245 = vadd.f32 0.0, %v6244
        %6246 = vdwg.mxu0
        %6247 = vmatpush.bf16.msra.mxu0 %v6167
        %6248 = vmatpush.bf16.msra.mxu0 %v6164
        %6249 = vmatpush.bf16.msra.mxu0 %v6161
        %6250 = vmatpush.bf16.msra.mxu0 %v6158
        %6251 = vmatpush.bf16.msra.mxu0 %v6155
        %6252 = vmatpush.bf16.msra.mxu0 %v6152
        %6253 = vmatpush.bf16.msra.mxu0 %v6149
        %6254 = vmatpush.bf16.msra.mxu0 %v6146
        %6255 = vmatmul.bf16.gmra.mxu0 %v5974
        %v6256 = vpop.f32.mrf.mxu0
        %v6257 = vadd.f32 %v6243, %v6256
        %v6258 = vpop.f32.mrf.mxu0
        %v6259 = vadd.f32 %v6245, %v6258
        %6260 = vdwg.mxu0
        %6261 = vmatpush.bf16.msra.mxu0 0
        %6262 = vmatpush.bf16.msra.mxu0 0
        %6263 = vmatpush.bf16.msra.mxu0 0
        %6264 = vmatpush.bf16.msra.mxu0 0
        %6265 = vmatpush.bf16.msra.mxu0 0
        %6266 = vmatpush.bf16.msra.mxu0 0
        %6267 = vmatpush.bf16.msra.mxu0 %v6173
        %6268 = vmatpush.bf16.msra.mxu0 %v6170
        %6269 = vmatmul.bf16.gmra.mxu0 %v6231
        %v6270 = vpop.f32.mrf.mxu0
        %v6271 = vadd.f32 %v6257, %v6270
        %v6272 = vpop.f32.mrf.mxu0
        %v6273 = vadd.f32 %v6259, %v6272
        %6274 = vdwg.mxu0
        %6275 = vmatpush.bf16.msra.mxu0 %v6144
        %6276 = vmatpush.bf16.msra.mxu0 %v6141
        %6277 = vmatpush.bf16.msra.mxu0 %v6138
        %6278 = vmatpush.bf16.msra.mxu0 %v6135
        %6279 = vmatpush.bf16.msra.mxu0 %v6132
        %6280 = vmatpush.bf16.msra.mxu0 %v6129
        %6281 = vmatpush.bf16.msra.mxu0 %v6126
        %6282 = vmatpush.bf16.msra.mxu0 %v6123
        %6283 = vmatmul.bf16.gmra.mxu0 %v5973
        %v6284 = vpop.f32.mrf.mxu0
        %v6285 = vadd.f32 0.0, %v6284
        %v6286 = vpop.f32.mrf.mxu0
        %v6287 = vadd.f32 0.0, %v6286
        %6288 = vdwg.mxu0
        %6289 = vmatpush.bf16.msra.mxu0 %v6168
        %6290 = vmatpush.bf16.msra.mxu0 %v6165
        %6291 = vmatpush.bf16.msra.mxu0 %v6162
        %6292 = vmatpush.bf16.msra.mxu0 %v6159
        %6293 = vmatpush.bf16.msra.mxu0 %v6156
        %6294 = vmatpush.bf16.msra.mxu0 %v6153
        %6295 = vmatpush.bf16.msra.mxu0 %v6150
        %6296 = vmatpush.bf16.msra.mxu0 %v6147
        %6297 = vmatmul.bf16.gmra.mxu0 %v5974
        %v6298 = vpop.f32.mrf.mxu0
        %v6299 = vadd.f32 %v6285, %v6298
        %v6300 = vpop.f32.mrf.mxu0
        %v6301 = vadd.f32 %v6287, %v6300
        %6302 = vdwg.mxu0
        %6303 = vmatpush.bf16.msra.mxu0 0
        %6304 = vmatpush.bf16.msra.mxu0 0
        %6305 = vmatpush.bf16.msra.mxu0 0
        %6306 = vmatpush.bf16.msra.mxu0 0
        %6307 = vmatpush.bf16.msra.mxu0 0
        %6308 = vmatpush.bf16.msra.mxu0 0
        %6309 = vmatpush.bf16.msra.mxu0 %v6174
        %6310 = vmatpush.bf16.msra.mxu0 %v6171
        %6311 = vmatmul.bf16.gmra.mxu0 %v6231
        %v6312 = vpop.f32.mrf.mxu0
        %v6313 = vadd.f32 %v6299, %v6312
        %v6314 = vpop.f32.mrf.mxu0
        %v6315 = vadd.f32 %v6301, %v6314
        %6316 = vdwg.mxu0
        %6317 = vmatpush.bf16.msra.mxu0 %v6145
        %6318 = vmatpush.bf16.msra.mxu0 %v6142
        %6319 = vmatpush.bf16.msra.mxu0 %v6139
        %6320 = vmatpush.bf16.msra.mxu0 %v6136
        %6321 = vmatpush.bf16.msra.mxu0 %v6133
        %6322 = vmatpush.bf16.msra.mxu0 %v6130
        %6323 = vmatpush.bf16.msra.mxu0 %v6127
        %6324 = vmatpush.bf16.msra.mxu0 %v6124
        %6325 = vmatmul.bf16.gmra.mxu0 %v5973
        %v6326 = vpop.f32.mrf.mxu0
        %v6327 = vadd.f32 0.0, %v6326
        %v6328 = vpop.f32.mrf.mxu0
        %v6329 = vadd.f32 0.0, %v6328
        %6330 = vdwg.mxu0
        %6331 = vmatpush.bf16.msra.mxu0 %v6169
        %6332 = vmatpush.bf16.msra.mxu0 %v6166
        %6333 = vmatpush.bf16.msra.mxu0 %v6163
        %6334 = vmatpush.bf16.msra.mxu0 %v6160
        %6335 = vmatpush.bf16.msra.mxu0 %v6157
        %6336 = vmatpush.bf16.msra.mxu0 %v6154
        %6337 = vmatpush.bf16.msra.mxu0 %v6151
        %6338 = vmatpush.bf16.msra.mxu0 %v6148
        %6339 = vmatmul.bf16.gmra.mxu0 %v5974
        %v6340 = vpop.f32.mrf.mxu0
        %v6341 = vadd.f32 %v6327, %v6340
        %v6342 = vpop.f32.mrf.mxu0
        %v6343 = vadd.f32 %v6329, %v6342
        %6344 = vdwg.mxu0
        %6345 = vmatpush.bf16.msra.mxu0 0
        %6346 = vmatpush.bf16.msra.mxu0 0
        %6347 = vmatpush.bf16.msra.mxu0 0
        %6348 = vmatpush.bf16.msra.mxu0 0
        %6349 = vmatpush.bf16.msra.mxu0 0
        %6350 = vmatpush.bf16.msra.mxu0 0
        %6351 = vmatpush.bf16.msra.mxu0 %v6175
        %6352 = vmatpush.bf16.msra.mxu0 %v6172
        %6353 = vmatmul.bf16.gmra.mxu0 %v6231
        %v6354 = vpop.f32.mrf.mxu0
        %v6355 = vadd.f32 %v6341, %v6354
        %v6356 = vpop.f32.mrf.mxu0
        %v6357 = vadd.f32 %v6343, %v6356
        %6358 = vdwg.mxu0
        %v6359 = vld [vmem:[#allocation43] sm:$0xff]
        %v6360 = vld [vmem:[#allocation43 + $0x8] sm:$0xff]
        %6362 = vset.pattern.permute.xlu0 0
        %6363 = vperm.xlu0 %6362, %v6359
        %v6364 = vpop.permute.xlu0 %6363
        %6367 = vset.pattern.permute.xlu0 0
        %6368 = vperm.xlu0 %6367, %v6360
        %v6369 = vpop.permute.xlu0 %6368
        %v6371 = vmul.f32 %v6271, %v6364
        %v6372 = vmul.f32 %v6313, %v6364
        %v6373 = vmul.f32 %v6355, %v6364
        %v6374 = vmul.f32 %v6273, %v6369
        %v6375 = vmul.f32 %v6315, %v6369
        %v6376 = vmul.f32 %v6357, %v6369
        %6377 = vset.pattern.permute.xlu0 1
        %6378 = vperm.xlu0 %6377, %v6359
        %v6379 = vpop.permute.xlu0 %6378
        %6381 = vset.pattern.permute.xlu0 1
        %6382 = vperm.xlu0 %6381, %v6360
        %v6383 = vpop.permute.xlu0 %6382
        %v6385 = vadd.f32 %v6371, %v6379
        %v6386 = vadd.f32 %v6372, %v6379
        %v6387 = vadd.f32 %v6373, %v6379
        %v6388 = vadd.f32 %v6374, %v6383
        %v6389 = vadd.f32 %v6375, %v6383
        %v6390 = vadd.f32 %v6376, %v6383
        %v6391 = vmax.f32 %v6385, 0.0
        %v6392 = vmax.f32 %v6386, 0.0
        %v6393 = vmax.f32 %v6387, 0.0
        %v6394 = vmax.f32 %v6388, 0.0
        %v6395 = vmax.f32 %v6389, 0.0
        %v6396 = vmax.f32 %v6390, 0.0
        %v6397 = vld [vmem:[#allocation46] sm:$0x7]
        %v6399 = vperm.slane %v6397, 0
        %v6400 = vperm.slane %v6397, 1
        %v6401 = vperm.slane %v6397, 2
        %v6405 = vmul.f32 %v6391, %v6399
        %v6406 = vmul.f32 %v6392, %v6400
        %v6407 = vmul.f32 %v6393, %v6401
        %v6408 = vmul.f32 %v6394, %v6399
        %v6409 = vmul.f32 %v6395, %v6400
        %v6410 = vmul.f32 %v6396, %v6401
        %v6411 = vpack.c.bf16 %v6406, %v6405
        %v6412 = vpack.c.bf16 %v6407, %v6407
        %v6413 = vpack.c.bf16 %v6409, %v6408
        %v6414 = vpack.c.bf16 %v6410, %v6410
        %6415 = vst [vmem:[#allocation17 + $0x4] sm:$0xff] %v6411
        %6416 = vst.msk [vmem:[#allocation17 + $0xc] sm:$0xf] %vm1957, %v6412
        %6417 = vst [vmem:[#allocation17 + $0x18] sm:$0xff] %v6413
        %6418 = vst.msk [vmem:[#allocation17 + $0x20] sm:$0xf] %vm1957, %v6414
        %v6419 = vld [vmem:[#allocation17 + $0x4] sm:$0xff]
        %v6420 = vld [vmem:[#allocation17 + $0xc] sm:$0xf]
        %v6421 = vld [vmem:[#allocation17 + $0x18] sm:$0xff]
        %v6422 = vld [vmem:[#allocation17 + $0x20] sm:$0xf]
        %v6423 = vld [vmem:[%s43] sm:$0x3]
        %v6428 = vunpack.c.l.b16 %v6419
        %v6429 = vunpack.c.h.b16 %v6419
        %v6430 = vunpack.c.l.b16 %v6420
        %v6431 = vunpack.c.l.b16 %v6421
        %v6432 = vunpack.c.h.b16 %v6421
        %v6433 = vunpack.c.l.b16 %v6422
        %v6434 = vpack.c.b16 %v6431, %v6428
        %v6435 = vpack.c.b16 %v6432, %v6429
        %v6436 = vpack.c.b16 %v6433, %v6430
        %v6441 = vsel %vm1812, %v6423, 0
        %6443 = vmatpush.bf16.msra.mxu0 0
        %6444 = vmatpush.bf16.msra.mxu0 0
        %6445 = vmatpush.bf16.msra.mxu0 0
        %6446 = vmatpush.bf16.msra.mxu0 0
        %6447 = vmatpush.bf16.msra.mxu0 0
        %6448 = vmatpush.bf16.msra.mxu0 0
        %6449 = vmatpush.bf16.msra.mxu0 0
        %6450 = vmatpush.bf16.msra.mxu0 %v6434
        %6451 = vmatmul.bf16.gmra.mxu0 %v6441
        %v6452 = vpop.f32.mrf.mxu0
        %v6453 = vadd.f32 0.0, %v6452
        %v6454 = vpop.f32.mrf.mxu0
        %6455 = vdwg.mxu0
        %6456 = vmatpush.bf16.msra.mxu0 0
        %6457 = vmatpush.bf16.msra.mxu0 0
        %6458 = vmatpush.bf16.msra.mxu0 0
        %6459 = vmatpush.bf16.msra.mxu0 0
        %6460 = vmatpush.bf16.msra.mxu0 0
        %6461 = vmatpush.bf16.msra.mxu0 0
        %6462 = vmatpush.bf16.msra.mxu0 0
        %6463 = vmatpush.bf16.msra.mxu0 %v6435
        %6464 = vmatmul.bf16.gmra.mxu0 %v6441
        %v6465 = vpop.f32.mrf.mxu0
        %v6466 = vadd.f32 0.0, %v6465
        %v6467 = vpop.f32.mrf.mxu0
        %6468 = vdwg.mxu0
        %6469 = vmatpush.bf16.msra.mxu0 0
        %6470 = vmatpush.bf16.msra.mxu0 0
        %6471 = vmatpush.bf16.msra.mxu0 0
        %6472 = vmatpush.bf16.msra.mxu0 0
        %6473 = vmatpush.bf16.msra.mxu0 0
        %6474 = vmatpush.bf16.msra.mxu0 0
        %6475 = vmatpush.bf16.msra.mxu0 0
        %6476 = vmatpush.bf16.msra.mxu0 %v6436
        %6477 = vmatmul.bf16.gmra.mxu0 %v6441
        %v6478 = vpop.f32.mrf.mxu0
        %v6479 = vadd.f32 0.0, %v6478
        %v6480 = vpop.f32.mrf.mxu0
        %6481 = vdwg.mxu0
        %v6482 = vld [vmem:[#allocation44] sm:$0x7]
        %6484 = vset.pattern.permute.xlu0 0
        %6485 = vperm.xlu0 %6484, %v6482
        %v6486 = vpop.permute.xlu0 %6485
        %v6488 = vmul.f32 %v6453, %v6486
        %v6489 = vmul.f32 %v6466, %v6486
        %v6490 = vmul.f32 %v6479, %v6486
        %6491 = vset.pattern.permute.xlu0 1
        %6492 = vperm.xlu0 %6491, %v6482
        %v6493 = vpop.permute.xlu0 %6492
        %v6495 = vadd.f32 %v6488, %v6493
        %v6496 = vadd.f32 %v6489, %v6493
        %v6497 = vadd.f32 %v6490, %v6493
        %v6498 = vld [vmem:[#allocation46] sm:$0x7]
        %v6500 = vperm.slane %v6498, 0
        %v6501 = vperm.slane %v6498, 1
        %v6502 = vperm.slane %v6498, 2
        %v6506 = vmul.f32 %v6495, %v6500
        %v6507 = vmul.f32 %v6496, %v6501
        %v6508 = vmul.f32 %v6497, %v6502
        %v6511 = vrot.slane %v6507, 4
        %vm6512 = vcmask 1043456
        %v6513 = vsel %vm6512, %v6506, %v6511
        %6515 = vst [vmem:[%s1434] sm:$0x77] %v6513
        %vm6516 = vcmask 550912
        %6517 = vst.msk [vmem:[%s1434 + $0x8] sm:$0x7] %vm6516, %v6508
        %p6518 = scmp.lt.s32.totalorder %s92, 1
        %s6519 = scalar_select %p6518, %s92, 1
        %s6520 = smul.addr %s6519, 3
        %s6521 = smul.addr %s6520, 4
        %s6522 = scalar_lea.vmem %s67, %s6521
        // Predicated region
        $region257: #{unet_forward.1} parent=151 // pred_check
          %p6523 = pneg %p808
        $region258: #{unet_forward.1} parent=151 // pred_check_branch
          %6525 = sbr.rel (%p6523) target = $region260
        $region259: #{unet_forward.1} parent=151 // pred_region
          _
        $region260: #{unet_forward.1} parent=151 // pred_fallthru
          _
      $region152: #{unet_forward.1} parent=5 // pred_fallthru
        _
      %p6526 = scmp.le.s32.totalorder 2, %s87
      // Predicated region
      $region261: #{unet_forward.1} parent=5 // pred_check
        %p6527 = pneg %p6526
      $region262: #{unet_forward.1} parent=5 // pred_check_branch
        %6529 = sbr.rel (%p6527) target = $region264
      $region263: #{unet_forward.1} parent=5 // pred_region
        %s6530 = ssub.s32 %s87, 2
        // Predicated region
        $region265: #{unet_forward.1} parent=263 // pred_check
          %p6531 = pneg %p814
        $region266: #{unet_forward.1} parent=263 // pred_check_branch
          %6533 = sbr.rel (%p6531) target = $region268
        $region267: #{unet_forward.1} parent=263 // pred_region
          %p6534 = scmp.lt.s32.totalorder %s93, 1
          %s6535 = scalar_select %p6534, %s93, 1
          %s6536 = smul.addr %s6535, 3
          %s6537 = smul.addr %s6536, 4
          %s6538 = scalar_lea.vmem %s67, %s6537
        $region268: #{unet_forward.1} parent=263 // pred_fallthru
          _
      $region264: #{unet_forward.1} parent=5 // pred_fallthru
        _
    $region6: #{unet_forward.1} parent=1 // loop_footer
      %s91 = sadd.s32 1, %s87
    $region7: #{unet_forward.1} parent=1 // loop_footer_branch
      %86 = sbr.rel target = $region3
    $region8: #{unet_forward.1} parent=1 // loop_exit
      _
    %6539 = vsyncpa [#allocation19], 1
    %s6540 = scalar_lea.sflag [#allocation19], 1
    %6541 = vsyncpa %s6540, 1
    %6542 = vsyncpa [#allocation21], 1
    %6543 = vsyncpa [#allocation24], 1
    %6544 = vsyncpa [#allocation27], 1
    %6545 = vsyncpa [#allocation30], 1
    %6546 = vsyncpa [#allocation33], 1
    %6547 = vsyncpa [#allocation36], 1
    %6548 = vsyncpa [#allocation39], 1
    %6549 = vsyncpa [#allocation42], 1
    %6550 = vsyncpa [#allocation45], 1
    %6551 = vsyncpa [#allocation48], 1
    %6552 = vsyncpa [#allocation51], 1
    %6553 = vsyncpa [#allocation54], 1
    %6554 = vsyncpa [#allocation57], 1

</llo_original>
